<compile_context>
chip_gen: v5e
topology: v5e:2x2
jax: 0.10.0
libtpu: 0.0.40
codegen_flags: <defaults>
</compile_context>

<pallas_src>
import functools
import math

import jax
import jax.numpy as jnp
from jax.experimental import pallas as pl
from jax.experimental.pallas import tpu as pltpu


def _round_up(x, m):
    return (x + m - 1) // m * m


_TM_MAX = 1024   # fixed M tile for big matmuls; ~7 MiB worst case (encoder
                 # layer 7: K=1152, N=256) incl. double buffering -> fits the
                 # default scoped VMEM on v5e (16 MiB) and v6e/v7x (32 MiB).
                 # Raise to 2048 (+ vmem_limit_bytes) on v6e if desired.


def _choose_tm(M):
    # Full-dim block for small M (legal regardless of 8-alignment), 1024 tile
    # with a ragged last block otherwise.
    return M if M <= _TM_MAX else _TM_MAX


# ------------------------------------------------------------------ kernels


def _gmm_kernel(a_ref, w_ref, b_ref, o_ref, *, act):
    """One (group, m-tile) step: bf16 MXU matmul + bias (+ activation)."""
    acc = jnp.dot(a_ref[...], w_ref[...], preferred_element_type=jnp.float32)
    acc = acc + b_ref[...]                           # (1, N) broadcast
    if act == "leaky":
        acc = jnp.where(acc > 0, acc, 0.01 * acc)
    elif act == "tanh":
        acc = jnp.tanh(acc)
    o_ref[...] = acc.astype(o_ref.dtype)


def _gmm_fused_kernel(a_ref, w1_ref, b1_ref, w2_ref, b2_ref, o_ref):
    """Last decoder layer: matmul + bias + LeakyReLU, then the fused 1x1
    output conv (block-diagonal second matmul) + bias + tanh."""
    h = jnp.dot(a_ref[...], w1_ref[...], preferred_element_type=jnp.float32)
    h = h + b1_ref[...]
    h = jnp.where(h > 0, h, 0.01 * h)
    o = jnp.dot(h, w2_ref[...], preferred_element_type=jnp.float32)
    o = jnp.tanh(o + b2_ref[...])
    o_ref[...] = o.astype(o_ref.dtype)


def _ln_leaky_kernel(x_ref, g_ref, b_ref, o_ref, *, n, npad, eps):
    """Custom torch LayerNorm of networks.py: mean/std over the WHOLE sample
    (unbiased std, eps added to the std), per-channel affine, LeakyReLU(0.01).
    Sample flattened to (rows, L); when npad > 0 the tail is masked out of the
    statistics.  Single sum / sum-of-squares pass."""
    x = x_ref[...].astype(jnp.float32)               # (rows, L)
    if npad:
        rows, L = x.shape
        rid = jax.lax.broadcasted_iota(jnp.int32, (rows, L), 0)
        cid = jax.lax.broadcasted_iota(jnp.int32, (rows, L), 1)
        xm = jnp.where(rid * L + cid < n, x, 0.0)
    else:
        xm = x
    s1 = jnp.sum(xm)
    s2 = jnp.sum(xm * xm)
    mean = s1 / float(n)
    var = jnp.maximum((s2 - float(n) * mean * mean) / float(n - 1), 0.0)
    y = (x - mean) / (jnp.sqrt(var) + eps)
    y = y * g_ref[...] + b_ref[...]                  # (1, L) broadcast
    o_ref[...] = jnp.where(y > 0, y, 0.01 * y).astype(o_ref.dtype)


def _max_views_kernel(x_ref, o_ref):
    """Max fusion over the view axis: [B, K, D] -> [B, D]."""
    o_ref[...] = jnp.max(x_ref[...], axis=1)


def _fc_stack_kernel(*refs, n_layers, eps):
    """Fused projection head: n_layers x (Linear -> InstanceNorm1d -> ReLU).
    refs = (x, w0, b0, ..., w_{n-1}, b_{n-1}, out).  bf16 matmuls, f32 stats;
    everything stays in VMEM."""
    x_ref, o_ref = refs[0], refs[-1]
    h = x_ref[...]                                   # (R, Din) bf16
    z = None
    for i in range(n_layers):
        w = refs[1 + 2 * i][...]                     # bf16
        b = refs[2 + 2 * i][...]                     # f32 (1, Dh)
        z = jnp.dot(h, w, preferred_element_type=jnp.float32) + b
        mean = jnp.mean(z, axis=-1, keepdims=True)
        var = jnp.mean((z - mean) ** 2, axis=-1, keepdims=True)
        z = jnp.maximum((z - mean) * jax.lax.rsqrt(var + eps), 0.0)
        h = z.astype(jnp.bfloat16)
    o_ref[...] = z


# ------------------------------------------------------------ call builders


@functools.lru_cache(maxsize=None)
def _build_gmm(G, M, K, N, TM, act, out_dtype):
    # g outermost + "parallel" (v7x megacore splits the 24-group axis; each
    # group's weights stay resident on one core); m "arbitrary" (weight block
    # index depends only on g -> no per-m weight re-DMA).
    return pl.pallas_call(
        functools.partial(_gmm_kernel, act=act),
        out_shape=jax.ShapeDtypeStruct((G, M, N), out_dtype),
        grid=(G, pl.cdiv(M, TM)),
        in_specs=[
            pl.BlockSpec((None, TM, K), lambda g, m: (g, m, 0)),   # A tile
            pl.BlockSpec((None, K, N), lambda g, m: (g, 0, 0)),    # weights
            pl.BlockSpec((None, 1, N), lambda g, m: (g, 0, 0)),    # bias
        ],
        out_specs=pl.BlockSpec((None, TM, N), lambda g, m: (g, m, 0)),
        compiler_params=pltpu.CompilerParams(
            dimension_semantics=("parallel", "arbitrary")),
    )


@functools.lru_cache(maxsize=None)
def _build_gmm_fused(G, M, K, N1, N2, TM):
    return pl.pallas_call(
        _gmm_fused_kernel,
        out_shape=jax.ShapeDtypeStruct((G, M, N2), jnp.float32),
        grid=(G, pl.cdiv(M, TM)),
        in_specs=[
            pl.BlockSpec((None, TM, K), lambda g, m: (g, m, 0)),
            pl.BlockSpec((None, K, N1), lambda g, m: (g, 0, 0)),
            pl.BlockSpec((None, 1, N1), lambda g, m: (g, 0, 0)),
            pl.BlockSpec((None, N1, N2), lambda g, m: (g, 0, 0)),
            pl.BlockSpec((None, 1, N2), lambda g, m: (g, 0, 0)),
        ],
        out_specs=pl.BlockSpec((None, TM, N2), lambda g, m: (g, m, 0)),
        compiler_params=pltpu.CompilerParams(
            dimension_semantics=("parallel", "arbitrary")),
    )


@functools.lru_cache(maxsize=None)
def _build_ln(G, S, rows, L, n, npad, eps, dtype):
    return pl.pallas_call(
        functools.partial(_ln_leaky_kernel, n=n, npad=npad, eps=eps),
        out_shape=jax.ShapeDtypeStruct((G, S, rows, L), dtype),
        grid=(G, S),
        in_specs=[
            pl.BlockSpec((None, None, rows, L), lambda g, s: (g, s, 0, 0)),
            pl.BlockSpec((None, 1, L), lambda g, s: (g, 0, 0)),
            pl.BlockSpec((None, 1, L), lambda g, s: (g, 0, 0)),
        ],
        out_specs=pl.BlockSpec((None, None, rows, L),
                               lambda g, s: (g, s, 0, 0)),
        compiler_params=pltpu.CompilerParams(
            dimension_semantics=("parallel", "arbitrary")),
    )


@functools.lru_cache(maxsize=None)
def _build_max_views(B, K, D, dtype):
    return pl.pallas_call(
        _max_views_kernel,
        out_shape=jax.ShapeDtypeStruct((B, D), dtype),
        grid=(1,),
        in_specs=[pl.BlockSpec((B, K, D), lambda i: (0, 0, 0))],
        out_specs=pl.BlockSpec((B, D), lambda i: (0, 0)),
    )


@functools.lru_cache(maxsize=None)
def _build_fc(R, Din, Dh, n_layers, eps):
    in_specs = [pl.BlockSpec((R, Din), lambda i: (0, 0))]
    for li in range(n_layers):
        kin = Din if li == 0 else Dh
        in_specs.append(pl.BlockSpec((kin, Dh), lambda i: (0, 0)))
        in_specs.append(pl.BlockSpec((1, Dh), lambda i: (0, 0)))
    return pl.pallas_call(
        functools.partial(_fc_stack_kernel, n_layers=n_layers, eps=eps),
        out_shape=jax.ShapeDtypeStruct((R, Dh), jnp.float32),
        grid=(1,),
        in_specs=in_specs,
        out_specs=pl.BlockSpec((R, Dh), lambda i: (0, 0)),
    )


# --------------------------------------------------------------------- ops


def grouped_matmul(a, w, b, act=None, out_dtype=jnp.float32):
    """a: [G, M, K], w: [G, K, N], b: [G, N] -> [G, M, N].  bf16 MXU, f32 acc.
    No M padding: ragged edge blocks are handled by the pipeline (edge rows
    never feed a reduction)."""
    G, M, K = a.shape
    N = w.shape[-1]
    TM = _choose_tm(M)
    a = a.astype(jnp.bfloat16)
    w = w.astype(jnp.bfloat16)
    b3 = b.reshape(G, 1, N).astype(jnp.float32)
    odt = jnp.bfloat16 if out_dtype == jnp.bfloat16 else jnp.float32
    return _build_gmm(G, M, K, N, TM, act, odt)(a, w, b3)


def grouped_matmul_fused(a, w1, b1, w2, b2):
    """matmul + bias + LeakyReLU + second matmul + bias + tanh, per group."""
    G, M, K = a.shape
    N1 = w1.shape[-1]
    N2 = w2.shape[-1]
    TM = _choose_tm(M)
    a = a.astype(jnp.bfloat16)
    w1 = w1.astype(jnp.bfloat16)
    b1 = b1.reshape(G, 1, N1).astype(jnp.float32)
    w2 = w2.astype(jnp.float32)
    b2 = b2.reshape(G, 1, N2).astype(jnp.float32)
    return _build_gmm_fused(G, M, K, N1, N2, TM)(a, w1, b1, w2, b2)


def layernorm_leaky(x, gamma, beta, eps=1e-5):
    """x: [G, S, H, W, C]; per-sample LayerNorm over (H,W,C), per-channel
    affine, LeakyReLU.  Sample flattened to lane-dense (rows, L)."""
    G, S, H, W, C = x.shape
    n = H * W * C
    reps = max(1, 512 // C)
    L = C * reps                               # lane-dense, L % C == 0
    rows = -(-n // L)
    pad = rows * L - n
    xf = x.reshape(G, S, n)
    if pad:
        xf = jnp.pad(xf, ((0, 0), (0, 0), (0, pad)))
    x4 = xf.reshape(G, S, rows, L)
    gt = jnp.tile(gamma, (1, reps)).reshape(G, 1, L).astype(jnp.float32)
    bt = jnp.tile(beta, (1, reps)).reshape(G, 1, L).astype(jnp.float32)
    y = _build_ln(G, S, rows, L, n, pad, eps, x4.dtype)(x4, gt, bt)
    return y.reshape(G, S, rows * L)[:, :, :n].reshape(G, S, H, W, C)


def maxpool3x3s2(x, pad):
    """3x3 max pool, stride 2; the 9 strided windows are folded with
    jnp.maximum (no [G, 9, ...] stack materialized)."""
    G, S, H, W, C = x.shape
    if pad:
        x = jnp.pad(x, ((0, 0), (0, 0), (pad, pad), (pad, pad), (0, 0)),
                    constant_values=-jnp.inf)
    Hp, Wp = H + 2 * pad, W + 2 * pad
    Ho, Wo = (Hp - 3) // 2 + 1, (Wp - 3) // 2 + 1
    out = None
    for dy in range(3):
        for dx in range(3):
            win = x[:, :, dy:dy + 2 * (Ho - 1) + 1:2,
                    dx:dx + 2 * (Wo - 1) + 1:2, :]
            out = win if out is None else jnp.maximum(out, win)
    return out


def max_over_views(x):
    """x: [B, K, D] -> max over the K views -> [B, D]  (the 'max fusion')."""
    B, K, D = x.shape
    return _build_max_views(B, K, D, x.dtype)(x)


def fc_stack(x, ws, bs, eps=1e-5):
    """Fused n x (Linear -> InstanceNorm1d -> ReLU) head.  x: [R0, Din]."""
    R0, Din = x.shape
    Dh = ws[0].shape[-1]
    R = max(8, _round_up(R0, 8))
    if R != R0:
        x = jnp.pad(x, ((0, R - R0), (0, 0)))
    args = [x.astype(jnp.bfloat16)]
    for w, b in zip(ws, bs):
        args.append(w.astype(jnp.bfloat16))
        args.append(b.reshape(1, -1).astype(jnp.float32))
    out = _build_fc(R, Din, Dh, len(ws), eps)(*args)
    return out[:R0]


def _im2col(x, kh, kw, pt, pb, pleft, pright):
    """x: [G, S, H, W, C] -> ([G, S*Ho*Wo, kh*kw*C], Ho, Wo); column order is
    (dy, dx, c), matching the [k*k*Cin, Cout] weight row layout."""
    G, S, H, W, C = x.shape
    if pt or pb or pleft or pright:
        x = jnp.pad(x, ((0, 0), (0, 0), (pt, pb), (pleft, pright), (0, 0)))
    Hp, Wp = H + pt + pb, W + pleft + pright
    Ho, Wo = Hp - kh + 1, Wp - kw + 1
    cols = [x[:, :, dy:dy + Ho, dx:dx + Wo, :].reshape(G, S * Ho * Wo, C)
            for dy in range(kh) for dx in range(kw)]
    return jnp.concatenate(cols, axis=-1), Ho, Wo


def encoder_block(h, w, b, gamma, beta, pool_pad):
    """Conv3x3(pad=1) -> custom LayerNorm -> LeakyReLU -> MaxPool3x3/s2."""
    G, S, H, W, _ = h.shape
    cout = w.shape[-1]
    a, _, _ = _im2col(h, 3, 3, 1, 1, 1, 1)
    y = grouped_matmul(a, w, b, act=None, out_dtype=jnp.bfloat16)
    y = y.reshape(G, S, H, W, cout)
    y = layernorm_leaky(y, gamma, beta)
    return maxpool3x3s2(y, pool_pad)


# --------------------------- transposed convolutions -----------------------

# k=4 / stride 2 / pad 1 sub-pixel decomposition: shared 3-tap window over the
# 1-padded input; phase a uses window positions {win: dy} below (dy indexes
# the flipped / forward-conv kernel), other positions are zero.
_PHASE_TAPS = {0: ((0, 0), (1, 2)), 1: ((1, 1), (2, 3))}


def _subpixel_weight(w_mat, cin, cout):
    """w_mat: [G, 16*Cin, Cout] equivalent forward-conv (flipped) kernel, row
    index = (dy*4 + dx)*Cin + ci  ->  shared-3x3-window weights
    [G, 9*Cin, 4*Cout] with the 4 output phases concatenated (phase-major)
    along N.  To load real PyTorch ConvTranspose2d weights Wt[Cin,Cout,kh,kw]:
        w_mat[g, (dy*4+dx)*Cin + ci, co] = Wt[ci, co, 3-dy, 3-dx]."""
    G = w_mat.shape[0]
    w4 = w_mat.reshape(G, 4, 4, cin, cout)
    out = jnp.zeros((G, 3, 3, cin, 2, 2, cout), w_mat.dtype)
    for ay in (0, 1):
        for jy, dy in _PHASE_TAPS[ay]:
            for ax in (0, 1):
                for jx, dx in _PHASE_TAPS[ax]:
                    out = out.at[:, jy, jx, :, ay, ax, :].set(w4[:, dy, dx])
    return out.reshape(G, 9 * cin, 4 * cout)


def deconv_subpixel(x, w_mat, b, cout, fuse_out=None):
    """ConvTranspose2d(k=4, stride=2, pad=1) + LeakyReLU as ONE grouped matmul
    (sub-pixel conv, N = 4*Cout) followed by one pixel-shuffle transpose.
    If fuse_out = (out_w [G,Cout,Co], out_b [G,Co]) is given, the trailing 1x1
    conv + tanh is fused into the same kernel (block-diagonal 2nd matmul)."""
    G, S, H, W, cin = x.shape
    w_sp = _subpixel_weight(w_mat, cin, cout)            # [G, 9*Cin, 4*Cout]
    b_sp = jnp.tile(b, (1, 4))                           # [G, 4*Cout]
    a, _, _ = _im2col(x, 3, 3, 1, 1, 1, 1)               # Ho=H, Wo=W
    if fuse_out is None:
        y = grouped_matmul(a, w_sp, b_sp, act="leaky", out_dtype=jnp.bfloat16)
        c2 = cout
    else:
        ow, ob = fuse_out
        c2 = ow.shape[-1]
        w2 = jnp.zeros((G, 4 * cout, 4 * c2), jnp.float32)
        for ph in range(4):
            w2 = w2.at[:, ph * cout:(ph + 1) * cout,
                       ph * c2:(ph + 1) * c2].set(ow.astype(jnp.float32))
        b2 = jnp.tile(ob, (1, 4))
        y = grouped_matmul_fused(a, w_sp, b_sp, w2, b2)  # f32 out
    y = y.reshape(G, S, H, W, 2, 2, c2)
    y = jnp.transpose(y, (0, 1, 2, 4, 3, 5, 6)).reshape(G, S, 2 * H, 2 * W, c2)
    return y


def _phase_spec(k, p, a, n_in):
    """Stride-2 phase decomposition of a ConvTranspose2d along one axis
    (generic path, used for the k=3/pad=0 layers which have uneven phases)."""
    q = k - 1 - p
    n_out = (n_in - 1) * 2 - 2 * p + k
    taps = [dy for dy in range(k) if (a + dy - q) % 2 == 0]
    offs = [(a + dy - q) // 2 for dy in taps]
    out_len = (n_out - a + 1) // 2
    assert offs[0] <= 0, "unsupported ConvTranspose geometry"
    pad_lo = -offs[0]
    pad_hi = max(0, (out_len - 1 + offs[-1]) - (n_in - 1))
    return pad_lo, pad_hi, taps, out_len


def deconv_layer(x, w_mat, b, k, stride, pad):
    """Generic ConvTranspose2d(k, stride=2, pad) + LeakyReLU via per-phase
    stride-1 sub-convolutions (only used for the small k=3 / pad=0 layers)."""
    assert stride == 2
    G, S, H, W, Cin = x.shape
    Cout = w_mat.shape[-1]
    Ho = (H - 1) * 2 - 2 * pad + k
    Wo = (W - 1) * 2 - 2 * pad + k
    y = jnp.zeros((G, S, Ho, Wo, Cout), jnp.bfloat16)
    for ay in range(2):
        pt, pb, taps_y, oly = _phase_spec(k, pad, ay, H)
        for ax in range(2):
            pleft, pright, taps_x, olx = _phase_spec(k, pad, ax, W)
            rows = [w_mat[:, (dy * k + dx) * Cin:(dy * k + dx + 1) * Cin, :]
                    for dy in taps_y for dx in taps_x]
            w_sub = jnp.concatenate(rows, axis=1)
            a, hp, wp = _im2col(x, len(taps_y), len(taps_x),
                                pt, pb, pleft, pright)
            ph = grouped_matmul(a, w_sub, b, act="leaky",
                                out_dtype=jnp.bfloat16)
            ph = ph.reshape(G, S, hp, wp, Cout)[:, :, :oly, :olx, :]
            y = y.at[:, :, ay::2, ax::2, :].set(ph)
    return y


# ------------------------------------------------------------------ configs


def full_config():
    """Exact max_fusion_no_loss: 4x6=24 parts of 200x200, 7 encoder blocks,
    fc 6144->256 (x5), 7 transposed-conv decoder layers, 1x1 conv + tanh."""
    return dict(
        rows=4, cols=6, part=200, in_ch=3,
        enc=[(3, 16, 1), (16, 32, 1), (32, 32, 1), (32, 64, 0),
             (64, 64, 1), (64, 128, 1), (128, 256, 0)],
        fc_dim=256, n_fc=5,
        dec=[(512, 256, 3, 2, 0), (256, 128, 4, 2, 1), (128, 64, 4, 2, 1),
             (64, 32, 3, 2, 0), (32, 16, 4, 2, 1), (16, 16, 4, 2, 1),
             (16, 16, 4, 2, 1)],
        out_ch=3)


def test_config():
    """Scaled-down instance of the same architecture for the smoke test:
    24 parts of 12x12, 3 encoder blocks (pools 12->6->3->1), fc 384->32 (x5),
    3 decoder layers (1->3->6->12, exercising both the k=3 phase path and the
    k=4 sub-pixel path incl. the fused output conv), 1x1 conv + tanh."""
    return dict(
        rows=4, cols=6, part=12, in_ch=3,
        enc=[(3, 8, 1), (8, 16, 1), (16, 16, 0)],
        fc_dim=32, n_fc=5,
        dec=[(48, 16, 3, 2, 0), (16, 8, 4, 2, 1), (8, 8, 4, 2, 1)],
        out_ch=3)


def init_params(cfg, key):
    G = cfg['rows'] * cfg['cols']
    p = {'enc_w': [], 'enc_b': [], 'enc_gamma': [], 'enc_beta': [],
         'fc_w': [], 'fc_b': [], 'dec_w': [], 'dec_b': []}

    def nxt():
        nonlocal key
        key, sub = jax.random.split(key)
        return sub

    for cin, cout, _ in cfg['enc']:
        fan = 9 * cin
        p['enc_w'].append(jax.random.normal(nxt(), (G, fan, cout), jnp.float32)
                          / math.sqrt(fan))
        p['enc_b'].append(jnp.zeros((G, cout), jnp.float32))
        p['enc_gamma'].append(jax.random.uniform(nxt(), (G, cout), jnp.float32))
        p['enc_beta'].append(jnp.zeros((G, cout), jnp.float32))

    ctop = cfg['enc'][-1][1]
    din = G * ctop
    for _ in range(cfg['n_fc']):
        p['fc_w'].append(jax.random.normal(nxt(), (din, cfg['fc_dim']),
                                           jnp.float32) / math.sqrt(din))
        p['fc_b'].append(jnp.zeros((cfg['fc_dim'],), jnp.float32))
        din = cfg['fc_dim']

    for cin, cout, k, _, _ in cfg['dec']:
        fan = k * k * cin
        p['dec_w'].append(jax.random.normal(nxt(), (G, fan, cout), jnp.float32)
                          / math.sqrt(fan))
        p['dec_b'].append(jnp.zeros((G, cout), jnp.float32))

    clast = cfg['dec'][-1][1]
    p['out_w'] = jax.random.normal(nxt(), (G, clast, cfg['out_ch']),
                                   jnp.float32) / math.sqrt(clast)
    p['out_b'] = jnp.zeros((G, cfg['out_ch']), jnp.float32)
    return p


# ------------------------------------------------------------------ forward


def max_fusion_forward(params, x, cfg):
    """x: [B, K_views, 3, rows*P, cols*P] (NCHW per view).  Returns a list of
    rows*cols inpainted part textures, each [B, 3, P, P]."""
    rows, cols, P = cfg['rows'], cfg['cols'], cfg['part']
    G = rows * cols
    B, K = x.shape[0], x.shape[1]
    S = B * K

    # crop the rows x cols body parts and move to grouped NHWC (bf16 storage)
    xp = x.reshape(B, K, cfg['in_ch'], rows, P, cols, P)
    xp = jnp.transpose(xp, (3, 5, 0, 1, 4, 6, 2))   # [rows, cols, B, K, P, P, C]
    h = xp.reshape(G, S, P, P, cfg['in_ch']).astype(jnp.bfloat16)

    # -------- per-part encoders (grouped over the G axis) --------
    for l, (_, _, pool_pad) in enumerate(cfg['enc']):
        h = encoder_block(h, params['enc_w'][l], params['enc_b'][l],
                          params['enc_gamma'][l], params['enc_beta'][l],
                          pool_pad)
    assert h.shape[2] == 1 and h.shape[3] == 1, "encoder must reduce to 1x1"
    ctop = cfg['enc'][-1][1]

    # per-view global code, part-major feature order (= torch.cat(dim=2))
    codes = h.reshape(G, B, K, ctop).astype(jnp.float32)
    bat_global_code = jnp.transpose(codes, (1, 2, 0, 3)).reshape(B, K, G * ctop)

    # -------- fused projection head (5 x Linear + InstanceNorm1d + ReLU) ----
    proj = fc_stack(bat_global_code.reshape(B * K, G * ctop),
                    params['fc_w'], params['fc_b'])
    bat_project_code = proj.reshape(B, K, cfg['fc_dim'])

    # -------- max fusion over the K views --------
    fus_global = max_over_views(bat_global_code)            # [B, G*ctop]
    fus_project = max_over_views(bat_project_code)          # [B, fc_dim]
    fus_part = fus_global.reshape(B, G, ctop)

    # -------- per-part decoders --------
    code = jnp.concatenate(
        [jnp.broadcast_to(fus_project[None], (G, B, cfg['fc_dim'])),
         jnp.transpose(fus_part, (1, 0, 2))], axis=-1)      # [G, B, fc_dim+ctop]
    d = code.reshape(G, B, 1, 1, cfg['fc_dim'] + ctop).astype(jnp.bfloat16)

    n_dec = len(cfg['dec'])
    last_k, last_pad = cfg['dec'][-1][2], cfg['dec'][-1][4]
    fuse_final = (last_k == 4 and last_pad == 1)
    for l, (_, cout, k, stride, pad) in enumerate(cfg['dec']):
        fuse = fuse_final and (l == n_dec - 1)
        if k == 4 and pad == 1 and stride == 2:
            d = deconv_subpixel(
                d, params['dec_w'][l], params['dec_b'][l], cout,
                fuse_out=((params['out_w'], params['out_b']) if fuse else None))
        else:
            d = deconv_layer(d, params['dec_w'][l], params['dec_b'][l],
                             k, stride, pad)

    if fuse_final:
        out = d.astype(jnp.float32)                          # [G,B,H,W,out_ch]
    else:
        Hd, Wd = d.shape[2], d.shape[3]
        a = d.reshape(G, B * Hd * Wd, cfg['dec'][-1][1])     # 1x1 conv + tanh
        out = grouped_matmul(a, params['out_w'], params['out_b'],
                             act="tanh", out_dtype=jnp.float32)
        out = out.reshape(G, B, Hd, Wd, cfg['out_ch'])
    out = jnp.transpose(out, (0, 1, 4, 2, 3))                # [G, B, C, H, W]
    return [out[g] for g in range(G)]


if __name__ == "__main__":
    cfg = test_config()
    key = jax.random.PRNGKey(0)
    pkey, xkey = jax.random.split(key)
    params = init_params(cfg, pkey)

    B, K_views = 1, 2
    H_in = cfg['rows'] * cfg['part']
    W_in = cfg['cols'] * cfg['part']
    bat_input_texture = jax.random.normal(
        xkey, (B, K_views, cfg['in_ch'], H_in, W_in), dtype=jnp.float32)

    fwd = jax.jit(lambda p, xx: max_fusion_forward(p, xx, cfg))
    outs = fwd(params, bat_input_texture)
    outs = jax.block_until_ready(outs)

    assert len(outs) == cfg['rows'] * cfg['cols']
    assert outs[0].shape == (B, cfg['out_ch'], cfg['part'], cfg['part'])
    assert all(bool(jnp.all(jnp.isfinite(o))) for o in outs)
    print("KERNEL_OK")
</pallas_src>

<mosaic_0001>
module attributes {stable_mosaic.version = 11 : i64} {
  func.func @_gmm_kernel(%arg0: i32, %arg1: i32, %arg2: memref<1x288x27xbf16, #tpu.memory_space<vmem>>, %arg3: memref<1x27x8xbf16, #tpu.memory_space<vmem>>, %arg4: memref<1x1x8xf32, #tpu.memory_space<vmem>>, %arg5: memref<1x288x8xbf16, #tpu.memory_space<vmem>>) attributes {dimension_semantics = [#tpu.dimension_semantics<parallel>, #tpu.dimension_semantics<arbitrary>], iteration_bounds = array<i64: 24, 1>, scalar_prefetch = 0 : i64, scratch_operands = 0 : i64, tpu.core_type = #tpu.core_type<tc>, window_params = [{transform_indices = @transform_0, window_bounds = array<i64: 1, 288, 27>}, {transform_indices = @transform_1, window_bounds = array<i64: 1, 27, 8>}, {transform_indices = @transform_2, window_bounds = array<i64: 1, 1, 8>}, {transform_indices = @transform_3, window_bounds = array<i64: 1, 288, 8>}]} {
    %c0 = arith.constant 0 : index
    %c0_0 = arith.constant 0 : index
    %c0_1 = arith.constant 0 : index
    %0 = vector.load %arg2[%c0, %c0_0, %c0_1] : memref<1x288x27xbf16, #tpu.memory_space<vmem>>, vector<1x288x27xbf16>
    %1 = vector.shape_cast %0 : vector<1x288x27xbf16> to vector<288x27xbf16>
    %c0_2 = arith.constant 0 : index
    %c0_3 = arith.constant 0 : index
    %c0_4 = arith.constant 0 : index
    %2 = vector.load %arg3[%c0_2, %c0_3, %c0_4] : memref<1x27x8xbf16, #tpu.memory_space<vmem>>, vector<1x27x8xbf16>
    %3 = vector.shape_cast %2 : vector<1x27x8xbf16> to vector<27x8xbf16>
    %cst = arith.constant dense<0.000000e+00> : vector<288x8xf32>
    %4 = tpu.matmul %1, %3, %cst {dimension_numbers = #tpu.dot_dimension_numbers<[1], [0], [0], [1], [0, 0, 1, 1], [], []>} : vector<288x27xbf16>, vector<27x8xbf16>, vector<288x8xf32> -> vector<288x8xf32>
    %c0_5 = arith.constant 0 : index
    %c0_6 = arith.constant 0 : index
    %c0_7 = arith.constant 0 : index
    %5 = vector.load %arg4[%c0_5, %c0_6, %c0_7] : memref<1x1x8xf32, #tpu.memory_space<vmem>>, vector<1x1x8xf32>
    %6 = vector.shape_cast %5 : vector<1x1x8xf32> to vector<1x8xf32>
    %7 = vector.broadcast %6 : vector<1x8xf32> to vector<288x8xf32>
    %8 = arith.addf %4, %7 : vector<288x8xf32>
    %9 = arith.truncf %8 : vector<288x8xf32> to vector<288x8xbf16>
    %c0_8 = arith.constant 0 : index
    %c0_9 = arith.constant 0 : index
    %c0_10 = arith.constant 0 : index
    %10 = vector.load %arg5[%c0_8, %c0_9, %c0_10] : memref<1x288x8xbf16, #tpu.memory_space<vmem>>, vector<1x288x8xbf16>
    %11 = vector.shape_cast %10 : vector<1x288x8xbf16> to vector<288x8xbf16>
    %12 = vector.shape_cast %9 : vector<288x8xbf16> to vector<1x288x8xbf16>
    tpu.vector_store %arg5[%c0_8, %c0_9, %c0_10], %12 {strides = array<i32>} : memref<1x288x8xbf16, #tpu.memory_space<vmem>>, vector<1x288x8xbf16>,
    return
  }
  func.func @transform_0(%arg0: i32, %arg1: i32) -> (i32, i32, i32) {
    %c0_i32 = arith.constant 0 : i32
    %c0_i32_0 = arith.constant 0 : i32
    return %arg0, %arg1, %c0_i32 : i32, i32, i32
  }
  func.func @transform_1(%arg0: i32, %arg1: i32) -> (i32, i32, i32) {
    %c0_i32 = arith.constant 0 : i32
    %c0_i32_0 = arith.constant 0 : i32
    %c0_i32_1 = arith.constant 0 : i32
    return %arg0, %c0_i32, %c0_i32_0 : i32, i32, i32
  }
  func.func @transform_2(%arg0: i32, %arg1: i32) -> (i32, i32, i32) {
    %c0_i32 = arith.constant 0 : i32
    %c0_i32_0 = arith.constant 0 : i32
    %c0_i32_1 = arith.constant 0 : i32
    return %arg0, %c0_i32, %c0_i32_0 : i32, i32, i32
  }
  func.func @transform_3(%arg0: i32, %arg1: i32) -> (i32, i32, i32) {
    %c0_i32 = arith.constant 0 : i32
    %c0_i32_0 = arith.constant 0 : i32
    return %arg0, %arg1, %c0_i32 : i32, i32, i32
  }
}

module attributes {stable_mosaic.version = 11 : i64} {
  func.func @_ln_leaky_kernel(%arg0: i32, %arg1: i32, %arg2: memref<1x1x3x512xbf16, #tpu.memory_space<vmem>>, %arg3: memref<1x1x512xf32, #tpu.memory_space<vmem>>, %arg4: memref<1x1x512xf32, #tpu.memory_space<vmem>>, %arg5: memref<1x1x3x512xbf16, #tpu.memory_space<vmem>>) attributes {dimension_semantics = [#tpu.dimension_semantics<parallel>, #tpu.dimension_semantics<arbitrary>], iteration_bounds = array<i64: 24, 2>, scalar_prefetch = 0 : i64, scratch_operands = 0 : i64, tpu.core_type = #tpu.core_type<tc>, window_params = [{transform_indices = @transform_0, window_bounds = array<i64: 1, 1, 3, 512>}, {transform_indices = @transform_1, window_bounds = array<i64: 1, 1, 512>}, {transform_indices = @transform_2, window_bounds = array<i64: 1, 1, 512>}, {transform_indices = @transform_3, window_bounds = array<i64: 1, 1, 3, 512>}]} {
    %c0 = arith.constant 0 : index
    %c0_0 = arith.constant 0 : index
    %c0_1 = arith.constant 0 : index
    %c0_2 = arith.constant 0 : index
    %0 = vector.load %arg2[%c0, %c0_0, %c0_1, %c0_2] : memref<1x1x3x512xbf16, #tpu.memory_space<vmem>>, vector<1x1x3x512xbf16>
    %1 = vector.shape_cast %0 : vector<1x1x3x512xbf16> to vector<3x512xbf16>
    %2 = arith.extf %1 : vector<3x512xbf16> to vector<3x512xf32>
    %3 = tpu.iota {dimensions = array<i32: 0>} : vector<3x512xi32>
    %4 = tpu.iota {dimensions = array<i32: 1>} : vector<3x512xi32>
    %c512_i32 = arith.constant 512 : i32
    %5 = vector.broadcast %c512_i32 : i32 to vector<3x512xi32>
    %6 = arith.muli %3, %5 : vector<3x512xi32>
    %7 = arith.addi %6, %4 : vector<3x512xi32>
    %c1152_i32 = arith.constant 1152 : i32
    %8 = vector.broadcast %c1152_i32 : i32 to vector<3x512xi32>
    %9 = arith.cmpi slt, %7, %8 : vector<3x512xi32>
    %cst = arith.constant 0.000000e+00 : f32
    %10 = vector.broadcast %cst : f32 to vector<3x512xf32>
    %11 = arith.select %9, %2, %10 : vector<3x512xi1>, vector<3x512xf32>
    %12 = vector.shape_cast %11 : vector<3x512xf32> to vector<1x3x512xf32>
    %cst_3 = arith.constant dense<0.000000e+00> : vector<1xf32>
    %13 = vector.multi_reduction <add>, %12, %cst_3 [1, 2] : vector<1x3x512xf32> to vector<1xf32>
    %14 = vector.shape_cast %13 : vector<1xf32> to vector<1x1x1xf32>
    %15 = vector.extract %14[0, 0, 0] : f32 from vector<1x1x1xf32>
    %16 = arith.mulf %11, %11 : vector<3x512xf32>
    %17 = vector.shape_cast %16 : vector<3x512xf32> to vector<1x3x512xf32>
    %cst_4 = arith.constant dense<0.000000e+00> : vector<1xf32>
    %18 = vector.multi_reduction <add>, %17, %cst_4 [1, 2] : vector<1x3x512xf32> to vector<1xf32>
    %19 = vector.shape_cast %18 : vector<1xf32> to vector<1x1x1xf32>
    %20 = vector.extract %19[0, 0, 0] : f32 from vector<1x1x1xf32>
    %cst_5 = arith.constant 1.152000e+03 : f32
    %21 = arith.divf %15, %cst_5 : f32
    %cst_6 = arith.constant 1.152000e+03 : f32
    %22 = arith.mulf %cst_6, %21 : f32
    %23 = arith.mulf %22, %21 : f32
    %24 = arith.subf %20, %23 : f32
    %cst_7 = arith.constant 1.151000e+03 : f32
    %25 = arith.divf %24, %cst_7 : f32
    %cst_8 = arith.constant 0.000000e+00 : f32
    %26 = arith.maximumf %25, %cst_8 : f32
    %27 = vector.broadcast %21 : f32 to vector<3x512xf32>
    %28 = arith.subf %2, %27 : vector<3x512xf32>
    %29 = math.sqrt %26 : f32
    %cst_9 = arith.constant 9.99999974E-6 : f32
    %30 = arith.addf %29, %cst_9 : f32
    %31 = vector.broadcast %30 : f32 to vector<3x512xf32>
    %32 = arith.divf %28, %31 : vector<3x512xf32>
    %c0_10 = arith.constant 0 : index
    %c0_11 = arith.constant 0 : index
    %c0_12 = arith.constant 0 : index
    %33 = vector.load %arg3[%c0_10, %c0_11, %c0_12] : memref<1x1x512xf32, #tpu.memory_space<vmem>>, vector<1x1x512xf32>
    %34 = vector.shape_cast %33 : vector<1x1x512xf32> to vector<1x512xf32>
    %35 = vector.broadcast %34 : vector<1x512xf32> to vector<3x512xf32>
    %36 = arith.mulf %32, %35 : vector<3x512xf32>
    %c0_13 = arith.constant 0 : index
    %c0_14 = arith.constant 0 : index
    %c0_15 = arith.constant 0 : index
    %37 = vector.load %arg4[%c0_13, %c0_14, %c0_15] : memref<1x1x512xf32, #tpu.memory_space<vmem>>, vector<1x1x512xf32>
    %38 = vector.shape_cast %37 : vector<1x1x512xf32> to vector<1x512xf32>
    %39 = vector.broadcast %38 : vector<1x512xf32> to vector<3x512xf32>
    %40 = arith.addf %36, %39 : vector<3x512xf32>
    %cst_16 = arith.constant 0.000000e+00 : f32
    %41 = vector.broadcast %cst_16 : f32 to vector<3x512xf32>
    %42 = arith.cmpf ogt, %40, %41 : vector<3x512xf32>
    %cst_17 = arith.constant 0.00999999977 : f32
    %43 = vector.broadcast %cst_17 : f32 to vector<3x512xf32>
    %44 = arith.mulf %43, %40 : vector<3x512xf32>
    %45 = arith.select %42, %40, %44 : vector<3x512xi1>, vector<3x512xf32>
    %46 = arith.truncf %45 : vector<3x512xf32> to vector<3x512xbf16>
    %c0_18 = arith.constant 0 : index
    %c0_19 = arith.constant 0 : index
    %c0_20 = arith.constant 0 : index
    %c0_21 = arith.constant 0 : index
    %47 = vector.load %arg5[%c0_18, %c0_19, %c0_20, %c0_21] : memref<1x1x3x512xbf16, #tpu.memory_space<vmem>>, vector<1x1x3x512xbf16>
    %48 = vector.shape_cast %47 : vector<1x1x3x512xbf16> to vector<3x512xbf16>
    %49 = vector.shape_cast %46 : vector<3x512xbf16> to vector<1x1x3x512xbf16>
    tpu.vector_store %arg5[%c0_18, %c0_19, %c0_20, %c0_21], %49 {strides = array<i32>} : memref<1x1x3x512xbf16, #tpu.memory_space<vmem>>, vector<1x1x3x512xbf16>,
    return
  }
  func.func @transform_0(%arg0: i32, %arg1: i32) -> (i32, i32, i32, i32) {
    %c0_i32 = arith.constant 0 : i32
    %c0_i32_0 = arith.constant 0 : i32
    %c0_i32_1 = arith.constant 0 : i32
    return %arg0, %arg1, %c0_i32, %c0_i32_0 : i32, i32, i32, i32
  }
  func.func @transform_1(%arg0: i32, %arg1: i32) -> (i32, i32, i32) {
    %c0_i32 = arith.constant 0 : i32
    %c0_i32_0 = arith.constant 0 : i32
    %c0_i32_1 = arith.constant 0 : i32
    return %arg0, %c0_i32, %c0_i32_0 : i32, i32, i32
  }
  func.func @transform_2(%arg0: i32, %arg1: i32) -> (i32, i32, i32) {
    %c0_i32 = arith.constant 0 : i32
    %c0_i32_0 = arith.constant 0 : i32
    %c0_i32_1 = arith.constant 0 : i32
    return %arg0, %c0_i32, %c0_i32_0 : i32, i32, i32
  }
  func.func @transform_3(%arg0: i32, %arg1: i32) -> (i32, i32, i32, i32) {
    %c0_i32 = arith.constant 0 : i32
    %c0_i32_0 = arith.constant 0 : i32
    %c0_i32_1 = arith.constant 0 : i32
    return %arg0, %arg1, %c0_i32, %c0_i32_0 : i32, i32, i32, i32
  }
}

module attributes {stable_mosaic.version = 11 : i64} {
  func.func @_gmm_kernel(%arg0: i32, %arg1: i32, %arg2: memref<1x72x72xbf16, #tpu.memory_space<vmem>>, %arg3: memref<1x72x16xbf16, #tpu.memory_space<vmem>>, %arg4: memref<1x1x16xf32, #tpu.memory_space<vmem>>, %arg5: memref<1x72x16xbf16, #tpu.memory_space<vmem>>) attributes {dimension_semantics = [#tpu.dimension_semantics<parallel>, #tpu.dimension_semantics<arbitrary>], iteration_bounds = array<i64: 24, 1>, scalar_prefetch = 0 : i64, scratch_operands = 0 : i64, tpu.core_type = #tpu.core_type<tc>, window_params = [{transform_indices = @transform_0, window_bounds = array<i64: 1, 72, 72>}, {transform_indices = @transform_1, window_bounds = array<i64: 1, 72, 16>}, {transform_indices = @transform_2, window_bounds = array<i64: 1, 1, 16>}, {transform_indices = @transform_3, window_bounds = array<i64: 1, 72, 16>}]} {
    %c0 = arith.constant 0 : index
    %c0_0 = arith.constant 0 : index
    %c0_1 = arith.constant 0 : index
    %0 = vector.load %arg2[%c0, %c0_0, %c0_1] : memref<1x72x72xbf16, #tpu.memory_space<vmem>>, vector<1x72x72xbf16>
    %1 = vector.shape_cast %0 : vector<1x72x72xbf16> to vector<72x72xbf16>
    %c0_2 = arith.constant 0 : index
    %c0_3 = arith.constant 0 : index
    %c0_4 = arith.constant 0 : index
    %2 = vector.load %arg3[%c0_2, %c0_3, %c0_4] : memref<1x72x16xbf16, #tpu.memory_space<vmem>>, vector<1x72x16xbf16>
    %3 = vector.shape_cast %2 : vector<1x72x16xbf16> to vector<72x16xbf16>
    %cst = arith.constant dense<0.000000e+00> : vector<72x16xf32>
    %4 = tpu.matmul %1, %3, %cst {dimension_numbers = #tpu.dot_dimension_numbers<[1], [0], [0], [1], [0, 0, 1, 1], [], []>} : vector<72x72xbf16>, vector<72x16xbf16>, vector<72x16xf32> -> vector<72x16xf32>
    %c0_5 = arith.constant 0 : index
    %c0_6 = arith.constant 0 : index
    %c0_7 = arith.constant 0 : index
    %5 = vector.load %arg4[%c0_5, %c0_6, %c0_7] : memref<1x1x16xf32, #tpu.memory_space<vmem>>, vector<1x1x16xf32>
    %6 = vector.shape_cast %5 : vector<1x1x16xf32> to vector<1x16xf32>
    %7 = vector.broadcast %6 : vector<1x16xf32> to vector<72x16xf32>
    %8 = arith.addf %4, %7 : vector<72x16xf32>
    %9 = arith.truncf %8 : vector<72x16xf32> to vector<72x16xbf16>
    %c0_8 = arith.constant 0 : index
    %c0_9 = arith.constant 0 : index
    %c0_10 = arith.constant 0 : index
    %10 = vector.load %arg5[%c0_8, %c0_9, %c0_10] : memref<1x72x16xbf16, #tpu.memory_space<vmem>>, vector<1x72x16xbf16>
    %11 = vector.shape_cast %10 : vector<1x72x16xbf16> to vector<72x16xbf16>
    %12 = vector.shape_cast %9 : vector<72x16xbf16> to vector<1x72x16xbf16>
    tpu.vector_store %arg5[%c0_8, %c0_9, %c0_10], %12 {strides = array<i32>} : memref<1x72x16xbf16, #tpu.memory_space<vmem>>, vector<1x72x16xbf16>,
    return
  }
  func.func @transform_0(%arg0: i32, %arg1: i32) -> (i32, i32, i32) {
    %c0_i32 = arith.constant 0 : i32
    %c0_i32_0 = arith.constant 0 : i32
    return %arg0, %arg1, %c0_i32 : i32, i32, i32
  }
  func.func @transform_1(%arg0: i32, %arg1: i32) -> (i32, i32, i32) {
    %c0_i32 = arith.constant 0 : i32
    %c0_i32_0 = arith.constant 0 : i32
    %c0_i32_1 = arith.constant 0 : i32
    return %arg0, %c0_i32, %c0_i32_0 : i32, i32, i32
  }
  func.func @transform_2(%arg0: i32, %arg1: i32) -> (i32, i32, i32) {
    %c0_i32 = arith.constant 0 : i32
    %c0_i32_0 = arith.constant 0 : i32
    %c0_i32_1 = arith.constant 0 : i32
    return %arg0, %c0_i32, %c0_i32_0 : i32, i32, i32
  }
  func.func @transform_3(%arg0: i32, %arg1: i32) -> (i32, i32, i32) {
    %c0_i32 = arith.constant 0 : i32
    %c0_i32_0 = arith.constant 0 : i32
    return %arg0, %arg1, %c0_i32 : i32, i32, i32
  }
}

module attributes {stable_mosaic.version = 11 : i64} {
  func.func @_ln_leaky_kernel(%arg0: i32, %arg1: i32, %arg2: memref<1x1x2x512xbf16, #tpu.memory_space<vmem>>, %arg3: memref<1x1x512xf32, #tpu.memory_space<vmem>>, %arg4: memref<1x1x512xf32, #tpu.memory_space<vmem>>, %arg5: memref<1x1x2x512xbf16, #tpu.memory_space<vmem>>) attributes {dimension_semantics = [#tpu.dimension_semantics<parallel>, #tpu.dimension_semantics<arbitrary>], iteration_bounds = array<i64: 24, 2>, scalar_prefetch = 0 : i64, scratch_operands = 0 : i64, tpu.core_type = #tpu.core_type<tc>, window_params = [{transform_indices = @transform_0, window_bounds = array<i64: 1, 1, 2, 512>}, {transform_indices = @transform_1, window_bounds = array<i64: 1, 1, 512>}, {transform_indices = @transform_2, window_bounds = array<i64: 1, 1, 512>}, {transform_indices = @transform_3, window_bounds = array<i64: 1, 1, 2, 512>}]} {
    %c0 = arith.constant 0 : index
    %c0_0 = arith.constant 0 : index
    %c0_1 = arith.constant 0 : index
    %c0_2 = arith.constant 0 : index
    %0 = vector.load %arg2[%c0, %c0_0, %c0_1, %c0_2] : memref<1x1x2x512xbf16, #tpu.memory_space<vmem>>, vector<1x1x2x512xbf16>
    %1 = vector.shape_cast %0 : vector<1x1x2x512xbf16> to vector<2x512xbf16>
    %2 = arith.extf %1 : vector<2x512xbf16> to vector<2x512xf32>
    %3 = tpu.iota {dimensions = array<i32: 0>} : vector<2x512xi32>
    %4 = tpu.iota {dimensions = array<i32: 1>} : vector<2x512xi32>
    %c512_i32 = arith.constant 512 : i32
    %5 = vector.broadcast %c512_i32 : i32 to vector<2x512xi32>
    %6 = arith.muli %3, %5 : vector<2x512xi32>
    %7 = arith.addi %6, %4 : vector<2x512xi32>
    %c576_i32 = arith.constant 576 : i32
    %8 = vector.broadcast %c576_i32 : i32 to vector<2x512xi32>
    %9 = arith.cmpi slt, %7, %8 : vector<2x512xi32>
    %cst = arith.constant 0.000000e+00 : f32
    %10 = vector.broadcast %cst : f32 to vector<2x512xf32>
    %11 = arith.select %9, %2, %10 : vector<2x512xi1>, vector<2x512xf32>
    %12 = vector.shape_cast %11 : vector<2x512xf32> to vector<1x2x512xf32>
    %cst_3 = arith.constant dense<0.000000e+00> : vector<1xf32>
    %13 = vector.multi_reduction <add>, %12, %cst_3 [1, 2] : vector<1x2x512xf32> to vector<1xf32>
    %14 = vector.shape_cast %13 : vector<1xf32> to vector<1x1x1xf32>
    %15 = vector.extract %14[0, 0, 0] : f32 from vector<1x1x1xf32>
    %16 = arith.mulf %11, %11 : vector<2x512xf32>
    %17 = vector.shape_cast %16 : vector<2x512xf32> to vector<1x2x512xf32>
    %cst_4 = arith.constant dense<0.000000e+00> : vector<1xf32>
    %18 = vector.multi_reduction <add>, %17, %cst_4 [1, 2] : vector<1x2x512xf32> to vector<1xf32>
    %19 = vector.shape_cast %18 : vector<1xf32> to vector<1x1x1xf32>
    %20 = vector.extract %19[0, 0, 0] : f32 from vector<1x1x1xf32>
    %cst_5 = arith.constant 5.760000e+02 : f32
    %21 = arith.divf %15, %cst_5 : f32
    %cst_6 = arith.constant 5.760000e+02 : f32
    %22 = arith.mulf %cst_6, %21 : f32
    %23 = arith.mulf %22, %21 : f32
    %24 = arith.subf %20, %23 : f32
    %cst_7 = arith.constant 5.750000e+02 : f32
    %25 = arith.divf %24, %cst_7 : f32
    %cst_8 = arith.constant 0.000000e+00 : f32
    %26 = arith.maximumf %25, %cst_8 : f32
    %27 = vector.broadcast %21 : f32 to vector<2x512xf32>
    %28 = arith.subf %2, %27 : vector<2x512xf32>
    %29 = math.sqrt %26 : f32
    %cst_9 = arith.constant 9.99999974E-6 : f32
    %30 = arith.addf %29, %cst_9 : f32
    %31 = vector.broadcast %30 : f32 to vector<2x512xf32>
    %32 = arith.divf %28, %31 : vector<2x512xf32>
    %c0_10 = arith.constant 0 : index
    %c0_11 = arith.constant 0 : index
    %c0_12 = arith.constant 0 : index
    %33 = vector.load %arg3[%c0_10, %c0_11, %c0_12] : memref<1x1x512xf32, #tpu.memory_space<vmem>>, vector<1x1x512xf32>
    %34 = vector.shape_cast %33 : vector<1x1x512xf32> to vector<1x512xf32>
    %35 = vector.broadcast %34 : vector<1x512xf32> to vector<2x512xf32>
    %36 = arith.mulf %32, %35 : vector<2x512xf32>
    %c0_13 = arith.constant 0 : index
    %c0_14 = arith.constant 0 : index
    %c0_15 = arith.constant 0 : index
    %37 = vector.load %arg4[%c0_13, %c0_14, %c0_15] : memref<1x1x512xf32, #tpu.memory_space<vmem>>, vector<1x1x512xf32>
    %38 = vector.shape_cast %37 : vector<1x1x512xf32> to vector<1x512xf32>
    %39 = vector.broadcast %38 : vector<1x512xf32> to vector<2x512xf32>
    %40 = arith.addf %36, %39 : vector<2x512xf32>
    %cst_16 = arith.constant 0.000000e+00 : f32
    %41 = vector.broadcast %cst_16 : f32 to vector<2x512xf32>
    %42 = arith.cmpf ogt, %40, %41 : vector<2x512xf32>
    %cst_17 = arith.constant 0.00999999977 : f32
    %43 = vector.broadcast %cst_17 : f32 to vector<2x512xf32>
    %44 = arith.mulf %43, %40 : vector<2x512xf32>
    %45 = arith.select %42, %40, %44 : vector<2x512xi1>, vector<2x512xf32>
    %46 = arith.truncf %45 : vector<2x512xf32> to vector<2x512xbf16>
    %c0_18 = arith.constant 0 : index
    %c0_19 = arith.constant 0 : index
    %c0_20 = arith.constant 0 : index
    %c0_21 = arith.constant 0 : index
    %47 = vector.load %arg5[%c0_18, %c0_19, %c0_20, %c0_21] : memref<1x1x2x512xbf16, #tpu.memory_space<vmem>>, vector<1x1x2x512xbf16>
    %48 = vector.shape_cast %47 : vector<1x1x2x512xbf16> to vector<2x512xbf16>
    %49 = vector.shape_cast %46 : vector<2x512xbf16> to vector<1x1x2x512xbf16>
    tpu.vector_store %arg5[%c0_18, %c0_19, %c0_20, %c0_21], %49 {strides = array<i32>} : memref<1x1x2x512xbf16, #tpu.memory_space<vmem>>, vector<1x1x2x512xbf16>,
    return
  }
  func.func @transform_0(%arg0: i32, %arg1: i32) -> (i32, i32, i32, i32) {
    %c0_i32 = arith.constant 0 : i32
    %c0_i32_0 = arith.constant 0 : i32
    %c0_i32_1 = arith.constant 0 : i32
    return %arg0, %arg1, %c0_i32, %c0_i32_0 : i32, i32, i32, i32
  }
  func.func @transform_1(%arg0: i32, %arg1: i32) -> (i32, i32, i32) {
    %c0_i32 = arith.constant 0 : i32
    %c0_i32_0 = arith.constant 0 : i32
    %c0_i32_1 = arith.constant 0 : i32
    return %arg0, %c0_i32, %c0_i32_0 : i32, i32, i32
  }
  func.func @transform_2(%arg0: i32, %arg1: i32) -> (i32, i32, i32) {
    %c0_i32 = arith.constant 0 : i32
    %c0_i32_0 = arith.constant 0 : i32
    %c0_i32_1 = arith.constant 0 : i32
    return %arg0, %c0_i32, %c0_i32_0 : i32, i32, i32
  }
  func.func @transform_3(%arg0: i32, %arg1: i32) -> (i32, i32, i32, i32) {
    %c0_i32 = arith.constant 0 : i32
    %c0_i32_0 = arith.constant 0 : i32
    %c0_i32_1 = arith.constant 0 : i32
    return %arg0, %arg1, %c0_i32, %c0_i32_0 : i32, i32, i32, i32
  }
}

module attributes {stable_mosaic.version = 11 : i64} {
  func.func @_gmm_kernel(%arg0: i32, %arg1: i32, %arg2: memref<1x18x144xbf16, #tpu.memory_space<vmem>>, %arg3: memref<1x144x16xbf16, #tpu.memory_space<vmem>>, %arg4: memref<1x1x16xf32, #tpu.memory_space<vmem>>, %arg5: memref<1x18x16xbf16, #tpu.memory_space<vmem>>) attributes {dimension_semantics = [#tpu.dimension_semantics<parallel>, #tpu.dimension_semantics<arbitrary>], iteration_bounds = array<i64: 24, 1>, scalar_prefetch = 0 : i64, scratch_operands = 0 : i64, tpu.core_type = #tpu.core_type<tc>, window_params = [{transform_indices = @transform_0, window_bounds = array<i64: 1, 18, 144>}, {transform_indices = @transform_1, window_bounds = array<i64: 1, 144, 16>}, {transform_indices = @transform_2, window_bounds = array<i64: 1, 1, 16>}, {transform_indices = @transform_3, window_bounds = array<i64: 1, 18, 16>}]} {
    %c0 = arith.constant 0 : index
    %c0_0 = arith.constant 0 : index
    %c0_1 = arith.constant 0 : index
    %0 = vector.load %arg2[%c0, %c0_0, %c0_1] : memref<1x18x144xbf16, #tpu.memory_space<vmem>>, vector<1x18x144xbf16>
    %1 = vector.shape_cast %0 : vector<1x18x144xbf16> to vector<18x144xbf16>
    %c0_2 = arith.constant 0 : index
    %c0_3 = arith.constant 0 : index
    %c0_4 = arith.constant 0 : index
    %2 = vector.load %arg3[%c0_2, %c0_3, %c0_4] : memref<1x144x16xbf16, #tpu.memory_space<vmem>>, vector<1x144x16xbf16>
    %3 = vector.shape_cast %2 : vector<1x144x16xbf16> to vector<144x16xbf16>
    %cst = arith.constant dense<0.000000e+00> : vector<18x16xf32>
    %4 = tpu.matmul %1, %3, %cst {dimension_numbers = #tpu.dot_dimension_numbers<[1], [0], [0], [1], [0, 0, 1, 1], [], []>} : vector<18x144xbf16>, vector<144x16xbf16>, vector<18x16xf32> -> vector<18x16xf32>
    %c0_5 = arith.constant 0 : index
    %c0_6 = arith.constant 0 : index
    %c0_7 = arith.constant 0 : index
    %5 = vector.load %arg4[%c0_5, %c0_6, %c0_7] : memref<1x1x16xf32, #tpu.memory_space<vmem>>, vector<1x1x16xf32>
    %6 = vector.shape_cast %5 : vector<1x1x16xf32> to vector<1x16xf32>
    %7 = vector.broadcast %6 : vector<1x16xf32> to vector<18x16xf32>
    %8 = arith.addf %4, %7 : vector<18x16xf32>
    %9 = arith.truncf %8 : vector<18x16xf32> to vector<18x16xbf16>
    %c0_8 = arith.constant 0 : index
    %c0_9 = arith.constant 0 : index
    %c0_10 = arith.constant 0 : index
    %10 = vector.load %arg5[%c0_8, %c0_9, %c0_10] : memref<1x18x16xbf16, #tpu.memory_space<vmem>>, vector<1x18x16xbf16>
    %11 = vector.shape_cast %10 : vector<1x18x16xbf16> to vector<18x16xbf16>
    %12 = vector.shape_cast %9 : vector<18x16xbf16> to vector<1x18x16xbf16>
    tpu.vector_store %arg5[%c0_8, %c0_9, %c0_10], %12 {strides = array<i32>} : memref<1x18x16xbf16, #tpu.memory_space<vmem>>, vector<1x18x16xbf16>,
    return
  }
  func.func @transform_0(%arg0: i32, %arg1: i32) -> (i32, i32, i32) {
    %c0_i32 = arith.constant 0 : i32
    %c0_i32_0 = arith.constant 0 : i32
    return %arg0, %arg1, %c0_i32 : i32, i32, i32
  }
  func.func @transform_1(%arg0: i32, %arg1: i32) -> (i32, i32, i32) {
    %c0_i32 = arith.constant 0 : i32
    %c0_i32_0 = arith.constant 0 : i32
    %c0_i32_1 = arith.constant 0 : i32
    return %arg0, %c0_i32, %c0_i32_0 : i32, i32, i32
  }
  func.func @transform_2(%arg0: i32, %arg1: i32) -> (i32, i32, i32) {
    %c0_i32 = arith.constant 0 : i32
    %c0_i32_0 = arith.constant 0 : i32
    %c0_i32_1 = arith.constant 0 : i32
    return %arg0, %c0_i32, %c0_i32_0 : i32, i32, i32
  }
  func.func @transform_3(%arg0: i32, %arg1: i32) -> (i32, i32, i32) {
    %c0_i32 = arith.constant 0 : i32
    %c0_i32_0 = arith.constant 0 : i32
    return %arg0, %arg1, %c0_i32 : i32, i32, i32
  }
}

module attributes {stable_mosaic.version = 11 : i64} {
  func.func @_ln_leaky_kernel(%arg0: i32, %arg1: i32, %arg2: memref<1x1x1x512xbf16, #tpu.memory_space<vmem>>, %arg3: memref<1x1x512xf32, #tpu.memory_space<vmem>>, %arg4: memref<1x1x512xf32, #tpu.memory_space<vmem>>, %arg5: memref<1x1x1x512xbf16, #tpu.memory_space<vmem>>) attributes {dimension_semantics = [#tpu.dimension_semantics<parallel>, #tpu.dimension_semantics<arbitrary>], iteration_bounds = array<i64: 24, 2>, scalar_prefetch = 0 : i64, scratch_operands = 0 : i64, tpu.core_type = #tpu.core_type<tc>, window_params = [{transform_indices = @transform_0, window_bounds = array<i64: 1, 1, 1, 512>}, {transform_indices = @transform_1, window_bounds = array<i64: 1, 1, 512>}, {transform_indices = @transform_2, window_bounds = array<i64: 1, 1, 512>}, {transform_indices = @transform_3, window_bounds = array<i64: 1, 1, 1, 512>}]} {
    %c0 = arith.constant 0 : index
    %c0_0 = arith.constant 0 : index
    %c0_1 = arith.constant 0 : index
    %c0_2 = arith.constant 0 : index
    %0 = vector.load %arg2[%c0, %c0_0, %c0_1, %c0_2] : memref<1x1x1x512xbf16, #tpu.memory_space<vmem>>, vector<1x1x1x512xbf16>
    %1 = vector.shape_cast %0 : vector<1x1x1x512xbf16> to vector<1x512xbf16>
    %2 = arith.extf %1 : vector<1x512xbf16> to vector<1x512xf32>
    %3 = tpu.iota {dimensions = array<i32: 0>} : vector<1x512xi32>
    %4 = tpu.iota {dimensions = array<i32: 1>} : vector<1x512xi32>
    %c512_i32 = arith.constant 512 : i32
    %5 = vector.broadcast %c512_i32 : i32 to vector<1x512xi32>
    %6 = arith.muli %3, %5 : vector<1x512xi32>
    %7 = arith.addi %6, %4 : vector<1x512xi32>
    %c144_i32 = arith.constant 144 : i32
    %8 = vector.broadcast %c144_i32 : i32 to vector<1x512xi32>
    %9 = arith.cmpi slt, %7, %8 : vector<1x512xi32>
    %cst = arith.constant 0.000000e+00 : f32
    %10 = vector.broadcast %cst : f32 to vector<1x512xf32>
    %11 = arith.select %9, %2, %10 : vector<1x512xi1>, vector<1x512xf32>
    %12 = vector.shape_cast %11 : vector<1x512xf32> to vector<1x1x512xf32>
    %cst_3 = arith.constant dense<0.000000e+00> : vector<1xf32>
    %13 = vector.multi_reduction <add>, %12, %cst_3 [1, 2] : vector<1x1x512xf32> to vector<1xf32>
    %14 = vector.shape_cast %13 : vector<1xf32> to vector<1x1x1xf32>
    %15 = vector.extract %14[0, 0, 0] : f32 from vector<1x1x1xf32>
    %16 = arith.mulf %11, %11 : vector<1x512xf32>
    %17 = vector.shape_cast %16 : vector<1x512xf32> to vector<1x1x512xf32>
    %cst_4 = arith.constant dense<0.000000e+00> : vector<1xf32>
    %18 = vector.multi_reduction <add>, %17, %cst_4 [1, 2] : vector<1x1x512xf32> to vector<1xf32>
    %19 = vector.shape_cast %18 : vector<1xf32> to vector<1x1x1xf32>
    %20 = vector.extract %19[0, 0, 0] : f32 from vector<1x1x1xf32>
    %cst_5 = arith.constant 1.440000e+02 : f32
    %21 = arith.divf %15, %cst_5 : f32
    %cst_6 = arith.constant 1.440000e+02 : f32
    %22 = arith.mulf %cst_6, %21 : f32
    %23 = arith.mulf %22, %21 : f32
    %24 = arith.subf %20, %23 : f32
    %cst_7 = arith.constant 1.430000e+02 : f32
    %25 = arith.divf %24, %cst_7 : f32
    %cst_8 = arith.constant 0.000000e+00 : f32
    %26 = arith.maximumf %25, %cst_8 : f32
    %27 = vector.broadcast %21 : f32 to vector<1x512xf32>
    %28 = arith.subf %2, %27 : vector<1x512xf32>
    %29 = math.sqrt %26 : f32
    %cst_9 = arith.constant 9.99999974E-6 : f32
    %30 = arith.addf %29, %cst_9 : f32
    %31 = vector.broadcast %30 : f32 to vector<1x512xf32>
    %32 = arith.divf %28, %31 : vector<1x512xf32>
    %c0_10 = arith.constant 0 : index
    %c0_11 = arith.constant 0 : index
    %c0_12 = arith.constant 0 : index
    %33 = vector.load %arg3[%c0_10, %c0_11, %c0_12] : memref<1x1x512xf32, #tpu.memory_space<vmem>>, vector<1x1x512xf32>
    %34 = vector.shape_cast %33 : vector<1x1x512xf32> to vector<1x512xf32>
    %35 = arith.mulf %32, %34 : vector<1x512xf32>
    %c0_13 = arith.constant 0 : index
    %c0_14 = arith.constant 0 : index
    %c0_15 = arith.constant 0 : index
    %36 = vector.load %arg4[%c0_13, %c0_14, %c0_15] : memref<1x1x512xf32, #tpu.memory_space<vmem>>, vector<1x1x512xf32>
    %37 = vector.shape_cast %36 : vector<1x1x512xf32> to vector<1x512xf32>
    %38 = arith.addf %35, %37 : vector<1x512xf32>
    %cst_16 = arith.constant 0.000000e+00 : f32
    %39 = vector.broadcast %cst_16 : f32 to vector<1x512xf32>
    %40 = arith.cmpf ogt, %38, %39 : vector<1x512xf32>
    %cst_17 = arith.constant 0.00999999977 : f32
    %41 = vector.broadcast %cst_17 : f32 to vector<1x512xf32>
    %42 = arith.mulf %41, %38 : vector<1x512xf32>
    %43 = arith.select %40, %38, %42 : vector<1x512xi1>, vector<1x512xf32>
    %44 = arith.truncf %43 : vector<1x512xf32> to vector<1x512xbf16>
    %c0_18 = arith.constant 0 : index
    %c0_19 = arith.constant 0 : index
    %c0_20 = arith.constant 0 : index
    %c0_21 = arith.constant 0 : index
    %45 = vector.load %arg5[%c0_18, %c0_19, %c0_20, %c0_21] : memref<1x1x1x512xbf16, #tpu.memory_space<vmem>>, vector<1x1x1x512xbf16>
    %46 = vector.shape_cast %45 : vector<1x1x1x512xbf16> to vector<1x512xbf16>
    %47 = vector.shape_cast %44 : vector<1x512xbf16> to vector<1x1x1x512xbf16>
    tpu.vector_store %arg5[%c0_18, %c0_19, %c0_20, %c0_21], %47 {strides = array<i32>} : memref<1x1x1x512xbf16, #tpu.memory_space<vmem>>, vector<1x1x1x512xbf16>,
    return
  }
  func.func @transform_0(%arg0: i32, %arg1: i32) -> (i32, i32, i32, i32) {
    %c0_i32 = arith.constant 0 : i32
    %c0_i32_0 = arith.constant 0 : i32
    %c0_i32_1 = arith.constant 0 : i32
    return %arg0, %arg1, %c0_i32, %c0_i32_0 : i32, i32, i32, i32
  }
  func.func @transform_1(%arg0: i32, %arg1: i32) -> (i32, i32, i32) {
    %c0_i32 = arith.constant 0 : i32
    %c0_i32_0 = arith.constant 0 : i32
    %c0_i32_1 = arith.constant 0 : i32
    return %arg0, %c0_i32, %c0_i32_0 : i32, i32, i32
  }
  func.func @transform_2(%arg0: i32, %arg1: i32) -> (i32, i32, i32) {
    %c0_i32 = arith.constant 0 : i32
    %c0_i32_0 = arith.constant 0 : i32
    %c0_i32_1 = arith.constant 0 : i32
    return %arg0, %c0_i32, %c0_i32_0 : i32, i32, i32
  }
  func.func @transform_3(%arg0: i32, %arg1: i32) -> (i32, i32, i32, i32) {
    %c0_i32 = arith.constant 0 : i32
    %c0_i32_0 = arith.constant 0 : i32
    %c0_i32_1 = arith.constant 0 : i32
    return %arg0, %arg1, %c0_i32, %c0_i32_0 : i32, i32, i32, i32
  }
}

module attributes {stable_mosaic.version = 11 : i64} {
  func.func @_fc_stack_kernel(%arg0: i32, %arg1: memref<8x384xbf16, #tpu.memory_space<vmem>>, %arg2: memref<384x32xbf16, #tpu.memory_space<vmem>>, %arg3: memref<1x32xf32, #tpu.memory_space<vmem>>, %arg4: memref<32x32xbf16, #tpu.memory_space<vmem>>, %arg5: memref<1x32xf32, #tpu.memory_space<vmem>>, %arg6: memref<32x32xbf16, #tpu.memory_space<vmem>>, %arg7: memref<1x32xf32, #tpu.memory_space<vmem>>, %arg8: memref<32x32xbf16, #tpu.memory_space<vmem>>, %arg9: memref<1x32xf32, #tpu.memory_space<vmem>>, %arg10: memref<32x32xbf16, #tpu.memory_space<vmem>>, %arg11: memref<1x32xf32, #tpu.memory_space<vmem>>, %arg12: memref<8x32xf32, #tpu.memory_space<vmem>>) attributes {dimension_semantics = [#tpu.dimension_semantics<arbitrary>], iteration_bounds = array<i64: 1>, scalar_prefetch = 0 : i64, scratch_operands = 0 : i64, tpu.core_type = #tpu.core_type<tc>, window_params = [{pipeline_mode = #tpu.pipeline_mode<synchronous>, transform_indices = @transform_0, window_bounds = array<i64: 8, 384>}, {pipeline_mode = #tpu.pipeline_mode<synchronous>, transform_indices = @transform_1, window_bounds = array<i64: 384, 32>}, {pipeline_mode = #tpu.pipeline_mode<synchronous>, transform_indices = @transform_2, window_bounds = array<i64: 1, 32>}, {pipeline_mode = #tpu.pipeline_mode<synchronous>, transform_indices = @transform_3, window_bounds = array<i64: 32, 32>}, {pipeline_mode = #tpu.pipeline_mode<synchronous>, transform_indices = @transform_4, window_bounds = array<i64: 1, 32>}, {pipeline_mode = #tpu.pipeline_mode<synchronous>, transform_indices = @transform_5, window_bounds = array<i64: 32, 32>}, {pipeline_mode = #tpu.pipeline_mode<synchronous>, transform_indices = @transform_6, window_bounds = array<i64: 1, 32>}, {pipeline_mode = #tpu.pipeline_mode<synchronous>, transform_indices = @transform_7, window_bounds = array<i64: 32, 32>}, {pipeline_mode = #tpu.pipeline_mode<synchronous>, transform_indices = @transform_8, window_bounds = array<i64: 1, 32>}, {pipeline_mode = #tpu.pipeline_mode<synchronous>, transform_indices = @transform_9, window_bounds = array<i64: 32, 32>}, {pipeline_mode = #tpu.pipeline_mode<synchronous>, transform_indices = @transform_10, window_bounds = array<i64: 1, 32>}, {pipeline_mode = #tpu.pipeline_mode<synchronous>, transform_indices = @transform_11, window_bounds = array<i64: 8, 32>}]} {
    %c0 = arith.constant 0 : index
    %c0_0 = arith.constant 0 : index
    %0 = vector.load %arg1[%c0, %c0_0] : memref<8x384xbf16, #tpu.memory_space<vmem>>, vector<8x384xbf16>
    %c0_1 = arith.constant 0 : index
    %c0_2 = arith.constant 0 : index
    %1 = vector.load %arg2[%c0_1, %c0_2] : memref<384x32xbf16, #tpu.memory_space<vmem>>, vector<384x32xbf16>
    %c0_3 = arith.constant 0 : index
    %c0_4 = arith.constant 0 : index
    %2 = vector.load %arg3[%c0_3, %c0_4] : memref<1x32xf32, #tpu.memory_space<vmem>>, vector<1x32xf32>
    %cst = arith.constant dense<0.000000e+00> : vector<8x32xf32>
    %3 = tpu.matmul %0, %1, %cst {dimension_numbers = #tpu.dot_dimension_numbers<[1], [0], [0], [1], [0, 0, 1, 1], [], []>} : vector<8x384xbf16>, vector<384x32xbf16>, vector<8x32xf32> -> vector<8x32xf32>
    %4 = vector.broadcast %2 : vector<1x32xf32> to vector<8x32xf32>
    %5 = arith.addf %3, %4 : vector<8x32xf32>
    %cst_5 = arith.constant dense<0.000000e+00> : vector<8xf32>
    %6 = vector.multi_reduction <add>, %5, %cst_5 [1] : vector<8x32xf32> to vector<8xf32>
    %7 = vector.shape_cast %6 : vector<8xf32> to vector<8x1xf32>
    %cst_6 = arith.constant 3.200000e+01 : f32
    %8 = vector.broadcast %cst_6 : f32 to vector<8x1xf32>
    %9 = arith.divf %7, %8 : vector<8x1xf32>
    %10 = vector.broadcast %9 : vector<8x1xf32> to vector<8x32xf32>
    %11 = arith.subf %5, %10 : vector<8x32xf32>
    %12 = arith.mulf %11, %11 : vector<8x32xf32>
    %cst_7 = arith.constant dense<0.000000e+00> : vector<8xf32>
    %13 = vector.multi_reduction <add>, %12, %cst_7 [1] : vector<8x32xf32> to vector<8xf32>
    %14 = vector.shape_cast %13 : vector<8xf32> to vector<8x1xf32>
    %cst_8 = arith.constant 3.200000e+01 : f32
    %15 = vector.broadcast %cst_8 : f32 to vector<8x1xf32>
    %16 = arith.divf %14, %15 : vector<8x1xf32>
    %17 = vector.broadcast %9 : vector<8x1xf32> to vector<8x32xf32>
    %18 = arith.subf %5, %17 : vector<8x32xf32>
    %cst_9 = arith.constant 9.99999974E-6 : f32
    %19 = vector.broadcast %cst_9 : f32 to vector<8x1xf32>
    %20 = arith.addf %16, %19 : vector<8x1xf32>
    %21 = math.rsqrt %20 : vector<8x1xf32>
    %22 = vector.broadcast %21 : vector<8x1xf32> to vector<8x32xf32>
    %23 = arith.mulf %18, %22 : vector<8x32xf32>
    %cst_10 = arith.constant 0.000000e+00 : f32
    %24 = vector.broadcast %cst_10 : f32 to vector<8x32xf32>
    %25 = arith.maximumf %23, %24 : vector<8x32xf32>
    %26 = arith.truncf %25 : vector<8x32xf32> to vector<8x32xbf16>
    %c0_11 = arith.constant 0 : index
    %c0_12 = arith.constant 0 : index
    %27 = vector.load %arg4[%c0_11, %c0_12] : memref<32x32xbf16, #tpu.memory_space<vmem>>, vector<32x32xbf16>
    %c0_13 = arith.constant 0 : index
    %c0_14 = arith.constant 0 : index
    %28 = vector.load %arg5[%c0_13, %c0_14] : memref<1x32xf32, #tpu.memory_space<vmem>>, vector<1x32xf32>
    %cst_15 = arith.constant dense<0.000000e+00> : vector<8x32xf32>
    %29 = tpu.matmul %26, %27, %cst_15 {dimension_numbers = #tpu.dot_dimension_numbers<[1], [0], [0], [1], [0, 0, 1, 1], [], []>} : vector<8x32xbf16>, vector<32x32xbf16>, vector<8x32xf32> -> vector<8x32xf32>
    %30 = vector.broadcast %28 : vector<1x32xf32> to vector<8x32xf32>
    %31 = arith.addf %29, %30 : vector<8x32xf32>
    %cst_16 = arith.constant dense<0.000000e+00> : vector<8xf32>
    %32 = vector.multi_reduction <add>, %31, %cst_16 [1] : vector<8x32xf32> to vector<8xf32>
    %33 = vector.shape_cast %32 : vector<8xf32> to vector<8x1xf32>
    %cst_17 = arith.constant 3.200000e+01 : f32
    %34 = vector.broadcast %cst_17 : f32 to vector<8x1xf32>
    %35 = arith.divf %33, %34 : vector<8x1xf32>
    %36 = vector.broadcast %35 : vector<8x1xf32> to vector<8x32xf32>
    %37 = arith.subf %31, %36 : vector<8x32xf32>
    %38 = arith.mulf %37, %37 : vector<8x32xf32>
    %cst_18 = arith.constant dense<0.000000e+00> : vector<8xf32>
    %39 = vector.multi_reduction <add>, %38, %cst_18 [1] : vector<8x32xf32> to vector<8xf32>
    %40 = vector.shape_cast %39 : vector<8xf32> to vector<8x1xf32>
    %cst_19 = arith.constant 3.200000e+01 : f32
    %41 = vector.broadcast %cst_19 : f32 to vector<8x1xf32>
    %42 = arith.divf %40, %41 : vector<8x1xf32>
    %43 = vector.broadcast %35 : vector<8x1xf32> to vector<8x32xf32>
    %44 = arith.subf %31, %43 : vector<8x32xf32>
    %cst_20 = arith.constant 9.99999974E-6 : f32
    %45 = vector.broadcast %cst_20 : f32 to vector<8x1xf32>
    %46 = arith.addf %42, %45 : vector<8x1xf32>
    %47 = math.rsqrt %46 : vector<8x1xf32>
    %48 = vector.broadcast %47 : vector<8x1xf32> to vector<8x32xf32>
    %49 = arith.mulf %44, %48 : vector<8x32xf32>
    %cst_21 = arith.constant 0.000000e+00 : f32
    %50 = vector.broadcast %cst_21 : f32 to vector<8x32xf32>
    %51 = arith.maximumf %49, %50 : vector<8x32xf32>
    %52 = arith.truncf %51 : vector<8x32xf32> to vector<8x32xbf16>
    %c0_22 = arith.constant 0 : index
    %c0_23 = arith.constant 0 : index
    %53 = vector.load %arg6[%c0_22, %c0_23] : memref<32x32xbf16, #tpu.memory_space<vmem>>, vector<32x32xbf16>
    %c0_24 = arith.constant 0 : index
    %c0_25 = arith.constant 0 : index
    %54 = vector.load %arg7[%c0_24, %c0_25] : memref<1x32xf32, #tpu.memory_space<vmem>>, vector<1x32xf32>
    %cst_26 = arith.constant dense<0.000000e+00> : vector<8x32xf32>
    %55 = tpu.matmul %52, %53, %cst_26 {dimension_numbers = #tpu.dot_dimension_numbers<[1], [0], [0], [1], [0, 0, 1, 1], [], []>} : vector<8x32xbf16>, vector<32x32xbf16>, vector<8x32xf32> -> vector<8x32xf32>
    %56 = vector.broadcast %54 : vector<1x32xf32> to vector<8x32xf32>
    %57 = arith.addf %55, %56 : vector<8x32xf32>
    %cst_27 = arith.constant dense<0.000000e+00> : vector<8xf32>
    %58 = vector.multi_reduction <add>, %57, %cst_27 [1] : vector<8x32xf32> to vector<8xf32>
    %59 = vector.shape_cast %58 : vector<8xf32> to vector<8x1xf32>
    %cst_28 = arith.constant 3.200000e+01 : f32
    %60 = vector.broadcast %cst_28 : f32 to vector<8x1xf32>
    %61 = arith.divf %59, %60 : vector<8x1xf32>
    %62 = vector.broadcast %61 : vector<8x1xf32> to vector<8x32xf32>
    %63 = arith.subf %57, %62 : vector<8x32xf32>
    %64 = arith.mulf %63, %63 : vector<8x32xf32>
    %cst_29 = arith.constant dense<0.000000e+00> : vector<8xf32>
    %65 = vector.multi_reduction <add>, %64, %cst_29 [1] : vector<8x32xf32> to vector<8xf32>
    %66 = vector.shape_cast %65 : vector<8xf32> to vector<8x1xf32>
    %cst_30 = arith.constant 3.200000e+01 : f32
    %67 = vector.broadcast %cst_30 : f32 to vector<8x1xf32>
    %68 = arith.divf %66, %67 : vector<8x1xf32>
    %69 = vector.broadcast %61 : vector<8x1xf32> to vector<8x32xf32>
    %70 = arith.subf %57, %69 : vector<8x32xf32>
    %cst_31 = arith.constant 9.99999974E-6 : f32
    %71 = vector.broadcast %cst_31 : f32 to vector<8x1xf32>
    %72 = arith.addf %68, %71 : vector<8x1xf32>
    %73 = math.rsqrt %72 : vector<8x1xf32>
    %74 = vector.broadcast %73 : vector<8x1xf32> to vector<8x32xf32>
    %75 = arith.mulf %70, %74 : vector<8x32xf32>
    %cst_32 = arith.constant 0.000000e+00 : f32
    %76 = vector.broadcast %cst_32 : f32 to vector<8x32xf32>
    %77 = arith.maximumf %75, %76 : vector<8x32xf32>
    %78 = arith.truncf %77 : vector<8x32xf32> to vector<8x32xbf16>
    %c0_33 = arith.constant 0 : index
    %c0_34 = arith.constant 0 : index
    %79 = vector.load %arg8[%c0_33, %c0_34] : memref<32x32xbf16, #tpu.memory_space<vmem>>, vector<32x32xbf16>
    %c0_35 = arith.constant 0 : index
    %c0_36 = arith.constant 0 : index
    %80 = vector.load %arg9[%c0_35, %c0_36] : memref<1x32xf32, #tpu.memory_space<vmem>>, vector<1x32xf32>
    %cst_37 = arith.constant dense<0.000000e+00> : vector<8x32xf32>
    %81 = tpu.matmul %78, %79, %cst_37 {dimension_numbers = #tpu.dot_dimension_numbers<[1], [0], [0], [1], [0, 0, 1, 1], [], []>} : vector<8x32xbf16>, vector<32x32xbf16>, vector<8x32xf32> -> vector<8x32xf32>
    %82 = vector.broadcast %80 : vector<1x32xf32> to vector<8x32xf32>
    %83 = arith.addf %81, %82 : vector<8x32xf32>
    %cst_38 = arith.constant dense<0.000000e+00> : vector<8xf32>
    %84 = vector.multi_reduction <add>, %83, %cst_38 [1] : vector<8x32xf32> to vector<8xf32>
    %85 = vector.shape_cast %84 : vector<8xf32> to vector<8x1xf32>
    %cst_39 = arith.constant 3.200000e+01 : f32
    %86 = vector.broadcast %cst_39 : f32 to vector<8x1xf32>
    %87 = arith.divf %85, %86 : vector<8x1xf32>
    %88 = vector.broadcast %87 : vector<8x1xf32> to vector<8x32xf32>
    %89 = arith.subf %83, %88 : vector<8x32xf32>
    %90 = arith.mulf %89, %89 : vector<8x32xf32>
    %cst_40 = arith.constant dense<0.000000e+00> : vector<8xf32>
    %91 = vector.multi_reduction <add>, %90, %cst_40 [1] : vector<8x32xf32> to vector<8xf32>
    %92 = vector.shape_cast %91 : vector<8xf32> to vector<8x1xf32>
    %cst_41 = arith.constant 3.200000e+01 : f32
    %93 = vector.broadcast %cst_41 : f32 to vector<8x1xf32>
    %94 = arith.divf %92, %93 : vector<8x1xf32>
    %95 = vector.broadcast %87 : vector<8x1xf32> to vector<8x32xf32>
    %96 = arith.subf %83, %95 : vector<8x32xf32>
    %cst_42 = arith.constant 9.99999974E-6 : f32
    %97 = vector.broadcast %cst_42 : f32 to vector<8x1xf32>
    %98 = arith.addf %94, %97 : vector<8x1xf32>
    %99 = math.rsqrt %98 : vector<8x1xf32>
    %100 = vector.broadcast %99 : vector<8x1xf32> to vector<8x32xf32>
    %101 = arith.mulf %96, %100 : vector<8x32xf32>
    %cst_43 = arith.constant 0.000000e+00 : f32
    %102 = vector.broadcast %cst_43 : f32 to vector<8x32xf32>
    %103 = arith.maximumf %101, %102 : vector<8x32xf32>
    %104 = arith.truncf %103 : vector<8x32xf32> to vector<8x32xbf16>
    %c0_44 = arith.constant 0 : index
    %c0_45 = arith.constant 0 : index
    %105 = vector.load %arg10[%c0_44, %c0_45] : memref<32x32xbf16, #tpu.memory_space<vmem>>, vector<32x32xbf16>
    %c0_46 = arith.constant 0 : index
    %c0_47 = arith.constant 0 : index
    %106 = vector.load %arg11[%c0_46, %c0_47] : memref<1x32xf32, #tpu.memory_space<vmem>>, vector<1x32xf32>
    %cst_48 = arith.constant dense<0.000000e+00> : vector<8x32xf32>
    %107 = tpu.matmul %104, %105, %cst_48 {dimension_numbers = #tpu.dot_dimension_numbers<[1], [0], [0], [1], [0, 0, 1, 1], [], []>} : vector<8x32xbf16>, vector<32x32xbf16>, vector<8x32xf32> -> vector<8x32xf32>
    %108 = vector.broadcast %106 : vector<1x32xf32> to vector<8x32xf32>
    %109 = arith.addf %107, %108 : vector<8x32xf32>
    %cst_49 = arith.constant dense<0.000000e+00> : vector<8xf32>
    %110 = vector.multi_reduction <add>, %109, %cst_49 [1] : vector<8x32xf32> to vector<8xf32>
    %111 = vector.shape_cast %110 : vector<8xf32> to vector<8x1xf32>
    %cst_50 = arith.constant 3.200000e+01 : f32
    %112 = vector.broadcast %cst_50 : f32 to vector<8x1xf32>
    %113 = arith.divf %111, %112 : vector<8x1xf32>
    %114 = vector.broadcast %113 : vector<8x1xf32> to vector<8x32xf32>
    %115 = arith.subf %109, %114 : vector<8x32xf32>
    %116 = arith.mulf %115, %115 : vector<8x32xf32>
    %cst_51 = arith.constant dense<0.000000e+00> : vector<8xf32>
    %117 = vector.multi_reduction <add>, %116, %cst_51 [1] : vector<8x32xf32> to vector<8xf32>
    %118 = vector.shape_cast %117 : vector<8xf32> to vector<8x1xf32>
    %cst_52 = arith.constant 3.200000e+01 : f32
    %119 = vector.broadcast %cst_52 : f32 to vector<8x1xf32>
    %120 = arith.divf %118, %119 : vector<8x1xf32>
    %121 = vector.broadcast %113 : vector<8x1xf32> to vector<8x32xf32>
    %122 = arith.subf %109, %121 : vector<8x32xf32>
    %cst_53 = arith.constant 9.99999974E-6 : f32
    %123 = vector.broadcast %cst_53 : f32 to vector<8x1xf32>
    %124 = arith.addf %120, %123 : vector<8x1xf32>
    %125 = math.rsqrt %124 : vector<8x1xf32>
    %126 = vector.broadcast %125 : vector<8x1xf32> to vector<8x32xf32>
    %127 = arith.mulf %122, %126 : vector<8x32xf32>
    %cst_54 = arith.constant 0.000000e+00 : f32
    %128 = vector.broadcast %cst_54 : f32 to vector<8x32xf32>
    %129 = arith.maximumf %127, %128 : vector<8x32xf32>
    %c0_55 = arith.constant 0 : index
    %c0_56 = arith.constant 0 : index
    %130 = vector.load %arg12[%c0_55, %c0_56] : memref<8x32xf32, #tpu.memory_space<vmem>>, vector<8x32xf32>
    tpu.vector_store %arg12[%c0_55, %c0_56], %129 {strides = array<i32>} : memref<8x32xf32, #tpu.memory_space<vmem>>, vector<8x32xf32>,
    return
  }
  func.func @transform_0(%arg0: i32) -> (i32, i32) {
    %c0_i32 = arith.constant 0 : i32
    %c0_i32_0 = arith.constant 0 : i32
    %c0_i32_1 = arith.constant 0 : i32
    return %c0_i32, %c0_i32_0 : i32, i32
  }
  func.func @transform_1(%arg0: i32) -> (i32, i32) {
    %c0_i32 = arith.constant 0 : i32
    %c0_i32_0 = arith.constant 0 : i32
    %c0_i32_1 = arith.constant 0 : i32
    return %c0_i32, %c0_i32_0 : i32, i32
  }
  func.func @transform_2(%arg0: i32) -> (i32, i32) {
    %c0_i32 = arith.constant 0 : i32
    %c0_i32_0 = arith.constant 0 : i32
    %c0_i32_1 = arith.constant 0 : i32
    return %c0_i32, %c0_i32_0 : i32, i32
  }
  func.func @transform_3(%arg0: i32) -> (i32, i32) {
    %c0_i32 = arith.constant 0 : i32
    %c0_i32_0 = arith.constant 0 : i32
    %c0_i32_1 = arith.constant 0 : i32
    return %c0_i32, %c0_i32_0 : i32, i32
  }
  func.func @transform_4(%arg0: i32) -> (i32, i32) {
    %c0_i32 = arith.constant 0 : i32
    %c0_i32_0 = arith.constant 0 : i32
    %c0_i32_1 = arith.constant 0 : i32
    return %c0_i32, %c0_i32_0 : i32, i32
  }
  func.func @transform_5(%arg0: i32) -> (i32, i32) {
    %c0_i32 = arith.constant 0 : i32
    %c0_i32_0 = arith.constant 0 : i32
    %c0_i32_1 = arith.constant 0 : i32
    return %c0_i32, %c0_i32_0 : i32, i32
  }
  func.func @transform_6(%arg0: i32) -> (i32, i32) {
    %c0_i32 = arith.constant 0 : i32
    %c0_i32_0 = arith.constant 0 : i32
    %c0_i32_1 = arith.constant 0 : i32
    return %c0_i32, %c0_i32_0 : i32, i32
  }
  func.func @transform_7(%arg0: i32) -> (i32, i32) {
    %c0_i32 = arith.constant 0 : i32
    %c0_i32_0 = arith.constant 0 : i32
    %c0_i32_1 = arith.constant 0 : i32
    return %c0_i32, %c0_i32_0 : i32, i32
  }
  func.func @transform_8(%arg0: i32) -> (i32, i32) {
    %c0_i32 = arith.constant 0 : i32
    %c0_i32_0 = arith.constant 0 : i32
    %c0_i32_1 = arith.constant 0 : i32
    return %c0_i32, %c0_i32_0 : i32, i32
  }
  func.func @transform_9(%arg0: i32) -> (i32, i32) {
    %c0_i32 = arith.constant 0 : i32
    %c0_i32_0 = arith.constant 0 : i32
    %c0_i32_1 = arith.constant 0 : i32
    return %c0_i32, %c0_i32_0 : i32, i32
  }
  func.func @transform_10(%arg0: i32) -> (i32, i32) {
    %c0_i32 = arith.constant 0 : i32
    %c0_i32_0 = arith.constant 0 : i32
    %c0_i32_1 = arith.constant 0 : i32
    return %c0_i32, %c0_i32_0 : i32, i32
  }
  func.func @transform_11(%arg0: i32) -> (i32, i32) {
    %c0_i32 = arith.constant 0 : i32
    %c0_i32_0 = arith.constant 0 : i32
    %c0_i32_1 = arith.constant 0 : i32
    return %c0_i32, %c0_i32_0 : i32, i32
  }
}

module attributes {stable_mosaic.version = 11 : i64} {
  func.func @_max_views_kernel(%arg0: i32, %arg1: memref<1x2x32xf32, #tpu.memory_space<vmem>>, %arg2: memref<1x32xf32, #tpu.memory_space<vmem>>) attributes {dimension_semantics = [#tpu.dimension_semantics<arbitrary>], iteration_bounds = array<i64: 1>, scalar_prefetch = 0 : i64, scratch_operands = 0 : i64, tpu.core_type = #tpu.core_type<tc>, window_params = [{pipeline_mode = #tpu.pipeline_mode<synchronous>, transform_indices = @transform_0, window_bounds = array<i64: 1, 2, 32>}, {pipeline_mode = #tpu.pipeline_mode<synchronous>, transform_indices = @transform_1, window_bounds = array<i64: 1, 32>}]} {
    %c0 = arith.constant 0 : index
    %c0_0 = arith.constant 0 : index
    %c0_1 = arith.constant 0 : index
    %0 = vector.load %arg1[%c0, %c0_0, %c0_1] : memref<1x2x32xf32, #tpu.memory_space<vmem>>, vector<1x2x32xf32>
    %cst = arith.constant dense<0xFF800000> : vector<1x32xf32>
    %1 = vector.multi_reduction <maximumf>, %0, %cst [1] : vector<1x2x32xf32> to vector<1x32xf32>
    %c0_2 = arith.constant 0 : index
    %c0_3 = arith.constant 0 : index
    %2 = vector.load %arg2[%c0_2, %c0_3] : memref<1x32xf32, #tpu.memory_space<vmem>>, vector<1x32xf32>
    tpu.vector_store %arg2[%c0_2, %c0_3], %1 {strides = array<i32>} : memref<1x32xf32, #tpu.memory_space<vmem>>, vector<1x32xf32>,
    return
  }
  func.func @transform_0(%arg0: i32) -> (i32, i32, i32) {
    %c0_i32 = arith.constant 0 : i32
    %c0_i32_0 = arith.constant 0 : i32
    %c0_i32_1 = arith.constant 0 : i32
    %c0_i32_2 = arith.constant 0 : i32
    return %c0_i32, %c0_i32_0, %c0_i32_1 : i32, i32, i32
  }
  func.func @transform_1(%arg0: i32) -> (i32, i32) {
    %c0_i32 = arith.constant 0 : i32
    %c0_i32_0 = arith.constant 0 : i32
    %c0_i32_1 = arith.constant 0 : i32
    return %c0_i32, %c0_i32_0 : i32, i32
  }
}

module attributes {stable_mosaic.version = 11 : i64} {
  func.func @_max_views_kernel(%arg0: i32, %arg1: memref<1x2x384xf32, #tpu.memory_space<vmem>>, %arg2: memref<1x384xf32, #tpu.memory_space<vmem>>) attributes {dimension_semantics = [#tpu.dimension_semantics<arbitrary>], iteration_bounds = array<i64: 1>, scalar_prefetch = 0 : i64, scratch_operands = 0 : i64, tpu.core_type = #tpu.core_type<tc>, window_params = [{pipeline_mode = #tpu.pipeline_mode<synchronous>, transform_indices = @transform_0, window_bounds = array<i64: 1, 2, 384>}, {pipeline_mode = #tpu.pipeline_mode<synchronous>, transform_indices = @transform_1, window_bounds = array<i64: 1, 384>}]} {
    %c0 = arith.constant 0 : index
    %c0_0 = arith.constant 0 : index
    %c0_1 = arith.constant 0 : index
    %0 = vector.load %arg1[%c0, %c0_0, %c0_1] : memref<1x2x384xf32, #tpu.memory_space<vmem>>, vector<1x2x384xf32>
    %cst = arith.constant dense<0xFF800000> : vector<1x384xf32>
    %1 = vector.multi_reduction <maximumf>, %0, %cst [1] : vector<1x2x384xf32> to vector<1x384xf32>
    %c0_2 = arith.constant 0 : index
    %c0_3 = arith.constant 0 : index
    %2 = vector.load %arg2[%c0_2, %c0_3] : memref<1x384xf32, #tpu.memory_space<vmem>>, vector<1x384xf32>
    tpu.vector_store %arg2[%c0_2, %c0_3], %1 {strides = array<i32>} : memref<1x384xf32, #tpu.memory_space<vmem>>, vector<1x384xf32>,
    return
  }
  func.func @transform_0(%arg0: i32) -> (i32, i32, i32) {
    %c0_i32 = arith.constant 0 : i32
    %c0_i32_0 = arith.constant 0 : i32
    %c0_i32_1 = arith.constant 0 : i32
    %c0_i32_2 = arith.constant 0 : i32
    return %c0_i32, %c0_i32_0, %c0_i32_1 : i32, i32, i32
  }
  func.func @transform_1(%arg0: i32) -> (i32, i32) {
    %c0_i32 = arith.constant 0 : i32
    %c0_i32_0 = arith.constant 0 : i32
    %c0_i32_1 = arith.constant 0 : i32
    return %c0_i32, %c0_i32_0 : i32, i32
  }
}

module attributes {stable_mosaic.version = 11 : i64} {
  func.func @_gmm_kernel(%arg0: i32, %arg1: i32, %arg2: memref<1x2x96xbf16, #tpu.memory_space<vmem>>, %arg3: memref<1x96x16xbf16, #tpu.memory_space<vmem>>, %arg4: memref<1x1x16xf32, #tpu.memory_space<vmem>>, %arg5: memref<1x2x16xbf16, #tpu.memory_space<vmem>>) attributes {dimension_semantics = [#tpu.dimension_semantics<parallel>, #tpu.dimension_semantics<arbitrary>], iteration_bounds = array<i64: 24, 1>, scalar_prefetch = 0 : i64, scratch_operands = 0 : i64, tpu.core_type = #tpu.core_type<tc>, window_params = [{transform_indices = @transform_0, window_bounds = array<i64: 1, 2, 96>}, {transform_indices = @transform_1, window_bounds = array<i64: 1, 96, 16>}, {transform_indices = @transform_2, window_bounds = array<i64: 1, 1, 16>}, {transform_indices = @transform_3, window_bounds = array<i64: 1, 2, 16>}]} {
    %c0 = arith.constant 0 : index
    %c0_0 = arith.constant 0 : index
    %c0_1 = arith.constant 0 : index
    %0 = vector.load %arg2[%c0, %c0_0, %c0_1] : memref<1x2x96xbf16, #tpu.memory_space<vmem>>, vector<1x2x96xbf16>
    %1 = vector.shape_cast %0 : vector<1x2x96xbf16> to vector<2x96xbf16>
    %c0_2 = arith.constant 0 : index
    %c0_3 = arith.constant 0 : index
    %c0_4 = arith.constant 0 : index
    %2 = vector.load %arg3[%c0_2, %c0_3, %c0_4] : memref<1x96x16xbf16, #tpu.memory_space<vmem>>, vector<1x96x16xbf16>
    %3 = vector.shape_cast %2 : vector<1x96x16xbf16> to vector<96x16xbf16>
    %cst = arith.constant dense<0.000000e+00> : vector<2x16xf32>
    %4 = tpu.matmul %1, %3, %cst {dimension_numbers = #tpu.dot_dimension_numbers<[1], [0], [0], [1], [0, 0, 1, 1], [], []>} : vector<2x96xbf16>, vector<96x16xbf16>, vector<2x16xf32> -> vector<2x16xf32>
    %c0_5 = arith.constant 0 : index
    %c0_6 = arith.constant 0 : index
    %c0_7 = arith.constant 0 : index
    %5 = vector.load %arg4[%c0_5, %c0_6, %c0_7] : memref<1x1x16xf32, #tpu.memory_space<vmem>>, vector<1x1x16xf32>
    %6 = vector.shape_cast %5 : vector<1x1x16xf32> to vector<1x16xf32>
    %7 = vector.broadcast %6 : vector<1x16xf32> to vector<2x16xf32>
    %8 = arith.addf %4, %7 : vector<2x16xf32>
    %cst_8 = arith.constant 0.000000e+00 : f32
    %9 = vector.broadcast %cst_8 : f32 to vector<2x16xf32>
    %10 = arith.cmpf ogt, %8, %9 : vector<2x16xf32>
    %cst_9 = arith.constant 0.00999999977 : f32
    %11 = vector.broadcast %cst_9 : f32 to vector<2x16xf32>
    %12 = arith.mulf %11, %8 : vector<2x16xf32>
    %13 = arith.select %10, %8, %12 : vector<2x16xi1>, vector<2x16xf32>
    %14 = arith.truncf %13 : vector<2x16xf32> to vector<2x16xbf16>
    %c0_10 = arith.constant 0 : index
    %c0_11 = arith.constant 0 : index
    %c0_12 = arith.constant 0 : index
    %15 = vector.load %arg5[%c0_10, %c0_11, %c0_12] : memref<1x2x16xbf16, #tpu.memory_space<vmem>>, vector<1x2x16xbf16>
    %16 = vector.shape_cast %15 : vector<1x2x16xbf16> to vector<2x16xbf16>
    %17 = vector.shape_cast %14 : vector<2x16xbf16> to vector<1x2x16xbf16>
    tpu.vector_store %arg5[%c0_10, %c0_11, %c0_12], %17 {strides = array<i32>} : memref<1x2x16xbf16, #tpu.memory_space<vmem>>, vector<1x2x16xbf16>,
    return
  }
  func.func @transform_0(%arg0: i32, %arg1: i32) -> (i32, i32, i32) {
    %c0_i32 = arith.constant 0 : i32
    %c0_i32_0 = arith.constant 0 : i32
    return %arg0, %arg1, %c0_i32 : i32, i32, i32
  }
  func.func @transform_1(%arg0: i32, %arg1: i32) -> (i32, i32, i32) {
    %c0_i32 = arith.constant 0 : i32
    %c0_i32_0 = arith.constant 0 : i32
    %c0_i32_1 = arith.constant 0 : i32
    return %arg0, %c0_i32, %c0_i32_0 : i32, i32, i32
  }
  func.func @transform_2(%arg0: i32, %arg1: i32) -> (i32, i32, i32) {
    %c0_i32 = arith.constant 0 : i32
    %c0_i32_0 = arith.constant 0 : i32
    %c0_i32_1 = arith.constant 0 : i32
    return %arg0, %c0_i32, %c0_i32_0 : i32, i32, i32
  }
  func.func @transform_3(%arg0: i32, %arg1: i32) -> (i32, i32, i32) {
    %c0_i32 = arith.constant 0 : i32
    %c0_i32_0 = arith.constant 0 : i32
    return %arg0, %arg1, %c0_i32 : i32, i32, i32
  }
}

module attributes {stable_mosaic.version = 11 : i64} {
  func.func @_gmm_kernel(%arg0: i32, %arg1: i32, %arg2: memref<1x4x192xbf16, #tpu.memory_space<vmem>>, %arg3: memref<1x192x16xbf16, #tpu.memory_space<vmem>>, %arg4: memref<1x1x16xf32, #tpu.memory_space<vmem>>, %arg5: memref<1x4x16xbf16, #tpu.memory_space<vmem>>) attributes {dimension_semantics = [#tpu.dimension_semantics<parallel>, #tpu.dimension_semantics<arbitrary>], iteration_bounds = array<i64: 24, 1>, scalar_prefetch = 0 : i64, scratch_operands = 0 : i64, tpu.core_type = #tpu.core_type<tc>, window_params = [{transform_indices = @transform_0, window_bounds = array<i64: 1, 4, 192>}, {transform_indices = @transform_1, window_bounds = array<i64: 1, 192, 16>}, {transform_indices = @transform_2, window_bounds = array<i64: 1, 1, 16>}, {transform_indices = @transform_3, window_bounds = array<i64: 1, 4, 16>}]} {
    %c0 = arith.constant 0 : index
    %c0_0 = arith.constant 0 : index
    %c0_1 = arith.constant 0 : index
    %0 = vector.load %arg2[%c0, %c0_0, %c0_1] : memref<1x4x192xbf16, #tpu.memory_space<vmem>>, vector<1x4x192xbf16>
    %1 = vector.shape_cast %0 : vector<1x4x192xbf16> to vector<4x192xbf16>
    %c0_2 = arith.constant 0 : index
    %c0_3 = arith.constant 0 : index
    %c0_4 = arith.constant 0 : index
    %2 = vector.load %arg3[%c0_2, %c0_3, %c0_4] : memref<1x192x16xbf16, #tpu.memory_space<vmem>>, vector<1x192x16xbf16>
    %3 = vector.shape_cast %2 : vector<1x192x16xbf16> to vector<192x16xbf16>
    %cst = arith.constant dense<0.000000e+00> : vector<4x16xf32>
    %4 = tpu.matmul %1, %3, %cst {dimension_numbers = #tpu.dot_dimension_numbers<[1], [0], [0], [1], [0, 0, 1, 1], [], []>} : vector<4x192xbf16>, vector<192x16xbf16>, vector<4x16xf32> -> vector<4x16xf32>
    %c0_5 = arith.constant 0 : index
    %c0_6 = arith.constant 0 : index
    %c0_7 = arith.constant 0 : index
    %5 = vector.load %arg4[%c0_5, %c0_6, %c0_7] : memref<1x1x16xf32, #tpu.memory_space<vmem>>, vector<1x1x16xf32>
    %6 = vector.shape_cast %5 : vector<1x1x16xf32> to vector<1x16xf32>
    %7 = vector.broadcast %6 : vector<1x16xf32> to vector<4x16xf32>
    %8 = arith.addf %4, %7 : vector<4x16xf32>
    %cst_8 = arith.constant 0.000000e+00 : f32
    %9 = vector.broadcast %cst_8 : f32 to vector<4x16xf32>
    %10 = arith.cmpf ogt, %8, %9 : vector<4x16xf32>
    %cst_9 = arith.constant 0.00999999977 : f32
    %11 = vector.broadcast %cst_9 : f32 to vector<4x16xf32>
    %12 = arith.mulf %11, %8 : vector<4x16xf32>
    %13 = arith.select %10, %8, %12 : vector<4x16xi1>, vector<4x16xf32>
    %14 = arith.truncf %13 : vector<4x16xf32> to vector<4x16xbf16>
    %c0_10 = arith.constant 0 : index
    %c0_11 = arith.constant 0 : index
    %c0_12 = arith.constant 0 : index
    %15 = vector.load %arg5[%c0_10, %c0_11, %c0_12] : memref<1x4x16xbf16, #tpu.memory_space<vmem>>, vector<1x4x16xbf16>
    %16 = vector.shape_cast %15 : vector<1x4x16xbf16> to vector<4x16xbf16>
    %17 = vector.shape_cast %14 : vector<4x16xbf16> to vector<1x4x16xbf16>
    tpu.vector_store %arg5[%c0_10, %c0_11, %c0_12], %17 {strides = array<i32>} : memref<1x4x16xbf16, #tpu.memory_space<vmem>>, vector<1x4x16xbf16>,
    return
  }
  func.func @transform_0(%arg0: i32, %arg1: i32) -> (i32, i32, i32) {
    %c0_i32 = arith.constant 0 : i32
    %c0_i32_0 = arith.constant 0 : i32
    return %arg0, %arg1, %c0_i32 : i32, i32, i32
  }
  func.func @transform_1(%arg0: i32, %arg1: i32) -> (i32, i32, i32) {
    %c0_i32 = arith.constant 0 : i32
    %c0_i32_0 = arith.constant 0 : i32
    %c0_i32_1 = arith.constant 0 : i32
    return %arg0, %c0_i32, %c0_i32_0 : i32, i32, i32
  }
  func.func @transform_2(%arg0: i32, %arg1: i32) -> (i32, i32, i32) {
    %c0_i32 = arith.constant 0 : i32
    %c0_i32_0 = arith.constant 0 : i32
    %c0_i32_1 = arith.constant 0 : i32
    return %arg0, %c0_i32, %c0_i32_0 : i32, i32, i32
  }
  func.func @transform_3(%arg0: i32, %arg1: i32) -> (i32, i32, i32) {
    %c0_i32 = arith.constant 0 : i32
    %c0_i32_0 = arith.constant 0 : i32
    return %arg0, %arg1, %c0_i32 : i32, i32, i32
  }
}

module attributes {stable_mosaic.version = 11 : i64} {
  func.func @_gmm_kernel(%arg0: i32, %arg1: i32, %arg2: memref<1x1x48xbf16, #tpu.memory_space<vmem>>, %arg3: memref<1x48x16xbf16, #tpu.memory_space<vmem>>, %arg4: memref<1x1x16xf32, #tpu.memory_space<vmem>>, %arg5: memref<1x1x16xbf16, #tpu.memory_space<vmem>>) attributes {dimension_semantics = [#tpu.dimension_semantics<parallel>, #tpu.dimension_semantics<arbitrary>], iteration_bounds = array<i64: 24, 1>, scalar_prefetch = 0 : i64, scratch_operands = 0 : i64, tpu.core_type = #tpu.core_type<tc>, window_params = [{transform_indices = @transform_0, window_bounds = array<i64: 1, 1, 48>}, {transform_indices = @transform_1, window_bounds = array<i64: 1, 48, 16>}, {transform_indices = @transform_2, window_bounds = array<i64: 1, 1, 16>}, {transform_indices = @transform_3, window_bounds = array<i64: 1, 1, 16>}]} {
    %c0 = arith.constant 0 : index
    %c0_0 = arith.constant 0 : index
    %c0_1 = arith.constant 0 : index
    %0 = vector.load %arg2[%c0, %c0_0, %c0_1] : memref<1x1x48xbf16, #tpu.memory_space<vmem>>, vector<1x1x48xbf16>
    %1 = vector.shape_cast %0 : vector<1x1x48xbf16> to vector<1x48xbf16>
    %c0_2 = arith.constant 0 : index
    %c0_3 = arith.constant 0 : index
    %c0_4 = arith.constant 0 : index
    %2 = vector.load %arg3[%c0_2, %c0_3, %c0_4] : memref<1x48x16xbf16, #tpu.memory_space<vmem>>, vector<1x48x16xbf16>
    %3 = vector.shape_cast %2 : vector<1x48x16xbf16> to vector<48x16xbf16>
    %cst = arith.constant dense<0.000000e+00> : vector<1x16xf32>
    %4 = tpu.matmul %1, %3, %cst {dimension_numbers = #tpu.dot_dimension_numbers<[1], [0], [0], [1], [0, 0, 1, 1], [], []>} : vector<1x48xbf16>, vector<48x16xbf16>, vector<1x16xf32> -> vector<1x16xf32>
    %c0_5 = arith.constant 0 : index
    %c0_6 = arith.constant 0 : index
    %c0_7 = arith.constant 0 : index
    %5 = vector.load %arg4[%c0_5, %c0_6, %c0_7] : memref<1x1x16xf32, #tpu.memory_space<vmem>>, vector<1x1x16xf32>
    %6 = vector.shape_cast %5 : vector<1x1x16xf32> to vector<1x16xf32>
    %7 = arith.addf %4, %6 : vector<1x16xf32>
    %cst_8 = arith.constant 0.000000e+00 : f32
    %8 = vector.broadcast %cst_8 : f32 to vector<1x16xf32>
    %9 = arith.cmpf ogt, %7, %8 : vector<1x16xf32>
    %cst_9 = arith.constant 0.00999999977 : f32
    %10 = vector.broadcast %cst_9 : f32 to vector<1x16xf32>
    %11 = arith.mulf %10, %7 : vector<1x16xf32>
    %12 = arith.select %9, %7, %11 : vector<1x16xi1>, vector<1x16xf32>
    %13 = arith.truncf %12 : vector<1x16xf32> to vector<1x16xbf16>
    %c0_10 = arith.constant 0 : index
    %c0_11 = arith.constant 0 : index
    %c0_12 = arith.constant 0 : index
    %14 = vector.load %arg5[%c0_10, %c0_11, %c0_12] : memref<1x1x16xbf16, #tpu.memory_space<vmem>>, vector<1x1x16xbf16>
    %15 = vector.shape_cast %14 : vector<1x1x16xbf16> to vector<1x16xbf16>
    %16 = vector.shape_cast %13 : vector<1x16xbf16> to vector<1x1x16xbf16>
    tpu.vector_store %arg5[%c0_10, %c0_11, %c0_12], %16 {strides = array<i32>} : memref<1x1x16xbf16, #tpu.memory_space<vmem>>, vector<1x1x16xbf16>,
    return
  }
  func.func @transform_0(%arg0: i32, %arg1: i32) -> (i32, i32, i32) {
    %c0_i32 = arith.constant 0 : i32
    %c0_i32_0 = arith.constant 0 : i32
    return %arg0, %arg1, %c0_i32 : i32, i32, i32
  }
  func.func @transform_1(%arg0: i32, %arg1: i32) -> (i32, i32, i32) {
    %c0_i32 = arith.constant 0 : i32
    %c0_i32_0 = arith.constant 0 : i32
    %c0_i32_1 = arith.constant 0 : i32
    return %arg0, %c0_i32, %c0_i32_0 : i32, i32, i32
  }
  func.func @transform_2(%arg0: i32, %arg1: i32) -> (i32, i32, i32) {
    %c0_i32 = arith.constant 0 : i32
    %c0_i32_0 = arith.constant 0 : i32
    %c0_i32_1 = arith.constant 0 : i32
    return %arg0, %c0_i32, %c0_i32_0 : i32, i32, i32
  }
  func.func @transform_3(%arg0: i32, %arg1: i32) -> (i32, i32, i32) {
    %c0_i32 = arith.constant 0 : i32
    %c0_i32_0 = arith.constant 0 : i32
    return %arg0, %arg1, %c0_i32 : i32, i32, i32
  }
}

module attributes {stable_mosaic.version = 11 : i64} {
  func.func @_gmm_kernel(%arg0: i32, %arg1: i32, %arg2: memref<1x9x144xbf16, #tpu.memory_space<vmem>>, %arg3: memref<1x144x32xbf16, #tpu.memory_space<vmem>>, %arg4: memref<1x1x32xf32, #tpu.memory_space<vmem>>, %arg5: memref<1x9x32xbf16, #tpu.memory_space<vmem>>) attributes {dimension_semantics = [#tpu.dimension_semantics<parallel>, #tpu.dimension_semantics<arbitrary>], iteration_bounds = array<i64: 24, 1>, scalar_prefetch = 0 : i64, scratch_operands = 0 : i64, tpu.core_type = #tpu.core_type<tc>, window_params = [{transform_indices = @transform_0, window_bounds = array<i64: 1, 9, 144>}, {transform_indices = @transform_1, window_bounds = array<i64: 1, 144, 32>}, {transform_indices = @transform_2, window_bounds = array<i64: 1, 1, 32>}, {transform_indices = @transform_3, window_bounds = array<i64: 1, 9, 32>}]} {
    %c0 = arith.constant 0 : index
    %c0_0 = arith.constant 0 : index
    %c0_1 = arith.constant 0 : index
    %0 = vector.load %arg2[%c0, %c0_0, %c0_1] : memref<1x9x144xbf16, #tpu.memory_space<vmem>>, vector<1x9x144xbf16>
    %1 = vector.shape_cast %0 : vector<1x9x144xbf16> to vector<9x144xbf16>
    %c0_2 = arith.constant 0 : index
    %c0_3 = arith.constant 0 : index
    %c0_4 = arith.constant 0 : index
    %2 = vector.load %arg3[%c0_2, %c0_3, %c0_4] : memref<1x144x32xbf16, #tpu.memory_space<vmem>>, vector<1x144x32xbf16>
    %3 = vector.shape_cast %2 : vector<1x144x32xbf16> to vector<144x32xbf16>
    %cst = arith.constant dense<0.000000e+00> : vector<9x32xf32>
    %4 = tpu.matmul %1, %3, %cst {dimension_numbers = #tpu.dot_dimension_numbers<[1], [0], [0], [1], [0, 0, 1, 1], [], []>} : vector<9x144xbf16>, vector<144x32xbf16>, vector<9x32xf32> -> vector<9x32xf32>
    %c0_5 = arith.constant 0 : index
    %c0_6 = arith.constant 0 : index
    %c0_7 = arith.constant 0 : index
    %5 = vector.load %arg4[%c0_5, %c0_6, %c0_7] : memref<1x1x32xf32, #tpu.memory_space<vmem>>, vector<1x1x32xf32>
    %6 = vector.shape_cast %5 : vector<1x1x32xf32> to vector<1x32xf32>
    %7 = vector.broadcast %6 : vector<1x32xf32> to vector<9x32xf32>
    %8 = arith.addf %4, %7 : vector<9x32xf32>
    %cst_8 = arith.constant 0.000000e+00 : f32
    %9 = vector.broadcast %cst_8 : f32 to vector<9x32xf32>
    %10 = arith.cmpf ogt, %8, %9 : vector<9x32xf32>
    %cst_9 = arith.constant 0.00999999977 : f32
    %11 = vector.broadcast %cst_9 : f32 to vector<9x32xf32>
    %12 = arith.mulf %11, %8 : vector<9x32xf32>
    %13 = arith.select %10, %8, %12 : vector<9x32xi1>, vector<9x32xf32>
    %14 = arith.truncf %13 : vector<9x32xf32> to vector<9x32xbf16>
    %c0_10 = arith.constant 0 : index
    %c0_11 = arith.constant 0 : index
    %c0_12 = arith.constant 0 : index
    %15 = vector.load %arg5[%c0_10, %c0_11, %c0_12] : memref<1x9x32xbf16, #tpu.memory_space<vmem>>, vector<1x9x32xbf16>
    %16 = vector.shape_cast %15 : vector<1x9x32xbf16> to vector<9x32xbf16>
    %17 = vector.shape_cast %14 : vector<9x32xbf16> to vector<1x9x32xbf16>
    tpu.vector_store %arg5[%c0_10, %c0_11, %c0_12], %17 {strides = array<i32>} : memref<1x9x32xbf16, #tpu.memory_space<vmem>>, vector<1x9x32xbf16>,
    return
  }
  func.func @transform_0(%arg0: i32, %arg1: i32) -> (i32, i32, i32) {
    %c0_i32 = arith.constant 0 : i32
    %c0_i32_0 = arith.constant 0 : i32
    return %arg0, %arg1, %c0_i32 : i32, i32, i32
  }
  func.func @transform_1(%arg0: i32, %arg1: i32) -> (i32, i32, i32) {
    %c0_i32 = arith.constant 0 : i32
    %c0_i32_0 = arith.constant 0 : i32
    %c0_i32_1 = arith.constant 0 : i32
    return %arg0, %c0_i32, %c0_i32_0 : i32, i32, i32
  }
  func.func @transform_2(%arg0: i32, %arg1: i32) -> (i32, i32, i32) {
    %c0_i32 = arith.constant 0 : i32
    %c0_i32_0 = arith.constant 0 : i32
    %c0_i32_1 = arith.constant 0 : i32
    return %arg0, %c0_i32, %c0_i32_0 : i32, i32, i32
  }
  func.func @transform_3(%arg0: i32, %arg1: i32) -> (i32, i32, i32) {
    %c0_i32 = arith.constant 0 : i32
    %c0_i32_0 = arith.constant 0 : i32
    return %arg0, %arg1, %c0_i32 : i32, i32, i32
  }
}

module attributes {stable_mosaic.version = 11 : i64} {
  func.func @_gmm_fused_kernel(%arg0: i32, %arg1: i32, %arg2: memref<1x36x72xbf16, #tpu.memory_space<vmem>>, %arg3: memref<1x72x32xbf16, #tpu.memory_space<vmem>>, %arg4: memref<1x1x32xf32, #tpu.memory_space<vmem>>, %arg5: memref<1x32x12xf32, #tpu.memory_space<vmem>>, %arg6: memref<1x1x12xf32, #tpu.memory_space<vmem>>, %arg7: memref<1x36x12xf32, #tpu.memory_space<vmem>>) attributes {dimension_semantics = [#tpu.dimension_semantics<parallel>, #tpu.dimension_semantics<arbitrary>], iteration_bounds = array<i64: 24, 1>, scalar_prefetch = 0 : i64, scratch_operands = 0 : i64, tpu.core_type = #tpu.core_type<tc>, window_params = [{transform_indices = @transform_0, window_bounds = array<i64: 1, 36, 72>}, {transform_indices = @transform_1, window_bounds = array<i64: 1, 72, 32>}, {transform_indices = @transform_2, window_bounds = array<i64: 1, 1, 32>}, {transform_indices = @transform_3, window_bounds = array<i64: 1, 32, 12>}, {transform_indices = @transform_4, window_bounds = array<i64: 1, 1, 12>}, {transform_indices = @transform_5, window_bounds = array<i64: 1, 36, 12>}]} {
    %c0 = arith.constant 0 : index
    %c0_0 = arith.constant 0 : index
    %c0_1 = arith.constant 0 : index
    %0 = vector.load %arg2[%c0, %c0_0, %c0_1] : memref<1x36x72xbf16, #tpu.memory_space<vmem>>, vector<1x36x72xbf16>
    %1 = vector.shape_cast %0 : vector<1x36x72xbf16> to vector<36x72xbf16>
    %c0_2 = arith.constant 0 : index
    %c0_3 = arith.constant 0 : index
    %c0_4 = arith.constant 0 : index
    %2 = vector.load %arg3[%c0_2, %c0_3, %c0_4] : memref<1x72x32xbf16, #tpu.memory_space<vmem>>, vector<1x72x32xbf16>
    %3 = vector.shape_cast %2 : vector<1x72x32xbf16> to vector<72x32xbf16>
    %cst = arith.constant dense<0.000000e+00> : vector<36x32xf32>
    %4 = tpu.matmul %1, %3, %cst {dimension_numbers = #tpu.dot_dimension_numbers<[1], [0], [0], [1], [0, 0, 1, 1], [], []>} : vector<36x72xbf16>, vector<72x32xbf16>, vector<36x32xf32> -> vector<36x32xf32>
    %c0_5 = arith.constant 0 : index
    %c0_6 = arith.constant 0 : index
    %c0_7 = arith.constant 0 : index
    %5 = vector.load %arg4[%c0_5, %c0_6, %c0_7] : memref<1x1x32xf32, #tpu.memory_space<vmem>>, vector<1x1x32xf32>
    %6 = vector.shape_cast %5 : vector<1x1x32xf32> to vector<1x32xf32>
    %7 = vector.broadcast %6 : vector<1x32xf32> to vector<36x32xf32>
    %8 = arith.addf %4, %7 : vector<36x32xf32>
    %cst_8 = arith.constant 0.000000e+00 : f32
    %9 = vector.broadcast %cst_8 : f32 to vector<36x32xf32>
    %10 = arith.cmpf ogt, %8, %9 : vector<36x32xf32>
    %cst_9 = arith.constant 0.00999999977 : f32
    %11 = vector.broadcast %cst_9 : f32 to vector<36x32xf32>
    %12 = arith.mulf %11, %8 : vector<36x32xf32>
    %13 = arith.select %10, %8, %12 : vector<36x32xi1>, vector<36x32xf32>
    %c0_10 = arith.constant 0 : index
    %c0_11 = arith.constant 0 : index
    %c0_12 = arith.constant 0 : index
    %14 = vector.load %arg5[%c0_10, %c0_11, %c0_12] : memref<1x32x12xf32, #tpu.memory_space<vmem>>, vector<1x32x12xf32>
    %15 = vector.shape_cast %14 : vector<1x32x12xf32> to vector<32x12xf32>
    %cst_13 = arith.constant dense<0.000000e+00> : vector<36x12xf32>
    %16 = tpu.matmul %13, %15, %cst_13 {dimension_numbers = #tpu.dot_dimension_numbers<[1], [0], [0], [1], [0, 0, 1, 1], [], []>} : vector<36x32xf32>, vector<32x12xf32>, vector<36x12xf32> -> vector<36x12xf32>
    %c0_14 = arith.constant 0 : index
    %c0_15 = arith.constant 0 : index
    %c0_16 = arith.constant 0 : index
    %17 = vector.load %arg6[%c0_14, %c0_15, %c0_16] : memref<1x1x12xf32, #tpu.memory_space<vmem>>, vector<1x1x12xf32>
    %18 = vector.shape_cast %17 : vector<1x1x12xf32> to vector<1x12xf32>
    %19 = vector.broadcast %18 : vector<1x12xf32> to vector<36x12xf32>
    %20 = arith.addf %16, %19 : vector<36x12xf32>
    %21 = math.tanh %20 : vector<36x12xf32>
    %c0_17 = arith.constant 0 : index
    %c0_18 = arith.constant 0 : index
    %c0_19 = arith.constant 0 : index
    %22 = vector.load %arg7[%c0_17, %c0_18, %c0_19] : memref<1x36x12xf32, #tpu.memory_space<vmem>>, vector<1x36x12xf32>
    %23 = vector.shape_cast %22 : vector<1x36x12xf32> to vector<36x12xf32>
    %24 = vector.shape_cast %21 : vector<36x12xf32> to vector<1x36x12xf32>
    tpu.vector_store %arg7[%c0_17, %c0_18, %c0_19], %24 {strides = array<i32>} : memref<1x36x12xf32, #tpu.memory_space<vmem>>, vector<1x36x12xf32>,
    return
  }
  func.func @transform_0(%arg0: i32, %arg1: i32) -> (i32, i32, i32) {
    %c0_i32 = arith.constant 0 : i32
    %c0_i32_0 = arith.constant 0 : i32
    return %arg0, %arg1, %c0_i32 : i32, i32, i32
  }
  func.func @transform_1(%arg0: i32, %arg1: i32) -> (i32, i32, i32) {
    %c0_i32 = arith.constant 0 : i32
    %c0_i32_0 = arith.constant 0 : i32
    %c0_i32_1 = arith.constant 0 : i32
    return %arg0, %c0_i32, %c0_i32_0 : i32, i32, i32
  }
  func.func @transform_2(%arg0: i32, %arg1: i32) -> (i32, i32, i32) {
    %c0_i32 = arith.constant 0 : i32
    %c0_i32_0 = arith.constant 0 : i32
    %c0_i32_1 = arith.constant 0 : i32
    return %arg0, %c0_i32, %c0_i32_0 : i32, i32, i32
  }
  func.func @transform_3(%arg0: i32, %arg1: i32) -> (i32, i32, i32) {
    %c0_i32 = arith.constant 0 : i32
    %c0_i32_0 = arith.constant 0 : i32
    %c0_i32_1 = arith.constant 0 : i32
    return %arg0, %c0_i32, %c0_i32_0 : i32, i32, i32
  }
  func.func @transform_4(%arg0: i32, %arg1: i32) -> (i32, i32, i32) {
    %c0_i32 = arith.constant 0 : i32
    %c0_i32_0 = arith.constant 0 : i32
    %c0_i32_1 = arith.constant 0 : i32
    return %arg0, %c0_i32, %c0_i32_0 : i32, i32, i32
  }
  func.func @transform_5(%arg0: i32, %arg1: i32) -> (i32, i32, i32) {
    %c0_i32 = arith.constant 0 : i32
    %c0_i32_0 = arith.constant 0 : i32
    return %arg0, %arg1, %c0_i32 : i32, i32, i32
  }
}

</mosaic_0001>

<llo_original>
// kernel: _lambda_.15
$region0: #{_lambda_.15}
  #allocation0 [shape = 'u32[]', space=smem, size = 0x4, offset = 0x4, fixed_abs, tag = 'smem constant byte address 0x4 - core index']
  #allocation1 [shape = 'u32[72,128]{1,0:T(1,128)}', space=vmem, size = 0x9000, scoped, tag = 'internal scratch']
  %s0 = inlined_call_operand.vmem [shape: bf16[24,288,27], index: 0, kind: input, shape index: {}]
  %s1 = inlined_call_operand.vmem [shape: bf16[24,27,8], index: 1, kind: input, shape index: {}]
  %s2 = inlined_call_operand.vmem [shape: f32[24,1,8], index: 2, kind: input, shape index: {}]
  %s3 = inlined_call_operand.vmem [shape: bf16[24,288,8], index: 3, kind: output, shape index: {}]
  %s4 = sld [smem:[#allocation0]]
  $region45: #{_lambda_.15} parent=0
    _
  %s6 = ssub.s32 1, %s4
  %s7 = scalar_select 0, %s6, %s4
  loop: start=0, step=1, limit=26
  $region2: #{_lambda_.15} parent=0 // loop_pre_header
    _
  $region3: #{_lambda_.15} parent=0 // loop_header
    %s9 = sphi 0, %s13
    %p10 = scmp.ge.s32.totalorder %s9, 26
    %s16 = sphi 0, %s28
    %s17 = sphi 0, %s24
    %s18 = sphi 0, %s16
    %s19 = sphi 0, %s17
    %s20 = sphi 0, %s18
    %s21 = sphi 0, %s19
    %s33 = sphi 0, %s35
    %s36 = sphi 0, %s33
    %s37 = sphi 0, %s36
    %s53 = sphi 0, %s37
    %s59 = sphi 0, %s61
    %s62 = sphi 0, %s59
    %s63 = sphi 0, %s62
    %s79 = sphi 0, %s63
    %s85 = sphi 0, %s87
    %s88 = sphi 0, %s85
    %s89 = sphi 0, %s88
    %s105 = sphi 0, %s89
    %s113 = sphi 0, %s115
    %s116 = sphi 0, %s113
    %s117 = sphi 0, %s116
    %s133 = sphi 0, %s117
  $region4: #{_lambda_.15} parent=0 // loop_header_branch
    %12 = sbr.rel (%p10) target = $region8
  $region5: #{_lambda_.15} parent=0 // loop_body
    %s14 = ssub.s32 %s9, 1
    %s15 = ssub.s32 %s9, 2
    %s22 = sadd.s32 1, %s17
    %p23 = scmp.ge.s32.totalorder %s22, 1
    %s24 = scalar_select %p23, 0, %s22
    %s25 = sadd.s32 1, %s16
    %s26 = scalar_select %p23, %s25, %s16
    %p27 = scmp.ge.s32.totalorder %s26, 24
    %s28 = scalar_select %p27, 0, %s26
    %s29 = ssub.s32 %s16, %s28
    %s30 = ssub.s32 %s17, %s24
    %s31 = sor.u32 %s29, %s30
    %p32 = scmp.eq.s32.totalorder %s31, 0
    %s34 = sadd.s32 %s33, 1
    %s35 = scalar_select %p32, %s33, %s34
    %p38 = pneg %p32
    %p39 = scmp.eq.s32.totalorder %s9, 23
    %p40 = por %p38, %p39
    %p41 = scmp.ne.s32.totalorder %s33, %s36
    %p42 = scmp.eq.s32.totalorder %s9, 0
    %p43 = por %p41, %p42
    %p44 = scmp.ne.s32.totalorder %s33, %s36
    %p45 = scmp.eq.s32.totalorder %s14, 23
    %p46 = por %p44, %p45
    %p47 = scmp.ne.s32.totalorder %s36, %s37
    %p48 = scmp.eq.s32.totalorder %s14, 0
    %p49 = por %p47, %p48
    %p50 = scmp.ne.s32.totalorder %s36, %s37
    %p51 = scmp.eq.s32.totalorder %s15, 23
    %p52 = por %p50, %p51
    %p54 = scmp.ne.s32.totalorder %s37, %s53
    %p55 = scmp.eq.s32.totalorder %s15, 0
    %p56 = por %p54, %p55
    %s57 = ssub.s32 %s16, %s28
    %p58 = scmp.eq.s32.totalorder %s57, 0
    %s60 = sadd.s32 %s59, 1
    %s61 = scalar_select %p58, %s59, %s60
    %p64 = pneg %p58
    %p65 = scmp.eq.s32.totalorder %s9, 23
    %p66 = por %p64, %p65
    %p67 = scmp.ne.s32.totalorder %s59, %s62
    %p68 = scmp.eq.s32.totalorder %s9, 0
    %p69 = por %p67, %p68
    %p70 = scmp.ne.s32.totalorder %s59, %s62
    %p71 = scmp.eq.s32.totalorder %s14, 23
    %p72 = por %p70, %p71
    %p73 = scmp.ne.s32.totalorder %s62, %s63
    %p74 = scmp.eq.s32.totalorder %s14, 0
    %p75 = por %p73, %p74
    %p76 = scmp.ne.s32.totalorder %s62, %s63
    %p77 = scmp.eq.s32.totalorder %s15, 23
    %p78 = por %p76, %p77
    %p80 = scmp.ne.s32.totalorder %s63, %s79
    %p81 = scmp.eq.s32.totalorder %s15, 0
    %p82 = por %p80, %p81
    %s83 = ssub.s32 %s16, %s28
    %p84 = scmp.eq.s32.totalorder %s83, 0
    %s86 = sadd.s32 %s85, 1
    %s87 = scalar_select %p84, %s85, %s86
    %p90 = pneg %p84
    %p91 = scmp.eq.s32.totalorder %s9, 23
    %p92 = por %p90, %p91
    %p93 = scmp.ne.s32.totalorder %s85, %s88
    %p94 = scmp.eq.s32.totalorder %s9, 0
    %p95 = por %p93, %p94
    %p96 = scmp.ne.s32.totalorder %s85, %s88
    %p97 = scmp.eq.s32.totalorder %s14, 23
    %p98 = por %p96, %p97
    %p99 = scmp.ne.s32.totalorder %s88, %s89
    %p100 = scmp.eq.s32.totalorder %s14, 0
    %p101 = por %p99, %p100
    %p102 = scmp.ne.s32.totalorder %s88, %s89
    %p103 = scmp.eq.s32.totalorder %s15, 23
    %p104 = por %p102, %p103
    %p106 = scmp.ne.s32.totalorder %s89, %s105
    %p107 = scmp.eq.s32.totalorder %s15, 0
    %p108 = por %p106, %p107
    %s109 = ssub.s32 %s16, %s28
    %s110 = ssub.s32 %s17, %s24
    %s111 = sor.u32 %s109, %s110
    %p112 = scmp.eq.s32.totalorder %s111, 0
    %s114 = sadd.s32 %s113, 1
    %s115 = scalar_select %p112, %s113, %s114
    %p118 = pneg %p112
    %p119 = scmp.eq.s32.totalorder %s9, 23
    %p120 = por %p118, %p119
    %p121 = scmp.ne.s32.totalorder %s113, %s116
    %p122 = scmp.eq.s32.totalorder %s9, 0
    %p123 = por %p121, %p122
    %p124 = scmp.ne.s32.totalorder %s113, %s116
    %p125 = scmp.eq.s32.totalorder %s14, 23
    %p126 = por %p124, %p125
    %p127 = scmp.ne.s32.totalorder %s116, %s117
    %p128 = scmp.eq.s32.totalorder %s14, 0
    %p129 = por %p127, %p128
    %p130 = scmp.ne.s32.totalorder %s116, %s117
    %p131 = scmp.eq.s32.totalorder %s15, 23
    %p132 = por %p130, %p131
    %p134 = scmp.ne.s32.totalorder %s117, %s133
    %p135 = scmp.eq.s32.totalorder %s15, 0
    %p136 = por %p134, %p135
    %p137 = scmp.le.s32.totalorder 1, %s9
    %p138 = scmp.lt.s32.totalorder %s9, 25
    %p139 = pnand %p137, %p138
    %p140 = pneg %p139
    // Predicated region
    $region9: #{_lambda_.15} parent=5 // pred_check
      _
    $region10: #{_lambda_.15} parent=5 // pred_check_branch
      %142 = sbr.rel (%p139) target = $region12
    $region11: #{_lambda_.15} parent=5 // pred_region
      %s143 = ssub.s32 %s9, 1
    $region12: #{_lambda_.15} parent=5 // pred_fallthru
      _
    %p144 = scmp.lt.s32.totalorder %s9, 24
    // Predicated region
    $region13: #{_lambda_.15} parent=5 // pred_check
      %p145 = pneg %p144
    $region14: #{_lambda_.15} parent=5 // pred_check_branch
      %147 = sbr.rel (%p145) target = $region16
    $region15: #{_lambda_.15} parent=5 // pred_region
      // Predicated region
      $region17: #{_lambda_.15} parent=15 // pred_check
        %p148 = pneg %p43
      $region18: #{_lambda_.15} parent=15 // pred_check_branch
        %150 = sbr.rel (%p148) target = $region20
      $region19: #{_lambda_.15} parent=15 // pred_region
        %s151 = smul.u32 36, %s17
        %p152 = scmp.lt.s32.totalorder %s16, 23
        %s153 = scalar_select %p152, %s16, 23
        %p154 = scmp.lt.s32.totalorder %s151, 35
        %s155 = scalar_select %p154, %s151, 35
        %s156 = smul.addr %s153, 36
        %s157 = sadd.s32 %s155, %s156
        %s158 = smul.addr %s157, 4
        %s159 = scalar_lea.vmem %s0, %s158
        %s160 = smul.u32 36, %s17
      $region20: #{_lambda_.15} parent=15 // pred_fallthru
        _
      // Predicated region
      $region21: #{_lambda_.15} parent=15 // pred_check
        %p161 = pneg %p69
      $region22: #{_lambda_.15} parent=15 // pred_check_branch
        %163 = sbr.rel (%p161) target = $region24
      $region23: #{_lambda_.15} parent=15 // pred_region
        %p164 = scmp.lt.s32.totalorder %s16, 23
        %s165 = scalar_select %p164, %s16, 23
        %s166 = smul.addr %s165, 4
        %s167 = smul.addr %s166, 4
        %s168 = scalar_lea.vmem %s1, %s167
      $region24: #{_lambda_.15} parent=15 // pred_fallthru
        _
      // Predicated region
      $region25: #{_lambda_.15} parent=15 // pred_check
        %p169 = pneg %p95
      $region26: #{_lambda_.15} parent=15 // pred_check_branch
        %171 = sbr.rel (%p169) target = $region28
      $region27: #{_lambda_.15} parent=15 // pred_region
        %p172 = scmp.lt.s32.totalorder %s16, 23
        %s173 = scalar_select %p172, %s16, 23
        %s174 = scalar_lea.vmem %s2, %s173
      $region28: #{_lambda_.15} parent=15 // pred_fallthru
        _
    $region16: #{_lambda_.15} parent=5 // pred_fallthru
      _
    %p175 = scmp.le.s32.totalorder 1, %s9
    %p176 = scmp.lt.s32.totalorder %s9, 25
    %p177 = pnand %p175, %p176
    %p178 = pneg %p177
    // Predicated region
    $region29: #{_lambda_.15} parent=5 // pred_check
      _
    $region30: #{_lambda_.15} parent=5 // pred_check_branch
      %180 = sbr.rel (%p177) target = $region32
    $region31: #{_lambda_.15} parent=5 // pred_region
      %s181 = ssub.s32 %s9, 1
      %s182 = smul.u32 36, %s19
      %p183 = scmp.lt.s32.totalorder %s18, 23
      %s184 = scalar_select %p183, %s18, 23
      %p185 = scmp.lt.s32.totalorder %s182, 35
      %s186 = scalar_select %p185, %s182, 35
      %s187 = smul.addr %s184, 36
      %s188 = sadd.s32 %s186, %s187
      %s189 = smul.addr %s188, 4
      %s190 = scalar_lea.vmem %s0, %s189
      %p191 = pneg %p49
      %p192 = pneg %p46
      %p193 = scmp.lt.s32.totalorder %s18, 23
      %s194 = scalar_select %p193, %s18, 23
      %s195 = smul.addr %s194, 4
      %s196 = smul.addr %s195, 4
      %s197 = scalar_lea.vmem %s1, %s196
      %p198 = pneg %p75
      %p199 = pneg %p72
      %p200 = scmp.lt.s32.totalorder %s18, 23
      %s201 = scalar_select %p200, %s18, 23
      %s202 = scalar_lea.vmem %s2, %s201
      %p203 = pneg %p101
      %p204 = pneg %p98
      %p205 = pneg %p129
      %p206 = pneg %p126
      %s207 = smul.u32 36, %s19
      %p208 = scmp.lt.s32.totalorder %s18, 23
      %s209 = scalar_select %p208, %s18, 23
      %p210 = scmp.lt.s32.totalorder %s207, 35
      %s211 = scalar_select %p210, %s207, 35
      %s212 = smul.addr %s209, 36
      %s213 = sadd.s32 %s211, %s212
      %s214 = smul.addr %s213, 4
      %s215 = scalar_lea.vmem %s3, %s214
      %s216 = smul.u32 36, %s19
      %p217 = scmp.lt.s32.totalorder %s18, 23
      %s218 = scalar_select %p217, %s18, 23
      %p219 = scmp.lt.s32.totalorder %s216, 35
      %s220 = scalar_select %p219, %s216, 35
      %s221 = smul.addr %s218, 36
      %s222 = sadd.s32 %s220, %s221
      %s223 = smul.addr %s222, 4
      %s224 = scalar_lea.vmem %s0, %s223
      %s225 = smul.u32 36, %s19
      %p226 = scmp.lt.s32.totalorder %s18, 23
      %s227 = scalar_select %p226, %s18, 23
      %s228 = smul.addr %s227, 4
      %s229 = smul.addr %s228, 4
      %s230 = scalar_lea.vmem %s1, %s229
      %p231 = scmp.lt.s32.totalorder %s18, 23
      %s232 = scalar_select %p231, %s18, 23
      %s233 = scalar_lea.vmem %s2, %s232
      %s234 = smul.u32 36, %s19
      %p235 = scmp.lt.s32.totalorder %s18, 23
      %s236 = scalar_select %p235, %s18, 23
      %p237 = scmp.lt.s32.totalorder %s234, 35
      %s238 = scalar_select %p237, %s234, 35
      %s239 = smul.addr %s236, 36
      %s240 = sadd.s32 %s238, %s239
      %s241 = smul.addr %s240, 4
      %s242 = scalar_lea.vmem %s3, %s241
      %s243 = smul.u32 36, %s19
      %v245 = vld [vmem:[%s224] sm:$0xf]
      %v246 = vld [vmem:[%s224 + $0x4] sm:$0xf]
      %v247 = vld [vmem:[%s224 + $0x8] sm:$0xf]
      %v248 = vld [vmem:[%s224 + $0xc] sm:$0xf]
      %v249 = vld [vmem:[%s224 + $0x10] sm:$0xf]
      %v250 = vld [vmem:[%s224 + $0x14] sm:$0xf]
      %v251 = vld [vmem:[%s224 + $0x18] sm:$0xf]
      %v252 = vld [vmem:[%s224 + $0x1c] sm:$0xf]
      %v253 = vld [vmem:[%s224 + $0x20] sm:$0xf]
      %v254 = vld [vmem:[%s224 + $0x24] sm:$0xf]
      %v255 = vld [vmem:[%s224 + $0x28] sm:$0xf]
      %v256 = vld [vmem:[%s224 + $0x2c] sm:$0xf]
      %v257 = vld [vmem:[%s224 + $0x30] sm:$0xf]
      %v258 = vld [vmem:[%s224 + $0x34] sm:$0xf]
      %v259 = vld [vmem:[%s224 + $0x38] sm:$0xf]
      %v260 = vld [vmem:[%s224 + $0x3c] sm:$0xf]
      %v261 = vld [vmem:[%s224 + $0x40] sm:$0xf]
      %v262 = vld [vmem:[%s224 + $0x44] sm:$0xf]
      %v263 = vld [vmem:[%s224 + $0x48] sm:$0xf]
      %v264 = vld [vmem:[%s224 + $0x4c] sm:$0xf]
      %v265 = vld [vmem:[%s224 + $0x50] sm:$0xf]
      %v266 = vld [vmem:[%s224 + $0x54] sm:$0xf]
      %v267 = vld [vmem:[%s224 + $0x58] sm:$0xf]
      %v268 = vld [vmem:[%s224 + $0x5c] sm:$0xf]
      %v269 = vld [vmem:[%s224 + $0x60] sm:$0xf]
      %v270 = vld [vmem:[%s224 + $0x64] sm:$0xf]
      %v271 = vld [vmem:[%s224 + $0x68] sm:$0xf]
      %v272 = vld [vmem:[%s224 + $0x6c] sm:$0xf]
      %v273 = vld [vmem:[%s224 + $0x70] sm:$0xf]
      %v274 = vld [vmem:[%s224 + $0x74] sm:$0xf]
      %v275 = vld [vmem:[%s224 + $0x78] sm:$0xf]
      %v276 = vld [vmem:[%s224 + $0x7c] sm:$0xf]
      %v277 = vld [vmem:[%s224 + $0x80] sm:$0xf]
      %v278 = vld [vmem:[%s224 + $0x84] sm:$0xf]
      %v279 = vld [vmem:[%s224 + $0x88] sm:$0xf]
      %v280 = vld [vmem:[%s224 + $0x8c] sm:$0xf]
      %v281 = vld [vmem:[%s230] sm:$0xf]
      %v282 = vld [vmem:[%s230 + $0x4] sm:$0xf]
      %v283 = vld [vmem:[%s230 + $0x8] sm:$0xf]
      %v284 = vld [vmem:[%s230 + $0xc] sm:$0x3]
      %v285 = vld [vmem:[%s233] sm:$0x1]
      %v287 = vperm.slane %v285, 0
      %v325 = vunpack.c.l.b16 %v245
      %v326 = vunpack.c.l.b16 %v246
      %v327 = vunpack.c.l.b16 %v247
      %v328 = vunpack.c.l.b16 %v248
      %v329 = vunpack.c.l.b16 %v249
      %v330 = vunpack.c.l.b16 %v250
      %v331 = vunpack.c.l.b16 %v251
      %v332 = vunpack.c.l.b16 %v252
      %v333 = vunpack.c.l.b16 %v253
      %v334 = vunpack.c.l.b16 %v254
      %v335 = vunpack.c.l.b16 %v255
      %v336 = vunpack.c.l.b16 %v256
      %v337 = vunpack.c.l.b16 %v257
      %v338 = vunpack.c.l.b16 %v258
      %v339 = vunpack.c.l.b16 %v259
      %v340 = vunpack.c.l.b16 %v260
      %v341 = vunpack.c.l.b16 %v261
      %v342 = vunpack.c.l.b16 %v262
      %v343 = vunpack.c.l.b16 %v263
      %v344 = vunpack.c.l.b16 %v264
      %v345 = vunpack.c.l.b16 %v265
      %v346 = vunpack.c.l.b16 %v266
      %v347 = vunpack.c.l.b16 %v267
      %v348 = vunpack.c.l.b16 %v268
      %v349 = vunpack.c.l.b16 %v269
      %v350 = vunpack.c.l.b16 %v270
      %v351 = vunpack.c.l.b16 %v271
      %v352 = vunpack.c.l.b16 %v272
      %v353 = vunpack.c.l.b16 %v273
      %v354 = vunpack.c.l.b16 %v274
      %v355 = vunpack.c.l.b16 %v275
      %v356 = vunpack.c.l.b16 %v276
      %v357 = vunpack.c.l.b16 %v277
      %v358 = vunpack.c.l.b16 %v278
      %v359 = vunpack.c.l.b16 %v279
      %v360 = vunpack.c.l.b16 %v280
      %v361 = vpack.c.b16 %v326, %v325
      %v362 = vpack.c.b16 %v328, %v327
      %v363 = vpack.c.b16 %v330, %v329
      %v364 = vpack.c.b16 %v332, %v331
      %v365 = vpack.c.b16 %v334, %v333
      %v366 = vpack.c.b16 %v336, %v335
      %v367 = vpack.c.b16 %v338, %v337
      %v368 = vpack.c.b16 %v340, %v339
      %v369 = vpack.c.b16 %v342, %v341
      %v370 = vpack.c.b16 %v344, %v343
      %v371 = vpack.c.b16 %v346, %v345
      %v372 = vpack.c.b16 %v348, %v347
      %v373 = vpack.c.b16 %v350, %v349
      %v374 = vpack.c.b16 %v352, %v351
      %v375 = vpack.c.b16 %v354, %v353
      %v376 = vpack.c.b16 %v356, %v355
      %v377 = vpack.c.b16 %v358, %v357
      %v378 = vpack.c.b16 %v360, %v359
      %v383 = vunpack.c.l.b16 %v281
      %v384 = vunpack.c.l.b16 %v282
      %v385 = vunpack.c.l.b16 %v283
      %v386 = vunpack.c.l.b16 %v284
      %v387 = vpack.c.b16 %v384, %v383
      %v388 = vpack.c.b16 %v386, %v385
      %vm390 = vcmask 220160
      %v392 = vsel %vm390, %v361, 0
      %v395 = vsel %vm390, %v362, 0
      %v398 = vsel %vm390, %v363, 0
      %v401 = vsel %vm390, %v364, 0
      %v404 = vsel %vm390, %v365, 0
      %v407 = vsel %vm390, %v366, 0
      %v410 = vsel %vm390, %v367, 0
      %v413 = vsel %vm390, %v368, 0
      %v416 = vsel %vm390, %v369, 0
      %v419 = vsel %vm390, %v370, 0
      %v422 = vsel %vm390, %v371, 0
      %v425 = vsel %vm390, %v372, 0
      %v428 = vsel %vm390, %v373, 0
      %v431 = vsel %vm390, %v374, 0
      %v434 = vsel %vm390, %v375, 0
      %v437 = vsel %vm390, %v376, 0
      %v440 = vsel %vm390, %v377, 0
      %v443 = vsel %vm390, %v378, 0
      %vm445 = vcmask 1044480
      %vm446 = vcmask 1045504
      %v447 = vsel %vm445, 4294967295, 65535
      %v448 = vsel %vm446, %v447, 0
      %v450 = vand.u32 %v388, %v448
      %452 = vmatpush.bf16.msra.mxu0 0
      %453 = vmatpush.bf16.msra.mxu0 0
      %454 = vmatpush.bf16.msra.mxu0 0
      %455 = vmatpush.bf16.msra.mxu0 0
      %456 = vmatpush.bf16.msra.mxu0 0
      %457 = vmatpush.bf16.msra.mxu0 0
      %458 = vmatpush.bf16.msra.mxu0 %v450
      %459 = vmatpush.bf16.msra.mxu0 %v387
      %460 = vmatmul.bf16.gmra.mxu0 %v392
      %v461 = vpop.f32.mrf.mxu0
      %v462 = vadd.f32 %v287, %v461
      %v463 = vpop.f32.mrf.mxu0
      %v464 = vadd.f32 %v287, %v463
      %465 = vmatmul.bf16.gmra.mxu0 %v395
      %v466 = vpop.f32.mrf.mxu0
      %v467 = vadd.f32 %v287, %v466
      %v468 = vpop.f32.mrf.mxu0
      %v469 = vadd.f32 %v287, %v468
      %470 = vmatmul.bf16.gmra.mxu0 %v398
      %v471 = vpop.f32.mrf.mxu0
      %v472 = vadd.f32 %v287, %v471
      %v473 = vpop.f32.mrf.mxu0
      %v474 = vadd.f32 %v287, %v473
      %475 = vmatmul.bf16.gmra.mxu0 %v401
      %v476 = vpop.f32.mrf.mxu0
      %v477 = vadd.f32 %v287, %v476
      %v478 = vpop.f32.mrf.mxu0
      %v479 = vadd.f32 %v287, %v478
      %480 = vmatmul.bf16.gmra.mxu0 %v404
      %v481 = vpop.f32.mrf.mxu0
      %v482 = vadd.f32 %v287, %v481
      %v483 = vpop.f32.mrf.mxu0
      %v484 = vadd.f32 %v287, %v483
      %485 = vmatmul.bf16.gmra.mxu0 %v407
      %v486 = vpop.f32.mrf.mxu0
      %v487 = vadd.f32 %v287, %v486
      %v488 = vpop.f32.mrf.mxu0
      %v489 = vadd.f32 %v287, %v488
      %490 = vmatmul.bf16.gmra.mxu0 %v410
      %v491 = vpop.f32.mrf.mxu0
      %v492 = vadd.f32 %v287, %v491
      %v493 = vpop.f32.mrf.mxu0
      %v494 = vadd.f32 %v287, %v493
      %495 = vmatmul.bf16.gmra.mxu0 %v413
      %v496 = vpop.f32.mrf.mxu0
      %v497 = vadd.f32 %v287, %v496
      %v498 = vpop.f32.mrf.mxu0
      %v499 = vadd.f32 %v287, %v498
      %500 = vmatmul.bf16.gmra.mxu0 %v416
      %v501 = vpop.f32.mrf.mxu0
      %v502 = vadd.f32 %v287, %v501
      %v503 = vpop.f32.mrf.mxu0
      %v504 = vadd.f32 %v287, %v503
      %505 = vmatmul.bf16.gmra.mxu0 %v419
      %v506 = vpop.f32.mrf.mxu0
      %v507 = vadd.f32 %v287, %v506
      %v508 = vpop.f32.mrf.mxu0
      %v509 = vadd.f32 %v287, %v508
      %510 = vmatmul.bf16.gmra.mxu0 %v422
      %v511 = vpop.f32.mrf.mxu0
      %v512 = vadd.f32 %v287, %v511
      %v513 = vpop.f32.mrf.mxu0
      %v514 = vadd.f32 %v287, %v513
      %515 = vmatmul.bf16.gmra.mxu0 %v425
      %v516 = vpop.f32.mrf.mxu0
      %v517 = vadd.f32 %v287, %v516
      %v518 = vpop.f32.mrf.mxu0
      %v519 = vadd.f32 %v287, %v518
      %520 = vmatmul.bf16.gmra.mxu0 %v428
      %v521 = vpop.f32.mrf.mxu0
      %v522 = vadd.f32 %v287, %v521
      %v523 = vpop.f32.mrf.mxu0
      %v524 = vadd.f32 %v287, %v523
      %525 = vmatmul.bf16.gmra.mxu0 %v431
      %v526 = vpop.f32.mrf.mxu0
      %v527 = vadd.f32 %v287, %v526
      %v528 = vpop.f32.mrf.mxu0
      %v529 = vadd.f32 %v287, %v528
      %530 = vmatmul.bf16.gmra.mxu0 %v434
      %v531 = vpop.f32.mrf.mxu0
      %v532 = vadd.f32 %v287, %v531
      %v533 = vpop.f32.mrf.mxu0
      %v534 = vadd.f32 %v287, %v533
      %535 = vmatmul.bf16.gmra.mxu0 %v437
      %v536 = vpop.f32.mrf.mxu0
      %v537 = vadd.f32 %v287, %v536
      %v538 = vpop.f32.mrf.mxu0
      %v539 = vadd.f32 %v287, %v538
      %540 = vmatmul.bf16.gmra.mxu0 %v440
      %v541 = vpop.f32.mrf.mxu0
      %v542 = vadd.f32 %v287, %v541
      %v543 = vpop.f32.mrf.mxu0
      %v544 = vadd.f32 %v287, %v543
      %545 = vmatmul.bf16.gmra.mxu0 %v443
      %v546 = vpop.f32.mrf.mxu0
      %v547 = vadd.f32 %v287, %v546
      %v548 = vpop.f32.mrf.mxu0
      %v549 = vadd.f32 %v287, %v548
      %550 = vdwg.mxu0
      %v551 = vpack.c.bf16 %v462, %v462
      %v552 = vpack.c.bf16 %v464, %v464
      %v553 = vpack.c.bf16 %v467, %v467
      %v554 = vpack.c.bf16 %v469, %v469
      %v555 = vpack.c.bf16 %v472, %v472
      %v556 = vpack.c.bf16 %v474, %v474
      %v557 = vpack.c.bf16 %v477, %v477
      %v558 = vpack.c.bf16 %v479, %v479
      %v559 = vpack.c.bf16 %v482, %v482
      %v560 = vpack.c.bf16 %v484, %v484
      %v561 = vpack.c.bf16 %v487, %v487
      %v562 = vpack.c.bf16 %v489, %v489
      %v563 = vpack.c.bf16 %v492, %v492
      %v564 = vpack.c.bf16 %v494, %v494
      %v565 = vpack.c.bf16 %v497, %v497
      %v566 = vpack.c.bf16 %v499, %v499
      %v567 = vpack.c.bf16 %v502, %v502
      %v568 = vpack.c.bf16 %v504, %v504
      %v569 = vpack.c.bf16 %v507, %v507
      %v570 = vpack.c.bf16 %v509, %v509
      %v571 = vpack.c.bf16 %v512, %v512
      %v572 = vpack.c.bf16 %v514, %v514
      %v573 = vpack.c.bf16 %v517, %v517
      %v574 = vpack.c.bf16 %v519, %v519
      %v575 = vpack.c.bf16 %v522, %v522
      %v576 = vpack.c.bf16 %v524, %v524
      %v577 = vpack.c.bf16 %v527, %v527
      %v578 = vpack.c.bf16 %v529, %v529
      %v579 = vpack.c.bf16 %v532, %v532
      %v580 = vpack.c.bf16 %v534, %v534
      %v581 = vpack.c.bf16 %v537, %v537
      %v582 = vpack.c.bf16 %v539, %v539
      %v583 = vpack.c.bf16 %v542, %v542
      %v584 = vpack.c.bf16 %v544, %v544
      %v585 = vpack.c.bf16 %v547, %v547
      %v586 = vpack.c.bf16 %v549, %v549
      %vm587 = vcmask 60416
      %588 = vst.msk [vmem:[%s242] sm:$0xf] %vm587, %v551
      %589 = vst.msk [vmem:[%s242 + $0x4] sm:$0xf] %vm587, %v552
      %590 = vst.msk [vmem:[%s242 + $0x8] sm:$0xf] %vm587, %v553
      %591 = vst.msk [vmem:[%s242 + $0xc] sm:$0xf] %vm587, %v554
      %592 = vst.msk [vmem:[%s242 + $0x10] sm:$0xf] %vm587, %v555
      %593 = vst.msk [vmem:[%s242 + $0x14] sm:$0xf] %vm587, %v556
      %594 = vst.msk [vmem:[%s242 + $0x18] sm:$0xf] %vm587, %v557
      %595 = vst.msk [vmem:[%s242 + $0x1c] sm:$0xf] %vm587, %v558
      %596 = vst.msk [vmem:[%s242 + $0x20] sm:$0xf] %vm587, %v559
      %597 = vst.msk [vmem:[%s242 + $0x24] sm:$0xf] %vm587, %v560
      %598 = vst.msk [vmem:[%s242 + $0x28] sm:$0xf] %vm587, %v561
      %599 = vst.msk [vmem:[%s242 + $0x2c] sm:$0xf] %vm587, %v562
      %600 = vst.msk [vmem:[%s242 + $0x30] sm:$0xf] %vm587, %v563
      %601 = vst.msk [vmem:[%s242 + $0x34] sm:$0xf] %vm587, %v564
      %602 = vst.msk [vmem:[%s242 + $0x38] sm:$0xf] %vm587, %v565
      %603 = vst.msk [vmem:[%s242 + $0x3c] sm:$0xf] %vm587, %v566
      %604 = vst.msk [vmem:[%s242 + $0x40] sm:$0xf] %vm587, %v567
      %605 = vst.msk [vmem:[%s242 + $0x44] sm:$0xf] %vm587, %v568
      %606 = vst.msk [vmem:[%s242 + $0x48] sm:$0xf] %vm587, %v569
      %607 = vst.msk [vmem:[%s242 + $0x4c] sm:$0xf] %vm587, %v570
      %608 = vst.msk [vmem:[%s242 + $0x50] sm:$0xf] %vm587, %v571
      %609 = vst.msk [vmem:[%s242 + $0x54] sm:$0xf] %vm587, %v572
      %610 = vst.msk [vmem:[%s242 + $0x58] sm:$0xf] %vm587, %v573
      %611 = vst.msk [vmem:[%s242 + $0x5c] sm:$0xf] %vm587, %v574
      %612 = vst.msk [vmem:[%s242 + $0x60] sm:$0xf] %vm587, %v575
      %613 = vst.msk [vmem:[%s242 + $0x64] sm:$0xf] %vm587, %v576
      %614 = vst.msk [vmem:[%s242 + $0x68] sm:$0xf] %vm587, %v577
      %615 = vst.msk [vmem:[%s242 + $0x6c] sm:$0xf] %vm587, %v578
      %616 = vst.msk [vmem:[%s242 + $0x70] sm:$0xf] %vm587, %v579
      %617 = vst.msk [vmem:[%s242 + $0x74] sm:$0xf] %vm587, %v580
      %618 = vst.msk [vmem:[%s242 + $0x78] sm:$0xf] %vm587, %v581
      %619 = vst.msk [vmem:[%s242 + $0x7c] sm:$0xf] %vm587, %v582
      %620 = vst.msk [vmem:[%s242 + $0x80] sm:$0xf] %vm587, %v583
      %621 = vst.msk [vmem:[%s242 + $0x84] sm:$0xf] %vm587, %v584
      %622 = vst.msk [vmem:[%s242 + $0x88] sm:$0xf] %vm587, %v585
      %623 = vst.msk [vmem:[%s242 + $0x8c] sm:$0xf] %vm587, %v586
      %s624 = smul.u32 36, %s19
      %p625 = scmp.lt.s32.totalorder %s18, 23
      %s626 = scalar_select %p625, %s18, 23
      %p627 = scmp.lt.s32.totalorder %s624, 35
      %s628 = scalar_select %p627, %s624, 35
      %s629 = smul.addr %s626, 36
      %s630 = sadd.s32 %s628, %s629
      %s631 = smul.addr %s630, 4
      %s632 = scalar_lea.vmem %s3, %s631
      // Predicated region
      $region33: #{_lambda_.15} parent=31 // pred_check
        %p633 = pneg %p126
      $region34: #{_lambda_.15} parent=31 // pred_check_branch
        %635 = sbr.rel (%p633) target = $region36
      $region35: #{_lambda_.15} parent=31 // pred_region
        %s636 = smul.u32 36, %s19
      $region36: #{_lambda_.15} parent=31 // pred_fallthru
        _
    $region32: #{_lambda_.15} parent=5 // pred_fallthru
      _
    %p637 = scmp.le.s32.totalorder 2, %s9
    // Predicated region
    $region37: #{_lambda_.15} parent=5 // pred_check
      %p638 = pneg %p637
    $region38: #{_lambda_.15} parent=5 // pred_check_branch
      %640 = sbr.rel (%p638) target = $region40
    $region39: #{_lambda_.15} parent=5 // pred_region
      %s641 = ssub.s32 %s9, 2
      // Predicated region
      $region41: #{_lambda_.15} parent=39 // pred_check
        %p642 = pneg %p132
      $region42: #{_lambda_.15} parent=39 // pred_check_branch
        %644 = sbr.rel (%p642) target = $region44
      $region43: #{_lambda_.15} parent=39 // pred_region
        %s645 = smul.u32 36, %s21
        %p646 = scmp.lt.s32.totalorder %s20, 23
        %s647 = scalar_select %p646, %s20, 23
        %p648 = scmp.lt.s32.totalorder %s645, 35
        %s649 = scalar_select %p648, %s645, 35
        %s650 = smul.addr %s647, 36
        %s651 = sadd.s32 %s649, %s650
        %s652 = smul.addr %s651, 4
        %s653 = scalar_lea.vmem %s3, %s652
      $region44: #{_lambda_.15} parent=39 // pred_fallthru
        _
    $region40: #{_lambda_.15} parent=5 // pred_fallthru
      _
  $region6: #{_lambda_.15} parent=0 // loop_footer
    %s13 = sadd.s32 1, %s9
  $region7: #{_lambda_.15} parent=0 // loop_footer_branch
    %8 = sbr.rel target = $region3
  $region8: #{_lambda_.15} parent=0 // loop_exit
    _

// kernel: _lambda_.16
$region0: #{_lambda_.16}
  #allocation0 [shape = 'u32[]', space=smem, size = 0x4, offset = 0x4, fixed_abs, tag = 'smem constant byte address 0x4 - core index']
  #allocation1 [shape = 'u32[72,128]{1,0:T(1,128)}', space=vmem, size = 0x9000, scoped, tag = 'internal scratch']
  %s0 = inlined_call_operand.vmem [shape: bf16[24,2,3,512], index: 0, kind: input, shape index: {}]
  %s1 = inlined_call_operand.vmem [shape: f32[24,1,512], index: 1, kind: input, shape index: {}]
  %s2 = inlined_call_operand.vmem [shape: f32[24,1,512], index: 2, kind: input, shape index: {}]
  %s3 = inlined_call_operand.vmem [shape: bf16[24,2,3,512], index: 3, kind: output, shape index: {}]
  %s4 = sld [smem:[#allocation0]]
  $region45: #{_lambda_.16} parent=0
    _
  %s6 = ssub.s32 1, %s4
  %s7 = scalar_select 0, %s6, %s4
  loop: start=0, step=1, limit=50
  $region2: #{_lambda_.16} parent=0 // loop_pre_header
    _
  $region3: #{_lambda_.16} parent=0 // loop_header
    %s9 = sphi 0, %s13
    %p10 = scmp.ge.s32.totalorder %s9, 50
    %s16 = sphi 0, %s28
    %s17 = sphi 0, %s24
    %s18 = sphi 0, %s16
    %s19 = sphi 0, %s17
    %s20 = sphi 0, %s18
    %s21 = sphi 0, %s19
    %s33 = sphi 0, %s35
    %s36 = sphi 0, %s33
    %s37 = sphi 0, %s36
    %s53 = sphi 0, %s37
    %s59 = sphi 0, %s61
    %s62 = sphi 0, %s59
    %s63 = sphi 0, %s62
    %s79 = sphi 0, %s63
    %s85 = sphi 0, %s87
    %s88 = sphi 0, %s85
    %s89 = sphi 0, %s88
    %s105 = sphi 0, %s89
    %s113 = sphi 0, %s115
    %s116 = sphi 0, %s113
    %s117 = sphi 0, %s116
    %s133 = sphi 0, %s117
  $region4: #{_lambda_.16} parent=0 // loop_header_branch
    %12 = sbr.rel (%p10) target = $region8
  $region5: #{_lambda_.16} parent=0 // loop_body
    %s14 = ssub.s32 %s9, 1
    %s15 = ssub.s32 %s9, 2
    %s22 = sadd.s32 1, %s17
    %p23 = scmp.ge.s32.totalorder %s22, 2
    %s24 = scalar_select %p23, 0, %s22
    %s25 = sadd.s32 1, %s16
    %s26 = scalar_select %p23, %s25, %s16
    %p27 = scmp.ge.s32.totalorder %s26, 24
    %s28 = scalar_select %p27, 0, %s26
    %s29 = ssub.s32 %s16, %s28
    %s30 = ssub.s32 %s17, %s24
    %s31 = sor.u32 %s29, %s30
    %p32 = scmp.eq.s32.totalorder %s31, 0
    %s34 = sadd.s32 %s33, 1
    %s35 = scalar_select %p32, %s33, %s34
    %p38 = pneg %p32
    %p39 = scmp.eq.s32.totalorder %s9, 47
    %p40 = por %p38, %p39
    %p41 = scmp.ne.s32.totalorder %s33, %s36
    %p42 = scmp.eq.s32.totalorder %s9, 0
    %p43 = por %p41, %p42
    %p44 = scmp.ne.s32.totalorder %s33, %s36
    %p45 = scmp.eq.s32.totalorder %s14, 47
    %p46 = por %p44, %p45
    %p47 = scmp.ne.s32.totalorder %s36, %s37
    %p48 = scmp.eq.s32.totalorder %s14, 0
    %p49 = por %p47, %p48
    %p50 = scmp.ne.s32.totalorder %s36, %s37
    %p51 = scmp.eq.s32.totalorder %s15, 47
    %p52 = por %p50, %p51
    %p54 = scmp.ne.s32.totalorder %s37, %s53
    %p55 = scmp.eq.s32.totalorder %s15, 0
    %p56 = por %p54, %p55
    %s57 = ssub.s32 %s16, %s28
    %p58 = scmp.eq.s32.totalorder %s57, 0
    %s60 = sadd.s32 %s59, 1
    %s61 = scalar_select %p58, %s59, %s60
    %p64 = pneg %p58
    %p65 = scmp.eq.s32.totalorder %s9, 47
    %p66 = por %p64, %p65
    %p67 = scmp.ne.s32.totalorder %s59, %s62
    %p68 = scmp.eq.s32.totalorder %s9, 0
    %p69 = por %p67, %p68
    %p70 = scmp.ne.s32.totalorder %s59, %s62
    %p71 = scmp.eq.s32.totalorder %s14, 47
    %p72 = por %p70, %p71
    %p73 = scmp.ne.s32.totalorder %s62, %s63
    %p74 = scmp.eq.s32.totalorder %s14, 0
    %p75 = por %p73, %p74
    %p76 = scmp.ne.s32.totalorder %s62, %s63
    %p77 = scmp.eq.s32.totalorder %s15, 47
    %p78 = por %p76, %p77
    %p80 = scmp.ne.s32.totalorder %s63, %s79
    %p81 = scmp.eq.s32.totalorder %s15, 0
    %p82 = por %p80, %p81
    %s83 = ssub.s32 %s16, %s28
    %p84 = scmp.eq.s32.totalorder %s83, 0
    %s86 = sadd.s32 %s85, 1
    %s87 = scalar_select %p84, %s85, %s86
    %p90 = pneg %p84
    %p91 = scmp.eq.s32.totalorder %s9, 47
    %p92 = por %p90, %p91
    %p93 = scmp.ne.s32.totalorder %s85, %s88
    %p94 = scmp.eq.s32.totalorder %s9, 0
    %p95 = por %p93, %p94
    %p96 = scmp.ne.s32.totalorder %s85, %s88
    %p97 = scmp.eq.s32.totalorder %s14, 47
    %p98 = por %p96, %p97
    %p99 = scmp.ne.s32.totalorder %s88, %s89
    %p100 = scmp.eq.s32.totalorder %s14, 0
    %p101 = por %p99, %p100
    %p102 = scmp.ne.s32.totalorder %s88, %s89
    %p103 = scmp.eq.s32.totalorder %s15, 47
    %p104 = por %p102, %p103
    %p106 = scmp.ne.s32.totalorder %s89, %s105
    %p107 = scmp.eq.s32.totalorder %s15, 0
    %p108 = por %p106, %p107
    %s109 = ssub.s32 %s16, %s28
    %s110 = ssub.s32 %s17, %s24
    %s111 = sor.u32 %s109, %s110
    %p112 = scmp.eq.s32.totalorder %s111, 0
    %s114 = sadd.s32 %s113, 1
    %s115 = scalar_select %p112, %s113, %s114
    %p118 = pneg %p112
    %p119 = scmp.eq.s32.totalorder %s9, 47
    %p120 = por %p118, %p119
    %p121 = scmp.ne.s32.totalorder %s113, %s116
    %p122 = scmp.eq.s32.totalorder %s9, 0
    %p123 = por %p121, %p122
    %p124 = scmp.ne.s32.totalorder %s113, %s116
    %p125 = scmp.eq.s32.totalorder %s14, 47
    %p126 = por %p124, %p125
    %p127 = scmp.ne.s32.totalorder %s116, %s117
    %p128 = scmp.eq.s32.totalorder %s14, 0
    %p129 = por %p127, %p128
    %p130 = scmp.ne.s32.totalorder %s116, %s117
    %p131 = scmp.eq.s32.totalorder %s15, 47
    %p132 = por %p130, %p131
    %p134 = scmp.ne.s32.totalorder %s117, %s133
    %p135 = scmp.eq.s32.totalorder %s15, 0
    %p136 = por %p134, %p135
    %p137 = scmp.le.s32.totalorder 1, %s9
    %p138 = scmp.lt.s32.totalorder %s9, 49
    %p139 = pnand %p137, %p138
    %p140 = pneg %p139
    // Predicated region
    $region9: #{_lambda_.16} parent=5 // pred_check
      _
    $region10: #{_lambda_.16} parent=5 // pred_check_branch
      %142 = sbr.rel (%p139) target = $region12
    $region11: #{_lambda_.16} parent=5 // pred_region
      %s143 = ssub.s32 %s9, 1
    $region12: #{_lambda_.16} parent=5 // pred_fallthru
      _
    %p144 = scmp.lt.s32.totalorder %s9, 48
    // Predicated region
    $region13: #{_lambda_.16} parent=5 // pred_check
      %p145 = pneg %p144
    $region14: #{_lambda_.16} parent=5 // pred_check_branch
      %147 = sbr.rel (%p145) target = $region16
    $region15: #{_lambda_.16} parent=5 // pred_region
      // Predicated region
      $region17: #{_lambda_.16} parent=15 // pred_check
        %p148 = pneg %p43
      $region18: #{_lambda_.16} parent=15 // pred_check_branch
        %150 = sbr.rel (%p148) target = $region20
      $region19: #{_lambda_.16} parent=15 // pred_region
        %p151 = scmp.lt.s32.totalorder %s16, 23
        %s152 = scalar_select %p151, %s16, 23
        %p153 = scmp.lt.s32.totalorder %s17, 1
        %s154 = scalar_select %p153, %s17, 1
        %s155 = smul.addr %s154, 4
        %s156 = smul.addr %s152, 8
        %s157 = sadd.s32 %s155, %s156
        %s158 = smul.addr %s157, 2
        %s159 = scalar_lea.vmem %s0, %s158
      $region20: #{_lambda_.16} parent=15 // pred_fallthru
        _
      // Predicated region
      $region21: #{_lambda_.16} parent=15 // pred_check
        %p160 = pneg %p69
      $region22: #{_lambda_.16} parent=15 // pred_check_branch
        %162 = sbr.rel (%p160) target = $region24
      $region23: #{_lambda_.16} parent=15 // pred_region
        %p163 = scmp.lt.s32.totalorder %s16, 23
        %s164 = scalar_select %p163, %s16, 23
        %s165 = smul.addr %s164, 4
        %s166 = scalar_lea.vmem %s1, %s165
      $region24: #{_lambda_.16} parent=15 // pred_fallthru
        _
      // Predicated region
      $region25: #{_lambda_.16} parent=15 // pred_check
        %p167 = pneg %p95
      $region26: #{_lambda_.16} parent=15 // pred_check_branch
        %169 = sbr.rel (%p167) target = $region28
      $region27: #{_lambda_.16} parent=15 // pred_region
        %p170 = scmp.lt.s32.totalorder %s16, 23
        %s171 = scalar_select %p170, %s16, 23
        %s172 = smul.addr %s171, 4
        %s173 = scalar_lea.vmem %s2, %s172
      $region28: #{_lambda_.16} parent=15 // pred_fallthru
        _
    $region16: #{_lambda_.16} parent=5 // pred_fallthru
      _
    %p174 = scmp.le.s32.totalorder 1, %s9
    %p175 = scmp.lt.s32.totalorder %s9, 49
    %p176 = pnand %p174, %p175
    %p177 = pneg %p176
    // Predicated region
    $region29: #{_lambda_.16} parent=5 // pred_check
      _
    $region30: #{_lambda_.16} parent=5 // pred_check_branch
      %179 = sbr.rel (%p176) target = $region32
    $region31: #{_lambda_.16} parent=5 // pred_region
      %s180 = ssub.s32 %s9, 1
      %p181 = scmp.lt.s32.totalorder %s18, 23
      %s182 = scalar_select %p181, %s18, 23
      %p183 = scmp.lt.s32.totalorder %s19, 1
      %s184 = scalar_select %p183, %s19, 1
      %s185 = smul.addr %s184, 4
      %s186 = smul.addr %s182, 8
      %s187 = sadd.s32 %s185, %s186
      %s188 = smul.addr %s187, 2
      %s189 = scalar_lea.vmem %s0, %s188
      %p190 = pneg %p49
      %p191 = pneg %p46
      %p192 = scmp.lt.s32.totalorder %s18, 23
      %s193 = scalar_select %p192, %s18, 23
      %s194 = smul.addr %s193, 4
      %s195 = scalar_lea.vmem %s1, %s194
      %p196 = pneg %p75
      %p197 = pneg %p72
      %p198 = scmp.lt.s32.totalorder %s18, 23
      %s199 = scalar_select %p198, %s18, 23
      %s200 = smul.addr %s199, 4
      %s201 = scalar_lea.vmem %s2, %s200
      %p202 = pneg %p101
      %p203 = pneg %p98
      %p204 = pneg %p129
      %p205 = pneg %p126
      %p206 = scmp.lt.s32.totalorder %s18, 23
      %s207 = scalar_select %p206, %s18, 23
      %p208 = scmp.lt.s32.totalorder %s19, 1
      %s209 = scalar_select %p208, %s19, 1
      %s210 = smul.addr %s209, 4
      %s211 = smul.addr %s207, 8
      %s212 = sadd.s32 %s210, %s211
      %s213 = smul.addr %s212, 2
      %s214 = scalar_lea.vmem %s3, %s213
      %p215 = scmp.lt.s32.totalorder %s18, 23
      %s216 = scalar_select %p215, %s18, 23
      %p217 = scmp.lt.s32.totalorder %s19, 1
      %s218 = scalar_select %p217, %s19, 1
      %s219 = smul.addr %s218, 4
      %s220 = smul.addr %s216, 8
      %s221 = sadd.s32 %s219, %s220
      %s222 = smul.addr %s221, 2
      %s223 = scalar_lea.vmem %s0, %s222
      %p224 = scmp.lt.s32.totalorder %s18, 23
      %s225 = scalar_select %p224, %s18, 23
      %s226 = smul.addr %s225, 4
      %s227 = scalar_lea.vmem %s1, %s226
      %p228 = scmp.lt.s32.totalorder %s18, 23
      %s229 = scalar_select %p228, %s18, 23
      %s230 = smul.addr %s229, 4
      %s231 = scalar_lea.vmem %s2, %s230
      %p232 = scmp.lt.s32.totalorder %s18, 23
      %s233 = scalar_select %p232, %s18, 23
      %p234 = scmp.lt.s32.totalorder %s19, 1
      %s235 = scalar_select %p234, %s19, 1
      %s236 = smul.addr %s235, 4
      %s237 = smul.addr %s233, 8
      %s238 = sadd.s32 %s236, %s237
      %s239 = smul.addr %s238, 2
      %s240 = scalar_lea.vmem %s3, %s239
      %v241 = vld [vmem:[%s223] sm:$0xff]
      %v242 = vunpack.c.l.bf16 %v241
      %v243 = vunpack.c.h.bf16 %v241
      %v244 = vlaneseq
      %v245 = vshrl.u32 %v244, 7
      %v246 = vlaneseq
      %v247 = vand.u32 %v246, 127
      %v248 = vadd.s32 %v247, 128
      %v249 = vadd.s32 %v247, 256
      %v250 = vadd.s32 %v247, 384
      %v251 = vmul.u32 %v245, 512
      %v252 = vadd.s32 %v251, %v247
      %v253 = vadd.s32 %v251, %v248
      %v254 = vadd.s32 %v251, %v249
      %v255 = vadd.s32 %v251, %v250
      %vm256 = vcmp.lt.s32.totalorder %v252, 1152
      %vm257 = vcmp.lt.s32.totalorder %v253, 1152
      %vm258 = vcmp.lt.s32.totalorder %v254, 1152
      %vm259 = vcmp.lt.s32.totalorder %v255, 1152
      %262 = vst [vmem:[#allocation1] ss:$2 sm:$0xff] %v242
      %s263 = scalar_lea.vmem [#allocation1], 16
      %264 = vst [vmem:[%s263] ss:$2 sm:$0xff] %v243
      %v265 = vld.sshfl [vmem:[#allocation1] sm:$0xff pattern:$0x75316420]
      %v266 = vld.sshfl [vmem:[#allocation1 + $0x8] sm:$0xff pattern:$0x75316420]
      %v267 = vld.sshfl [vmem:[#allocation1 + $0x10] sm:$0xff pattern:$0x75316420]
      %v268 = vld.sshfl [vmem:[#allocation1 + $0x18] sm:$0xff pattern:$0x75316420]
      %v273 = vsel %vm256, %v265, 0.0
      %v274 = vsel %vm257, %v266, 0.0
      %v275 = vsel %vm258, %v267, 0.0
      %v276 = vsel %vm259, %v268, 0.0
      %vm277 = vcmask 1042432
      %v278 = vsel %vm277, %v273, 0.0
      %v279 = vsel %vm277, %v274, 0.0
      %v280 = vadd.f32 %v278, %v279
      %v281 = vsel %vm277, %v275, 0.0
      %v282 = vadd.f32 %v280, %v281
      %v283 = vsel %vm277, %v276, 0.0
      %v284 = vadd.f32 %v282, %v283
      %285 = vadd.xlane.f32.xlu0 %v284
      %v286 = vpop.xlane.xlu0 %285
      %v287 = vrot.slane %v286, 4
      %v288 = vadd.f32 %v286, %v287
      %v289 = vrot.slane %v288, 2
      %v290 = vadd.f32 %v288, %v289
      %v291 = vrot.slane %v290, 1
      %v292 = vadd.f32 %v290, %v291
      %s293 = vtos %v292
      %v294 = vmul.f32 %v273, %v273
      %v295 = vmul.f32 %v274, %v274
      %v296 = vmul.f32 %v275, %v275
      %v297 = vmul.f32 %v276, %v276
      %v298 = vsel %vm277, %v294, 0.0
      %v299 = vsel %vm277, %v295, 0.0
      %v300 = vadd.f32 %v298, %v299
      %v301 = vsel %vm277, %v296, 0.0
      %v302 = vadd.f32 %v300, %v301
      %v303 = vsel %vm277, %v297, 0.0
      %v304 = vadd.f32 %v302, %v303
      %305 = vadd.xlane.f32.xlu0 %v304
      %v306 = vpop.xlane.xlu0 %305
      %v307 = vrot.slane %v306, 4
      %v308 = vadd.f32 %v306, %v307
      %v309 = vrot.slane %v308, 2
      %v310 = vadd.f32 %v308, %v309
      %v311 = vrot.slane %v310, 1
      %v312 = vadd.f32 %v310, %v311
      %s313 = vtos %v312
      %v314 = vrcp.pop 1152.0
      %v315 = vmul.f32 1152.0, %v314
      %v316 = vsub.f32 1.0, %v315
      %v317 = vmul.f32 %v314, %v316
      %v318 = vadd.f32 %v314, %v317
      %vm319 = vweird.f32 %v314
      %v320 = vsel %vm319, %v314, %v318
      %s321 = vtos %v320
      %s322 = smul.f32 %s293, %s321
      %s323 = smul.f32 %s322, 1152.0
      %s324 = smul.f32 %s323, %s322
      %s325 = ssub.f32 %s313, %s324
      %v326 = vrcp.pop 1151.0
      %v327 = vmul.f32 1151.0, %v326
      %v328 = vsub.f32 1.0, %v327
      %v329 = vmul.f32 %v326, %v328
      %v330 = vadd.f32 %v326, %v329
      %vm331 = vweird.f32 %v326
      %v332 = vsel %vm331, %v326, %v330
      %s333 = vtos %v332
      %s334 = smul.f32 %s325, %s333
      %s335 = smax.f32 %s334, 0.0
      %v336 = vstv %s322
      %v337 = vsub.f32 %v242, %v336
      %v338 = vsub.f32 %v243, %v336
      %v339 = vstv %s335
      %v340 = vrsqrt.pop %v339
      %v341 = vmul.f32 %v340, %v339
      %v342 = vmul.f32 %v341, %v340
      %v343 = vmul.f32 0.5, %v342
      %v344 = vsub.f32 1.5, %v343
      %v345 = vmul.f32 %v340, %v344
      %v346 = vmul.f32 %v339, %v345
      %vm347 = vcmp.eq.f32.partialorder %v339, inf
      %v348 = vsel %vm347, %v339, %v346
      %vm349 = vcmp.eq.f32.partialorder %v339, 0.0
      %v350 = vand.u32 %v339, 2147483648
      %v351 = vsel %vm349, %v350, %v348
      %s352 = vtos %v351
      %s353 = sadd.f32 %s352, 1e-05
      %v354 = vstv %s353
      %v355 = vrcp.pop %v354
      %v356 = vmul.f32 %v354, %v355
      %v357 = vsub.f32 1.0, %v356
      %v358 = vmul.f32 %v355, %v357
      %v359 = vadd.f32 %v355, %v358
      %vm360 = vweird.f32 %v354
      %vm361 = vweird.f32 %v355
      %vm362 = vmor %vm360, %vm361
      %v363 = vsel %vm362, %v355, %v359
      %v364 = vand.u32 2147483647, %v354
      %vm365 = vcmp.eq.f32.partialorder %v364, 8.507059e+37
      %v366 = vand.u32 %v354, 2147483648
      %v367 = vor.u32 1.1754944e-38, %v366
      %v368 = vsel %vm365, %v367, %v363
      %v369 = vmul.f32 %v337, %v368
      %v370 = vmul.f32 %v338, %v368
      %v371 = vld [vmem:[%s227] sm:$0xf]
      %v373 = vperm.slane %v371, 0
      %v374 = vperm.slane %v371, 1
      %v375 = vperm.slane %v371, 2
      %v376 = vperm.slane %v371, 3
      %v377 = vrot.slane %v374, 4
      %v378 = vrot.slane %v376, 4
      %vm379 = vcmask 1043456
      %v380 = vsel %vm379, %v373, %v377
      %v381 = vsel %vm379, %v375, %v378
      %v384 = vmul.f32 %v369, %v380
      %v385 = vmul.f32 %v370, %v381
      %v386 = vld [vmem:[%s231] sm:$0xf]
      %v388 = vperm.slane %v386, 0
      %v389 = vperm.slane %v386, 1
      %v390 = vperm.slane %v386, 2
      %v391 = vperm.slane %v386, 3
      %v392 = vrot.slane %v389, 4
      %v393 = vrot.slane %v391, 4
      %v394 = vsel %vm379, %v388, %v392
      %v395 = vsel %vm379, %v390, %v393
      %v398 = vadd.f32 %v384, %v394
      %v399 = vadd.f32 %v385, %v395
      %vm400 = vcmp.gt.f32.partialorder %v398, 0.0
      %vm401 = vcmp.gt.f32.partialorder %v399, 0.0
      %v402 = vmul.f32 %v398, 0.01
      %v403 = vmul.f32 %v399, 0.01
      %v404 = vsel %vm400, %v398, %v402
      %v405 = vsel %vm401, %v399, %v403
      %408 = vst [vmem:[#allocation1] ss:$2 sm:$0xff] %v404
      %s409 = scalar_lea.vmem [#allocation1], 16
      %410 = vst [vmem:[%s409] ss:$2 sm:$0xff] %v405
      %v411 = vld.sshfl [vmem:[#allocation1] sm:$0xff pattern:$0x75316420]
      %v412 = vld.sshfl [vmem:[#allocation1 + $0x8] sm:$0xff pattern:$0x75316420]
      %v413 = vld.sshfl [vmem:[#allocation1 + $0x10] sm:$0xff pattern:$0x75316420]
      %v414 = vld.sshfl [vmem:[#allocation1 + $0x18] sm:$0xff pattern:$0x75316420]
      %v419 = vpack.c.bf16 %v412, %v411
      %v420 = vpack.c.bf16 %v414, %v413
      %v423 = vrot.slane %v419, 2
      %v424 = vrot.slane %v420, 4
      %v425 = vrot.slane %v420, 6
      %vm426 = vcmask 1041408
      %v429 = vsel %vm426, %v419, %v423
      %vm430 = vcmask 1045508
      %v433 = vsel %vm430, %v424, %v425
      %v434 = vsel %vm379, %v429, %v433
      %vm436 = vcmask 1041408
      %vm437 = vsmask.f32 1280
      %vm438 = vmand %vm436, %vm437
      %vm439 = vcmask 1043458
      %vm440 = vsmask.f32 3328
      %vm441 = vmand %vm439, %vm440
      %vm442 = vmor %vm441, %vm438
      %vm443 = vcmask 1045508
      %vm444 = vsmask.f32 5376
      %vm445 = vmand %vm443, %vm444
      %vm446 = vmor %vm445, %vm442
      %vm447 = vcmask 1047558
      %vm448 = vsmask.f32 7424
      %vm449 = vmand %vm447, %vm448
      %vm450 = vmor %vm449, %vm446
      %v451 = vld [vmem:[%s240] sm:$0xff]
      %v452 = vsel %vm450, %v434, %v451
      %453 = vst [vmem:[%s240] sm:$0xff] %v452
      %p454 = scmp.lt.s32.totalorder %s18, 23
      %s455 = scalar_select %p454, %s18, 23
      %p456 = scmp.lt.s32.totalorder %s19, 1
      %s457 = scalar_select %p456, %s19, 1
      %s458 = smul.addr %s457, 4
      %s459 = smul.addr %s455, 8
      %s460 = sadd.s32 %s458, %s459
      %s461 = smul.addr %s460, 2
      %s462 = scalar_lea.vmem %s3, %s461
      // Predicated region
      $region33: #{_lambda_.16} parent=31 // pred_check
        %p463 = pneg %p126
      $region34: #{_lambda_.16} parent=31 // pred_check_branch
        %465 = sbr.rel (%p463) target = $region36
      $region35: #{_lambda_.16} parent=31 // pred_region
        _
      $region36: #{_lambda_.16} parent=31 // pred_fallthru
        _
    $region32: #{_lambda_.16} parent=5 // pred_fallthru
      _
    %p466 = scmp.le.s32.totalorder 2, %s9
    // Predicated region
    $region37: #{_lambda_.16} parent=5 // pred_check
      %p467 = pneg %p466
    $region38: #{_lambda_.16} parent=5 // pred_check_branch
      %469 = sbr.rel (%p467) target = $region40
    $region39: #{_lambda_.16} parent=5 // pred_region
      %s470 = ssub.s32 %s9, 2
      // Predicated region
      $region41: #{_lambda_.16} parent=39 // pred_check
        %p471 = pneg %p132
      $region42: #{_lambda_.16} parent=39 // pred_check_branch
        %473 = sbr.rel (%p471) target = $region44
      $region43: #{_lambda_.16} parent=39 // pred_region
        %p474 = scmp.lt.s32.totalorder %s20, 23
        %s475 = scalar_select %p474, %s20, 23
        %p476 = scmp.lt.s32.totalorder %s21, 1
        %s477 = scalar_select %p476, %s21, 1
        %s478 = smul.addr %s477, 4
        %s479 = smul.addr %s475, 8
        %s480 = sadd.s32 %s478, %s479
        %s481 = smul.addr %s480, 2
        %s482 = scalar_lea.vmem %s3, %s481
      $region44: #{_lambda_.16} parent=39 // pred_fallthru
        _
    $region40: #{_lambda_.16} parent=5 // pred_fallthru
      _
  $region6: #{_lambda_.16} parent=0 // loop_footer
    %s13 = sadd.s32 1, %s9
  $region7: #{_lambda_.16} parent=0 // loop_footer_branch
    %8 = sbr.rel target = $region3
  $region8: #{_lambda_.16} parent=0 // loop_exit
    _

// kernel: _lambda_.17
$region0: #{_lambda_.17}
  #allocation0 [shape = 'u32[]', space=smem, size = 0x4, offset = 0x4, fixed_abs, tag = 'smem constant byte address 0x4 - core index']
  #allocation1 [shape = 'u32[72,128]{1,0:T(1,128)}', space=vmem, size = 0x9000, scoped, tag = 'internal scratch']
  %s0 = inlined_call_operand.vmem [shape: bf16[24,72,72], index: 0, kind: input, shape index: {}]
  %s1 = inlined_call_operand.vmem [shape: bf16[24,72,16], index: 1, kind: input, shape index: {}]
  %s2 = inlined_call_operand.vmem [shape: f32[24,1,16], index: 2, kind: input, shape index: {}]
  %s3 = inlined_call_operand.vmem [shape: bf16[24,72,16], index: 3, kind: output, shape index: {}]
  %s4 = sld [smem:[#allocation0]]
  $region45: #{_lambda_.17} parent=0
    _
  %s6 = ssub.s32 1, %s4
  %s7 = scalar_select 0, %s6, %s4
  loop: start=0, step=1, limit=26
  $region2: #{_lambda_.17} parent=0 // loop_pre_header
    _
  $region3: #{_lambda_.17} parent=0 // loop_header
    %s9 = sphi 0, %s13
    %p10 = scmp.ge.s32.totalorder %s9, 26
    %s16 = sphi 0, %s28
    %s17 = sphi 0, %s24
    %s18 = sphi 0, %s16
    %s19 = sphi 0, %s17
    %s20 = sphi 0, %s18
    %s21 = sphi 0, %s19
    %s33 = sphi 0, %s35
    %s36 = sphi 0, %s33
    %s37 = sphi 0, %s36
    %s53 = sphi 0, %s37
    %s59 = sphi 0, %s61
    %s62 = sphi 0, %s59
    %s63 = sphi 0, %s62
    %s79 = sphi 0, %s63
    %s85 = sphi 0, %s87
    %s88 = sphi 0, %s85
    %s89 = sphi 0, %s88
    %s105 = sphi 0, %s89
    %s113 = sphi 0, %s115
    %s116 = sphi 0, %s113
    %s117 = sphi 0, %s116
    %s133 = sphi 0, %s117
  $region4: #{_lambda_.17} parent=0 // loop_header_branch
    %12 = sbr.rel (%p10) target = $region8
  $region5: #{_lambda_.17} parent=0 // loop_body
    %s14 = ssub.s32 %s9, 1
    %s15 = ssub.s32 %s9, 2
    %s22 = sadd.s32 1, %s17
    %p23 = scmp.ge.s32.totalorder %s22, 1
    %s24 = scalar_select %p23, 0, %s22
    %s25 = sadd.s32 1, %s16
    %s26 = scalar_select %p23, %s25, %s16
    %p27 = scmp.ge.s32.totalorder %s26, 24
    %s28 = scalar_select %p27, 0, %s26
    %s29 = ssub.s32 %s16, %s28
    %s30 = ssub.s32 %s17, %s24
    %s31 = sor.u32 %s29, %s30
    %p32 = scmp.eq.s32.totalorder %s31, 0
    %s34 = sadd.s32 %s33, 1
    %s35 = scalar_select %p32, %s33, %s34
    %p38 = pneg %p32
    %p39 = scmp.eq.s32.totalorder %s9, 23
    %p40 = por %p38, %p39
    %p41 = scmp.ne.s32.totalorder %s33, %s36
    %p42 = scmp.eq.s32.totalorder %s9, 0
    %p43 = por %p41, %p42
    %p44 = scmp.ne.s32.totalorder %s33, %s36
    %p45 = scmp.eq.s32.totalorder %s14, 23
    %p46 = por %p44, %p45
    %p47 = scmp.ne.s32.totalorder %s36, %s37
    %p48 = scmp.eq.s32.totalorder %s14, 0
    %p49 = por %p47, %p48
    %p50 = scmp.ne.s32.totalorder %s36, %s37
    %p51 = scmp.eq.s32.totalorder %s15, 23
    %p52 = por %p50, %p51
    %p54 = scmp.ne.s32.totalorder %s37, %s53
    %p55 = scmp.eq.s32.totalorder %s15, 0
    %p56 = por %p54, %p55
    %s57 = ssub.s32 %s16, %s28
    %p58 = scmp.eq.s32.totalorder %s57, 0
    %s60 = sadd.s32 %s59, 1
    %s61 = scalar_select %p58, %s59, %s60
    %p64 = pneg %p58
    %p65 = scmp.eq.s32.totalorder %s9, 23
    %p66 = por %p64, %p65
    %p67 = scmp.ne.s32.totalorder %s59, %s62
    %p68 = scmp.eq.s32.totalorder %s9, 0
    %p69 = por %p67, %p68
    %p70 = scmp.ne.s32.totalorder %s59, %s62
    %p71 = scmp.eq.s32.totalorder %s14, 23
    %p72 = por %p70, %p71
    %p73 = scmp.ne.s32.totalorder %s62, %s63
    %p74 = scmp.eq.s32.totalorder %s14, 0
    %p75 = por %p73, %p74
    %p76 = scmp.ne.s32.totalorder %s62, %s63
    %p77 = scmp.eq.s32.totalorder %s15, 23
    %p78 = por %p76, %p77
    %p80 = scmp.ne.s32.totalorder %s63, %s79
    %p81 = scmp.eq.s32.totalorder %s15, 0
    %p82 = por %p80, %p81
    %s83 = ssub.s32 %s16, %s28
    %p84 = scmp.eq.s32.totalorder %s83, 0
    %s86 = sadd.s32 %s85, 1
    %s87 = scalar_select %p84, %s85, %s86
    %p90 = pneg %p84
    %p91 = scmp.eq.s32.totalorder %s9, 23
    %p92 = por %p90, %p91
    %p93 = scmp.ne.s32.totalorder %s85, %s88
    %p94 = scmp.eq.s32.totalorder %s9, 0
    %p95 = por %p93, %p94
    %p96 = scmp.ne.s32.totalorder %s85, %s88
    %p97 = scmp.eq.s32.totalorder %s14, 23
    %p98 = por %p96, %p97
    %p99 = scmp.ne.s32.totalorder %s88, %s89
    %p100 = scmp.eq.s32.totalorder %s14, 0
    %p101 = por %p99, %p100
    %p102 = scmp.ne.s32.totalorder %s88, %s89
    %p103 = scmp.eq.s32.totalorder %s15, 23
    %p104 = por %p102, %p103
    %p106 = scmp.ne.s32.totalorder %s89, %s105
    %p107 = scmp.eq.s32.totalorder %s15, 0
    %p108 = por %p106, %p107
    %s109 = ssub.s32 %s16, %s28
    %s110 = ssub.s32 %s17, %s24
    %s111 = sor.u32 %s109, %s110
    %p112 = scmp.eq.s32.totalorder %s111, 0
    %s114 = sadd.s32 %s113, 1
    %s115 = scalar_select %p112, %s113, %s114
    %p118 = pneg %p112
    %p119 = scmp.eq.s32.totalorder %s9, 23
    %p120 = por %p118, %p119
    %p121 = scmp.ne.s32.totalorder %s113, %s116
    %p122 = scmp.eq.s32.totalorder %s9, 0
    %p123 = por %p121, %p122
    %p124 = scmp.ne.s32.totalorder %s113, %s116
    %p125 = scmp.eq.s32.totalorder %s14, 23
    %p126 = por %p124, %p125
    %p127 = scmp.ne.s32.totalorder %s116, %s117
    %p128 = scmp.eq.s32.totalorder %s14, 0
    %p129 = por %p127, %p128
    %p130 = scmp.ne.s32.totalorder %s116, %s117
    %p131 = scmp.eq.s32.totalorder %s15, 23
    %p132 = por %p130, %p131
    %p134 = scmp.ne.s32.totalorder %s117, %s133
    %p135 = scmp.eq.s32.totalorder %s15, 0
    %p136 = por %p134, %p135
    %p137 = scmp.le.s32.totalorder 1, %s9
    %p138 = scmp.lt.s32.totalorder %s9, 25
    %p139 = pnand %p137, %p138
    %p140 = pneg %p139
    // Predicated region
    $region9: #{_lambda_.17} parent=5 // pred_check
      _
    $region10: #{_lambda_.17} parent=5 // pred_check_branch
      %142 = sbr.rel (%p139) target = $region12
    $region11: #{_lambda_.17} parent=5 // pred_region
      %s143 = ssub.s32 %s9, 1
    $region12: #{_lambda_.17} parent=5 // pred_fallthru
      _
    %p144 = scmp.lt.s32.totalorder %s9, 24
    // Predicated region
    $region13: #{_lambda_.17} parent=5 // pred_check
      %p145 = pneg %p144
    $region14: #{_lambda_.17} parent=5 // pred_check_branch
      %147 = sbr.rel (%p145) target = $region16
    $region15: #{_lambda_.17} parent=5 // pred_region
      // Predicated region
      $region17: #{_lambda_.17} parent=15 // pred_check
        %p148 = pneg %p43
      $region18: #{_lambda_.17} parent=15 // pred_check_branch
        %150 = sbr.rel (%p148) target = $region20
      $region19: #{_lambda_.17} parent=15 // pred_region
        %s151 = smul.u32 9, %s17
        %p152 = scmp.lt.s32.totalorder %s16, 23
        %s153 = scalar_select %p152, %s16, 23
        %p154 = scmp.lt.s32.totalorder %s151, 8
        %s155 = scalar_select %p154, %s151, 8
        %s156 = smul.addr %s153, 9
        %s157 = sadd.s32 %s155, %s156
        %s158 = smul.addr %s157, 4
        %s159 = scalar_lea.vmem %s0, %s158
        %s160 = smul.u32 9, %s17
      $region20: #{_lambda_.17} parent=15 // pred_fallthru
        _
      // Predicated region
      $region21: #{_lambda_.17} parent=15 // pred_check
        %p161 = pneg %p69
      $region22: #{_lambda_.17} parent=15 // pred_check_branch
        %163 = sbr.rel (%p161) target = $region24
      $region23: #{_lambda_.17} parent=15 // pred_region
        %p164 = scmp.lt.s32.totalorder %s16, 23
        %s165 = scalar_select %p164, %s16, 23
        %s166 = smul.addr %s165, 9
        %s167 = smul.addr %s166, 4
        %s168 = scalar_lea.vmem %s1, %s167
      $region24: #{_lambda_.17} parent=15 // pred_fallthru
        _
      // Predicated region
      $region25: #{_lambda_.17} parent=15 // pred_check
        %p169 = pneg %p95
      $region26: #{_lambda_.17} parent=15 // pred_check_branch
        %171 = sbr.rel (%p169) target = $region28
      $region27: #{_lambda_.17} parent=15 // pred_region
        %p172 = scmp.lt.s32.totalorder %s16, 23
        %s173 = scalar_select %p172, %s16, 23
        %s174 = scalar_lea.vmem %s2, %s173
      $region28: #{_lambda_.17} parent=15 // pred_fallthru
        _
    $region16: #{_lambda_.17} parent=5 // pred_fallthru
      _
    %p175 = scmp.le.s32.totalorder 1, %s9
    %p176 = scmp.lt.s32.totalorder %s9, 25
    %p177 = pnand %p175, %p176
    %p178 = pneg %p177
    // Predicated region
    $region29: #{_lambda_.17} parent=5 // pred_check
      _
    $region30: #{_lambda_.17} parent=5 // pred_check_branch
      %180 = sbr.rel (%p177) target = $region32
    $region31: #{_lambda_.17} parent=5 // pred_region
      %s181 = ssub.s32 %s9, 1
      %s182 = smul.u32 9, %s19
      %p183 = scmp.lt.s32.totalorder %s18, 23
      %s184 = scalar_select %p183, %s18, 23
      %p185 = scmp.lt.s32.totalorder %s182, 8
      %s186 = scalar_select %p185, %s182, 8
      %s187 = smul.addr %s184, 9
      %s188 = sadd.s32 %s186, %s187
      %s189 = smul.addr %s188, 4
      %s190 = scalar_lea.vmem %s0, %s189
      %p191 = pneg %p49
      %p192 = pneg %p46
      %p193 = scmp.lt.s32.totalorder %s18, 23
      %s194 = scalar_select %p193, %s18, 23
      %s195 = smul.addr %s194, 9
      %s196 = smul.addr %s195, 4
      %s197 = scalar_lea.vmem %s1, %s196
      %p198 = pneg %p75
      %p199 = pneg %p72
      %p200 = scmp.lt.s32.totalorder %s18, 23
      %s201 = scalar_select %p200, %s18, 23
      %s202 = scalar_lea.vmem %s2, %s201
      %p203 = pneg %p101
      %p204 = pneg %p98
      %p205 = pneg %p129
      %p206 = pneg %p126
      %s207 = smul.u32 9, %s19
      %p208 = scmp.lt.s32.totalorder %s18, 23
      %s209 = scalar_select %p208, %s18, 23
      %p210 = scmp.lt.s32.totalorder %s207, 8
      %s211 = scalar_select %p210, %s207, 8
      %s212 = smul.addr %s209, 9
      %s213 = sadd.s32 %s211, %s212
      %s214 = smul.addr %s213, 4
      %s215 = scalar_lea.vmem %s3, %s214
      %s216 = smul.u32 9, %s19
      %p217 = scmp.lt.s32.totalorder %s18, 23
      %s218 = scalar_select %p217, %s18, 23
      %p219 = scmp.lt.s32.totalorder %s216, 8
      %s220 = scalar_select %p219, %s216, 8
      %s221 = smul.addr %s218, 9
      %s222 = sadd.s32 %s220, %s221
      %s223 = smul.addr %s222, 4
      %s224 = scalar_lea.vmem %s0, %s223
      %s225 = smul.u32 9, %s19
      %p226 = scmp.lt.s32.totalorder %s18, 23
      %s227 = scalar_select %p226, %s18, 23
      %s228 = smul.addr %s227, 9
      %s229 = smul.addr %s228, 4
      %s230 = scalar_lea.vmem %s1, %s229
      %p231 = scmp.lt.s32.totalorder %s18, 23
      %s232 = scalar_select %p231, %s18, 23
      %s233 = scalar_lea.vmem %s2, %s232
      %s234 = smul.u32 9, %s19
      %p235 = scmp.lt.s32.totalorder %s18, 23
      %s236 = scalar_select %p235, %s18, 23
      %p237 = scmp.lt.s32.totalorder %s234, 8
      %s238 = scalar_select %p237, %s234, 8
      %s239 = smul.addr %s236, 9
      %s240 = sadd.s32 %s238, %s239
      %s241 = smul.addr %s240, 4
      %s242 = scalar_lea.vmem %s3, %s241
      %s243 = smul.u32 9, %s19
      %v245 = vld [vmem:[%s224] sm:$0xf]
      %v246 = vld [vmem:[%s224 + $0x4] sm:$0xf]
      %v247 = vld [vmem:[%s224 + $0x8] sm:$0xf]
      %v248 = vld [vmem:[%s224 + $0xc] sm:$0xf]
      %v249 = vld [vmem:[%s224 + $0x10] sm:$0xf]
      %v250 = vld [vmem:[%s224 + $0x14] sm:$0xf]
      %v251 = vld [vmem:[%s224 + $0x18] sm:$0xf]
      %v252 = vld [vmem:[%s224 + $0x1c] sm:$0xf]
      %v253 = vld [vmem:[%s224 + $0x20] sm:$0xf]
      %v254 = vld [vmem:[%s230] sm:$0xf]
      %v255 = vld [vmem:[%s230 + $0x4] sm:$0xf]
      %v256 = vld [vmem:[%s230 + $0x8] sm:$0xf]
      %v257 = vld [vmem:[%s230 + $0xc] sm:$0xf]
      %v258 = vld [vmem:[%s230 + $0x10] sm:$0xf]
      %v259 = vld [vmem:[%s230 + $0x14] sm:$0xf]
      %v260 = vld [vmem:[%s230 + $0x18] sm:$0xf]
      %v261 = vld [vmem:[%s230 + $0x1c] sm:$0xf]
      %v262 = vld [vmem:[%s230 + $0x20] sm:$0xf]
      %v263 = vld [vmem:[%s233] sm:$0x1]
      %v265 = vperm.slane %v263, 0
      %v276 = vunpack.c.l.b16 %v245
      %v277 = vunpack.c.l.b16 %v246
      %v278 = vunpack.c.l.b16 %v247
      %v279 = vunpack.c.l.b16 %v248
      %v280 = vunpack.c.l.b16 %v249
      %v281 = vunpack.c.l.b16 %v250
      %v282 = vunpack.c.l.b16 %v251
      %v283 = vunpack.c.l.b16 %v252
      %v284 = vunpack.c.l.b16 %v253
      %v285 = vpack.c.b16 %v277, %v276
      %v286 = vpack.c.b16 %v279, %v278
      %v287 = vpack.c.b16 %v281, %v280
      %v288 = vpack.c.b16 %v283, %v282
      %v289 = vpack.c.b16 %v284, %v284
      %v299 = vunpack.c.l.b16 %v254
      %v300 = vunpack.c.l.b16 %v255
      %v301 = vunpack.c.l.b16 %v256
      %v302 = vunpack.c.l.b16 %v257
      %v303 = vunpack.c.l.b16 %v258
      %v304 = vunpack.c.l.b16 %v259
      %v305 = vunpack.c.l.b16 %v260
      %v306 = vunpack.c.l.b16 %v261
      %v307 = vunpack.c.l.b16 %v262
      %v308 = vpack.c.b16 %v300, %v299
      %v309 = vpack.c.b16 %v302, %v301
      %v310 = vpack.c.b16 %v304, %v303
      %v311 = vpack.c.b16 %v306, %v305
      %v312 = vpack.c.b16 %v307, %v307
      %vm317 = vcmask 588800
      %v319 = vsel %vm317, %v285, 0
      %v322 = vsel %vm317, %v286, 0
      %v325 = vsel %vm317, %v287, 0
      %v328 = vsel %vm317, %v288, 0
      %v331 = vsel %vm317, %v289, 0
      %vm333 = vcmask 1043456
      %v335 = vsel %vm333, %v312, 0
      %337 = vmatpush.bf16.msra.mxu0 0
      %338 = vmatpush.bf16.msra.mxu0 0
      %339 = vmatpush.bf16.msra.mxu0 0
      %340 = vmatpush.bf16.msra.mxu0 %v335
      %341 = vmatpush.bf16.msra.mxu0 %v311
      %342 = vmatpush.bf16.msra.mxu0 %v310
      %343 = vmatpush.bf16.msra.mxu0 %v309
      %344 = vmatpush.bf16.msra.mxu0 %v308
      %345 = vmatmul.bf16.gmra.mxu0 %v319
      %v346 = vpop.f32.mrf.mxu0
      %v347 = vadd.f32 %v265, %v346
      %v348 = vpop.f32.mrf.mxu0
      %v349 = vadd.f32 %v265, %v348
      %350 = vmatmul.bf16.gmra.mxu0 %v322
      %v351 = vpop.f32.mrf.mxu0
      %v352 = vadd.f32 %v265, %v351
      %v353 = vpop.f32.mrf.mxu0
      %v354 = vadd.f32 %v265, %v353
      %355 = vmatmul.bf16.gmra.mxu0 %v325
      %v356 = vpop.f32.mrf.mxu0
      %v357 = vadd.f32 %v265, %v356
      %v358 = vpop.f32.mrf.mxu0
      %v359 = vadd.f32 %v265, %v358
      %360 = vmatmul.bf16.gmra.mxu0 %v328
      %v361 = vpop.f32.mrf.mxu0
      %v362 = vadd.f32 %v265, %v361
      %v363 = vpop.f32.mrf.mxu0
      %v364 = vadd.f32 %v265, %v363
      %365 = vmatmul.bf16.gmra.mxu0 %v331
      %v366 = vpop.f32.mrf.mxu0
      %v367 = vadd.f32 %v265, %v366
      %v368 = vpop.f32.mrf.mxu0
      %369 = vdwg.mxu0
      %v370 = vpack.c.bf16 %v347, %v347
      %v371 = vpack.c.bf16 %v349, %v349
      %v372 = vpack.c.bf16 %v352, %v352
      %v373 = vpack.c.bf16 %v354, %v354
      %v374 = vpack.c.bf16 %v357, %v357
      %v375 = vpack.c.bf16 %v359, %v359
      %v376 = vpack.c.bf16 %v362, %v362
      %v377 = vpack.c.bf16 %v364, %v364
      %v378 = vpack.c.bf16 %v367, %v367
      %vm379 = vcmask 125952
      %380 = vst.msk [vmem:[%s242] sm:$0xf] %vm379, %v370
      %381 = vst.msk [vmem:[%s242 + $0x4] sm:$0xf] %vm379, %v371
      %382 = vst.msk [vmem:[%s242 + $0x8] sm:$0xf] %vm379, %v372
      %383 = vst.msk [vmem:[%s242 + $0xc] sm:$0xf] %vm379, %v373
      %384 = vst.msk [vmem:[%s242 + $0x10] sm:$0xf] %vm379, %v374
      %385 = vst.msk [vmem:[%s242 + $0x14] sm:$0xf] %vm379, %v375
      %386 = vst.msk [vmem:[%s242 + $0x18] sm:$0xf] %vm379, %v376
      %387 = vst.msk [vmem:[%s242 + $0x1c] sm:$0xf] %vm379, %v377
      %388 = vst.msk [vmem:[%s242 + $0x20] sm:$0xf] %vm379, %v378
      %s389 = smul.u32 9, %s19
      %p390 = scmp.lt.s32.totalorder %s18, 23
      %s391 = scalar_select %p390, %s18, 23
      %p392 = scmp.lt.s32.totalorder %s389, 8
      %s393 = scalar_select %p392, %s389, 8
      %s394 = smul.addr %s391, 9
      %s395 = sadd.s32 %s393, %s394
      %s396 = smul.addr %s395, 4
      %s397 = scalar_lea.vmem %s3, %s396
      // Predicated region
      $region33: #{_lambda_.17} parent=31 // pred_check
        %p398 = pneg %p126
      $region34: #{_lambda_.17} parent=31 // pred_check_branch
        %400 = sbr.rel (%p398) target = $region36
      $region35: #{_lambda_.17} parent=31 // pred_region
        %s401 = smul.u32 9, %s19
      $region36: #{_lambda_.17} parent=31 // pred_fallthru
        _
    $region32: #{_lambda_.17} parent=5 // pred_fallthru
      _
    %p402 = scmp.le.s32.totalorder 2, %s9
    // Predicated region
    $region37: #{_lambda_.17} parent=5 // pred_check
      %p403 = pneg %p402
    $region38: #{_lambda_.17} parent=5 // pred_check_branch
      %405 = sbr.rel (%p403) target = $region40
    $region39: #{_lambda_.17} parent=5 // pred_region
      %s406 = ssub.s32 %s9, 2
      // Predicated region
      $region41: #{_lambda_.17} parent=39 // pred_check
        %p407 = pneg %p132
      $region42: #{_lambda_.17} parent=39 // pred_check_branch
        %409 = sbr.rel (%p407) target = $region44
      $region43: #{_lambda_.17} parent=39 // pred_region
        %s410 = smul.u32 9, %s21
        %p411 = scmp.lt.s32.totalorder %s20, 23
        %s412 = scalar_select %p411, %s20, 23
        %p413 = scmp.lt.s32.totalorder %s410, 8
        %s414 = scalar_select %p413, %s410, 8
        %s415 = smul.addr %s412, 9
        %s416 = sadd.s32 %s414, %s415
        %s417 = smul.addr %s416, 4
        %s418 = scalar_lea.vmem %s3, %s417
      $region44: #{_lambda_.17} parent=39 // pred_fallthru
        _
    $region40: #{_lambda_.17} parent=5 // pred_fallthru
      _
  $region6: #{_lambda_.17} parent=0 // loop_footer
    %s13 = sadd.s32 1, %s9
  $region7: #{_lambda_.17} parent=0 // loop_footer_branch
    %8 = sbr.rel target = $region3
  $region8: #{_lambda_.17} parent=0 // loop_exit
    _

// kernel: _lambda_.18
$region0: #{_lambda_.18}
  #allocation0 [shape = 'u32[]', space=smem, size = 0x4, offset = 0x4, fixed_abs, tag = 'smem constant byte address 0x4 - core index']
  #allocation1 [shape = 'u32[72,128]{1,0:T(1,128)}', space=vmem, size = 0x9000, scoped, tag = 'internal scratch']
  %s0 = inlined_call_operand.vmem [shape: bf16[24,2,2,512], index: 0, kind: input, shape index: {}]
  %s1 = inlined_call_operand.vmem [shape: f32[24,1,512], index: 1, kind: input, shape index: {}]
  %s2 = inlined_call_operand.vmem [shape: f32[24,1,512], index: 2, kind: input, shape index: {}]
  %s3 = inlined_call_operand.vmem [shape: bf16[24,2,2,512], index: 3, kind: output, shape index: {}]
  %s4 = sld [smem:[#allocation0]]
  $region45: #{_lambda_.18} parent=0
    _
  %s6 = ssub.s32 1, %s4
  %s7 = scalar_select 0, %s6, %s4
  loop: start=0, step=1, limit=50
  $region2: #{_lambda_.18} parent=0 // loop_pre_header
    _
  $region3: #{_lambda_.18} parent=0 // loop_header
    %s9 = sphi 0, %s13
    %p10 = scmp.ge.s32.totalorder %s9, 50
    %s16 = sphi 0, %s28
    %s17 = sphi 0, %s24
    %s18 = sphi 0, %s16
    %s19 = sphi 0, %s17
    %s20 = sphi 0, %s18
    %s21 = sphi 0, %s19
    %s33 = sphi 0, %s35
    %s36 = sphi 0, %s33
    %s37 = sphi 0, %s36
    %s53 = sphi 0, %s37
    %s59 = sphi 0, %s61
    %s62 = sphi 0, %s59
    %s63 = sphi 0, %s62
    %s79 = sphi 0, %s63
    %s85 = sphi 0, %s87
    %s88 = sphi 0, %s85
    %s89 = sphi 0, %s88
    %s105 = sphi 0, %s89
    %s113 = sphi 0, %s115
    %s116 = sphi 0, %s113
    %s117 = sphi 0, %s116
    %s133 = sphi 0, %s117
  $region4: #{_lambda_.18} parent=0 // loop_header_branch
    %12 = sbr.rel (%p10) target = $region8
  $region5: #{_lambda_.18} parent=0 // loop_body
    %s14 = ssub.s32 %s9, 1
    %s15 = ssub.s32 %s9, 2
    %s22 = sadd.s32 1, %s17
    %p23 = scmp.ge.s32.totalorder %s22, 2
    %s24 = scalar_select %p23, 0, %s22
    %s25 = sadd.s32 1, %s16
    %s26 = scalar_select %p23, %s25, %s16
    %p27 = scmp.ge.s32.totalorder %s26, 24
    %s28 = scalar_select %p27, 0, %s26
    %s29 = ssub.s32 %s16, %s28
    %s30 = ssub.s32 %s17, %s24
    %s31 = sor.u32 %s29, %s30
    %p32 = scmp.eq.s32.totalorder %s31, 0
    %s34 = sadd.s32 %s33, 1
    %s35 = scalar_select %p32, %s33, %s34
    %p38 = pneg %p32
    %p39 = scmp.eq.s32.totalorder %s9, 47
    %p40 = por %p38, %p39
    %p41 = scmp.ne.s32.totalorder %s33, %s36
    %p42 = scmp.eq.s32.totalorder %s9, 0
    %p43 = por %p41, %p42
    %p44 = scmp.ne.s32.totalorder %s33, %s36
    %p45 = scmp.eq.s32.totalorder %s14, 47
    %p46 = por %p44, %p45
    %p47 = scmp.ne.s32.totalorder %s36, %s37
    %p48 = scmp.eq.s32.totalorder %s14, 0
    %p49 = por %p47, %p48
    %p50 = scmp.ne.s32.totalorder %s36, %s37
    %p51 = scmp.eq.s32.totalorder %s15, 47
    %p52 = por %p50, %p51
    %p54 = scmp.ne.s32.totalorder %s37, %s53
    %p55 = scmp.eq.s32.totalorder %s15, 0
    %p56 = por %p54, %p55
    %s57 = ssub.s32 %s16, %s28
    %p58 = scmp.eq.s32.totalorder %s57, 0
    %s60 = sadd.s32 %s59, 1
    %s61 = scalar_select %p58, %s59, %s60
    %p64 = pneg %p58
    %p65 = scmp.eq.s32.totalorder %s9, 47
    %p66 = por %p64, %p65
    %p67 = scmp.ne.s32.totalorder %s59, %s62
    %p68 = scmp.eq.s32.totalorder %s9, 0
    %p69 = por %p67, %p68
    %p70 = scmp.ne.s32.totalorder %s59, %s62
    %p71 = scmp.eq.s32.totalorder %s14, 47
    %p72 = por %p70, %p71
    %p73 = scmp.ne.s32.totalorder %s62, %s63
    %p74 = scmp.eq.s32.totalorder %s14, 0
    %p75 = por %p73, %p74
    %p76 = scmp.ne.s32.totalorder %s62, %s63
    %p77 = scmp.eq.s32.totalorder %s15, 47
    %p78 = por %p76, %p77
    %p80 = scmp.ne.s32.totalorder %s63, %s79
    %p81 = scmp.eq.s32.totalorder %s15, 0
    %p82 = por %p80, %p81
    %s83 = ssub.s32 %s16, %s28
    %p84 = scmp.eq.s32.totalorder %s83, 0
    %s86 = sadd.s32 %s85, 1
    %s87 = scalar_select %p84, %s85, %s86
    %p90 = pneg %p84
    %p91 = scmp.eq.s32.totalorder %s9, 47
    %p92 = por %p90, %p91
    %p93 = scmp.ne.s32.totalorder %s85, %s88
    %p94 = scmp.eq.s32.totalorder %s9, 0
    %p95 = por %p93, %p94
    %p96 = scmp.ne.s32.totalorder %s85, %s88
    %p97 = scmp.eq.s32.totalorder %s14, 47
    %p98 = por %p96, %p97
    %p99 = scmp.ne.s32.totalorder %s88, %s89
    %p100 = scmp.eq.s32.totalorder %s14, 0
    %p101 = por %p99, %p100
    %p102 = scmp.ne.s32.totalorder %s88, %s89
    %p103 = scmp.eq.s32.totalorder %s15, 47
    %p104 = por %p102, %p103
    %p106 = scmp.ne.s32.totalorder %s89, %s105
    %p107 = scmp.eq.s32.totalorder %s15, 0
    %p108 = por %p106, %p107
    %s109 = ssub.s32 %s16, %s28
    %s110 = ssub.s32 %s17, %s24
    %s111 = sor.u32 %s109, %s110
    %p112 = scmp.eq.s32.totalorder %s111, 0
    %s114 = sadd.s32 %s113, 1
    %s115 = scalar_select %p112, %s113, %s114
    %p118 = pneg %p112
    %p119 = scmp.eq.s32.totalorder %s9, 47
    %p120 = por %p118, %p119
    %p121 = scmp.ne.s32.totalorder %s113, %s116
    %p122 = scmp.eq.s32.totalorder %s9, 0
    %p123 = por %p121, %p122
    %p124 = scmp.ne.s32.totalorder %s113, %s116
    %p125 = scmp.eq.s32.totalorder %s14, 47
    %p126 = por %p124, %p125
    %p127 = scmp.ne.s32.totalorder %s116, %s117
    %p128 = scmp.eq.s32.totalorder %s14, 0
    %p129 = por %p127, %p128
    %p130 = scmp.ne.s32.totalorder %s116, %s117
    %p131 = scmp.eq.s32.totalorder %s15, 47
    %p132 = por %p130, %p131
    %p134 = scmp.ne.s32.totalorder %s117, %s133
    %p135 = scmp.eq.s32.totalorder %s15, 0
    %p136 = por %p134, %p135
    %p137 = scmp.le.s32.totalorder 1, %s9
    %p138 = scmp.lt.s32.totalorder %s9, 49
    %p139 = pnand %p137, %p138
    %p140 = pneg %p139
    // Predicated region
    $region9: #{_lambda_.18} parent=5 // pred_check
      _
    $region10: #{_lambda_.18} parent=5 // pred_check_branch
      %142 = sbr.rel (%p139) target = $region12
    $region11: #{_lambda_.18} parent=5 // pred_region
      %s143 = ssub.s32 %s9, 1
    $region12: #{_lambda_.18} parent=5 // pred_fallthru
      _
    %p144 = scmp.lt.s32.totalorder %s9, 48
    // Predicated region
    $region13: #{_lambda_.18} parent=5 // pred_check
      %p145 = pneg %p144
    $region14: #{_lambda_.18} parent=5 // pred_check_branch
      %147 = sbr.rel (%p145) target = $region16
    $region15: #{_lambda_.18} parent=5 // pred_region
      // Predicated region
      $region17: #{_lambda_.18} parent=15 // pred_check
        %p148 = pneg %p43
      $region18: #{_lambda_.18} parent=15 // pred_check_branch
        %150 = sbr.rel (%p148) target = $region20
      $region19: #{_lambda_.18} parent=15 // pred_region
        %p151 = scmp.lt.s32.totalorder %s16, 23
        %s152 = scalar_select %p151, %s16, 23
        %p153 = scmp.lt.s32.totalorder %s17, 1
        %s154 = scalar_select %p153, %s17, 1
        %s155 = smul.addr %s154, 4
        %s156 = smul.addr %s152, 8
        %s157 = sadd.s32 %s155, %s156
        %s158 = scalar_lea.vmem %s0, %s157
      $region20: #{_lambda_.18} parent=15 // pred_fallthru
        _
      // Predicated region
      $region21: #{_lambda_.18} parent=15 // pred_check
        %p159 = pneg %p69
      $region22: #{_lambda_.18} parent=15 // pred_check_branch
        %161 = sbr.rel (%p159) target = $region24
      $region23: #{_lambda_.18} parent=15 // pred_region
        %p162 = scmp.lt.s32.totalorder %s16, 23
        %s163 = scalar_select %p162, %s16, 23
        %s164 = smul.addr %s163, 4
        %s165 = scalar_lea.vmem %s1, %s164
      $region24: #{_lambda_.18} parent=15 // pred_fallthru
        _
      // Predicated region
      $region25: #{_lambda_.18} parent=15 // pred_check
        %p166 = pneg %p95
      $region26: #{_lambda_.18} parent=15 // pred_check_branch
        %168 = sbr.rel (%p166) target = $region28
      $region27: #{_lambda_.18} parent=15 // pred_region
        %p169 = scmp.lt.s32.totalorder %s16, 23
        %s170 = scalar_select %p169, %s16, 23
        %s171 = smul.addr %s170, 4
        %s172 = scalar_lea.vmem %s2, %s171
      $region28: #{_lambda_.18} parent=15 // pred_fallthru
        _
    $region16: #{_lambda_.18} parent=5 // pred_fallthru
      _
    %p173 = scmp.le.s32.totalorder 1, %s9
    %p174 = scmp.lt.s32.totalorder %s9, 49
    %p175 = pnand %p173, %p174
    %p176 = pneg %p175
    // Predicated region
    $region29: #{_lambda_.18} parent=5 // pred_check
      _
    $region30: #{_lambda_.18} parent=5 // pred_check_branch
      %178 = sbr.rel (%p175) target = $region32
    $region31: #{_lambda_.18} parent=5 // pred_region
      %s179 = ssub.s32 %s9, 1
      %p180 = scmp.lt.s32.totalorder %s18, 23
      %s181 = scalar_select %p180, %s18, 23
      %p182 = scmp.lt.s32.totalorder %s19, 1
      %s183 = scalar_select %p182, %s19, 1
      %s184 = smul.addr %s183, 4
      %s185 = smul.addr %s181, 8
      %s186 = sadd.s32 %s184, %s185
      %s187 = scalar_lea.vmem %s0, %s186
      %p188 = pneg %p49
      %p189 = pneg %p46
      %p190 = scmp.lt.s32.totalorder %s18, 23
      %s191 = scalar_select %p190, %s18, 23
      %s192 = smul.addr %s191, 4
      %s193 = scalar_lea.vmem %s1, %s192
      %p194 = pneg %p75
      %p195 = pneg %p72
      %p196 = scmp.lt.s32.totalorder %s18, 23
      %s197 = scalar_select %p196, %s18, 23
      %s198 = smul.addr %s197, 4
      %s199 = scalar_lea.vmem %s2, %s198
      %p200 = pneg %p101
      %p201 = pneg %p98
      %p202 = pneg %p129
      %p203 = pneg %p126
      %p204 = scmp.lt.s32.totalorder %s18, 23
      %s205 = scalar_select %p204, %s18, 23
      %p206 = scmp.lt.s32.totalorder %s19, 1
      %s207 = scalar_select %p206, %s19, 1
      %s208 = smul.addr %s207, 4
      %s209 = smul.addr %s205, 8
      %s210 = sadd.s32 %s208, %s209
      %s211 = scalar_lea.vmem %s3, %s210
      %p212 = scmp.lt.s32.totalorder %s18, 23
      %s213 = scalar_select %p212, %s18, 23
      %p214 = scmp.lt.s32.totalorder %s19, 1
      %s215 = scalar_select %p214, %s19, 1
      %s216 = smul.addr %s215, 4
      %s217 = smul.addr %s213, 8
      %s218 = sadd.s32 %s216, %s217
      %s219 = scalar_lea.vmem %s0, %s218
      %p220 = scmp.lt.s32.totalorder %s18, 23
      %s221 = scalar_select %p220, %s18, 23
      %s222 = smul.addr %s221, 4
      %s223 = scalar_lea.vmem %s1, %s222
      %p224 = scmp.lt.s32.totalorder %s18, 23
      %s225 = scalar_select %p224, %s18, 23
      %s226 = smul.addr %s225, 4
      %s227 = scalar_lea.vmem %s2, %s226
      %p228 = scmp.lt.s32.totalorder %s18, 23
      %s229 = scalar_select %p228, %s18, 23
      %p230 = scmp.lt.s32.totalorder %s19, 1
      %s231 = scalar_select %p230, %s19, 1
      %s232 = smul.addr %s231, 4
      %s233 = smul.addr %s229, 8
      %s234 = sadd.s32 %s232, %s233
      %s235 = scalar_lea.vmem %s3, %s234
      %v236 = vld [vmem:[%s219] sm:$0xf]
      %v237 = vunpack.c.l.bf16 %v236
      %v238 = vlaneseq
      %v239 = vshrl.u32 %v238, 7
      %v240 = vlaneseq
      %v241 = vand.u32 %v240, 127
      %v242 = vadd.s32 %v241, 128
      %v243 = vadd.s32 %v241, 256
      %v244 = vadd.s32 %v241, 384
      %v245 = vmul.u32 %v239, 512
      %v246 = vadd.s32 %v245, %v241
      %v247 = vadd.s32 %v245, %v242
      %v248 = vadd.s32 %v245, %v243
      %v249 = vadd.s32 %v245, %v244
      %vm250 = vcmp.lt.s32.totalorder %v246, 576
      %vm251 = vcmp.lt.s32.totalorder %v247, 576
      %vm252 = vcmp.lt.s32.totalorder %v248, 576
      %vm253 = vcmp.lt.s32.totalorder %v249, 576
      %255 = vst [vmem:[#allocation1] ss:$4 sm:$0xff] %v237
      %v256 = vld.sshfl [vmem:[#allocation1] sm:$0xff pattern:$0x73625140]
      %v257 = vld.sshfl [vmem:[#allocation1 + $0x8] sm:$0xff pattern:$0x73625140]
      %v258 = vld.sshfl [vmem:[#allocation1 + $0x10] sm:$0xff pattern:$0x73625140]
      %v259 = vld.sshfl [vmem:[#allocation1 + $0x18] sm:$0xff pattern:$0x73625140]
      %v264 = vsel %vm250, %v256, 0.0
      %v265 = vsel %vm251, %v257, 0.0
      %v266 = vsel %vm252, %v258, 0.0
      %v267 = vsel %vm253, %v259, 0.0
      %vm268 = vcmask 1041408
      %v269 = vsel %vm268, %v264, 0.0
      %v270 = vsel %vm268, %v265, 0.0
      %v271 = vadd.f32 %v269, %v270
      %v272 = vsel %vm268, %v266, 0.0
      %v273 = vadd.f32 %v271, %v272
      %v274 = vsel %vm268, %v267, 0.0
      %v275 = vadd.f32 %v273, %v274
      %276 = vadd.xlane.f32.xlu0 %v275
      %v277 = vpop.xlane.xlu0 %276
      %v278 = vrot.slane %v277, 4
      %v279 = vadd.f32 %v277, %v278
      %v280 = vrot.slane %v279, 2
      %v281 = vadd.f32 %v279, %v280
      %v282 = vrot.slane %v281, 1
      %v283 = vadd.f32 %v281, %v282
      %s284 = vtos %v283
      %v285 = vmul.f32 %v264, %v264
      %v286 = vmul.f32 %v265, %v265
      %v287 = vmul.f32 %v266, %v266
      %v288 = vmul.f32 %v267, %v267
      %v289 = vsel %vm268, %v285, 0.0
      %v290 = vsel %vm268, %v286, 0.0
      %v291 = vadd.f32 %v289, %v290
      %v292 = vsel %vm268, %v287, 0.0
      %v293 = vadd.f32 %v291, %v292
      %v294 = vsel %vm268, %v288, 0.0
      %v295 = vadd.f32 %v293, %v294
      %296 = vadd.xlane.f32.xlu0 %v295
      %v297 = vpop.xlane.xlu0 %296
      %v298 = vrot.slane %v297, 4
      %v299 = vadd.f32 %v297, %v298
      %v300 = vrot.slane %v299, 2
      %v301 = vadd.f32 %v299, %v300
      %v302 = vrot.slane %v301, 1
      %v303 = vadd.f32 %v301, %v302
      %s304 = vtos %v303
      %v305 = vrcp.pop 576.0
      %v306 = vmul.f32 576.0, %v305
      %v307 = vsub.f32 1.0, %v306
      %v308 = vmul.f32 %v305, %v307
      %v309 = vadd.f32 %v305, %v308
      %vm310 = vweird.f32 %v305
      %v311 = vsel %vm310, %v305, %v309
      %s312 = vtos %v311
      %s313 = smul.f32 %s284, %s312
      %s314 = smul.f32 %s313, 576.0
      %s315 = smul.f32 %s314, %s313
      %s316 = ssub.f32 %s304, %s315
      %v317 = vrcp.pop 575.0
      %v318 = vmul.f32 575.0, %v317
      %v319 = vsub.f32 1.0, %v318
      %v320 = vmul.f32 %v317, %v319
      %v321 = vadd.f32 %v317, %v320
      %vm322 = vweird.f32 %v317
      %v323 = vsel %vm322, %v317, %v321
      %s324 = vtos %v323
      %s325 = smul.f32 %s316, %s324
      %s326 = smax.f32 %s325, 0.0
      %v327 = vstv %s313
      %v328 = vsub.f32 %v237, %v327
      %v329 = vstv %s326
      %v330 = vrsqrt.pop %v329
      %v331 = vmul.f32 %v330, %v329
      %v332 = vmul.f32 %v331, %v330
      %v333 = vmul.f32 0.5, %v332
      %v334 = vsub.f32 1.5, %v333
      %v335 = vmul.f32 %v330, %v334
      %v336 = vmul.f32 %v329, %v335
      %vm337 = vcmp.eq.f32.partialorder %v329, inf
      %v338 = vsel %vm337, %v329, %v336
      %vm339 = vcmp.eq.f32.partialorder %v329, 0.0
      %v340 = vand.u32 %v329, 2147483648
      %v341 = vsel %vm339, %v340, %v338
      %s342 = vtos %v341
      %s343 = sadd.f32 %s342, 1e-05
      %v344 = vstv %s343
      %v345 = vrcp.pop %v344
      %v346 = vmul.f32 %v344, %v345
      %v347 = vsub.f32 1.0, %v346
      %v348 = vmul.f32 %v345, %v347
      %v349 = vadd.f32 %v345, %v348
      %vm350 = vweird.f32 %v344
      %vm351 = vweird.f32 %v345
      %vm352 = vmor %vm350, %vm351
      %v353 = vsel %vm352, %v345, %v349
      %v354 = vand.u32 2147483647, %v344
      %vm355 = vcmp.eq.f32.partialorder %v354, 8.507059e+37
      %v356 = vand.u32 %v344, 2147483648
      %v357 = vor.u32 1.1754944e-38, %v356
      %v358 = vsel %vm355, %v357, %v353
      %v359 = vmul.f32 %v328, %v358
      %v360 = vld [vmem:[%s223] sm:$0xf]
      %v362 = vperm.slane %v360, 0
      %v363 = vperm.slane %v360, 1
      %v364 = vperm.slane %v360, 2
      %v365 = vperm.slane %v360, 3
      %v366 = vrot.slane %v363, 6
      %v367 = vrot.slane %v364, 4
      %v368 = vrot.slane %v365, 2
      %v369 = vsel %vm268, %v362, %v366
      %vm370 = vcmask 1045508
      %v371 = vsel %vm370, %v367, %v368
      %vm372 = vcmask 1043456
      %v373 = vsel %vm372, %v369, %v371
      %v375 = vmul.f32 %v359, %v373
      %v376 = vld [vmem:[%s227] sm:$0xf]
      %v378 = vperm.slane %v376, 0
      %v379 = vperm.slane %v376, 1
      %v380 = vperm.slane %v376, 2
      %v381 = vperm.slane %v376, 3
      %v382 = vrot.slane %v379, 6
      %v383 = vrot.slane %v380, 4
      %v384 = vrot.slane %v381, 2
      %v385 = vsel %vm268, %v378, %v382
      %v386 = vsel %vm370, %v383, %v384
      %v387 = vsel %vm372, %v385, %v386
      %v389 = vadd.f32 %v375, %v387
      %vm390 = vcmp.gt.f32.partialorder %v389, 0.0
      %v391 = vmul.f32 %v389, 0.01
      %v392 = vsel %vm390, %v389, %v391
      %394 = vst [vmem:[#allocation1] ss:$4 sm:$0xff] %v392
      %v395 = vld.sshfl [vmem:[#allocation1] sm:$0xff pattern:$0x73625140]
      %v396 = vld.sshfl [vmem:[#allocation1 + $0x8] sm:$0xff pattern:$0x73625140]
      %v397 = vld.sshfl [vmem:[#allocation1 + $0x10] sm:$0xff pattern:$0x73625140]
      %v398 = vld.sshfl [vmem:[#allocation1 + $0x18] sm:$0xff pattern:$0x73625140]
      %v403 = vpack.c.bf16 %v396, %v395
      %v404 = vpack.c.bf16 %v398, %v397
      %v407 = vrot.slane %v403, 3
      %v408 = vrot.slane %v404, 6
      %v409 = vrot.slane %v404, 1
      %vm410 = vcmask 1040384
      %v413 = vsel %vm410, %v403, %v407
      %vm414 = vcmask 1042434
      %v417 = vsel %vm414, %v408, %v409
      %v418 = vsel %vm268, %v413, %v417
      %420 = vst [vmem:[%s235] sm:$0xf] %v418
      %p421 = scmp.lt.s32.totalorder %s18, 23
      %s422 = scalar_select %p421, %s18, 23
      %p423 = scmp.lt.s32.totalorder %s19, 1
      %s424 = scalar_select %p423, %s19, 1
      %s425 = smul.addr %s424, 4
      %s426 = smul.addr %s422, 8
      %s427 = sadd.s32 %s425, %s426
      %s428 = scalar_lea.vmem %s3, %s427
      // Predicated region
      $region33: #{_lambda_.18} parent=31 // pred_check
        %p429 = pneg %p126
      $region34: #{_lambda_.18} parent=31 // pred_check_branch
        %431 = sbr.rel (%p429) target = $region36
      $region35: #{_lambda_.18} parent=31 // pred_region
        _
      $region36: #{_lambda_.18} parent=31 // pred_fallthru
        _
    $region32: #{_lambda_.18} parent=5 // pred_fallthru
      _
    %p432 = scmp.le.s32.totalorder 2, %s9
    // Predicated region
    $region37: #{_lambda_.18} parent=5 // pred_check
      %p433 = pneg %p432
    $region38: #{_lambda_.18} parent=5 // pred_check_branch
      %435 = sbr.rel (%p433) target = $region40
    $region39: #{_lambda_.18} parent=5 // pred_region
      %s436 = ssub.s32 %s9, 2
      // Predicated region
      $region41: #{_lambda_.18} parent=39 // pred_check
        %p437 = pneg %p132
      $region42: #{_lambda_.18} parent=39 // pred_check_branch
        %439 = sbr.rel (%p437) target = $region44
      $region43: #{_lambda_.18} parent=39 // pred_region
        %p440 = scmp.lt.s32.totalorder %s20, 23
        %s441 = scalar_select %p440, %s20, 23
        %p442 = scmp.lt.s32.totalorder %s21, 1
        %s443 = scalar_select %p442, %s21, 1
        %s444 = smul.addr %s443, 4
        %s445 = smul.addr %s441, 8
        %s446 = sadd.s32 %s444, %s445
        %s447 = scalar_lea.vmem %s3, %s446
      $region44: #{_lambda_.18} parent=39 // pred_fallthru
        _
    $region40: #{_lambda_.18} parent=5 // pred_fallthru
      _
  $region6: #{_lambda_.18} parent=0 // loop_footer
    %s13 = sadd.s32 1, %s9
  $region7: #{_lambda_.18} parent=0 // loop_footer_branch
    %8 = sbr.rel target = $region3
  $region8: #{_lambda_.18} parent=0 // loop_exit
    _

// kernel: _lambda_.19
$region0: #{_lambda_.19}
  #allocation0 [shape = 'u32[]', space=smem, size = 0x4, offset = 0x4, fixed_abs, tag = 'smem constant byte address 0x4 - core index']
  #allocation1 [shape = 'u32[72,128]{1,0:T(1,128)}', space=vmem, size = 0x9000, scoped, tag = 'internal scratch']
  %s0 = inlined_call_operand.vmem [shape: bf16[24,18,144], index: 0, kind: input, shape index: {}]
  %s1 = inlined_call_operand.vmem [shape: bf16[24,144,16], index: 1, kind: input, shape index: {}]
  %s2 = inlined_call_operand.vmem [shape: f32[24,1,16], index: 2, kind: input, shape index: {}]
  %s3 = inlined_call_operand.vmem [shape: bf16[24,18,16], index: 3, kind: output, shape index: {}]
  %s4 = sld [smem:[#allocation0]]
  $region45: #{_lambda_.19} parent=0
    _
  %s6 = ssub.s32 1, %s4
  %s7 = scalar_select 0, %s6, %s4
  loop: start=0, step=1, limit=26
  $region2: #{_lambda_.19} parent=0 // loop_pre_header
    _
  $region3: #{_lambda_.19} parent=0 // loop_header
    %s9 = sphi 0, %s13
    %p10 = scmp.ge.s32.totalorder %s9, 26
    %s16 = sphi 0, %s28
    %s17 = sphi 0, %s24
    %s18 = sphi 0, %s16
    %s19 = sphi 0, %s17
    %s20 = sphi 0, %s18
    %s21 = sphi 0, %s19
    %s33 = sphi 0, %s35
    %s36 = sphi 0, %s33
    %s37 = sphi 0, %s36
    %s53 = sphi 0, %s37
    %s59 = sphi 0, %s61
    %s62 = sphi 0, %s59
    %s63 = sphi 0, %s62
    %s79 = sphi 0, %s63
    %s85 = sphi 0, %s87
    %s88 = sphi 0, %s85
    %s89 = sphi 0, %s88
    %s105 = sphi 0, %s89
    %s113 = sphi 0, %s115
    %s116 = sphi 0, %s113
    %s117 = sphi 0, %s116
    %s133 = sphi 0, %s117
  $region4: #{_lambda_.19} parent=0 // loop_header_branch
    %12 = sbr.rel (%p10) target = $region8
  $region5: #{_lambda_.19} parent=0 // loop_body
    %s14 = ssub.s32 %s9, 1
    %s15 = ssub.s32 %s9, 2
    %s22 = sadd.s32 1, %s17
    %p23 = scmp.ge.s32.totalorder %s22, 1
    %s24 = scalar_select %p23, 0, %s22
    %s25 = sadd.s32 1, %s16
    %s26 = scalar_select %p23, %s25, %s16
    %p27 = scmp.ge.s32.totalorder %s26, 24
    %s28 = scalar_select %p27, 0, %s26
    %s29 = ssub.s32 %s16, %s28
    %s30 = ssub.s32 %s17, %s24
    %s31 = sor.u32 %s29, %s30
    %p32 = scmp.eq.s32.totalorder %s31, 0
    %s34 = sadd.s32 %s33, 1
    %s35 = scalar_select %p32, %s33, %s34
    %p38 = pneg %p32
    %p39 = scmp.eq.s32.totalorder %s9, 23
    %p40 = por %p38, %p39
    %p41 = scmp.ne.s32.totalorder %s33, %s36
    %p42 = scmp.eq.s32.totalorder %s9, 0
    %p43 = por %p41, %p42
    %p44 = scmp.ne.s32.totalorder %s33, %s36
    %p45 = scmp.eq.s32.totalorder %s14, 23
    %p46 = por %p44, %p45
    %p47 = scmp.ne.s32.totalorder %s36, %s37
    %p48 = scmp.eq.s32.totalorder %s14, 0
    %p49 = por %p47, %p48
    %p50 = scmp.ne.s32.totalorder %s36, %s37
    %p51 = scmp.eq.s32.totalorder %s15, 23
    %p52 = por %p50, %p51
    %p54 = scmp.ne.s32.totalorder %s37, %s53
    %p55 = scmp.eq.s32.totalorder %s15, 0
    %p56 = por %p54, %p55
    %s57 = ssub.s32 %s16, %s28
    %p58 = scmp.eq.s32.totalorder %s57, 0
    %s60 = sadd.s32 %s59, 1
    %s61 = scalar_select %p58, %s59, %s60
    %p64 = pneg %p58
    %p65 = scmp.eq.s32.totalorder %s9, 23
    %p66 = por %p64, %p65
    %p67 = scmp.ne.s32.totalorder %s59, %s62
    %p68 = scmp.eq.s32.totalorder %s9, 0
    %p69 = por %p67, %p68
    %p70 = scmp.ne.s32.totalorder %s59, %s62
    %p71 = scmp.eq.s32.totalorder %s14, 23
    %p72 = por %p70, %p71
    %p73 = scmp.ne.s32.totalorder %s62, %s63
    %p74 = scmp.eq.s32.totalorder %s14, 0
    %p75 = por %p73, %p74
    %p76 = scmp.ne.s32.totalorder %s62, %s63
    %p77 = scmp.eq.s32.totalorder %s15, 23
    %p78 = por %p76, %p77
    %p80 = scmp.ne.s32.totalorder %s63, %s79
    %p81 = scmp.eq.s32.totalorder %s15, 0
    %p82 = por %p80, %p81
    %s83 = ssub.s32 %s16, %s28
    %p84 = scmp.eq.s32.totalorder %s83, 0
    %s86 = sadd.s32 %s85, 1
    %s87 = scalar_select %p84, %s85, %s86
    %p90 = pneg %p84
    %p91 = scmp.eq.s32.totalorder %s9, 23
    %p92 = por %p90, %p91
    %p93 = scmp.ne.s32.totalorder %s85, %s88
    %p94 = scmp.eq.s32.totalorder %s9, 0
    %p95 = por %p93, %p94
    %p96 = scmp.ne.s32.totalorder %s85, %s88
    %p97 = scmp.eq.s32.totalorder %s14, 23
    %p98 = por %p96, %p97
    %p99 = scmp.ne.s32.totalorder %s88, %s89
    %p100 = scmp.eq.s32.totalorder %s14, 0
    %p101 = por %p99, %p100
    %p102 = scmp.ne.s32.totalorder %s88, %s89
    %p103 = scmp.eq.s32.totalorder %s15, 23
    %p104 = por %p102, %p103
    %p106 = scmp.ne.s32.totalorder %s89, %s105
    %p107 = scmp.eq.s32.totalorder %s15, 0
    %p108 = por %p106, %p107
    %s109 = ssub.s32 %s16, %s28
    %s110 = ssub.s32 %s17, %s24
    %s111 = sor.u32 %s109, %s110
    %p112 = scmp.eq.s32.totalorder %s111, 0
    %s114 = sadd.s32 %s113, 1
    %s115 = scalar_select %p112, %s113, %s114
    %p118 = pneg %p112
    %p119 = scmp.eq.s32.totalorder %s9, 23
    %p120 = por %p118, %p119
    %p121 = scmp.ne.s32.totalorder %s113, %s116
    %p122 = scmp.eq.s32.totalorder %s9, 0
    %p123 = por %p121, %p122
    %p124 = scmp.ne.s32.totalorder %s113, %s116
    %p125 = scmp.eq.s32.totalorder %s14, 23
    %p126 = por %p124, %p125
    %p127 = scmp.ne.s32.totalorder %s116, %s117
    %p128 = scmp.eq.s32.totalorder %s14, 0
    %p129 = por %p127, %p128
    %p130 = scmp.ne.s32.totalorder %s116, %s117
    %p131 = scmp.eq.s32.totalorder %s15, 23
    %p132 = por %p130, %p131
    %p134 = scmp.ne.s32.totalorder %s117, %s133
    %p135 = scmp.eq.s32.totalorder %s15, 0
    %p136 = por %p134, %p135
    %p137 = scmp.le.s32.totalorder 1, %s9
    %p138 = scmp.lt.s32.totalorder %s9, 25
    %p139 = pnand %p137, %p138
    %p140 = pneg %p139
    // Predicated region
    $region9: #{_lambda_.19} parent=5 // pred_check
      _
    $region10: #{_lambda_.19} parent=5 // pred_check_branch
      %142 = sbr.rel (%p139) target = $region12
    $region11: #{_lambda_.19} parent=5 // pred_region
      %s143 = ssub.s32 %s9, 1
    $region12: #{_lambda_.19} parent=5 // pred_fallthru
      _
    %p144 = scmp.lt.s32.totalorder %s9, 24
    // Predicated region
    $region13: #{_lambda_.19} parent=5 // pred_check
      %p145 = pneg %p144
    $region14: #{_lambda_.19} parent=5 // pred_check_branch
      %147 = sbr.rel (%p145) target = $region16
    $region15: #{_lambda_.19} parent=5 // pred_region
      // Predicated region
      $region17: #{_lambda_.19} parent=15 // pred_check
        %p148 = pneg %p43
      $region18: #{_lambda_.19} parent=15 // pred_check_branch
        %150 = sbr.rel (%p148) target = $region20
      $region19: #{_lambda_.19} parent=15 // pred_region
        %s151 = smul.u32 3, %s17
        %p152 = scmp.lt.s32.totalorder %s16, 23
        %s153 = scalar_select %p152, %s16, 23
        %p154 = scmp.lt.s32.totalorder %s151, 2
        %s155 = scalar_select %p154, %s151, 2
        %s156 = smul.addr %s155, 2
        %s157 = smul.addr %s153, 6
        %s158 = sadd.s32 %s156, %s157
        %s159 = smul.addr %s158, 4
        %s160 = scalar_lea.vmem %s0, %s159
        %s161 = smul.u32 3, %s17
      $region20: #{_lambda_.19} parent=15 // pred_fallthru
        _
      // Predicated region
      $region21: #{_lambda_.19} parent=15 // pred_check
        %p162 = pneg %p69
      $region22: #{_lambda_.19} parent=15 // pred_check_branch
        %164 = sbr.rel (%p162) target = $region24
      $region23: #{_lambda_.19} parent=15 // pred_region
        %p165 = scmp.lt.s32.totalorder %s16, 23
        %s166 = scalar_select %p165, %s16, 23
        %s167 = smul.addr %s166, 18
        %s168 = smul.addr %s167, 4
        %s169 = scalar_lea.vmem %s1, %s168
      $region24: #{_lambda_.19} parent=15 // pred_fallthru
        _
      // Predicated region
      $region25: #{_lambda_.19} parent=15 // pred_check
        %p170 = pneg %p95
      $region26: #{_lambda_.19} parent=15 // pred_check_branch
        %172 = sbr.rel (%p170) target = $region28
      $region27: #{_lambda_.19} parent=15 // pred_region
        %p173 = scmp.lt.s32.totalorder %s16, 23
        %s174 = scalar_select %p173, %s16, 23
        %s175 = scalar_lea.vmem %s2, %s174
      $region28: #{_lambda_.19} parent=15 // pred_fallthru
        _
    $region16: #{_lambda_.19} parent=5 // pred_fallthru
      _
    %p176 = scmp.le.s32.totalorder 1, %s9
    %p177 = scmp.lt.s32.totalorder %s9, 25
    %p178 = pnand %p176, %p177
    %p179 = pneg %p178
    // Predicated region
    $region29: #{_lambda_.19} parent=5 // pred_check
      _
    $region30: #{_lambda_.19} parent=5 // pred_check_branch
      %181 = sbr.rel (%p178) target = $region32
    $region31: #{_lambda_.19} parent=5 // pred_region
      %s182 = ssub.s32 %s9, 1
      %s183 = smul.u32 3, %s19
      %p184 = scmp.lt.s32.totalorder %s18, 23
      %s185 = scalar_select %p184, %s18, 23
      %p186 = scmp.lt.s32.totalorder %s183, 2
      %s187 = scalar_select %p186, %s183, 2
      %s188 = smul.addr %s187, 2
      %s189 = smul.addr %s185, 6
      %s190 = sadd.s32 %s188, %s189
      %s191 = smul.addr %s190, 4
      %s192 = scalar_lea.vmem %s0, %s191
      %p193 = pneg %p49
      %p194 = pneg %p46
      %p195 = scmp.lt.s32.totalorder %s18, 23
      %s196 = scalar_select %p195, %s18, 23
      %s197 = smul.addr %s196, 18
      %s198 = smul.addr %s197, 4
      %s199 = scalar_lea.vmem %s1, %s198
      %p200 = pneg %p75
      %p201 = pneg %p72
      %p202 = scmp.lt.s32.totalorder %s18, 23
      %s203 = scalar_select %p202, %s18, 23
      %s204 = scalar_lea.vmem %s2, %s203
      %p205 = pneg %p101
      %p206 = pneg %p98
      %p207 = pneg %p129
      %p208 = pneg %p126
      %s209 = smul.u32 3, %s19
      %p210 = scmp.lt.s32.totalorder %s18, 23
      %s211 = scalar_select %p210, %s18, 23
      %p212 = scmp.lt.s32.totalorder %s209, 2
      %s213 = scalar_select %p212, %s209, 2
      %s214 = smul.addr %s211, 3
      %s215 = sadd.s32 %s213, %s214
      %s216 = smul.addr %s215, 4
      %s217 = scalar_lea.vmem %s3, %s216
      %s218 = smul.u32 3, %s19
      %p219 = scmp.lt.s32.totalorder %s18, 23
      %s220 = scalar_select %p219, %s18, 23
      %p221 = scmp.lt.s32.totalorder %s218, 2
      %s222 = scalar_select %p221, %s218, 2
      %s223 = smul.addr %s222, 2
      %s224 = smul.addr %s220, 6
      %s225 = sadd.s32 %s223, %s224
      %s226 = smul.addr %s225, 4
      %s227 = scalar_lea.vmem %s0, %s226
      %s228 = smul.u32 3, %s19
      %p229 = scmp.lt.s32.totalorder %s18, 23
      %s230 = scalar_select %p229, %s18, 23
      %s231 = smul.addr %s230, 18
      %s232 = smul.addr %s231, 4
      %s233 = scalar_lea.vmem %s1, %s232
      %p234 = scmp.lt.s32.totalorder %s18, 23
      %s235 = scalar_select %p234, %s18, 23
      %s236 = scalar_lea.vmem %s2, %s235
      %s237 = smul.u32 3, %s19
      %p238 = scmp.lt.s32.totalorder %s18, 23
      %s239 = scalar_select %p238, %s18, 23
      %p240 = scmp.lt.s32.totalorder %s237, 2
      %s241 = scalar_select %p240, %s237, 2
      %s242 = smul.addr %s239, 3
      %s243 = sadd.s32 %s241, %s242
      %s244 = smul.addr %s243, 4
      %s245 = scalar_lea.vmem %s3, %s244
      %s246 = smul.u32 3, %s19
      %v248 = vld [vmem:[%s227] sm:$0xff]
      %v249 = vld [vmem:[%s227 + $0x8] sm:$0xff]
      %v250 = vld [vmem:[%s227 + $0x10] sm:$0x11]
      %v251 = vld [vmem:[%s233] sm:$0xf]
      %v252 = vld [vmem:[%s233 + $0x4] sm:$0xf]
      %v253 = vld [vmem:[%s233 + $0x8] sm:$0xf]
      %v254 = vld [vmem:[%s233 + $0xc] sm:$0xf]
      %v255 = vld [vmem:[%s233 + $0x10] sm:$0xf]
      %v256 = vld [vmem:[%s233 + $0x14] sm:$0xf]
      %v257 = vld [vmem:[%s233 + $0x18] sm:$0xf]
      %v258 = vld [vmem:[%s233 + $0x1c] sm:$0xf]
      %v259 = vld [vmem:[%s233 + $0x20] sm:$0xf]
      %v260 = vld [vmem:[%s233 + $0x24] sm:$0xf]
      %v261 = vld [vmem:[%s233 + $0x28] sm:$0xf]
      %v262 = vld [vmem:[%s233 + $0x2c] sm:$0xf]
      %v263 = vld [vmem:[%s233 + $0x30] sm:$0xf]
      %v264 = vld [vmem:[%s233 + $0x34] sm:$0xf]
      %v265 = vld [vmem:[%s233 + $0x38] sm:$0xf]
      %v266 = vld [vmem:[%s233 + $0x3c] sm:$0xf]
      %v267 = vld [vmem:[%s233 + $0x40] sm:$0xf]
      %v268 = vld [vmem:[%s233 + $0x44] sm:$0xf]
      %v269 = vld [vmem:[%s236] sm:$0x1]
      %v271 = vperm.slane %v269, 0
      %v276 = vunpack.c.l.b16 %v248
      %v277 = vunpack.c.h.b16 %v248
      %v278 = vunpack.c.l.b16 %v249
      %v279 = vunpack.c.h.b16 %v249
      %v280 = vunpack.c.l.b16 %v250
      %v281 = vunpack.c.h.b16 %v250
      %v282 = vpack.c.b16 %v278, %v276
      %v283 = vpack.c.b16 %v279, %v277
      %v284 = vpack.c.b16 %v280, %v280
      %v285 = vpack.c.b16 %v281, %v281
      %v306 = vunpack.c.l.b16 %v251
      %v307 = vunpack.c.l.b16 %v252
      %v308 = vunpack.c.l.b16 %v253
      %v309 = vunpack.c.l.b16 %v254
      %v310 = vunpack.c.l.b16 %v255
      %v311 = vunpack.c.l.b16 %v256
      %v312 = vunpack.c.l.b16 %v257
      %v313 = vunpack.c.l.b16 %v258
      %v314 = vunpack.c.l.b16 %v259
      %v315 = vunpack.c.l.b16 %v260
      %v316 = vunpack.c.l.b16 %v261
      %v317 = vunpack.c.l.b16 %v262
      %v318 = vunpack.c.l.b16 %v263
      %v319 = vunpack.c.l.b16 %v264
      %v320 = vunpack.c.l.b16 %v265
      %v321 = vunpack.c.l.b16 %v266
      %v322 = vunpack.c.l.b16 %v267
      %v323 = vunpack.c.l.b16 %v268
      %v324 = vpack.c.b16 %v307, %v306
      %v325 = vpack.c.b16 %v309, %v308
      %v326 = vpack.c.b16 %v311, %v310
      %v327 = vpack.c.b16 %v313, %v312
      %v328 = vpack.c.b16 %v315, %v314
      %v329 = vpack.c.b16 %v317, %v316
      %v330 = vpack.c.b16 %v319, %v318
      %v331 = vpack.c.b16 %v321, %v320
      %v332 = vpack.c.b16 %v323, %v322
      %vm342 = vcmask 130048
      %v344 = vsel %vm342, %v283, 0
      %v347 = vsel %vm342, %v285, 0
      %349 = vmatpush.bf16.msra.mxu0 %v331
      %350 = vmatpush.bf16.msra.mxu0 %v330
      %351 = vmatpush.bf16.msra.mxu0 %v329
      %352 = vmatpush.bf16.msra.mxu0 %v328
      %353 = vmatpush.bf16.msra.mxu0 %v327
      %354 = vmatpush.bf16.msra.mxu0 %v326
      %355 = vmatpush.bf16.msra.mxu0 %v325
      %356 = vmatpush.bf16.msra.mxu0 %v324
      %357 = vmatmul.bf16.gmra.mxu0 %v282
      %v358 = vpop.f32.mrf.mxu0
      %v359 = vadd.f32 %v271, %v358
      %v360 = vpop.f32.mrf.mxu0
      %v361 = vadd.f32 %v271, %v360
      %362 = vmatmul.bf16.gmra.mxu0 %v284
      %v363 = vpop.f32.mrf.mxu0
      %v364 = vadd.f32 %v271, %v363
      %v365 = vpop.f32.mrf.mxu0
      %366 = vdwg.mxu0
      %367 = vmatpush.bf16.msra.mxu0 0
      %368 = vmatpush.bf16.msra.mxu0 0
      %369 = vmatpush.bf16.msra.mxu0 0
      %370 = vmatpush.bf16.msra.mxu0 0
      %371 = vmatpush.bf16.msra.mxu0 0
      %372 = vmatpush.bf16.msra.mxu0 0
      %373 = vmatpush.bf16.msra.mxu0 0
      %374 = vmatpush.bf16.msra.mxu0 %v332
      %375 = vmatmul.bf16.gmra.mxu0 %v344
      %v376 = vpop.f32.mrf.mxu0
      %v377 = vadd.f32 %v359, %v376
      %v378 = vpop.f32.mrf.mxu0
      %v379 = vadd.f32 %v361, %v378
      %380 = vmatmul.bf16.gmra.mxu0 %v347
      %v381 = vpop.f32.mrf.mxu0
      %v382 = vadd.f32 %v364, %v381
      %v383 = vpop.f32.mrf.mxu0
      %384 = vdwg.mxu0
      %v385 = vpack.c.bf16 %v377, %v377
      %v386 = vpack.c.bf16 %v379, %v379
      %v387 = vpack.c.bf16 %v382, %v382
      %vm388 = vcmask 125952
      %389 = vst.msk [vmem:[%s245] sm:$0xf] %vm388, %v385
      %390 = vst.msk [vmem:[%s245 + $0x4] sm:$0xf] %vm388, %v386
      %vm391 = vcmask 122880
      %392 = vst.msk [vmem:[%s245 + $0x8] sm:$0x1] %vm391, %v387
      %s393 = smul.u32 3, %s19
      %p394 = scmp.lt.s32.totalorder %s18, 23
      %s395 = scalar_select %p394, %s18, 23
      %p396 = scmp.lt.s32.totalorder %s393, 2
      %s397 = scalar_select %p396, %s393, 2
      %s398 = smul.addr %s395, 3
      %s399 = sadd.s32 %s397, %s398
      %s400 = smul.addr %s399, 4
      %s401 = scalar_lea.vmem %s3, %s400
      // Predicated region
      $region33: #{_lambda_.19} parent=31 // pred_check
        %p402 = pneg %p126
      $region34: #{_lambda_.19} parent=31 // pred_check_branch
        %404 = sbr.rel (%p402) target = $region36
      $region35: #{_lambda_.19} parent=31 // pred_region
        %s405 = smul.u32 3, %s19
      $region36: #{_lambda_.19} parent=31 // pred_fallthru
        _
    $region32: #{_lambda_.19} parent=5 // pred_fallthru
      _
    %p406 = scmp.le.s32.totalorder 2, %s9
    // Predicated region
    $region37: #{_lambda_.19} parent=5 // pred_check
      %p407 = pneg %p406
    $region38: #{_lambda_.19} parent=5 // pred_check_branch
      %409 = sbr.rel (%p407) target = $region40
    $region39: #{_lambda_.19} parent=5 // pred_region
      %s410 = ssub.s32 %s9, 2
      // Predicated region
      $region41: #{_lambda_.19} parent=39 // pred_check
        %p411 = pneg %p132
      $region42: #{_lambda_.19} parent=39 // pred_check_branch
        %413 = sbr.rel (%p411) target = $region44
      $region43: #{_lambda_.19} parent=39 // pred_region
        %s414 = smul.u32 3, %s21
        %p415 = scmp.lt.s32.totalorder %s20, 23
        %s416 = scalar_select %p415, %s20, 23
        %p417 = scmp.lt.s32.totalorder %s414, 2
        %s418 = scalar_select %p417, %s414, 2
        %s419 = smul.addr %s416, 3
        %s420 = sadd.s32 %s418, %s419
        %s421 = smul.addr %s420, 4
        %s422 = scalar_lea.vmem %s3, %s421
      $region44: #{_lambda_.19} parent=39 // pred_fallthru
        _
    $region40: #{_lambda_.19} parent=5 // pred_fallthru
      _
  $region6: #{_lambda_.19} parent=0 // loop_footer
    %s13 = sadd.s32 1, %s9
  $region7: #{_lambda_.19} parent=0 // loop_footer_branch
    %8 = sbr.rel target = $region3
  $region8: #{_lambda_.19} parent=0 // loop_exit
    _

// kernel: _lambda_.20
$region0: #{_lambda_.20}
  #allocation0 [shape = 'u32[]', space=smem, size = 0x4, offset = 0x4, fixed_abs, tag = 'smem constant byte address 0x4 - core index']
  #allocation1 [shape = 'u32[72,128]{1,0:T(1,128)}', space=vmem, size = 0x9000, scoped, tag = 'internal scratch']
  %s0 = inlined_call_operand.vmem [shape: bf16[24,2,1,512], index: 0, kind: input, shape index: {}]
  %s1 = inlined_call_operand.vmem [shape: f32[24,1,512], index: 1, kind: input, shape index: {}]
  %s2 = inlined_call_operand.vmem [shape: f32[24,1,512], index: 2, kind: input, shape index: {}]
  %s3 = inlined_call_operand.vmem [shape: bf16[24,2,1,512], index: 3, kind: output, shape index: {}]
  %s4 = sld [smem:[#allocation0]]
  $region45: #{_lambda_.20} parent=0
    _
  %s6 = ssub.s32 1, %s4
  %s7 = scalar_select 0, %s6, %s4
  loop: start=0, step=1, limit=50
  $region2: #{_lambda_.20} parent=0 // loop_pre_header
    _
  $region3: #{_lambda_.20} parent=0 // loop_header
    %s9 = sphi 0, %s13
    %p10 = scmp.ge.s32.totalorder %s9, 50
    %s16 = sphi 0, %s28
    %s17 = sphi 0, %s24
    %s18 = sphi 0, %s16
    %s19 = sphi 0, %s17
    %s20 = sphi 0, %s18
    %s21 = sphi 0, %s19
    %s33 = sphi 0, %s35
    %s36 = sphi 0, %s33
    %s37 = sphi 0, %s36
    %s53 = sphi 0, %s37
    %s59 = sphi 0, %s61
    %s62 = sphi 0, %s59
    %s63 = sphi 0, %s62
    %s79 = sphi 0, %s63
    %s85 = sphi 0, %s87
    %s88 = sphi 0, %s85
    %s89 = sphi 0, %s88
    %s105 = sphi 0, %s89
    %s113 = sphi 0, %s115
    %s116 = sphi 0, %s113
    %s117 = sphi 0, %s116
    %s133 = sphi 0, %s117
  $region4: #{_lambda_.20} parent=0 // loop_header_branch
    %12 = sbr.rel (%p10) target = $region8
  $region5: #{_lambda_.20} parent=0 // loop_body
    %s14 = ssub.s32 %s9, 1
    %s15 = ssub.s32 %s9, 2
    %s22 = sadd.s32 1, %s17
    %p23 = scmp.ge.s32.totalorder %s22, 2
    %s24 = scalar_select %p23, 0, %s22
    %s25 = sadd.s32 1, %s16
    %s26 = scalar_select %p23, %s25, %s16
    %p27 = scmp.ge.s32.totalorder %s26, 24
    %s28 = scalar_select %p27, 0, %s26
    %s29 = ssub.s32 %s16, %s28
    %s30 = ssub.s32 %s17, %s24
    %s31 = sor.u32 %s29, %s30
    %p32 = scmp.eq.s32.totalorder %s31, 0
    %s34 = sadd.s32 %s33, 1
    %s35 = scalar_select %p32, %s33, %s34
    %p38 = pneg %p32
    %p39 = scmp.eq.s32.totalorder %s9, 47
    %p40 = por %p38, %p39
    %p41 = scmp.ne.s32.totalorder %s33, %s36
    %p42 = scmp.eq.s32.totalorder %s9, 0
    %p43 = por %p41, %p42
    %p44 = scmp.ne.s32.totalorder %s33, %s36
    %p45 = scmp.eq.s32.totalorder %s14, 47
    %p46 = por %p44, %p45
    %p47 = scmp.ne.s32.totalorder %s36, %s37
    %p48 = scmp.eq.s32.totalorder %s14, 0
    %p49 = por %p47, %p48
    %p50 = scmp.ne.s32.totalorder %s36, %s37
    %p51 = scmp.eq.s32.totalorder %s15, 47
    %p52 = por %p50, %p51
    %p54 = scmp.ne.s32.totalorder %s37, %s53
    %p55 = scmp.eq.s32.totalorder %s15, 0
    %p56 = por %p54, %p55
    %s57 = ssub.s32 %s16, %s28
    %p58 = scmp.eq.s32.totalorder %s57, 0
    %s60 = sadd.s32 %s59, 1
    %s61 = scalar_select %p58, %s59, %s60
    %p64 = pneg %p58
    %p65 = scmp.eq.s32.totalorder %s9, 47
    %p66 = por %p64, %p65
    %p67 = scmp.ne.s32.totalorder %s59, %s62
    %p68 = scmp.eq.s32.totalorder %s9, 0
    %p69 = por %p67, %p68
    %p70 = scmp.ne.s32.totalorder %s59, %s62
    %p71 = scmp.eq.s32.totalorder %s14, 47
    %p72 = por %p70, %p71
    %p73 = scmp.ne.s32.totalorder %s62, %s63
    %p74 = scmp.eq.s32.totalorder %s14, 0
    %p75 = por %p73, %p74
    %p76 = scmp.ne.s32.totalorder %s62, %s63
    %p77 = scmp.eq.s32.totalorder %s15, 47
    %p78 = por %p76, %p77
    %p80 = scmp.ne.s32.totalorder %s63, %s79
    %p81 = scmp.eq.s32.totalorder %s15, 0
    %p82 = por %p80, %p81
    %s83 = ssub.s32 %s16, %s28
    %p84 = scmp.eq.s32.totalorder %s83, 0
    %s86 = sadd.s32 %s85, 1
    %s87 = scalar_select %p84, %s85, %s86
    %p90 = pneg %p84
    %p91 = scmp.eq.s32.totalorder %s9, 47
    %p92 = por %p90, %p91
    %p93 = scmp.ne.s32.totalorder %s85, %s88
    %p94 = scmp.eq.s32.totalorder %s9, 0
    %p95 = por %p93, %p94
    %p96 = scmp.ne.s32.totalorder %s85, %s88
    %p97 = scmp.eq.s32.totalorder %s14, 47
    %p98 = por %p96, %p97
    %p99 = scmp.ne.s32.totalorder %s88, %s89
    %p100 = scmp.eq.s32.totalorder %s14, 0
    %p101 = por %p99, %p100
    %p102 = scmp.ne.s32.totalorder %s88, %s89
    %p103 = scmp.eq.s32.totalorder %s15, 47
    %p104 = por %p102, %p103
    %p106 = scmp.ne.s32.totalorder %s89, %s105
    %p107 = scmp.eq.s32.totalorder %s15, 0
    %p108 = por %p106, %p107
    %s109 = ssub.s32 %s16, %s28
    %s110 = ssub.s32 %s17, %s24
    %s111 = sor.u32 %s109, %s110
    %p112 = scmp.eq.s32.totalorder %s111, 0
    %s114 = sadd.s32 %s113, 1
    %s115 = scalar_select %p112, %s113, %s114
    %p118 = pneg %p112
    %p119 = scmp.eq.s32.totalorder %s9, 47
    %p120 = por %p118, %p119
    %p121 = scmp.ne.s32.totalorder %s113, %s116
    %p122 = scmp.eq.s32.totalorder %s9, 0
    %p123 = por %p121, %p122
    %p124 = scmp.ne.s32.totalorder %s113, %s116
    %p125 = scmp.eq.s32.totalorder %s14, 47
    %p126 = por %p124, %p125
    %p127 = scmp.ne.s32.totalorder %s116, %s117
    %p128 = scmp.eq.s32.totalorder %s14, 0
    %p129 = por %p127, %p128
    %p130 = scmp.ne.s32.totalorder %s116, %s117
    %p131 = scmp.eq.s32.totalorder %s15, 47
    %p132 = por %p130, %p131
    %p134 = scmp.ne.s32.totalorder %s117, %s133
    %p135 = scmp.eq.s32.totalorder %s15, 0
    %p136 = por %p134, %p135
    %p137 = scmp.le.s32.totalorder 1, %s9
    %p138 = scmp.lt.s32.totalorder %s9, 49
    %p139 = pnand %p137, %p138
    %p140 = pneg %p139
    // Predicated region
    $region9: #{_lambda_.20} parent=5 // pred_check
      _
    $region10: #{_lambda_.20} parent=5 // pred_check_branch
      %142 = sbr.rel (%p139) target = $region12
    $region11: #{_lambda_.20} parent=5 // pred_region
      %s143 = ssub.s32 %s9, 1
    $region12: #{_lambda_.20} parent=5 // pred_fallthru
      _
    %p144 = scmp.lt.s32.totalorder %s9, 48
    // Predicated region
    $region13: #{_lambda_.20} parent=5 // pred_check
      %p145 = pneg %p144
    $region14: #{_lambda_.20} parent=5 // pred_check_branch
      %147 = sbr.rel (%p145) target = $region16
    $region15: #{_lambda_.20} parent=5 // pred_region
      // Predicated region
      $region17: #{_lambda_.20} parent=15 // pred_check
        %p148 = pneg %p43
      $region18: #{_lambda_.20} parent=15 // pred_check_branch
        %150 = sbr.rel (%p148) target = $region20
      $region19: #{_lambda_.20} parent=15 // pred_region
        %p151 = scmp.lt.s32.totalorder %s16, 23
        %s152 = scalar_select %p151, %s16, 23
        %p153 = scmp.lt.s32.totalorder %s17, 1
        %s154 = scalar_select %p153, %s17, 1
        %s155 = smul.addr %s154, 4
        %s156 = smul.addr %s152, 8
        %s157 = sadd.s32 %s155, %s156
        %s158 = scalar_lea.vmem %s0, %s157
      $region20: #{_lambda_.20} parent=15 // pred_fallthru
        _
      // Predicated region
      $region21: #{_lambda_.20} parent=15 // pred_check
        %p159 = pneg %p69
      $region22: #{_lambda_.20} parent=15 // pred_check_branch
        %161 = sbr.rel (%p159) target = $region24
      $region23: #{_lambda_.20} parent=15 // pred_region
        %p162 = scmp.lt.s32.totalorder %s16, 23
        %s163 = scalar_select %p162, %s16, 23
        %s164 = smul.addr %s163, 4
        %s165 = scalar_lea.vmem %s1, %s164
      $region24: #{_lambda_.20} parent=15 // pred_fallthru
        _
      // Predicated region
      $region25: #{_lambda_.20} parent=15 // pred_check
        %p166 = pneg %p95
      $region26: #{_lambda_.20} parent=15 // pred_check_branch
        %168 = sbr.rel (%p166) target = $region28
      $region27: #{_lambda_.20} parent=15 // pred_region
        %p169 = scmp.lt.s32.totalorder %s16, 23
        %s170 = scalar_select %p169, %s16, 23
        %s171 = smul.addr %s170, 4
        %s172 = scalar_lea.vmem %s2, %s171
      $region28: #{_lambda_.20} parent=15 // pred_fallthru
        _
    $region16: #{_lambda_.20} parent=5 // pred_fallthru
      _
    %p173 = scmp.le.s32.totalorder 1, %s9
    %p174 = scmp.lt.s32.totalorder %s9, 49
    %p175 = pnand %p173, %p174
    %p176 = pneg %p175
    // Predicated region
    $region29: #{_lambda_.20} parent=5 // pred_check
      _
    $region30: #{_lambda_.20} parent=5 // pred_check_branch
      %178 = sbr.rel (%p175) target = $region32
    $region31: #{_lambda_.20} parent=5 // pred_region
      %s179 = ssub.s32 %s9, 1
      %p180 = scmp.lt.s32.totalorder %s18, 23
      %s181 = scalar_select %p180, %s18, 23
      %p182 = scmp.lt.s32.totalorder %s19, 1
      %s183 = scalar_select %p182, %s19, 1
      %s184 = smul.addr %s183, 4
      %s185 = smul.addr %s181, 8
      %s186 = sadd.s32 %s184, %s185
      %s187 = scalar_lea.vmem %s0, %s186
      %p188 = pneg %p49
      %p189 = pneg %p46
      %p190 = scmp.lt.s32.totalorder %s18, 23
      %s191 = scalar_select %p190, %s18, 23
      %s192 = smul.addr %s191, 4
      %s193 = scalar_lea.vmem %s1, %s192
      %p194 = pneg %p75
      %p195 = pneg %p72
      %p196 = scmp.lt.s32.totalorder %s18, 23
      %s197 = scalar_select %p196, %s18, 23
      %s198 = smul.addr %s197, 4
      %s199 = scalar_lea.vmem %s2, %s198
      %p200 = pneg %p101
      %p201 = pneg %p98
      %p202 = pneg %p129
      %p203 = pneg %p126
      %p204 = scmp.lt.s32.totalorder %s18, 23
      %s205 = scalar_select %p204, %s18, 23
      %p206 = scmp.lt.s32.totalorder %s19, 1
      %s207 = scalar_select %p206, %s19, 1
      %s208 = smul.addr %s207, 4
      %s209 = smul.addr %s205, 8
      %s210 = sadd.s32 %s208, %s209
      %s211 = scalar_lea.vmem %s3, %s210
      %p212 = scmp.lt.s32.totalorder %s18, 23
      %s213 = scalar_select %p212, %s18, 23
      %p214 = scmp.lt.s32.totalorder %s19, 1
      %s215 = scalar_select %p214, %s19, 1
      %s216 = smul.addr %s215, 4
      %s217 = smul.addr %s213, 8
      %s218 = sadd.s32 %s216, %s217
      %s219 = scalar_lea.vmem %s0, %s218
      %p220 = scmp.lt.s32.totalorder %s18, 23
      %s221 = scalar_select %p220, %s18, 23
      %s222 = smul.addr %s221, 4
      %s223 = scalar_lea.vmem %s1, %s222
      %p224 = scmp.lt.s32.totalorder %s18, 23
      %s225 = scalar_select %p224, %s18, 23
      %s226 = smul.addr %s225, 4
      %s227 = scalar_lea.vmem %s2, %s226
      %p228 = scmp.lt.s32.totalorder %s18, 23
      %s229 = scalar_select %p228, %s18, 23
      %p230 = scmp.lt.s32.totalorder %s19, 1
      %s231 = scalar_select %p230, %s19, 1
      %s232 = smul.addr %s231, 4
      %s233 = smul.addr %s229, 8
      %s234 = sadd.s32 %s232, %s233
      %s235 = scalar_lea.vmem %s3, %s234
      %v236 = vld [vmem:[%s219] sm:$0xf]
      %v237 = vunpack.c.l.bf16 %v236
      %v238 = vlaneseq
      %v239 = vshrl.u32 %v238, 7
      %v240 = vlaneseq
      %v241 = vand.u32 %v240, 127
      %v242 = vadd.s32 %v241, 128
      %v243 = vadd.s32 %v241, 256
      %v244 = vadd.s32 %v241, 384
      %v245 = vmul.u32 %v239, 512
      %v246 = vadd.s32 %v245, %v241
      %v247 = vadd.s32 %v245, %v242
      %v248 = vadd.s32 %v245, %v243
      %v249 = vadd.s32 %v245, %v244
      %vm250 = vcmp.lt.s32.totalorder %v246, 144
      %vm251 = vcmp.lt.s32.totalorder %v247, 144
      %vm252 = vcmp.lt.s32.totalorder %v248, 144
      %vm253 = vcmp.lt.s32.totalorder %v249, 144
      %v255 = vperm.slane %v237, 0
      %v256 = vperm.slane %v237, 2
      %v257 = vperm.slane %v237, 4
      %v258 = vperm.slane %v237, 6
      %v263 = vsel %vm250, %v255, 0.0
      %v264 = vsel %vm251, %v256, 0.0
      %v265 = vsel %vm252, %v257, 0.0
      %v266 = vsel %vm253, %v258, 0.0
      %vm267 = vcmask 1040384
      %v268 = vsel %vm267, %v263, 0.0
      %v269 = vsel %vm267, %v264, 0.0
      %v270 = vadd.f32 %v268, %v269
      %v271 = vsel %vm267, %v265, 0.0
      %v272 = vadd.f32 %v270, %v271
      %v273 = vsel %vm267, %v266, 0.0
      %v274 = vadd.f32 %v272, %v273
      %275 = vadd.xlane.f32.xlu0 %v274
      %v276 = vpop.xlane.xlu0 %275
      %v277 = vrot.slane %v276, 4
      %v278 = vadd.f32 %v276, %v277
      %v279 = vrot.slane %v278, 2
      %v280 = vadd.f32 %v278, %v279
      %v281 = vrot.slane %v280, 1
      %v282 = vadd.f32 %v280, %v281
      %s283 = vtos %v282
      %v284 = vmul.f32 %v263, %v263
      %v285 = vmul.f32 %v264, %v264
      %v286 = vmul.f32 %v265, %v265
      %v287 = vmul.f32 %v266, %v266
      %v288 = vsel %vm267, %v284, 0.0
      %v289 = vsel %vm267, %v285, 0.0
      %v290 = vadd.f32 %v288, %v289
      %v291 = vsel %vm267, %v286, 0.0
      %v292 = vadd.f32 %v290, %v291
      %v293 = vsel %vm267, %v287, 0.0
      %v294 = vadd.f32 %v292, %v293
      %295 = vadd.xlane.f32.xlu0 %v294
      %v296 = vpop.xlane.xlu0 %295
      %v297 = vrot.slane %v296, 4
      %v298 = vadd.f32 %v296, %v297
      %v299 = vrot.slane %v298, 2
      %v300 = vadd.f32 %v298, %v299
      %v301 = vrot.slane %v300, 1
      %v302 = vadd.f32 %v300, %v301
      %s303 = vtos %v302
      %v304 = vrcp.pop 144.0
      %v305 = vmul.f32 144.0, %v304
      %v306 = vsub.f32 1.0, %v305
      %v307 = vmul.f32 %v304, %v306
      %v308 = vadd.f32 %v304, %v307
      %vm309 = vweird.f32 %v304
      %v310 = vsel %vm309, %v304, %v308
      %s311 = vtos %v310
      %s312 = smul.f32 %s283, %s311
      %s313 = smul.f32 %s312, 144.0
      %s314 = smul.f32 %s313, %s312
      %s315 = ssub.f32 %s303, %s314
      %v316 = vrcp.pop 143.0
      %v317 = vmul.f32 143.0, %v316
      %v318 = vsub.f32 1.0, %v317
      %v319 = vmul.f32 %v316, %v318
      %v320 = vadd.f32 %v316, %v319
      %vm321 = vweird.f32 %v316
      %v322 = vsel %vm321, %v316, %v320
      %s323 = vtos %v322
      %s324 = smul.f32 %s315, %s323
      %s325 = smax.f32 %s324, 0.0
      %v326 = vstv %s312
      %v327 = vsub.f32 %v237, %v326
      %v328 = vstv %s325
      %v329 = vrsqrt.pop %v328
      %v330 = vmul.f32 %v329, %v328
      %v331 = vmul.f32 %v330, %v329
      %v332 = vmul.f32 0.5, %v331
      %v333 = vsub.f32 1.5, %v332
      %v334 = vmul.f32 %v329, %v333
      %v335 = vmul.f32 %v328, %v334
      %vm336 = vcmp.eq.f32.partialorder %v328, inf
      %v337 = vsel %vm336, %v328, %v335
      %vm338 = vcmp.eq.f32.partialorder %v328, 0.0
      %v339 = vand.u32 %v328, 2147483648
      %v340 = vsel %vm338, %v339, %v337
      %s341 = vtos %v340
      %s342 = sadd.f32 %s341, 1e-05
      %v343 = vstv %s342
      %v344 = vrcp.pop %v343
      %v345 = vmul.f32 %v343, %v344
      %v346 = vsub.f32 1.0, %v345
      %v347 = vmul.f32 %v344, %v346
      %v348 = vadd.f32 %v344, %v347
      %vm349 = vweird.f32 %v343
      %vm350 = vweird.f32 %v344
      %vm351 = vmor %vm349, %vm350
      %v352 = vsel %vm351, %v344, %v348
      %v353 = vand.u32 2147483647, %v343
      %vm354 = vcmp.eq.f32.partialorder %v353, 8.507059e+37
      %v355 = vand.u32 %v343, 2147483648
      %v356 = vor.u32 1.1754944e-38, %v355
      %v357 = vsel %vm354, %v356, %v352
      %v358 = vmul.f32 %v327, %v357
      %v359 = vld [vmem:[%s223] sm:$0xf]
      %v362 = vunpack.c.l.s4 857870592
      %v363 = vunpack.c.0.s8 %v362
      %v364 = vperm.slane %v359, %v363
      %v366 = vmul.f32 %v358, %v364
      %v367 = vld [vmem:[%s227] sm:$0xf]
      %v370 = vunpack.c.l.s4 857870592
      %v371 = vunpack.c.0.s8 %v370
      %v372 = vperm.slane %v367, %v371
      %v374 = vadd.f32 %v366, %v372
      %vm375 = vcmp.gt.f32.partialorder %v374, 0.0
      %v376 = vmul.f32 %v374, 0.01
      %v377 = vsel %vm375, %v374, %v376
      %v379 = vperm.slane %v377, 0
      %v380 = vperm.slane %v377, 2
      %v381 = vperm.slane %v377, 4
      %v382 = vperm.slane %v377, 6
      %v387 = vpack.c.bf16 %v380, %v379
      %v388 = vpack.c.bf16 %v382, %v381
      %v391 = vrot.slane %v387, 3
      %v392 = vrot.slane %v388, 6
      %v393 = vrot.slane %v388, 1
      %v396 = vsel %vm267, %v387, %v391
      %vm397 = vcmask 1042434
      %v400 = vsel %vm397, %v392, %v393
      %vm401 = vcmask 1041408
      %v402 = vsel %vm401, %v396, %v400
      %vm404 = vcmask 1040384
      %vm405 = vsmask.f32 256
      %vm406 = vmand %vm404, %vm405
      %vm407 = vcmask 1041409
      %vm408 = vsmask.f32 1280
      %vm409 = vmand %vm407, %vm408
      %vm410 = vmor %vm409, %vm406
      %vm411 = vcmask 1042434
      %vm412 = vsmask.f32 2304
      %vm413 = vmand %vm411, %vm412
      %vm414 = vmor %vm413, %vm410
      %vm415 = vcmask 1043459
      %vm416 = vsmask.f32 3328
      %vm417 = vmand %vm415, %vm416
      %vm418 = vmor %vm417, %vm414
      %v419 = vld [vmem:[%s235] sm:$0xf]
      %v420 = vsel %vm418, %v402, %v419
      %421 = vst [vmem:[%s235] sm:$0xf] %v420
      %p422 = scmp.lt.s32.totalorder %s18, 23
      %s423 = scalar_select %p422, %s18, 23
      %p424 = scmp.lt.s32.totalorder %s19, 1
      %s425 = scalar_select %p424, %s19, 1
      %s426 = smul.addr %s425, 4
      %s427 = smul.addr %s423, 8
      %s428 = sadd.s32 %s426, %s427
      %s429 = scalar_lea.vmem %s3, %s428
      // Predicated region
      $region33: #{_lambda_.20} parent=31 // pred_check
        %p430 = pneg %p126
      $region34: #{_lambda_.20} parent=31 // pred_check_branch
        %432 = sbr.rel (%p430) target = $region36
      $region35: #{_lambda_.20} parent=31 // pred_region
        _
      $region36: #{_lambda_.20} parent=31 // pred_fallthru
        _
    $region32: #{_lambda_.20} parent=5 // pred_fallthru
      _
    %p433 = scmp.le.s32.totalorder 2, %s9
    // Predicated region
    $region37: #{_lambda_.20} parent=5 // pred_check
      %p434 = pneg %p433
    $region38: #{_lambda_.20} parent=5 // pred_check_branch
      %436 = sbr.rel (%p434) target = $region40
    $region39: #{_lambda_.20} parent=5 // pred_region
      %s437 = ssub.s32 %s9, 2
      // Predicated region
      $region41: #{_lambda_.20} parent=39 // pred_check
        %p438 = pneg %p132
      $region42: #{_lambda_.20} parent=39 // pred_check_branch
        %440 = sbr.rel (%p438) target = $region44
      $region43: #{_lambda_.20} parent=39 // pred_region
        %p441 = scmp.lt.s32.totalorder %s20, 23
        %s442 = scalar_select %p441, %s20, 23
        %p443 = scmp.lt.s32.totalorder %s21, 1
        %s444 = scalar_select %p443, %s21, 1
        %s445 = smul.addr %s444, 4
        %s446 = smul.addr %s442, 8
        %s447 = sadd.s32 %s445, %s446
        %s448 = scalar_lea.vmem %s3, %s447
      $region44: #{_lambda_.20} parent=39 // pred_fallthru
        _
    $region40: #{_lambda_.20} parent=5 // pred_fallthru
      _
  $region6: #{_lambda_.20} parent=0 // loop_footer
    %s13 = sadd.s32 1, %s9
  $region7: #{_lambda_.20} parent=0 // loop_footer_branch
    %8 = sbr.rel target = $region3
  $region8: #{_lambda_.20} parent=0 // loop_exit
    _

// kernel: _lambda_.23
$region0: #{_lambda_.23}
  #allocation0 [shape = 'u32[]', space=smem, size = 0x4, offset = 0x4, fixed_abs, tag = 'smem constant byte address 0x4 - core index']
  #allocation1 [shape = 'u32[72,128]{1,0:T(1,128)}', space=vmem, size = 0x9000, scoped, tag = 'internal scratch']
  %s0 = inlined_call_operand.vmem [shape: f32[1,2,32], index: 0, kind: input, shape index: {}]
  %s1 = inlined_call_operand.vmem [shape: f32[1,32], index: 1, kind: output, shape index: {}]
  %s2 = sld [smem:[#allocation0]]
  $region14: #{_lambda_.23} parent=0
    _
  %s4 = ssub.s32 1, %s2
  %s5 = scalar_select 0, %s4, %s2
  // Predicated region
  $region2: #{_lambda_.23} parent=0 // pred_check
    _
  $region3: #{_lambda_.23} parent=0 // pred_check_branch
    %7 = sbr.rel (0) target = $region5
  $region4: #{_lambda_.23} parent=0 // pred_region
    _
  $region5: #{_lambda_.23} parent=0 // pred_fallthru
    _
  %v8 = vld [vmem:[%s0] sm:$0x3]
  %vm9 = vcmask 254976
  %v10 = vsel %vm9, %v8, -inf
  %v11 = vrot.slane %v10, 4
  %v12 = vmax.f32 %v10, %v11
  %v13 = vrot.slane %v12, 2
  %v14 = vmax.f32 %v12, %v13
  %v15 = vrot.slane %v14, 1
  %v16 = vmax.f32 %v14, %v15
  %vm17 = vcmask 253952
  %18 = vst.msk [vmem:[%s1] sm:$0x1] %vm17, %v16
  // Predicated region
  $region6: #{_lambda_.23} parent=0 // pred_check
    _
  $region7: #{_lambda_.23} parent=0 // pred_check_branch
    %20 = sbr.rel (0) target = $region9
  $region8: #{_lambda_.23} parent=0 // pred_region
    _
  $region9: #{_lambda_.23} parent=0 // pred_fallthru
    _
  // Predicated region
  $region10: #{_lambda_.23} parent=0 // pred_check
    _
  $region11: #{_lambda_.23} parent=0 // pred_check_branch
    %22 = sbr.rel (0) target = $region13
  $region12: #{_lambda_.23} parent=0 // pred_region
    _
  $region13: #{_lambda_.23} parent=0 // pred_fallthru
    _

// kernel: _lambda_.21
$region0: #{_lambda_.21}
  #allocation0 [shape = 'u32[]', space=smem, size = 0x4, offset = 0x4, fixed_abs, tag = 'smem constant byte address 0x4 - core index']
  #allocation1 [shape = 'u32[72,128]{1,0:T(1,128)}', space=vmem, size = 0x9000, scoped, tag = 'internal scratch']
  %s0 = inlined_call_operand.vmem [shape: bf16[8,384], index: 0, kind: input, shape index: {}]
  %s1 = inlined_call_operand.vmem [shape: bf16[384,32], index: 1, kind: input, shape index: {}]
  %s2 = inlined_call_operand.vmem [shape: f32[1,32], index: 2, kind: input, shape index: {}]
  %s3 = inlined_call_operand.vmem [shape: bf16[32,32], index: 3, kind: input, shape index: {}]
  %s4 = inlined_call_operand.vmem [shape: f32[1,32], index: 4, kind: input, shape index: {}]
  %s5 = inlined_call_operand.vmem [shape: bf16[32,32], index: 5, kind: input, shape index: {}]
  %s6 = inlined_call_operand.vmem [shape: f32[1,32], index: 6, kind: input, shape index: {}]
  %s7 = inlined_call_operand.vmem [shape: bf16[32,32], index: 7, kind: input, shape index: {}]
  %s8 = inlined_call_operand.vmem [shape: f32[1,32], index: 8, kind: input, shape index: {}]
  %s9 = inlined_call_operand.vmem [shape: bf16[32,32], index: 9, kind: input, shape index: {}]
  %s10 = inlined_call_operand.vmem [shape: f32[1,32], index: 10, kind: input, shape index: {}]
  %s11 = inlined_call_operand.vmem [shape: f32[8,32], index: 11, kind: output, shape index: {}]
  %s12 = sld [smem:[#allocation0]]
  $region54: #{_lambda_.21} parent=0
    _
  %s14 = ssub.s32 1, %s12
  %s15 = scalar_select 0, %s14, %s12
  // Predicated region
  $region2: #{_lambda_.21} parent=0 // pred_check
    _
  $region3: #{_lambda_.21} parent=0 // pred_check_branch
    %17 = sbr.rel (0) target = $region5
  $region4: #{_lambda_.21} parent=0 // pred_region
    _
  $region5: #{_lambda_.21} parent=0 // pred_fallthru
    _
  // Predicated region
  $region6: #{_lambda_.21} parent=0 // pred_check
    _
  $region7: #{_lambda_.21} parent=0 // pred_check_branch
    %19 = sbr.rel (0) target = $region9
  $region8: #{_lambda_.21} parent=0 // pred_region
    _
  $region9: #{_lambda_.21} parent=0 // pred_fallthru
    _
  // Predicated region
  $region10: #{_lambda_.21} parent=0 // pred_check
    _
  $region11: #{_lambda_.21} parent=0 // pred_check_branch
    %21 = sbr.rel (0) target = $region13
  $region12: #{_lambda_.21} parent=0 // pred_region
    _
  $region13: #{_lambda_.21} parent=0 // pred_fallthru
    _
  // Predicated region
  $region14: #{_lambda_.21} parent=0 // pred_check
    _
  $region15: #{_lambda_.21} parent=0 // pred_check_branch
    %23 = sbr.rel (0) target = $region17
  $region16: #{_lambda_.21} parent=0 // pred_region
    _
  $region17: #{_lambda_.21} parent=0 // pred_fallthru
    _
  // Predicated region
  $region18: #{_lambda_.21} parent=0 // pred_check
    _
  $region19: #{_lambda_.21} parent=0 // pred_check_branch
    %25 = sbr.rel (0) target = $region21
  $region20: #{_lambda_.21} parent=0 // pred_region
    _
  $region21: #{_lambda_.21} parent=0 // pred_fallthru
    _
  // Predicated region
  $region22: #{_lambda_.21} parent=0 // pred_check
    _
  $region23: #{_lambda_.21} parent=0 // pred_check_branch
    %27 = sbr.rel (0) target = $region25
  $region24: #{_lambda_.21} parent=0 // pred_region
    _
  $region25: #{_lambda_.21} parent=0 // pred_fallthru
    _
  // Predicated region
  $region26: #{_lambda_.21} parent=0 // pred_check
    _
  $region27: #{_lambda_.21} parent=0 // pred_check_branch
    %29 = sbr.rel (0) target = $region29
  $region28: #{_lambda_.21} parent=0 // pred_region
    _
  $region29: #{_lambda_.21} parent=0 // pred_fallthru
    _
  // Predicated region
  $region30: #{_lambda_.21} parent=0 // pred_check
    _
  $region31: #{_lambda_.21} parent=0 // pred_check_branch
    %31 = sbr.rel (0) target = $region33
  $region32: #{_lambda_.21} parent=0 // pred_region
    _
  $region33: #{_lambda_.21} parent=0 // pred_fallthru
    _
  // Predicated region
  $region34: #{_lambda_.21} parent=0 // pred_check
    _
  $region35: #{_lambda_.21} parent=0 // pred_check_branch
    %33 = sbr.rel (0) target = $region37
  $region36: #{_lambda_.21} parent=0 // pred_region
    _
  $region37: #{_lambda_.21} parent=0 // pred_fallthru
    _
  // Predicated region
  $region38: #{_lambda_.21} parent=0 // pred_check
    _
  $region39: #{_lambda_.21} parent=0 // pred_check_branch
    %35 = sbr.rel (0) target = $region41
  $region40: #{_lambda_.21} parent=0 // pred_region
    _
  $region41: #{_lambda_.21} parent=0 // pred_fallthru
    _
  // Predicated region
  $region42: #{_lambda_.21} parent=0 // pred_check
    _
  $region43: #{_lambda_.21} parent=0 // pred_check_branch
    %37 = sbr.rel (0) target = $region45
  $region44: #{_lambda_.21} parent=0 // pred_region
    _
  $region45: #{_lambda_.21} parent=0 // pred_fallthru
    _
  %v39 = vld [vmem:[%s0] sm:$0xff]
  %v40 = vld [vmem:[%s0 + $0x8] sm:$0xf]
  %v41 = vld [vmem:[%s1] sm:$0xf]
  %v42 = vld [vmem:[%s1 + $0x4] sm:$0xf]
  %v43 = vld [vmem:[%s1 + $0x8] sm:$0xf]
  %v44 = vld [vmem:[%s1 + $0xc] sm:$0xf]
  %v45 = vld [vmem:[%s1 + $0x10] sm:$0xf]
  %v46 = vld [vmem:[%s1 + $0x14] sm:$0xf]
  %v47 = vld [vmem:[%s1 + $0x18] sm:$0xf]
  %v48 = vld [vmem:[%s1 + $0x1c] sm:$0xf]
  %v49 = vld [vmem:[%s1 + $0x20] sm:$0xf]
  %v50 = vld [vmem:[%s1 + $0x24] sm:$0xf]
  %v51 = vld [vmem:[%s1 + $0x28] sm:$0xf]
  %v52 = vld [vmem:[%s1 + $0x2c] sm:$0xf]
  %v53 = vld [vmem:[%s1 + $0x30] sm:$0xf]
  %v54 = vld [vmem:[%s1 + $0x34] sm:$0xf]
  %v55 = vld [vmem:[%s1 + $0x38] sm:$0xf]
  %v56 = vld [vmem:[%s1 + $0x3c] sm:$0xf]
  %v57 = vld [vmem:[%s1 + $0x40] sm:$0xf]
  %v58 = vld [vmem:[%s1 + $0x44] sm:$0xf]
  %v59 = vld [vmem:[%s1 + $0x48] sm:$0xf]
  %v60 = vld [vmem:[%s1 + $0x4c] sm:$0xf]
  %v61 = vld [vmem:[%s1 + $0x50] sm:$0xf]
  %v62 = vld [vmem:[%s1 + $0x54] sm:$0xf]
  %v63 = vld [vmem:[%s1 + $0x58] sm:$0xf]
  %v64 = vld [vmem:[%s1 + $0x5c] sm:$0xf]
  %v65 = vld [vmem:[%s1 + $0x60] sm:$0xf]
  %v66 = vld [vmem:[%s1 + $0x64] sm:$0xf]
  %v67 = vld [vmem:[%s1 + $0x68] sm:$0xf]
  %v68 = vld [vmem:[%s1 + $0x6c] sm:$0xf]
  %v69 = vld [vmem:[%s1 + $0x70] sm:$0xf]
  %v70 = vld [vmem:[%s1 + $0x74] sm:$0xf]
  %v71 = vld [vmem:[%s1 + $0x78] sm:$0xf]
  %v72 = vld [vmem:[%s1 + $0x7c] sm:$0xf]
  %v73 = vld [vmem:[%s1 + $0x80] sm:$0xf]
  %v74 = vld [vmem:[%s1 + $0x84] sm:$0xf]
  %v75 = vld [vmem:[%s1 + $0x88] sm:$0xf]
  %v76 = vld [vmem:[%s1 + $0x8c] sm:$0xf]
  %v77 = vld [vmem:[%s1 + $0x90] sm:$0xf]
  %v78 = vld [vmem:[%s1 + $0x94] sm:$0xf]
  %v79 = vld [vmem:[%s1 + $0x98] sm:$0xf]
  %v80 = vld [vmem:[%s1 + $0x9c] sm:$0xf]
  %v81 = vld [vmem:[%s1 + $0xa0] sm:$0xf]
  %v82 = vld [vmem:[%s1 + $0xa4] sm:$0xf]
  %v83 = vld [vmem:[%s1 + $0xa8] sm:$0xf]
  %v84 = vld [vmem:[%s1 + $0xac] sm:$0xf]
  %v85 = vld [vmem:[%s1 + $0xb0] sm:$0xf]
  %v86 = vld [vmem:[%s1 + $0xb4] sm:$0xf]
  %v87 = vld [vmem:[%s1 + $0xb8] sm:$0xf]
  %v88 = vld [vmem:[%s1 + $0xbc] sm:$0xf]
  %v89 = vld [vmem:[%s2] sm:$0x1]
  %v91 = vperm.slane %v89, 0
  %v95 = vunpack.c.l.b16 %v39
  %v96 = vunpack.c.h.b16 %v39
  %v97 = vunpack.c.l.b16 %v40
  %v98 = vpack.c.b16 %v95, %v95
  %v99 = vpack.c.b16 %v96, %v96
  %v100 = vpack.c.b16 %v97, %v97
  %v152 = vunpack.c.l.b16 %v41
  %v153 = vunpack.c.l.b16 %v42
  %v154 = vunpack.c.l.b16 %v43
  %v155 = vunpack.c.l.b16 %v44
  %v156 = vunpack.c.l.b16 %v45
  %v157 = vunpack.c.l.b16 %v46
  %v158 = vunpack.c.l.b16 %v47
  %v159 = vunpack.c.l.b16 %v48
  %v160 = vunpack.c.l.b16 %v49
  %v161 = vunpack.c.l.b16 %v50
  %v162 = vunpack.c.l.b16 %v51
  %v163 = vunpack.c.l.b16 %v52
  %v164 = vunpack.c.l.b16 %v53
  %v165 = vunpack.c.l.b16 %v54
  %v166 = vunpack.c.l.b16 %v55
  %v167 = vunpack.c.l.b16 %v56
  %v168 = vunpack.c.l.b16 %v57
  %v169 = vunpack.c.l.b16 %v58
  %v170 = vunpack.c.l.b16 %v59
  %v171 = vunpack.c.l.b16 %v60
  %v172 = vunpack.c.l.b16 %v61
  %v173 = vunpack.c.l.b16 %v62
  %v174 = vunpack.c.l.b16 %v63
  %v175 = vunpack.c.l.b16 %v64
  %v176 = vunpack.c.l.b16 %v65
  %v177 = vunpack.c.l.b16 %v66
  %v178 = vunpack.c.l.b16 %v67
  %v179 = vunpack.c.l.b16 %v68
  %v180 = vunpack.c.l.b16 %v69
  %v181 = vunpack.c.l.b16 %v70
  %v182 = vunpack.c.l.b16 %v71
  %v183 = vunpack.c.l.b16 %v72
  %v184 = vunpack.c.l.b16 %v73
  %v185 = vunpack.c.l.b16 %v74
  %v186 = vunpack.c.l.b16 %v75
  %v187 = vunpack.c.l.b16 %v76
  %v188 = vunpack.c.l.b16 %v77
  %v189 = vunpack.c.l.b16 %v78
  %v190 = vunpack.c.l.b16 %v79
  %v191 = vunpack.c.l.b16 %v80
  %v192 = vunpack.c.l.b16 %v81
  %v193 = vunpack.c.l.b16 %v82
  %v194 = vunpack.c.l.b16 %v83
  %v195 = vunpack.c.l.b16 %v84
  %v196 = vunpack.c.l.b16 %v85
  %v197 = vunpack.c.l.b16 %v86
  %v198 = vunpack.c.l.b16 %v87
  %v199 = vunpack.c.l.b16 %v88
  %v200 = vpack.c.b16 %v153, %v152
  %v201 = vpack.c.b16 %v155, %v154
  %v202 = vpack.c.b16 %v157, %v156
  %v203 = vpack.c.b16 %v159, %v158
  %v204 = vpack.c.b16 %v161, %v160
  %v205 = vpack.c.b16 %v163, %v162
  %v206 = vpack.c.b16 %v165, %v164
  %v207 = vpack.c.b16 %v167, %v166
  %v208 = vpack.c.b16 %v169, %v168
  %v209 = vpack.c.b16 %v171, %v170
  %v210 = vpack.c.b16 %v173, %v172
  %v211 = vpack.c.b16 %v175, %v174
  %v212 = vpack.c.b16 %v177, %v176
  %v213 = vpack.c.b16 %v179, %v178
  %v214 = vpack.c.b16 %v181, %v180
  %v215 = vpack.c.b16 %v183, %v182
  %v216 = vpack.c.b16 %v185, %v184
  %v217 = vpack.c.b16 %v187, %v186
  %v218 = vpack.c.b16 %v189, %v188
  %v219 = vpack.c.b16 %v191, %v190
  %v220 = vpack.c.b16 %v193, %v192
  %v221 = vpack.c.b16 %v195, %v194
  %v222 = vpack.c.b16 %v197, %v196
  %v223 = vpack.c.b16 %v199, %v198
  %248 = vmatpush.bf16.msra.mxu0 %v207
  %249 = vmatpush.bf16.msra.mxu0 %v206
  %250 = vmatpush.bf16.msra.mxu0 %v205
  %251 = vmatpush.bf16.msra.mxu0 %v204
  %252 = vmatpush.bf16.msra.mxu0 %v203
  %253 = vmatpush.bf16.msra.mxu0 %v202
  %254 = vmatpush.bf16.msra.mxu0 %v201
  %255 = vmatpush.bf16.msra.mxu0 %v200
  %256 = vmatmul.bf16.gmra.mxu0 %v98
  %v257 = vpop.f32.mrf.mxu0
  %v258 = vadd.f32 %v91, %v257
  %v259 = vpop.f32.mrf.mxu0
  %260 = vdwg.mxu0
  %261 = vmatpush.bf16.msra.mxu0 %v215
  %262 = vmatpush.bf16.msra.mxu0 %v214
  %263 = vmatpush.bf16.msra.mxu0 %v213
  %264 = vmatpush.bf16.msra.mxu0 %v212
  %265 = vmatpush.bf16.msra.mxu0 %v211
  %266 = vmatpush.bf16.msra.mxu0 %v210
  %267 = vmatpush.bf16.msra.mxu0 %v209
  %268 = vmatpush.bf16.msra.mxu0 %v208
  %269 = vmatmul.bf16.gmra.mxu0 %v99
  %v270 = vpop.f32.mrf.mxu0
  %v271 = vadd.f32 %v258, %v270
  %v272 = vpop.f32.mrf.mxu0
  %273 = vdwg.mxu0
  %274 = vmatpush.bf16.msra.mxu0 %v223
  %275 = vmatpush.bf16.msra.mxu0 %v222
  %276 = vmatpush.bf16.msra.mxu0 %v221
  %277 = vmatpush.bf16.msra.mxu0 %v220
  %278 = vmatpush.bf16.msra.mxu0 %v219
  %279 = vmatpush.bf16.msra.mxu0 %v218
  %280 = vmatpush.bf16.msra.mxu0 %v217
  %281 = vmatpush.bf16.msra.mxu0 %v216
  %282 = vmatmul.bf16.gmra.mxu0 %v100
  %v283 = vpop.f32.mrf.mxu0
  %v284 = vadd.f32 %v271, %v283
  %v285 = vpop.f32.mrf.mxu0
  %286 = vdwg.mxu0
  %vm287 = vcmask 261120
  %v288 = vsel %vm287, %v284, 0.0
  %289 = vadd.xlane.f32.xlu0 %v288
  %v290 = vpop.xlane.xlu0 %289
  %v291 = vrcp.pop 32.0
  %v292 = vmul.f32 32.0, %v291
  %v293 = vsub.f32 1.0, %v292
  %v294 = vmul.f32 %v291, %v293
  %v295 = vadd.f32 %v291, %v294
  %vm296 = vweird.f32 %v291
  %v297 = vsel %vm296, %v291, %v295
  %v298 = vmul.f32 %v290, %v297
  %v299 = vsub.f32 %v284, %v298
  %v300 = vmul.f32 %v299, %v299
  %v301 = vsel %vm287, %v300, 0.0
  %302 = vadd.xlane.f32.xlu0 %v301
  %v303 = vpop.xlane.xlu0 %302
  %v304 = vmul.f32 %v303, %v297
  %v305 = vadd.f32 %v304, 1e-05
  %v306 = vrsqrt.pop %v305
  %v307 = vmul.f32 %v306, %v305
  %v308 = vmul.f32 %v307, %v306
  %v309 = vmul.f32 0.5, %v308
  %v310 = vsub.f32 1.5, %v309
  %v311 = vmul.f32 %v306, %v310
  %vm312 = vweird.f32 %v305
  %vm313 = vweird.f32 %v306
  %vm314 = vmor %vm312, %vm313
  %v315 = vsel %vm314, %v306, %v311
  %v316 = vmul.f32 %v299, %v315
  %v317 = vmax.f32 %v316, 0.0
  %v318 = vpack.c.bf16 %v317, %v317
  %v319 = vld [vmem:[%s3] sm:$0xf]
  %v320 = vld [vmem:[%s3 + $0x4] sm:$0xf]
  %v321 = vld [vmem:[%s3 + $0x8] sm:$0xf]
  %v322 = vld [vmem:[%s3 + $0xc] sm:$0xf]
  %v323 = vld [vmem:[%s4] sm:$0x1]
  %v325 = vperm.slane %v323, 0
  %v331 = vunpack.c.l.b16 %v319
  %v332 = vunpack.c.l.b16 %v320
  %v333 = vunpack.c.l.b16 %v321
  %v334 = vunpack.c.l.b16 %v322
  %v335 = vpack.c.b16 %v332, %v331
  %v336 = vpack.c.b16 %v334, %v333
  %v340 = vsel %vm287, %v318, 0
  %342 = vmatpush.bf16.msra.mxu0 0
  %343 = vmatpush.bf16.msra.mxu0 0
  %344 = vmatpush.bf16.msra.mxu0 0
  %345 = vmatpush.bf16.msra.mxu0 0
  %346 = vmatpush.bf16.msra.mxu0 0
  %347 = vmatpush.bf16.msra.mxu0 0
  %348 = vmatpush.bf16.msra.mxu0 %v336
  %349 = vmatpush.bf16.msra.mxu0 %v335
  %350 = vmatmul.bf16.gmra.mxu0 %v340
  %v351 = vpop.f32.mrf.mxu0
  %v352 = vadd.f32 %v325, %v351
  %v353 = vpop.f32.mrf.mxu0
  %354 = vdwg.mxu0
  %v355 = vsel %vm287, %v352, 0.0
  %356 = vadd.xlane.f32.xlu0 %v355
  %v357 = vpop.xlane.xlu0 %356
  %v358 = vmul.f32 %v357, %v297
  %v359 = vsub.f32 %v352, %v358
  %v360 = vmul.f32 %v359, %v359
  %v361 = vsel %vm287, %v360, 0.0
  %362 = vadd.xlane.f32.xlu0 %v361
  %v363 = vpop.xlane.xlu0 %362
  %v364 = vmul.f32 %v363, %v297
  %v365 = vadd.f32 %v364, 1e-05
  %v366 = vrsqrt.pop %v365
  %v367 = vmul.f32 %v366, %v365
  %v368 = vmul.f32 %v367, %v366
  %v369 = vmul.f32 0.5, %v368
  %v370 = vsub.f32 1.5, %v369
  %v371 = vmul.f32 %v366, %v370
  %vm372 = vweird.f32 %v365
  %vm373 = vweird.f32 %v366
  %vm374 = vmor %vm372, %vm373
  %v375 = vsel %vm374, %v366, %v371
  %v376 = vmul.f32 %v359, %v375
  %v377 = vmax.f32 %v376, 0.0
  %v378 = vpack.c.bf16 %v377, %v377
  %v379 = vld [vmem:[%s5] sm:$0xf]
  %v380 = vld [vmem:[%s5 + $0x4] sm:$0xf]
  %v381 = vld [vmem:[%s5 + $0x8] sm:$0xf]
  %v382 = vld [vmem:[%s5 + $0xc] sm:$0xf]
  %v383 = vld [vmem:[%s6] sm:$0x1]
  %v385 = vperm.slane %v383, 0
  %v391 = vunpack.c.l.b16 %v379
  %v392 = vunpack.c.l.b16 %v380
  %v393 = vunpack.c.l.b16 %v381
  %v394 = vunpack.c.l.b16 %v382
  %v395 = vpack.c.b16 %v392, %v391
  %v396 = vpack.c.b16 %v394, %v393
  %v400 = vsel %vm287, %v378, 0
  %402 = vmatpush.bf16.msra.mxu0 0
  %403 = vmatpush.bf16.msra.mxu0 0
  %404 = vmatpush.bf16.msra.mxu0 0
  %405 = vmatpush.bf16.msra.mxu0 0
  %406 = vmatpush.bf16.msra.mxu0 0
  %407 = vmatpush.bf16.msra.mxu0 0
  %408 = vmatpush.bf16.msra.mxu0 %v396
  %409 = vmatpush.bf16.msra.mxu0 %v395
  %410 = vmatmul.bf16.gmra.mxu0 %v400
  %v411 = vpop.f32.mrf.mxu0
  %v412 = vadd.f32 %v385, %v411
  %v413 = vpop.f32.mrf.mxu0
  %414 = vdwg.mxu0
  %v415 = vsel %vm287, %v412, 0.0
  %416 = vadd.xlane.f32.xlu0 %v415
  %v417 = vpop.xlane.xlu0 %416
  %v418 = vmul.f32 %v417, %v297
  %v419 = vsub.f32 %v412, %v418
  %v420 = vmul.f32 %v419, %v419
  %v421 = vsel %vm287, %v420, 0.0
  %422 = vadd.xlane.f32.xlu0 %v421
  %v423 = vpop.xlane.xlu0 %422
  %v424 = vmul.f32 %v423, %v297
  %v425 = vadd.f32 %v424, 1e-05
  %v426 = vrsqrt.pop %v425
  %v427 = vmul.f32 %v426, %v425
  %v428 = vmul.f32 %v427, %v426
  %v429 = vmul.f32 0.5, %v428
  %v430 = vsub.f32 1.5, %v429
  %v431 = vmul.f32 %v426, %v430
  %vm432 = vweird.f32 %v425
  %vm433 = vweird.f32 %v426
  %vm434 = vmor %vm432, %vm433
  %v435 = vsel %vm434, %v426, %v431
  %v436 = vmul.f32 %v419, %v435
  %v437 = vmax.f32 %v436, 0.0
  %v438 = vpack.c.bf16 %v437, %v437
  %v439 = vld [vmem:[%s7] sm:$0xf]
  %v440 = vld [vmem:[%s7 + $0x4] sm:$0xf]
  %v441 = vld [vmem:[%s7 + $0x8] sm:$0xf]
  %v442 = vld [vmem:[%s7 + $0xc] sm:$0xf]
  %v443 = vld [vmem:[%s8] sm:$0x1]
  %v445 = vperm.slane %v443, 0
  %v451 = vunpack.c.l.b16 %v439
  %v452 = vunpack.c.l.b16 %v440
  %v453 = vunpack.c.l.b16 %v441
  %v454 = vunpack.c.l.b16 %v442
  %v455 = vpack.c.b16 %v452, %v451
  %v456 = vpack.c.b16 %v454, %v453
  %v460 = vsel %vm287, %v438, 0
  %462 = vmatpush.bf16.msra.mxu0 0
  %463 = vmatpush.bf16.msra.mxu0 0
  %464 = vmatpush.bf16.msra.mxu0 0
  %465 = vmatpush.bf16.msra.mxu0 0
  %466 = vmatpush.bf16.msra.mxu0 0
  %467 = vmatpush.bf16.msra.mxu0 0
  %468 = vmatpush.bf16.msra.mxu0 %v456
  %469 = vmatpush.bf16.msra.mxu0 %v455
  %470 = vmatmul.bf16.gmra.mxu0 %v460
  %v471 = vpop.f32.mrf.mxu0
  %v472 = vadd.f32 %v445, %v471
  %v473 = vpop.f32.mrf.mxu0
  %474 = vdwg.mxu0
  %v475 = vsel %vm287, %v472, 0.0
  %476 = vadd.xlane.f32.xlu0 %v475
  %v477 = vpop.xlane.xlu0 %476
  %v478 = vmul.f32 %v477, %v297
  %v479 = vsub.f32 %v472, %v478
  %v480 = vmul.f32 %v479, %v479
  %v481 = vsel %vm287, %v480, 0.0
  %482 = vadd.xlane.f32.xlu0 %v481
  %v483 = vpop.xlane.xlu0 %482
  %v484 = vmul.f32 %v483, %v297
  %v485 = vadd.f32 %v484, 1e-05
  %v486 = vrsqrt.pop %v485
  %v487 = vmul.f32 %v486, %v485
  %v488 = vmul.f32 %v487, %v486
  %v489 = vmul.f32 0.5, %v488
  %v490 = vsub.f32 1.5, %v489
  %v491 = vmul.f32 %v486, %v490
  %vm492 = vweird.f32 %v485
  %vm493 = vweird.f32 %v486
  %vm494 = vmor %vm492, %vm493
  %v495 = vsel %vm494, %v486, %v491
  %v496 = vmul.f32 %v479, %v495
  %v497 = vmax.f32 %v496, 0.0
  %v498 = vpack.c.bf16 %v497, %v497
  %v499 = vld [vmem:[%s9] sm:$0xf]
  %v500 = vld [vmem:[%s9 + $0x4] sm:$0xf]
  %v501 = vld [vmem:[%s9 + $0x8] sm:$0xf]
  %v502 = vld [vmem:[%s9 + $0xc] sm:$0xf]
  %v503 = vld [vmem:[%s10] sm:$0x1]
  %v505 = vperm.slane %v503, 0
  %v511 = vunpack.c.l.b16 %v499
  %v512 = vunpack.c.l.b16 %v500
  %v513 = vunpack.c.l.b16 %v501
  %v514 = vunpack.c.l.b16 %v502
  %v515 = vpack.c.b16 %v512, %v511
  %v516 = vpack.c.b16 %v514, %v513
  %v520 = vsel %vm287, %v498, 0
  %522 = vmatpush.bf16.msra.mxu0 0
  %523 = vmatpush.bf16.msra.mxu0 0
  %524 = vmatpush.bf16.msra.mxu0 0
  %525 = vmatpush.bf16.msra.mxu0 0
  %526 = vmatpush.bf16.msra.mxu0 0
  %527 = vmatpush.bf16.msra.mxu0 0
  %528 = vmatpush.bf16.msra.mxu0 %v516
  %529 = vmatpush.bf16.msra.mxu0 %v515
  %530 = vmatmul.bf16.gmra.mxu0 %v520
  %v531 = vpop.f32.mrf.mxu0
  %v532 = vadd.f32 %v505, %v531
  %v533 = vpop.f32.mrf.mxu0
  %534 = vdwg.mxu0
  %v535 = vsel %vm287, %v532, 0.0
  %536 = vadd.xlane.f32.xlu0 %v535
  %v537 = vpop.xlane.xlu0 %536
  %v538 = vmul.f32 %v537, %v297
  %v539 = vsub.f32 %v532, %v538
  %v540 = vmul.f32 %v539, %v539
  %v541 = vsel %vm287, %v540, 0.0
  %542 = vadd.xlane.f32.xlu0 %v541
  %v543 = vpop.xlane.xlu0 %542
  %v544 = vmul.f32 %v543, %v297
  %v545 = vadd.f32 %v544, 1e-05
  %v546 = vrsqrt.pop %v545
  %v547 = vmul.f32 %v546, %v545
  %v548 = vmul.f32 %v547, %v546
  %v549 = vmul.f32 0.5, %v548
  %v550 = vsub.f32 1.5, %v549
  %v551 = vmul.f32 %v546, %v550
  %vm552 = vweird.f32 %v545
  %vm553 = vweird.f32 %v546
  %vm554 = vmor %vm552, %vm553
  %v555 = vsel %vm554, %v546, %v551
  %v556 = vmul.f32 %v539, %v555
  %v557 = vmax.f32 %v556, 0.0
  %558 = vst.msk [vmem:[%s11] sm:$0xff] %vm287, %v557
  // Predicated region
  $region46: #{_lambda_.21} parent=0 // pred_check
    _
  $region47: #{_lambda_.21} parent=0 // pred_check_branch
    %560 = sbr.rel (0) target = $region49
  $region48: #{_lambda_.21} parent=0 // pred_region
    _
  $region49: #{_lambda_.21} parent=0 // pred_fallthru
    _
  // Predicated region
  $region50: #{_lambda_.21} parent=0 // pred_check
    _
  $region51: #{_lambda_.21} parent=0 // pred_check_branch
    %562 = sbr.rel (0) target = $region53
  $region52: #{_lambda_.21} parent=0 // pred_region
    _
  $region53: #{_lambda_.21} parent=0 // pred_fallthru
    _

// kernel: _lambda_.22
$region0: #{_lambda_.22}
  #allocation0 [shape = 'u32[]', space=smem, size = 0x4, offset = 0x4, fixed_abs, tag = 'smem constant byte address 0x4 - core index']
  #allocation1 [shape = 'u32[72,128]{1,0:T(1,128)}', space=vmem, size = 0x9000, scoped, tag = 'internal scratch']
  %s0 = inlined_call_operand.vmem [shape: f32[1,2,384], index: 0, kind: input, shape index: {}]
  %s1 = inlined_call_operand.vmem [shape: f32[1,384], index: 1, kind: output, shape index: {}]
  %s2 = sld [smem:[#allocation0]]
  $region14: #{_lambda_.22} parent=0
    _
  %s4 = ssub.s32 1, %s2
  %s5 = scalar_select 0, %s4, %s2
  // Predicated region
  $region2: #{_lambda_.22} parent=0 // pred_check
    _
  $region3: #{_lambda_.22} parent=0 // pred_check_branch
    %7 = sbr.rel (0) target = $region5
  $region4: #{_lambda_.22} parent=0 // pred_region
    _
  $region5: #{_lambda_.22} parent=0 // pred_fallthru
    _
  %v8 = vld [vmem:[%s0] sm:$0x3f]
  %10 = vst [vmem:[#allocation1] ss:$4 sm:$0xff] %v8
  %v11 = vld.sshfl [vmem:[#allocation1] sm:$0xff pattern:$0x73625140]
  %v12 = vld.sshfl [vmem:[#allocation1 + $0x8] sm:$0xff pattern:$0x73625140]
  %v13 = vld.sshfl [vmem:[#allocation1 + $0x10] sm:$0xff pattern:$0x73625140]
  %vm17 = vcmask 1041408
  %v18 = vsel %vm17, %v11, -inf
  %v19 = vrot.slane %v18, 4
  %v20 = vmax.f32 %v18, %v19
  %v21 = vrot.slane %v20, 2
  %v22 = vmax.f32 %v20, %v21
  %v23 = vrot.slane %v22, 1
  %v24 = vmax.f32 %v22, %v23
  %v25 = vsel %vm17, %v12, -inf
  %v26 = vrot.slane %v25, 4
  %v27 = vmax.f32 %v25, %v26
  %v28 = vrot.slane %v27, 2
  %v29 = vmax.f32 %v27, %v28
  %v30 = vrot.slane %v29, 1
  %v31 = vmax.f32 %v29, %v30
  %v32 = vsel %vm17, %v13, -inf
  %v33 = vrot.slane %v32, 4
  %v34 = vmax.f32 %v32, %v33
  %v35 = vrot.slane %v34, 2
  %v36 = vmax.f32 %v34, %v35
  %v37 = vrot.slane %v36, 1
  %v38 = vmax.f32 %v36, %v37
  %v42 = vrot.slane %v31, 7
  %v43 = vrot.slane %v38, 6
  %vm44 = vcmask 1040384
  %v45 = vsel %vm44, %v24, %v42
  %v46 = vsel %vm17, %v45, %v43
  %v48 = vlaneseq
  %vm49 = vcmp.ge.s32.totalorder %v48, 0
  %vm50 = vcmp.lt.s32.totalorder %v48, 384
  %vm51 = vmand %vm49, %vm50
  %52 = vst.msk [vmem:[%s1] sm:$0x7] %vm51, %v46
  // Predicated region
  $region6: #{_lambda_.22} parent=0 // pred_check
    _
  $region7: #{_lambda_.22} parent=0 // pred_check_branch
    %54 = sbr.rel (0) target = $region9
  $region8: #{_lambda_.22} parent=0 // pred_region
    _
  $region9: #{_lambda_.22} parent=0 // pred_fallthru
    _
  // Predicated region
  $region10: #{_lambda_.22} parent=0 // pred_check
    _
  $region11: #{_lambda_.22} parent=0 // pred_check_branch
    %56 = sbr.rel (0) target = $region13
  $region12: #{_lambda_.22} parent=0 // pred_region
    _
  $region13: #{_lambda_.22} parent=0 // pred_fallthru
    _

// kernel: _lambda_.26
$region0: #{_lambda_.26}
  #allocation0 [shape = 'u32[]', space=smem, size = 0x4, offset = 0x4, fixed_abs, tag = 'smem constant byte address 0x4 - core index']
  #allocation1 [shape = 'u32[72,128]{1,0:T(1,128)}', space=vmem, size = 0x9000, scoped, tag = 'internal scratch']
  %s0 = inlined_call_operand.vmem [shape: bf16[24,2,96], index: 0, kind: input, shape index: {}]
  %s1 = inlined_call_operand.vmem [shape: bf16[24,96,16], index: 1, kind: input, shape index: {}]
  %s2 = inlined_call_operand.vmem [shape: f32[24,1,16], index: 2, kind: input, shape index: {}]
  %s3 = inlined_call_operand.vmem [shape: bf16[24,2,16], index: 3, kind: output, shape index: {}]
  %s4 = sld [smem:[#allocation0]]
  $region45: #{_lambda_.26} parent=0
    _
  %s6 = ssub.s32 1, %s4
  %s7 = scalar_select 0, %s6, %s4
  loop: start=0, step=1, limit=26
  $region2: #{_lambda_.26} parent=0 // loop_pre_header
    _
  $region3: #{_lambda_.26} parent=0 // loop_header
    %s9 = sphi 0, %s13
    %p10 = scmp.ge.s32.totalorder %s9, 26
    %s16 = sphi 0, %s28
    %s17 = sphi 0, %s24
    %s18 = sphi 0, %s16
    %s19 = sphi 0, %s17
    %s20 = sphi 0, %s18
    %s21 = sphi 0, %s19
    %s33 = sphi 0, %s35
    %s36 = sphi 0, %s33
    %s37 = sphi 0, %s36
    %s53 = sphi 0, %s37
    %s59 = sphi 0, %s61
    %s62 = sphi 0, %s59
    %s63 = sphi 0, %s62
    %s79 = sphi 0, %s63
    %s85 = sphi 0, %s87
    %s88 = sphi 0, %s85
    %s89 = sphi 0, %s88
    %s105 = sphi 0, %s89
    %s113 = sphi 0, %s115
    %s116 = sphi 0, %s113
    %s117 = sphi 0, %s116
    %s133 = sphi 0, %s117
  $region4: #{_lambda_.26} parent=0 // loop_header_branch
    %12 = sbr.rel (%p10) target = $region8
  $region5: #{_lambda_.26} parent=0 // loop_body
    %s14 = ssub.s32 %s9, 1
    %s15 = ssub.s32 %s9, 2
    %s22 = sadd.s32 1, %s17
    %p23 = scmp.ge.s32.totalorder %s22, 1
    %s24 = scalar_select %p23, 0, %s22
    %s25 = sadd.s32 1, %s16
    %s26 = scalar_select %p23, %s25, %s16
    %p27 = scmp.ge.s32.totalorder %s26, 24
    %s28 = scalar_select %p27, 0, %s26
    %s29 = ssub.s32 %s16, %s28
    %s30 = ssub.s32 %s17, %s24
    %s31 = sor.u32 %s29, %s30
    %p32 = scmp.eq.s32.totalorder %s31, 0
    %s34 = sadd.s32 %s33, 1
    %s35 = scalar_select %p32, %s33, %s34
    %p38 = pneg %p32
    %p39 = scmp.eq.s32.totalorder %s9, 23
    %p40 = por %p38, %p39
    %p41 = scmp.ne.s32.totalorder %s33, %s36
    %p42 = scmp.eq.s32.totalorder %s9, 0
    %p43 = por %p41, %p42
    %p44 = scmp.ne.s32.totalorder %s33, %s36
    %p45 = scmp.eq.s32.totalorder %s14, 23
    %p46 = por %p44, %p45
    %p47 = scmp.ne.s32.totalorder %s36, %s37
    %p48 = scmp.eq.s32.totalorder %s14, 0
    %p49 = por %p47, %p48
    %p50 = scmp.ne.s32.totalorder %s36, %s37
    %p51 = scmp.eq.s32.totalorder %s15, 23
    %p52 = por %p50, %p51
    %p54 = scmp.ne.s32.totalorder %s37, %s53
    %p55 = scmp.eq.s32.totalorder %s15, 0
    %p56 = por %p54, %p55
    %s57 = ssub.s32 %s16, %s28
    %p58 = scmp.eq.s32.totalorder %s57, 0
    %s60 = sadd.s32 %s59, 1
    %s61 = scalar_select %p58, %s59, %s60
    %p64 = pneg %p58
    %p65 = scmp.eq.s32.totalorder %s9, 23
    %p66 = por %p64, %p65
    %p67 = scmp.ne.s32.totalorder %s59, %s62
    %p68 = scmp.eq.s32.totalorder %s9, 0
    %p69 = por %p67, %p68
    %p70 = scmp.ne.s32.totalorder %s59, %s62
    %p71 = scmp.eq.s32.totalorder %s14, 23
    %p72 = por %p70, %p71
    %p73 = scmp.ne.s32.totalorder %s62, %s63
    %p74 = scmp.eq.s32.totalorder %s14, 0
    %p75 = por %p73, %p74
    %p76 = scmp.ne.s32.totalorder %s62, %s63
    %p77 = scmp.eq.s32.totalorder %s15, 23
    %p78 = por %p76, %p77
    %p80 = scmp.ne.s32.totalorder %s63, %s79
    %p81 = scmp.eq.s32.totalorder %s15, 0
    %p82 = por %p80, %p81
    %s83 = ssub.s32 %s16, %s28
    %p84 = scmp.eq.s32.totalorder %s83, 0
    %s86 = sadd.s32 %s85, 1
    %s87 = scalar_select %p84, %s85, %s86
    %p90 = pneg %p84
    %p91 = scmp.eq.s32.totalorder %s9, 23
    %p92 = por %p90, %p91
    %p93 = scmp.ne.s32.totalorder %s85, %s88
    %p94 = scmp.eq.s32.totalorder %s9, 0
    %p95 = por %p93, %p94
    %p96 = scmp.ne.s32.totalorder %s85, %s88
    %p97 = scmp.eq.s32.totalorder %s14, 23
    %p98 = por %p96, %p97
    %p99 = scmp.ne.s32.totalorder %s88, %s89
    %p100 = scmp.eq.s32.totalorder %s14, 0
    %p101 = por %p99, %p100
    %p102 = scmp.ne.s32.totalorder %s88, %s89
    %p103 = scmp.eq.s32.totalorder %s15, 23
    %p104 = por %p102, %p103
    %p106 = scmp.ne.s32.totalorder %s89, %s105
    %p107 = scmp.eq.s32.totalorder %s15, 0
    %p108 = por %p106, %p107
    %s109 = ssub.s32 %s16, %s28
    %s110 = ssub.s32 %s17, %s24
    %s111 = sor.u32 %s109, %s110
    %p112 = scmp.eq.s32.totalorder %s111, 0
    %s114 = sadd.s32 %s113, 1
    %s115 = scalar_select %p112, %s113, %s114
    %p118 = pneg %p112
    %p119 = scmp.eq.s32.totalorder %s9, 23
    %p120 = por %p118, %p119
    %p121 = scmp.ne.s32.totalorder %s113, %s116
    %p122 = scmp.eq.s32.totalorder %s9, 0
    %p123 = por %p121, %p122
    %p124 = scmp.ne.s32.totalorder %s113, %s116
    %p125 = scmp.eq.s32.totalorder %s14, 23
    %p126 = por %p124, %p125
    %p127 = scmp.ne.s32.totalorder %s116, %s117
    %p128 = scmp.eq.s32.totalorder %s14, 0
    %p129 = por %p127, %p128
    %p130 = scmp.ne.s32.totalorder %s116, %s117
    %p131 = scmp.eq.s32.totalorder %s15, 23
    %p132 = por %p130, %p131
    %p134 = scmp.ne.s32.totalorder %s117, %s133
    %p135 = scmp.eq.s32.totalorder %s15, 0
    %p136 = por %p134, %p135
    %p137 = scmp.le.s32.totalorder 1, %s9
    %p138 = scmp.lt.s32.totalorder %s9, 25
    %p139 = pnand %p137, %p138
    %p140 = pneg %p139
    // Predicated region
    $region9: #{_lambda_.26} parent=5 // pred_check
      _
    $region10: #{_lambda_.26} parent=5 // pred_check_branch
      %142 = sbr.rel (%p139) target = $region12
    $region11: #{_lambda_.26} parent=5 // pred_region
      %s143 = ssub.s32 %s9, 1
    $region12: #{_lambda_.26} parent=5 // pred_fallthru
      _
    %p144 = scmp.lt.s32.totalorder %s9, 24
    // Predicated region
    $region13: #{_lambda_.26} parent=5 // pred_check
      %p145 = pneg %p144
    $region14: #{_lambda_.26} parent=5 // pred_check_branch
      %147 = sbr.rel (%p145) target = $region16
    $region15: #{_lambda_.26} parent=5 // pred_region
      // Predicated region
      $region17: #{_lambda_.26} parent=15 // pred_check
        %p148 = pneg %p43
      $region18: #{_lambda_.26} parent=15 // pred_check_branch
        %150 = sbr.rel (%p148) target = $region20
      $region19: #{_lambda_.26} parent=15 // pred_region
        %p151 = scmp.lt.s32.totalorder %s16, 23
        %s152 = scalar_select %p151, %s16, 23
        %p153 = scmp.lt.s32.totalorder %s17, 0
        %s154 = scalar_select %p153, %s17, 0
        %s155 = sadd.s32 %s154, %s152
        %s156 = scalar_lea.vmem %s0, %s155
      $region20: #{_lambda_.26} parent=15 // pred_fallthru
        _
      // Predicated region
      $region21: #{_lambda_.26} parent=15 // pred_check
        %p157 = pneg %p69
      $region22: #{_lambda_.26} parent=15 // pred_check_branch
        %159 = sbr.rel (%p157) target = $region24
      $region23: #{_lambda_.26} parent=15 // pred_region
        %p160 = scmp.lt.s32.totalorder %s16, 23
        %s161 = scalar_select %p160, %s16, 23
        %s162 = smul.addr %s161, 12
        %s163 = smul.addr %s162, 4
        %s164 = scalar_lea.vmem %s1, %s163
      $region24: #{_lambda_.26} parent=15 // pred_fallthru
        _
      // Predicated region
      $region25: #{_lambda_.26} parent=15 // pred_check
        %p165 = pneg %p95
      $region26: #{_lambda_.26} parent=15 // pred_check_branch
        %167 = sbr.rel (%p165) target = $region28
      $region27: #{_lambda_.26} parent=15 // pred_region
        %p168 = scmp.lt.s32.totalorder %s16, 23
        %s169 = scalar_select %p168, %s16, 23
        %s170 = scalar_lea.vmem %s2, %s169
      $region28: #{_lambda_.26} parent=15 // pred_fallthru
        _
    $region16: #{_lambda_.26} parent=5 // pred_fallthru
      _
    %p171 = scmp.le.s32.totalorder 1, %s9
    %p172 = scmp.lt.s32.totalorder %s9, 25
    %p173 = pnand %p171, %p172
    %p174 = pneg %p173
    // Predicated region
    $region29: #{_lambda_.26} parent=5 // pred_check
      _
    $region30: #{_lambda_.26} parent=5 // pred_check_branch
      %176 = sbr.rel (%p173) target = $region32
    $region31: #{_lambda_.26} parent=5 // pred_region
      %s177 = ssub.s32 %s9, 1
      %p178 = scmp.lt.s32.totalorder %s18, 23
      %s179 = scalar_select %p178, %s18, 23
      %p180 = scmp.lt.s32.totalorder %s19, 0
      %s181 = scalar_select %p180, %s19, 0
      %s182 = sadd.s32 %s181, %s179
      %s183 = scalar_lea.vmem %s0, %s182
      %p184 = pneg %p49
      %p185 = pneg %p46
      %p186 = scmp.lt.s32.totalorder %s18, 23
      %s187 = scalar_select %p186, %s18, 23
      %s188 = smul.addr %s187, 12
      %s189 = smul.addr %s188, 4
      %s190 = scalar_lea.vmem %s1, %s189
      %p191 = pneg %p75
      %p192 = pneg %p72
      %p193 = scmp.lt.s32.totalorder %s18, 23
      %s194 = scalar_select %p193, %s18, 23
      %s195 = scalar_lea.vmem %s2, %s194
      %p196 = pneg %p101
      %p197 = pneg %p98
      %p198 = pneg %p129
      %p199 = pneg %p126
      %p200 = scmp.lt.s32.totalorder %s18, 23
      %s201 = scalar_select %p200, %s18, 23
      %p202 = scmp.lt.s32.totalorder %s19, 0
      %s203 = scalar_select %p202, %s19, 0
      %s204 = sadd.s32 %s203, %s201
      %s205 = scalar_lea.vmem %s3, %s204
      %p206 = scmp.lt.s32.totalorder %s18, 23
      %s207 = scalar_select %p206, %s18, 23
      %p208 = scmp.lt.s32.totalorder %s19, 0
      %s209 = scalar_select %p208, %s19, 0
      %s210 = sadd.s32 %s209, %s207
      %s211 = scalar_lea.vmem %s0, %s210
      %p212 = scmp.lt.s32.totalorder %s18, 23
      %s213 = scalar_select %p212, %s18, 23
      %s214 = smul.addr %s213, 12
      %s215 = smul.addr %s214, 4
      %s216 = scalar_lea.vmem %s1, %s215
      %p217 = scmp.lt.s32.totalorder %s18, 23
      %s218 = scalar_select %p217, %s18, 23
      %s219 = scalar_lea.vmem %s2, %s218
      %p220 = scmp.lt.s32.totalorder %s18, 23
      %s221 = scalar_select %p220, %s18, 23
      %p222 = scmp.lt.s32.totalorder %s19, 0
      %s223 = scalar_select %p222, %s19, 0
      %s224 = sadd.s32 %s223, %s221
      %s225 = scalar_lea.vmem %s3, %s224
      %v227 = vld [vmem:[%s211] sm:$0x1]
      %v228 = vld [vmem:[%s216] sm:$0xf]
      %v229 = vld [vmem:[%s216 + $0x4] sm:$0xf]
      %v230 = vld [vmem:[%s216 + $0x8] sm:$0xf]
      %v231 = vld [vmem:[%s216 + $0xc] sm:$0xf]
      %v232 = vld [vmem:[%s216 + $0x10] sm:$0xf]
      %v233 = vld [vmem:[%s216 + $0x14] sm:$0xf]
      %v234 = vld [vmem:[%s216 + $0x18] sm:$0xf]
      %v235 = vld [vmem:[%s216 + $0x1c] sm:$0xf]
      %v236 = vld [vmem:[%s216 + $0x20] sm:$0xf]
      %v237 = vld [vmem:[%s216 + $0x24] sm:$0xf]
      %v238 = vld [vmem:[%s216 + $0x28] sm:$0xf]
      %v239 = vld [vmem:[%s216 + $0x2c] sm:$0xf]
      %v240 = vld [vmem:[%s219] sm:$0x1]
      %v242 = vperm.slane %v240, 0
      %v256 = vunpack.c.l.b16 %v228
      %v257 = vunpack.c.l.b16 %v229
      %v258 = vunpack.c.l.b16 %v230
      %v259 = vunpack.c.l.b16 %v231
      %v260 = vunpack.c.l.b16 %v232
      %v261 = vunpack.c.l.b16 %v233
      %v262 = vunpack.c.l.b16 %v234
      %v263 = vunpack.c.l.b16 %v235
      %v264 = vunpack.c.l.b16 %v236
      %v265 = vunpack.c.l.b16 %v237
      %v266 = vunpack.c.l.b16 %v238
      %v267 = vunpack.c.l.b16 %v239
      %v268 = vpack.c.b16 %v257, %v256
      %v269 = vpack.c.b16 %v259, %v258
      %v270 = vpack.c.b16 %v261, %v260
      %v271 = vpack.c.b16 %v263, %v262
      %v272 = vpack.c.b16 %v265, %v264
      %v273 = vpack.c.b16 %v267, %v266
      %vm280 = vcmask 785408
      %v282 = vsel %vm280, %v227, 0
      %284 = vmatpush.bf16.msra.mxu0 0
      %285 = vmatpush.bf16.msra.mxu0 0
      %286 = vmatpush.bf16.msra.mxu0 %v273
      %287 = vmatpush.bf16.msra.mxu0 %v272
      %288 = vmatpush.bf16.msra.mxu0 %v271
      %289 = vmatpush.bf16.msra.mxu0 %v270
      %290 = vmatpush.bf16.msra.mxu0 %v269
      %291 = vmatpush.bf16.msra.mxu0 %v268
      %292 = vmatmul.bf16.gmra.mxu0 %v282
      %v293 = vpop.f32.mrf.mxu0
      %v294 = vadd.f32 %v242, %v293
      %v295 = vpop.f32.mrf.mxu0
      %296 = vdwg.mxu0
      %vm297 = vcmp.gt.f32.partialorder %v294, 0.0
      %v298 = vmul.f32 %v294, 0.01
      %v299 = vsel %vm297, %v294, %v298
      %v300 = vpack.c.bf16 %v299, %v299
      %vm301 = vcmask 122880
      %302 = vst.msk [vmem:[%s225] sm:$0x1] %vm301, %v300
      %p303 = scmp.lt.s32.totalorder %s18, 23
      %s304 = scalar_select %p303, %s18, 23
      %p305 = scmp.lt.s32.totalorder %s19, 0
      %s306 = scalar_select %p305, %s19, 0
      %s307 = sadd.s32 %s306, %s304
      %s308 = scalar_lea.vmem %s3, %s307
      // Predicated region
      $region33: #{_lambda_.26} parent=31 // pred_check
        %p309 = pneg %p126
      $region34: #{_lambda_.26} parent=31 // pred_check_branch
        %311 = sbr.rel (%p309) target = $region36
      $region35: #{_lambda_.26} parent=31 // pred_region
        _
      $region36: #{_lambda_.26} parent=31 // pred_fallthru
        _
    $region32: #{_lambda_.26} parent=5 // pred_fallthru
      _
    %p312 = scmp.le.s32.totalorder 2, %s9
    // Predicated region
    $region37: #{_lambda_.26} parent=5 // pred_check
      %p313 = pneg %p312
    $region38: #{_lambda_.26} parent=5 // pred_check_branch
      %315 = sbr.rel (%p313) target = $region40
    $region39: #{_lambda_.26} parent=5 // pred_region
      %s316 = ssub.s32 %s9, 2
      // Predicated region
      $region41: #{_lambda_.26} parent=39 // pred_check
        %p317 = pneg %p132
      $region42: #{_lambda_.26} parent=39 // pred_check_branch
        %319 = sbr.rel (%p317) target = $region44
      $region43: #{_lambda_.26} parent=39 // pred_region
        %p320 = scmp.lt.s32.totalorder %s20, 23
        %s321 = scalar_select %p320, %s20, 23
        %p322 = scmp.lt.s32.totalorder %s21, 0
        %s323 = scalar_select %p322, %s21, 0
        %s324 = sadd.s32 %s323, %s321
        %s325 = scalar_lea.vmem %s3, %s324
      $region44: #{_lambda_.26} parent=39 // pred_fallthru
        _
    $region40: #{_lambda_.26} parent=5 // pred_fallthru
      _
  $region6: #{_lambda_.26} parent=0 // loop_footer
    %s13 = sadd.s32 1, %s9
  $region7: #{_lambda_.26} parent=0 // loop_footer_branch
    %8 = sbr.rel target = $region3
  $region8: #{_lambda_.26} parent=0 // loop_exit
    _

// kernel: _lambda_.24
$region0: #{_lambda_.24}
  #allocation0 [shape = 'u32[]', space=smem, size = 0x4, offset = 0x4, fixed_abs, tag = 'smem constant byte address 0x4 - core index']
  #allocation1 [shape = 'u32[72,128]{1,0:T(1,128)}', space=vmem, size = 0x9000, scoped, tag = 'internal scratch']
  %s0 = inlined_call_operand.vmem [shape: bf16[24,4,192], index: 0, kind: input, shape index: {}]
  %s1 = inlined_call_operand.vmem [shape: bf16[24,192,16], index: 1, kind: input, shape index: {}]
  %s2 = inlined_call_operand.vmem [shape: f32[24,1,16], index: 2, kind: input, shape index: {}]
  %s3 = inlined_call_operand.vmem [shape: bf16[24,4,16], index: 3, kind: output, shape index: {}]
  %s4 = sld [smem:[#allocation0]]
  $region45: #{_lambda_.24} parent=0
    _
  %s6 = ssub.s32 1, %s4
  %s7 = scalar_select 0, %s6, %s4
  loop: start=0, step=1, limit=26
  $region2: #{_lambda_.24} parent=0 // loop_pre_header
    _
  $region3: #{_lambda_.24} parent=0 // loop_header
    %s9 = sphi 0, %s13
    %p10 = scmp.ge.s32.totalorder %s9, 26
    %s16 = sphi 0, %s28
    %s17 = sphi 0, %s24
    %s18 = sphi 0, %s16
    %s19 = sphi 0, %s17
    %s20 = sphi 0, %s18
    %s21 = sphi 0, %s19
    %s33 = sphi 0, %s35
    %s36 = sphi 0, %s33
    %s37 = sphi 0, %s36
    %s53 = sphi 0, %s37
    %s59 = sphi 0, %s61
    %s62 = sphi 0, %s59
    %s63 = sphi 0, %s62
    %s79 = sphi 0, %s63
    %s85 = sphi 0, %s87
    %s88 = sphi 0, %s85
    %s89 = sphi 0, %s88
    %s105 = sphi 0, %s89
    %s113 = sphi 0, %s115
    %s116 = sphi 0, %s113
    %s117 = sphi 0, %s116
    %s133 = sphi 0, %s117
  $region4: #{_lambda_.24} parent=0 // loop_header_branch
    %12 = sbr.rel (%p10) target = $region8
  $region5: #{_lambda_.24} parent=0 // loop_body
    %s14 = ssub.s32 %s9, 1
    %s15 = ssub.s32 %s9, 2
    %s22 = sadd.s32 1, %s17
    %p23 = scmp.ge.s32.totalorder %s22, 1
    %s24 = scalar_select %p23, 0, %s22
    %s25 = sadd.s32 1, %s16
    %s26 = scalar_select %p23, %s25, %s16
    %p27 = scmp.ge.s32.totalorder %s26, 24
    %s28 = scalar_select %p27, 0, %s26
    %s29 = ssub.s32 %s16, %s28
    %s30 = ssub.s32 %s17, %s24
    %s31 = sor.u32 %s29, %s30
    %p32 = scmp.eq.s32.totalorder %s31, 0
    %s34 = sadd.s32 %s33, 1
    %s35 = scalar_select %p32, %s33, %s34
    %p38 = pneg %p32
    %p39 = scmp.eq.s32.totalorder %s9, 23
    %p40 = por %p38, %p39
    %p41 = scmp.ne.s32.totalorder %s33, %s36
    %p42 = scmp.eq.s32.totalorder %s9, 0
    %p43 = por %p41, %p42
    %p44 = scmp.ne.s32.totalorder %s33, %s36
    %p45 = scmp.eq.s32.totalorder %s14, 23
    %p46 = por %p44, %p45
    %p47 = scmp.ne.s32.totalorder %s36, %s37
    %p48 = scmp.eq.s32.totalorder %s14, 0
    %p49 = por %p47, %p48
    %p50 = scmp.ne.s32.totalorder %s36, %s37
    %p51 = scmp.eq.s32.totalorder %s15, 23
    %p52 = por %p50, %p51
    %p54 = scmp.ne.s32.totalorder %s37, %s53
    %p55 = scmp.eq.s32.totalorder %s15, 0
    %p56 = por %p54, %p55
    %s57 = ssub.s32 %s16, %s28
    %p58 = scmp.eq.s32.totalorder %s57, 0
    %s60 = sadd.s32 %s59, 1
    %s61 = scalar_select %p58, %s59, %s60
    %p64 = pneg %p58
    %p65 = scmp.eq.s32.totalorder %s9, 23
    %p66 = por %p64, %p65
    %p67 = scmp.ne.s32.totalorder %s59, %s62
    %p68 = scmp.eq.s32.totalorder %s9, 0
    %p69 = por %p67, %p68
    %p70 = scmp.ne.s32.totalorder %s59, %s62
    %p71 = scmp.eq.s32.totalorder %s14, 23
    %p72 = por %p70, %p71
    %p73 = scmp.ne.s32.totalorder %s62, %s63
    %p74 = scmp.eq.s32.totalorder %s14, 0
    %p75 = por %p73, %p74
    %p76 = scmp.ne.s32.totalorder %s62, %s63
    %p77 = scmp.eq.s32.totalorder %s15, 23
    %p78 = por %p76, %p77
    %p80 = scmp.ne.s32.totalorder %s63, %s79
    %p81 = scmp.eq.s32.totalorder %s15, 0
    %p82 = por %p80, %p81
    %s83 = ssub.s32 %s16, %s28
    %p84 = scmp.eq.s32.totalorder %s83, 0
    %s86 = sadd.s32 %s85, 1
    %s87 = scalar_select %p84, %s85, %s86
    %p90 = pneg %p84
    %p91 = scmp.eq.s32.totalorder %s9, 23
    %p92 = por %p90, %p91
    %p93 = scmp.ne.s32.totalorder %s85, %s88
    %p94 = scmp.eq.s32.totalorder %s9, 0
    %p95 = por %p93, %p94
    %p96 = scmp.ne.s32.totalorder %s85, %s88
    %p97 = scmp.eq.s32.totalorder %s14, 23
    %p98 = por %p96, %p97
    %p99 = scmp.ne.s32.totalorder %s88, %s89
    %p100 = scmp.eq.s32.totalorder %s14, 0
    %p101 = por %p99, %p100
    %p102 = scmp.ne.s32.totalorder %s88, %s89
    %p103 = scmp.eq.s32.totalorder %s15, 23
    %p104 = por %p102, %p103
    %p106 = scmp.ne.s32.totalorder %s89, %s105
    %p107 = scmp.eq.s32.totalorder %s15, 0
    %p108 = por %p106, %p107
    %s109 = ssub.s32 %s16, %s28
    %s110 = ssub.s32 %s17, %s24
    %s111 = sor.u32 %s109, %s110
    %p112 = scmp.eq.s32.totalorder %s111, 0
    %s114 = sadd.s32 %s113, 1
    %s115 = scalar_select %p112, %s113, %s114
    %p118 = pneg %p112
    %p119 = scmp.eq.s32.totalorder %s9, 23
    %p120 = por %p118, %p119
    %p121 = scmp.ne.s32.totalorder %s113, %s116
    %p122 = scmp.eq.s32.totalorder %s9, 0
    %p123 = por %p121, %p122
    %p124 = scmp.ne.s32.totalorder %s113, %s116
    %p125 = scmp.eq.s32.totalorder %s14, 23
    %p126 = por %p124, %p125
    %p127 = scmp.ne.s32.totalorder %s116, %s117
    %p128 = scmp.eq.s32.totalorder %s14, 0
    %p129 = por %p127, %p128
    %p130 = scmp.ne.s32.totalorder %s116, %s117
    %p131 = scmp.eq.s32.totalorder %s15, 23
    %p132 = por %p130, %p131
    %p134 = scmp.ne.s32.totalorder %s117, %s133
    %p135 = scmp.eq.s32.totalorder %s15, 0
    %p136 = por %p134, %p135
    %p137 = scmp.le.s32.totalorder 1, %s9
    %p138 = scmp.lt.s32.totalorder %s9, 25
    %p139 = pnand %p137, %p138
    %p140 = pneg %p139
    // Predicated region
    $region9: #{_lambda_.24} parent=5 // pred_check
      _
    $region10: #{_lambda_.24} parent=5 // pred_check_branch
      %142 = sbr.rel (%p139) target = $region12
    $region11: #{_lambda_.24} parent=5 // pred_region
      %s143 = ssub.s32 %s9, 1
    $region12: #{_lambda_.24} parent=5 // pred_fallthru
      _
    %p144 = scmp.lt.s32.totalorder %s9, 24
    // Predicated region
    $region13: #{_lambda_.24} parent=5 // pred_check
      %p145 = pneg %p144
    $region14: #{_lambda_.24} parent=5 // pred_check_branch
      %147 = sbr.rel (%p145) target = $region16
    $region15: #{_lambda_.24} parent=5 // pred_region
      // Predicated region
      $region17: #{_lambda_.24} parent=15 // pred_check
        %p148 = pneg %p43
      $region18: #{_lambda_.24} parent=15 // pred_check_branch
        %150 = sbr.rel (%p148) target = $region20
      $region19: #{_lambda_.24} parent=15 // pred_region
        %p151 = scmp.lt.s32.totalorder %s16, 23
        %s152 = scalar_select %p151, %s16, 23
        %p153 = scmp.lt.s32.totalorder %s17, 0
        %s154 = scalar_select %p153, %s17, 0
        %s155 = smul.addr %s154, 2
        %s156 = smul.addr %s152, 2
        %s157 = sadd.s32 %s155, %s156
        %s158 = smul.addr %s157, 2
        %s159 = scalar_lea.vmem %s0, %s158
      $region20: #{_lambda_.24} parent=15 // pred_fallthru
        _
      // Predicated region
      $region21: #{_lambda_.24} parent=15 // pred_check
        %p160 = pneg %p69
      $region22: #{_lambda_.24} parent=15 // pred_check_branch
        %162 = sbr.rel (%p160) target = $region24
      $region23: #{_lambda_.24} parent=15 // pred_region
        %p163 = scmp.lt.s32.totalorder %s16, 23
        %s164 = scalar_select %p163, %s16, 23
        %s165 = smul.addr %s164, 24
        %s166 = smul.addr %s165, 4
        %s167 = scalar_lea.vmem %s1, %s166
      $region24: #{_lambda_.24} parent=15 // pred_fallthru
        _
      // Predicated region
      $region25: #{_lambda_.24} parent=15 // pred_check
        %p168 = pneg %p95
      $region26: #{_lambda_.24} parent=15 // pred_check_branch
        %170 = sbr.rel (%p168) target = $region28
      $region27: #{_lambda_.24} parent=15 // pred_region
        %p171 = scmp.lt.s32.totalorder %s16, 23
        %s172 = scalar_select %p171, %s16, 23
        %s173 = scalar_lea.vmem %s2, %s172
      $region28: #{_lambda_.24} parent=15 // pred_fallthru
        _
    $region16: #{_lambda_.24} parent=5 // pred_fallthru
      _
    %p174 = scmp.le.s32.totalorder 1, %s9
    %p175 = scmp.lt.s32.totalorder %s9, 25
    %p176 = pnand %p174, %p175
    %p177 = pneg %p176
    // Predicated region
    $region29: #{_lambda_.24} parent=5 // pred_check
      _
    $region30: #{_lambda_.24} parent=5 // pred_check_branch
      %179 = sbr.rel (%p176) target = $region32
    $region31: #{_lambda_.24} parent=5 // pred_region
      %s180 = ssub.s32 %s9, 1
      %p181 = scmp.lt.s32.totalorder %s18, 23
      %s182 = scalar_select %p181, %s18, 23
      %p183 = scmp.lt.s32.totalorder %s19, 0
      %s184 = scalar_select %p183, %s19, 0
      %s185 = smul.addr %s184, 2
      %s186 = smul.addr %s182, 2
      %s187 = sadd.s32 %s185, %s186
      %s188 = smul.addr %s187, 2
      %s189 = scalar_lea.vmem %s0, %s188
      %p190 = pneg %p49
      %p191 = pneg %p46
      %p192 = scmp.lt.s32.totalorder %s18, 23
      %s193 = scalar_select %p192, %s18, 23
      %s194 = smul.addr %s193, 24
      %s195 = smul.addr %s194, 4
      %s196 = scalar_lea.vmem %s1, %s195
      %p197 = pneg %p75
      %p198 = pneg %p72
      %p199 = scmp.lt.s32.totalorder %s18, 23
      %s200 = scalar_select %p199, %s18, 23
      %s201 = scalar_lea.vmem %s2, %s200
      %p202 = pneg %p101
      %p203 = pneg %p98
      %p204 = pneg %p129
      %p205 = pneg %p126
      %p206 = scmp.lt.s32.totalorder %s18, 23
      %s207 = scalar_select %p206, %s18, 23
      %p208 = scmp.lt.s32.totalorder %s19, 0
      %s209 = scalar_select %p208, %s19, 0
      %s210 = sadd.s32 %s209, %s207
      %s211 = smul.addr %s210, 2
      %s212 = scalar_lea.vmem %s3, %s211
      %p213 = scmp.lt.s32.totalorder %s18, 23
      %s214 = scalar_select %p213, %s18, 23
      %p215 = scmp.lt.s32.totalorder %s19, 0
      %s216 = scalar_select %p215, %s19, 0
      %s217 = smul.addr %s216, 2
      %s218 = smul.addr %s214, 2
      %s219 = sadd.s32 %s217, %s218
      %s220 = smul.addr %s219, 2
      %s221 = scalar_lea.vmem %s0, %s220
      %p222 = scmp.lt.s32.totalorder %s18, 23
      %s223 = scalar_select %p222, %s18, 23
      %s224 = smul.addr %s223, 24
      %s225 = smul.addr %s224, 4
      %s226 = scalar_lea.vmem %s1, %s225
      %p227 = scmp.lt.s32.totalorder %s18, 23
      %s228 = scalar_select %p227, %s18, 23
      %s229 = scalar_lea.vmem %s2, %s228
      %p230 = scmp.lt.s32.totalorder %s18, 23
      %s231 = scalar_select %p230, %s18, 23
      %p232 = scmp.lt.s32.totalorder %s19, 0
      %s233 = scalar_select %p232, %s19, 0
      %s234 = sadd.s32 %s233, %s231
      %s235 = smul.addr %s234, 2
      %s236 = scalar_lea.vmem %s3, %s235
      %v238 = vld [vmem:[%s221] sm:$0xf]
      %v239 = vld [vmem:[%s226] sm:$0xf]
      %v240 = vld [vmem:[%s226 + $0x4] sm:$0xf]
      %v241 = vld [vmem:[%s226 + $0x8] sm:$0xf]
      %v242 = vld [vmem:[%s226 + $0xc] sm:$0xf]
      %v243 = vld [vmem:[%s226 + $0x10] sm:$0xf]
      %v244 = vld [vmem:[%s226 + $0x14] sm:$0xf]
      %v245 = vld [vmem:[%s226 + $0x18] sm:$0xf]
      %v246 = vld [vmem:[%s226 + $0x1c] sm:$0xf]
      %v247 = vld [vmem:[%s226 + $0x20] sm:$0xf]
      %v248 = vld [vmem:[%s226 + $0x24] sm:$0xf]
      %v249 = vld [vmem:[%s226 + $0x28] sm:$0xf]
      %v250 = vld [vmem:[%s226 + $0x2c] sm:$0xf]
      %v251 = vld [vmem:[%s226 + $0x30] sm:$0xf]
      %v252 = vld [vmem:[%s226 + $0x34] sm:$0xf]
      %v253 = vld [vmem:[%s226 + $0x38] sm:$0xf]
      %v254 = vld [vmem:[%s226 + $0x3c] sm:$0xf]
      %v255 = vld [vmem:[%s226 + $0x40] sm:$0xf]
      %v256 = vld [vmem:[%s226 + $0x44] sm:$0xf]
      %v257 = vld [vmem:[%s226 + $0x48] sm:$0xf]
      %v258 = vld [vmem:[%s226 + $0x4c] sm:$0xf]
      %v259 = vld [vmem:[%s226 + $0x50] sm:$0xf]
      %v260 = vld [vmem:[%s226 + $0x54] sm:$0xf]
      %v261 = vld [vmem:[%s226 + $0x58] sm:$0xf]
      %v262 = vld [vmem:[%s226 + $0x5c] sm:$0xf]
      %v263 = vld [vmem:[%s229] sm:$0x1]
      %v265 = vperm.slane %v263, 0
      %268 = vst [vmem:[#allocation1] ss:$4 sm:$0xff] %v238
      %v269 = vld.sshfl [vmem:[#allocation1] sm:$0xff pattern:$0x73625140]
      %v270 = vld.sshfl [vmem:[#allocation1 + $0x8] sm:$0xff pattern:$0x73625140]
      %v296 = vunpack.c.l.b16 %v239
      %v297 = vunpack.c.l.b16 %v240
      %v298 = vunpack.c.l.b16 %v241
      %v299 = vunpack.c.l.b16 %v242
      %v300 = vunpack.c.l.b16 %v243
      %v301 = vunpack.c.l.b16 %v244
      %v302 = vunpack.c.l.b16 %v245
      %v303 = vunpack.c.l.b16 %v246
      %v304 = vunpack.c.l.b16 %v247
      %v305 = vunpack.c.l.b16 %v248
      %v306 = vunpack.c.l.b16 %v249
      %v307 = vunpack.c.l.b16 %v250
      %v308 = vunpack.c.l.b16 %v251
      %v309 = vunpack.c.l.b16 %v252
      %v310 = vunpack.c.l.b16 %v253
      %v311 = vunpack.c.l.b16 %v254
      %v312 = vunpack.c.l.b16 %v255
      %v313 = vunpack.c.l.b16 %v256
      %v314 = vunpack.c.l.b16 %v257
      %v315 = vunpack.c.l.b16 %v258
      %v316 = vunpack.c.l.b16 %v259
      %v317 = vunpack.c.l.b16 %v260
      %v318 = vunpack.c.l.b16 %v261
      %v319 = vunpack.c.l.b16 %v262
      %v320 = vpack.c.b16 %v297, %v296
      %v321 = vpack.c.b16 %v299, %v298
      %v322 = vpack.c.b16 %v301, %v300
      %v323 = vpack.c.b16 %v303, %v302
      %v324 = vpack.c.b16 %v305, %v304
      %v325 = vpack.c.b16 %v307, %v306
      %v326 = vpack.c.b16 %v309, %v308
      %v327 = vpack.c.b16 %v311, %v310
      %v328 = vpack.c.b16 %v313, %v312
      %v329 = vpack.c.b16 %v315, %v314
      %v330 = vpack.c.b16 %v317, %v316
      %v331 = vpack.c.b16 %v319, %v318
      %vm344 = vcmask 523264
      %v345 = vsel %vm344, %v270, 0
      %347 = vmatpush.bf16.msra.mxu0 %v327
      %348 = vmatpush.bf16.msra.mxu0 %v326
      %349 = vmatpush.bf16.msra.mxu0 %v325
      %350 = vmatpush.bf16.msra.mxu0 %v324
      %351 = vmatpush.bf16.msra.mxu0 %v323
      %352 = vmatpush.bf16.msra.mxu0 %v322
      %353 = vmatpush.bf16.msra.mxu0 %v321
      %354 = vmatpush.bf16.msra.mxu0 %v320
      %355 = vmatmul.bf16.gmra.mxu0 %v269
      %v356 = vpop.f32.mrf.mxu0
      %v357 = vadd.f32 %v265, %v356
      %v358 = vpop.f32.mrf.mxu0
      %359 = vdwg.mxu0
      %360 = vmatpush.bf16.msra.mxu0 0
      %361 = vmatpush.bf16.msra.mxu0 0
      %362 = vmatpush.bf16.msra.mxu0 0
      %363 = vmatpush.bf16.msra.mxu0 0
      %364 = vmatpush.bf16.msra.mxu0 %v331
      %365 = vmatpush.bf16.msra.mxu0 %v330
      %366 = vmatpush.bf16.msra.mxu0 %v329
      %367 = vmatpush.bf16.msra.mxu0 %v328
      %368 = vmatmul.bf16.gmra.mxu0 %v345
      %v369 = vpop.f32.mrf.mxu0
      %v370 = vadd.f32 %v357, %v369
      %v371 = vpop.f32.mrf.mxu0
      %372 = vdwg.mxu0
      %vm373 = vcmp.gt.f32.partialorder %v370, 0.0
      %v374 = vmul.f32 %v370, 0.01
      %v375 = vsel %vm373, %v370, %v374
      %v376 = vpack.c.bf16 %v375, %v375
      %vm377 = vcmask 123904
      %378 = vst.msk [vmem:[%s236] sm:$0x3] %vm377, %v376
      %p379 = scmp.lt.s32.totalorder %s18, 23
      %s380 = scalar_select %p379, %s18, 23
      %p381 = scmp.lt.s32.totalorder %s19, 0
      %s382 = scalar_select %p381, %s19, 0
      %s383 = sadd.s32 %s382, %s380
      %s384 = smul.addr %s383, 2
      %s385 = scalar_lea.vmem %s3, %s384
      // Predicated region
      $region33: #{_lambda_.24} parent=31 // pred_check
        %p386 = pneg %p126
      $region34: #{_lambda_.24} parent=31 // pred_check_branch
        %388 = sbr.rel (%p386) target = $region36
      $region35: #{_lambda_.24} parent=31 // pred_region
        _
      $region36: #{_lambda_.24} parent=31 // pred_fallthru
        _
    $region32: #{_lambda_.24} parent=5 // pred_fallthru
      _
    %p389 = scmp.le.s32.totalorder 2, %s9
    // Predicated region
    $region37: #{_lambda_.24} parent=5 // pred_check
      %p390 = pneg %p389
    $region38: #{_lambda_.24} parent=5 // pred_check_branch
      %392 = sbr.rel (%p390) target = $region40
    $region39: #{_lambda_.24} parent=5 // pred_region
      %s393 = ssub.s32 %s9, 2
      // Predicated region
      $region41: #{_lambda_.24} parent=39 // pred_check
        %p394 = pneg %p132
      $region42: #{_lambda_.24} parent=39 // pred_check_branch
        %396 = sbr.rel (%p394) target = $region44
      $region43: #{_lambda_.24} parent=39 // pred_region
        %p397 = scmp.lt.s32.totalorder %s20, 23
        %s398 = scalar_select %p397, %s20, 23
        %p399 = scmp.lt.s32.totalorder %s21, 0
        %s400 = scalar_select %p399, %s21, 0
        %s401 = sadd.s32 %s400, %s398
        %s402 = smul.addr %s401, 2
        %s403 = scalar_lea.vmem %s3, %s402
      $region44: #{_lambda_.24} parent=39 // pred_fallthru
        _
    $region40: #{_lambda_.24} parent=5 // pred_fallthru
      _
  $region6: #{_lambda_.24} parent=0 // loop_footer
    %s13 = sadd.s32 1, %s9
  $region7: #{_lambda_.24} parent=0 // loop_footer_branch
    %8 = sbr.rel target = $region3
  $region8: #{_lambda_.24} parent=0 // loop_exit
    _

// kernel: _lambda_.27
$region0: #{_lambda_.27}
  #allocation0 [shape = 'u32[]', space=smem, size = 0x4, offset = 0x4, fixed_abs, tag = 'smem constant byte address 0x4 - core index']
  #allocation1 [shape = 'u32[72,128]{1,0:T(1,128)}', space=vmem, size = 0x9000, scoped, tag = 'internal scratch']
  %s0 = inlined_call_operand.vmem [shape: bf16[24,1,48], index: 0, kind: input, shape index: {}]
  %s1 = inlined_call_operand.vmem [shape: bf16[24,48,16], index: 1, kind: input, shape index: {}]
  %s2 = inlined_call_operand.vmem [shape: f32[24,1,16], index: 2, kind: input, shape index: {}]
  %s3 = inlined_call_operand.vmem [shape: bf16[24,1,16], index: 3, kind: output, shape index: {}]
  %s4 = sld [smem:[#allocation0]]
  $region45: #{_lambda_.27} parent=0
    _
  %s6 = ssub.s32 1, %s4
  %s7 = scalar_select 0, %s6, %s4
  loop: start=0, step=1, limit=26
  $region2: #{_lambda_.27} parent=0 // loop_pre_header
    _
  $region3: #{_lambda_.27} parent=0 // loop_header
    %s9 = sphi 0, %s13
    %p10 = scmp.ge.s32.totalorder %s9, 26
    %s16 = sphi 0, %s28
    %s17 = sphi 0, %s24
    %s18 = sphi 0, %s16
    %s19 = sphi 0, %s17
    %s20 = sphi 0, %s18
    %s21 = sphi 0, %s19
    %s33 = sphi 0, %s35
    %s36 = sphi 0, %s33
    %s37 = sphi 0, %s36
    %s53 = sphi 0, %s37
    %s59 = sphi 0, %s61
    %s62 = sphi 0, %s59
    %s63 = sphi 0, %s62
    %s79 = sphi 0, %s63
    %s85 = sphi 0, %s87
    %s88 = sphi 0, %s85
    %s89 = sphi 0, %s88
    %s105 = sphi 0, %s89
    %s113 = sphi 0, %s115
    %s116 = sphi 0, %s113
    %s117 = sphi 0, %s116
    %s133 = sphi 0, %s117
  $region4: #{_lambda_.27} parent=0 // loop_header_branch
    %12 = sbr.rel (%p10) target = $region8
  $region5: #{_lambda_.27} parent=0 // loop_body
    %s14 = ssub.s32 %s9, 1
    %s15 = ssub.s32 %s9, 2
    %s22 = sadd.s32 1, %s17
    %p23 = scmp.ge.s32.totalorder %s22, 1
    %s24 = scalar_select %p23, 0, %s22
    %s25 = sadd.s32 1, %s16
    %s26 = scalar_select %p23, %s25, %s16
    %p27 = scmp.ge.s32.totalorder %s26, 24
    %s28 = scalar_select %p27, 0, %s26
    %s29 = ssub.s32 %s16, %s28
    %s30 = ssub.s32 %s17, %s24
    %s31 = sor.u32 %s29, %s30
    %p32 = scmp.eq.s32.totalorder %s31, 0
    %s34 = sadd.s32 %s33, 1
    %s35 = scalar_select %p32, %s33, %s34
    %p38 = pneg %p32
    %p39 = scmp.eq.s32.totalorder %s9, 23
    %p40 = por %p38, %p39
    %p41 = scmp.ne.s32.totalorder %s33, %s36
    %p42 = scmp.eq.s32.totalorder %s9, 0
    %p43 = por %p41, %p42
    %p44 = scmp.ne.s32.totalorder %s33, %s36
    %p45 = scmp.eq.s32.totalorder %s14, 23
    %p46 = por %p44, %p45
    %p47 = scmp.ne.s32.totalorder %s36, %s37
    %p48 = scmp.eq.s32.totalorder %s14, 0
    %p49 = por %p47, %p48
    %p50 = scmp.ne.s32.totalorder %s36, %s37
    %p51 = scmp.eq.s32.totalorder %s15, 23
    %p52 = por %p50, %p51
    %p54 = scmp.ne.s32.totalorder %s37, %s53
    %p55 = scmp.eq.s32.totalorder %s15, 0
    %p56 = por %p54, %p55
    %s57 = ssub.s32 %s16, %s28
    %p58 = scmp.eq.s32.totalorder %s57, 0
    %s60 = sadd.s32 %s59, 1
    %s61 = scalar_select %p58, %s59, %s60
    %p64 = pneg %p58
    %p65 = scmp.eq.s32.totalorder %s9, 23
    %p66 = por %p64, %p65
    %p67 = scmp.ne.s32.totalorder %s59, %s62
    %p68 = scmp.eq.s32.totalorder %s9, 0
    %p69 = por %p67, %p68
    %p70 = scmp.ne.s32.totalorder %s59, %s62
    %p71 = scmp.eq.s32.totalorder %s14, 23
    %p72 = por %p70, %p71
    %p73 = scmp.ne.s32.totalorder %s62, %s63
    %p74 = scmp.eq.s32.totalorder %s14, 0
    %p75 = por %p73, %p74
    %p76 = scmp.ne.s32.totalorder %s62, %s63
    %p77 = scmp.eq.s32.totalorder %s15, 23
    %p78 = por %p76, %p77
    %p80 = scmp.ne.s32.totalorder %s63, %s79
    %p81 = scmp.eq.s32.totalorder %s15, 0
    %p82 = por %p80, %p81
    %s83 = ssub.s32 %s16, %s28
    %p84 = scmp.eq.s32.totalorder %s83, 0
    %s86 = sadd.s32 %s85, 1
    %s87 = scalar_select %p84, %s85, %s86
    %p90 = pneg %p84
    %p91 = scmp.eq.s32.totalorder %s9, 23
    %p92 = por %p90, %p91
    %p93 = scmp.ne.s32.totalorder %s85, %s88
    %p94 = scmp.eq.s32.totalorder %s9, 0
    %p95 = por %p93, %p94
    %p96 = scmp.ne.s32.totalorder %s85, %s88
    %p97 = scmp.eq.s32.totalorder %s14, 23
    %p98 = por %p96, %p97
    %p99 = scmp.ne.s32.totalorder %s88, %s89
    %p100 = scmp.eq.s32.totalorder %s14, 0
    %p101 = por %p99, %p100
    %p102 = scmp.ne.s32.totalorder %s88, %s89
    %p103 = scmp.eq.s32.totalorder %s15, 23
    %p104 = por %p102, %p103
    %p106 = scmp.ne.s32.totalorder %s89, %s105
    %p107 = scmp.eq.s32.totalorder %s15, 0
    %p108 = por %p106, %p107
    %s109 = ssub.s32 %s16, %s28
    %s110 = ssub.s32 %s17, %s24
    %s111 = sor.u32 %s109, %s110
    %p112 = scmp.eq.s32.totalorder %s111, 0
    %s114 = sadd.s32 %s113, 1
    %s115 = scalar_select %p112, %s113, %s114
    %p118 = pneg %p112
    %p119 = scmp.eq.s32.totalorder %s9, 23
    %p120 = por %p118, %p119
    %p121 = scmp.ne.s32.totalorder %s113, %s116
    %p122 = scmp.eq.s32.totalorder %s9, 0
    %p123 = por %p121, %p122
    %p124 = scmp.ne.s32.totalorder %s113, %s116
    %p125 = scmp.eq.s32.totalorder %s14, 23
    %p126 = por %p124, %p125
    %p127 = scmp.ne.s32.totalorder %s116, %s117
    %p128 = scmp.eq.s32.totalorder %s14, 0
    %p129 = por %p127, %p128
    %p130 = scmp.ne.s32.totalorder %s116, %s117
    %p131 = scmp.eq.s32.totalorder %s15, 23
    %p132 = por %p130, %p131
    %p134 = scmp.ne.s32.totalorder %s117, %s133
    %p135 = scmp.eq.s32.totalorder %s15, 0
    %p136 = por %p134, %p135
    %p137 = scmp.le.s32.totalorder 1, %s9
    %p138 = scmp.lt.s32.totalorder %s9, 25
    %p139 = pnand %p137, %p138
    %p140 = pneg %p139
    // Predicated region
    $region9: #{_lambda_.27} parent=5 // pred_check
      _
    $region10: #{_lambda_.27} parent=5 // pred_check_branch
      %142 = sbr.rel (%p139) target = $region12
    $region11: #{_lambda_.27} parent=5 // pred_region
      %s143 = ssub.s32 %s9, 1
    $region12: #{_lambda_.27} parent=5 // pred_fallthru
      _
    %p144 = scmp.lt.s32.totalorder %s9, 24
    // Predicated region
    $region13: #{_lambda_.27} parent=5 // pred_check
      %p145 = pneg %p144
    $region14: #{_lambda_.27} parent=5 // pred_check_branch
      %147 = sbr.rel (%p145) target = $region16
    $region15: #{_lambda_.27} parent=5 // pred_region
      // Predicated region
      $region17: #{_lambda_.27} parent=15 // pred_check
        %p148 = pneg %p43
      $region18: #{_lambda_.27} parent=15 // pred_check_branch
        %150 = sbr.rel (%p148) target = $region20
      $region19: #{_lambda_.27} parent=15 // pred_region
        %p151 = scmp.lt.s32.totalorder %s16, 23
        %s152 = scalar_select %p151, %s16, 23
        %p153 = scmp.lt.s32.totalorder %s17, 0
        %s154 = scalar_select %p153, %s17, 0
        %s155 = sadd.s32 %s154, %s152
        %s156 = scalar_lea.vmem %s0, %s155
      $region20: #{_lambda_.27} parent=15 // pred_fallthru
        _
      // Predicated region
      $region21: #{_lambda_.27} parent=15 // pred_check
        %p157 = pneg %p69
      $region22: #{_lambda_.27} parent=15 // pred_check_branch
        %159 = sbr.rel (%p157) target = $region24
      $region23: #{_lambda_.27} parent=15 // pred_region
        %p160 = scmp.lt.s32.totalorder %s16, 23
        %s161 = scalar_select %p160, %s16, 23
        %s162 = smul.addr %s161, 6
        %s163 = smul.addr %s162, 4
        %s164 = scalar_lea.vmem %s1, %s163
      $region24: #{_lambda_.27} parent=15 // pred_fallthru
        _
      // Predicated region
      $region25: #{_lambda_.27} parent=15 // pred_check
        %p165 = pneg %p95
      $region26: #{_lambda_.27} parent=15 // pred_check_branch
        %167 = sbr.rel (%p165) target = $region28
      $region27: #{_lambda_.27} parent=15 // pred_region
        %p168 = scmp.lt.s32.totalorder %s16, 23
        %s169 = scalar_select %p168, %s16, 23
        %s170 = scalar_lea.vmem %s2, %s169
      $region28: #{_lambda_.27} parent=15 // pred_fallthru
        _
    $region16: #{_lambda_.27} parent=5 // pred_fallthru
      _
    %p171 = scmp.le.s32.totalorder 1, %s9
    %p172 = scmp.lt.s32.totalorder %s9, 25
    %p173 = pnand %p171, %p172
    %p174 = pneg %p173
    // Predicated region
    $region29: #{_lambda_.27} parent=5 // pred_check
      _
    $region30: #{_lambda_.27} parent=5 // pred_check_branch
      %176 = sbr.rel (%p173) target = $region32
    $region31: #{_lambda_.27} parent=5 // pred_region
      %s177 = ssub.s32 %s9, 1
      %p178 = scmp.lt.s32.totalorder %s18, 23
      %s179 = scalar_select %p178, %s18, 23
      %p180 = scmp.lt.s32.totalorder %s19, 0
      %s181 = scalar_select %p180, %s19, 0
      %s182 = sadd.s32 %s181, %s179
      %s183 = scalar_lea.vmem %s0, %s182
      %p184 = pneg %p49
      %p185 = pneg %p46
      %p186 = scmp.lt.s32.totalorder %s18, 23
      %s187 = scalar_select %p186, %s18, 23
      %s188 = smul.addr %s187, 6
      %s189 = smul.addr %s188, 4
      %s190 = scalar_lea.vmem %s1, %s189
      %p191 = pneg %p75
      %p192 = pneg %p72
      %p193 = scmp.lt.s32.totalorder %s18, 23
      %s194 = scalar_select %p193, %s18, 23
      %s195 = scalar_lea.vmem %s2, %s194
      %p196 = pneg %p101
      %p197 = pneg %p98
      %p198 = pneg %p129
      %p199 = pneg %p126
      %p200 = scmp.lt.s32.totalorder %s18, 23
      %s201 = scalar_select %p200, %s18, 23
      %p202 = scmp.lt.s32.totalorder %s19, 0
      %s203 = scalar_select %p202, %s19, 0
      %s204 = sadd.s32 %s203, %s201
      %s205 = scalar_lea.vmem %s3, %s204
      %p206 = scmp.lt.s32.totalorder %s18, 23
      %s207 = scalar_select %p206, %s18, 23
      %p208 = scmp.lt.s32.totalorder %s19, 0
      %s209 = scalar_select %p208, %s19, 0
      %s210 = sadd.s32 %s209, %s207
      %s211 = scalar_lea.vmem %s0, %s210
      %p212 = scmp.lt.s32.totalorder %s18, 23
      %s213 = scalar_select %p212, %s18, 23
      %s214 = smul.addr %s213, 6
      %s215 = smul.addr %s214, 4
      %s216 = scalar_lea.vmem %s1, %s215
      %p217 = scmp.lt.s32.totalorder %s18, 23
      %s218 = scalar_select %p217, %s18, 23
      %s219 = scalar_lea.vmem %s2, %s218
      %p220 = scmp.lt.s32.totalorder %s18, 23
      %s221 = scalar_select %p220, %s18, 23
      %p222 = scmp.lt.s32.totalorder %s19, 0
      %s223 = scalar_select %p222, %s19, 0
      %s224 = sadd.s32 %s223, %s221
      %s225 = scalar_lea.vmem %s3, %s224
      %v227 = vld [vmem:[%s211] sm:$0x1]
      %v228 = vld [vmem:[%s216] sm:$0xf]
      %v229 = vld [vmem:[%s216 + $0x4] sm:$0xf]
      %v230 = vld [vmem:[%s216 + $0x8] sm:$0xf]
      %v231 = vld [vmem:[%s216 + $0xc] sm:$0xf]
      %v232 = vld [vmem:[%s216 + $0x10] sm:$0xf]
      %v233 = vld [vmem:[%s216 + $0x14] sm:$0xf]
      %v234 = vld [vmem:[%s219] sm:$0x1]
      %v241 = vunpack.c.l.b16 %v228
      %v242 = vunpack.c.l.b16 %v229
      %v243 = vunpack.c.l.b16 %v230
      %v244 = vunpack.c.l.b16 %v231
      %v245 = vunpack.c.l.b16 %v232
      %v246 = vunpack.c.l.b16 %v233
      %v247 = vpack.c.b16 %v242, %v241
      %v248 = vpack.c.b16 %v244, %v243
      %v249 = vpack.c.b16 %v246, %v245
      %vm253 = vcmask 392192
      %v255 = vsel %vm253, %v227, 0
      %257 = vmatpush.bf16.msra.mxu0 0
      %258 = vmatpush.bf16.msra.mxu0 0
      %259 = vmatpush.bf16.msra.mxu0 0
      %260 = vmatpush.bf16.msra.mxu0 0
      %261 = vmatpush.bf16.msra.mxu0 0
      %262 = vmatpush.bf16.msra.mxu0 %v249
      %263 = vmatpush.bf16.msra.mxu0 %v248
      %264 = vmatpush.bf16.msra.mxu0 %v247
      %265 = vmatmul.bf16.gmra.mxu0 %v255
      %v266 = vpop.f32.mrf.mxu0
      %v267 = vadd.f32 %v234, %v266
      %v268 = vpop.f32.mrf.mxu0
      %269 = vdwg.mxu0
      %vm270 = vcmp.gt.f32.partialorder %v267, 0.0
      %v271 = vmul.f32 %v267, 0.01
      %v272 = vsel %vm270, %v267, %v271
      %v273 = vpack.c.bf16 %v272, %v272
      %vm274 = vcmask 122880
      %vm275 = vsmask.f32 256
      %vm276 = vmand %vm274, %vm275
      %v277 = vld [vmem:[%s225] sm:$0x1]
      %v278 = vsel %vm276, %v273, %v277
      %279 = vst [vmem:[%s225] sm:$0x1] %v278
      %p280 = scmp.lt.s32.totalorder %s18, 23
      %s281 = scalar_select %p280, %s18, 23
      %p282 = scmp.lt.s32.totalorder %s19, 0
      %s283 = scalar_select %p282, %s19, 0
      %s284 = sadd.s32 %s283, %s281
      %s285 = scalar_lea.vmem %s3, %s284
      // Predicated region
      $region33: #{_lambda_.27} parent=31 // pred_check
        %p286 = pneg %p126
      $region34: #{_lambda_.27} parent=31 // pred_check_branch
        %288 = sbr.rel (%p286) target = $region36
      $region35: #{_lambda_.27} parent=31 // pred_region
        _
      $region36: #{_lambda_.27} parent=31 // pred_fallthru
        _
    $region32: #{_lambda_.27} parent=5 // pred_fallthru
      _
    %p289 = scmp.le.s32.totalorder 2, %s9
    // Predicated region
    $region37: #{_lambda_.27} parent=5 // pred_check
      %p290 = pneg %p289
    $region38: #{_lambda_.27} parent=5 // pred_check_branch
      %292 = sbr.rel (%p290) target = $region40
    $region39: #{_lambda_.27} parent=5 // pred_region
      %s293 = ssub.s32 %s9, 2
      // Predicated region
      $region41: #{_lambda_.27} parent=39 // pred_check
        %p294 = pneg %p132
      $region42: #{_lambda_.27} parent=39 // pred_check_branch
        %296 = sbr.rel (%p294) target = $region44
      $region43: #{_lambda_.27} parent=39 // pred_region
        %p297 = scmp.lt.s32.totalorder %s20, 23
        %s298 = scalar_select %p297, %s20, 23
        %p299 = scmp.lt.s32.totalorder %s21, 0
        %s300 = scalar_select %p299, %s21, 0
        %s301 = sadd.s32 %s300, %s298
        %s302 = scalar_lea.vmem %s3, %s301
      $region44: #{_lambda_.27} parent=39 // pred_fallthru
        _
    $region40: #{_lambda_.27} parent=5 // pred_fallthru
      _
  $region6: #{_lambda_.27} parent=0 // loop_footer
    %s13 = sadd.s32 1, %s9
  $region7: #{_lambda_.27} parent=0 // loop_footer_branch
    %8 = sbr.rel target = $region3
  $region8: #{_lambda_.27} parent=0 // loop_exit
    _

// kernel: _lambda_.28
$region0: #{_lambda_.28}
  #allocation0 [shape = 'u32[]', space=smem, size = 0x4, offset = 0x4, fixed_abs, tag = 'smem constant byte address 0x4 - core index']
  #allocation1 [shape = 'u32[72,128]{1,0:T(1,128)}', space=vmem, size = 0x9000, scoped, tag = 'internal scratch']
  %s0 = inlined_call_operand.vmem [shape: bf16[24,9,144], index: 0, kind: input, shape index: {}]
  %s1 = inlined_call_operand.vmem [shape: bf16[24,144,32], index: 1, kind: input, shape index: {}]
  %s2 = inlined_call_operand.vmem [shape: f32[24,1,32], index: 2, kind: input, shape index: {}]
  %s3 = inlined_call_operand.vmem [shape: bf16[24,9,32], index: 3, kind: output, shape index: {}]
  %s4 = sld [smem:[#allocation0]]
  $region45: #{_lambda_.28} parent=0
    _
  %s6 = ssub.s32 1, %s4
  %s7 = scalar_select 0, %s6, %s4
  loop: start=0, step=1, limit=26
  $region2: #{_lambda_.28} parent=0 // loop_pre_header
    _
  $region3: #{_lambda_.28} parent=0 // loop_header
    %s9 = sphi 0, %s13
    %p10 = scmp.ge.s32.totalorder %s9, 26
    %s16 = sphi 0, %s28
    %s17 = sphi 0, %s24
    %s18 = sphi 0, %s16
    %s19 = sphi 0, %s17
    %s20 = sphi 0, %s18
    %s21 = sphi 0, %s19
    %s33 = sphi 0, %s35
    %s36 = sphi 0, %s33
    %s37 = sphi 0, %s36
    %s53 = sphi 0, %s37
    %s59 = sphi 0, %s61
    %s62 = sphi 0, %s59
    %s63 = sphi 0, %s62
    %s79 = sphi 0, %s63
    %s85 = sphi 0, %s87
    %s88 = sphi 0, %s85
    %s89 = sphi 0, %s88
    %s105 = sphi 0, %s89
    %s113 = sphi 0, %s115
    %s116 = sphi 0, %s113
    %s117 = sphi 0, %s116
    %s133 = sphi 0, %s117
  $region4: #{_lambda_.28} parent=0 // loop_header_branch
    %12 = sbr.rel (%p10) target = $region8
  $region5: #{_lambda_.28} parent=0 // loop_body
    %s14 = ssub.s32 %s9, 1
    %s15 = ssub.s32 %s9, 2
    %s22 = sadd.s32 1, %s17
    %p23 = scmp.ge.s32.totalorder %s22, 1
    %s24 = scalar_select %p23, 0, %s22
    %s25 = sadd.s32 1, %s16
    %s26 = scalar_select %p23, %s25, %s16
    %p27 = scmp.ge.s32.totalorder %s26, 24
    %s28 = scalar_select %p27, 0, %s26
    %s29 = ssub.s32 %s16, %s28
    %s30 = ssub.s32 %s17, %s24
    %s31 = sor.u32 %s29, %s30
    %p32 = scmp.eq.s32.totalorder %s31, 0
    %s34 = sadd.s32 %s33, 1
    %s35 = scalar_select %p32, %s33, %s34
    %p38 = pneg %p32
    %p39 = scmp.eq.s32.totalorder %s9, 23
    %p40 = por %p38, %p39
    %p41 = scmp.ne.s32.totalorder %s33, %s36
    %p42 = scmp.eq.s32.totalorder %s9, 0
    %p43 = por %p41, %p42
    %p44 = scmp.ne.s32.totalorder %s33, %s36
    %p45 = scmp.eq.s32.totalorder %s14, 23
    %p46 = por %p44, %p45
    %p47 = scmp.ne.s32.totalorder %s36, %s37
    %p48 = scmp.eq.s32.totalorder %s14, 0
    %p49 = por %p47, %p48
    %p50 = scmp.ne.s32.totalorder %s36, %s37
    %p51 = scmp.eq.s32.totalorder %s15, 23
    %p52 = por %p50, %p51
    %p54 = scmp.ne.s32.totalorder %s37, %s53
    %p55 = scmp.eq.s32.totalorder %s15, 0
    %p56 = por %p54, %p55
    %s57 = ssub.s32 %s16, %s28
    %p58 = scmp.eq.s32.totalorder %s57, 0
    %s60 = sadd.s32 %s59, 1
    %s61 = scalar_select %p58, %s59, %s60
    %p64 = pneg %p58
    %p65 = scmp.eq.s32.totalorder %s9, 23
    %p66 = por %p64, %p65
    %p67 = scmp.ne.s32.totalorder %s59, %s62
    %p68 = scmp.eq.s32.totalorder %s9, 0
    %p69 = por %p67, %p68
    %p70 = scmp.ne.s32.totalorder %s59, %s62
    %p71 = scmp.eq.s32.totalorder %s14, 23
    %p72 = por %p70, %p71
    %p73 = scmp.ne.s32.totalorder %s62, %s63
    %p74 = scmp.eq.s32.totalorder %s14, 0
    %p75 = por %p73, %p74
    %p76 = scmp.ne.s32.totalorder %s62, %s63
    %p77 = scmp.eq.s32.totalorder %s15, 23
    %p78 = por %p76, %p77
    %p80 = scmp.ne.s32.totalorder %s63, %s79
    %p81 = scmp.eq.s32.totalorder %s15, 0
    %p82 = por %p80, %p81
    %s83 = ssub.s32 %s16, %s28
    %p84 = scmp.eq.s32.totalorder %s83, 0
    %s86 = sadd.s32 %s85, 1
    %s87 = scalar_select %p84, %s85, %s86
    %p90 = pneg %p84
    %p91 = scmp.eq.s32.totalorder %s9, 23
    %p92 = por %p90, %p91
    %p93 = scmp.ne.s32.totalorder %s85, %s88
    %p94 = scmp.eq.s32.totalorder %s9, 0
    %p95 = por %p93, %p94
    %p96 = scmp.ne.s32.totalorder %s85, %s88
    %p97 = scmp.eq.s32.totalorder %s14, 23
    %p98 = por %p96, %p97
    %p99 = scmp.ne.s32.totalorder %s88, %s89
    %p100 = scmp.eq.s32.totalorder %s14, 0
    %p101 = por %p99, %p100
    %p102 = scmp.ne.s32.totalorder %s88, %s89
    %p103 = scmp.eq.s32.totalorder %s15, 23
    %p104 = por %p102, %p103
    %p106 = scmp.ne.s32.totalorder %s89, %s105
    %p107 = scmp.eq.s32.totalorder %s15, 0
    %p108 = por %p106, %p107
    %s109 = ssub.s32 %s16, %s28
    %s110 = ssub.s32 %s17, %s24
    %s111 = sor.u32 %s109, %s110
    %p112 = scmp.eq.s32.totalorder %s111, 0
    %s114 = sadd.s32 %s113, 1
    %s115 = scalar_select %p112, %s113, %s114
    %p118 = pneg %p112
    %p119 = scmp.eq.s32.totalorder %s9, 23
    %p120 = por %p118, %p119
    %p121 = scmp.ne.s32.totalorder %s113, %s116
    %p122 = scmp.eq.s32.totalorder %s9, 0
    %p123 = por %p121, %p122
    %p124 = scmp.ne.s32.totalorder %s113, %s116
    %p125 = scmp.eq.s32.totalorder %s14, 23
    %p126 = por %p124, %p125
    %p127 = scmp.ne.s32.totalorder %s116, %s117
    %p128 = scmp.eq.s32.totalorder %s14, 0
    %p129 = por %p127, %p128
    %p130 = scmp.ne.s32.totalorder %s116, %s117
    %p131 = scmp.eq.s32.totalorder %s15, 23
    %p132 = por %p130, %p131
    %p134 = scmp.ne.s32.totalorder %s117, %s133
    %p135 = scmp.eq.s32.totalorder %s15, 0
    %p136 = por %p134, %p135
    %p137 = scmp.le.s32.totalorder 1, %s9
    %p138 = scmp.lt.s32.totalorder %s9, 25
    %p139 = pnand %p137, %p138
    %p140 = pneg %p139
    // Predicated region
    $region9: #{_lambda_.28} parent=5 // pred_check
      _
    $region10: #{_lambda_.28} parent=5 // pred_check_branch
      %142 = sbr.rel (%p139) target = $region12
    $region11: #{_lambda_.28} parent=5 // pred_region
      %s143 = ssub.s32 %s9, 1
    $region12: #{_lambda_.28} parent=5 // pred_fallthru
      _
    %p144 = scmp.lt.s32.totalorder %s9, 24
    // Predicated region
    $region13: #{_lambda_.28} parent=5 // pred_check
      %p145 = pneg %p144
    $region14: #{_lambda_.28} parent=5 // pred_check_branch
      %147 = sbr.rel (%p145) target = $region16
    $region15: #{_lambda_.28} parent=5 // pred_region
      // Predicated region
      $region17: #{_lambda_.28} parent=15 // pred_check
        %p148 = pneg %p43
      $region18: #{_lambda_.28} parent=15 // pred_check_branch
        %150 = sbr.rel (%p148) target = $region20
      $region19: #{_lambda_.28} parent=15 // pred_region
        %s151 = smul.u32 2, %s17
        %p152 = scmp.lt.s32.totalorder %s16, 23
        %s153 = scalar_select %p152, %s16, 23
        %p154 = scmp.lt.s32.totalorder %s151, 1
        %s155 = scalar_select %p154, %s151, 1
        %s156 = smul.addr %s155, 2
        %s157 = smul.addr %s153, 4
        %s158 = sadd.s32 %s156, %s157
        %s159 = smul.addr %s158, 4
        %s160 = scalar_lea.vmem %s0, %s159
        %s161 = smul.u32 2, %s17
      $region20: #{_lambda_.28} parent=15 // pred_fallthru
        _
      // Predicated region
      $region21: #{_lambda_.28} parent=15 // pred_check
        %p162 = pneg %p69
      $region22: #{_lambda_.28} parent=15 // pred_check_branch
        %164 = sbr.rel (%p162) target = $region24
      $region23: #{_lambda_.28} parent=15 // pred_region
        %p165 = scmp.lt.s32.totalorder %s16, 23
        %s166 = scalar_select %p165, %s16, 23
        %s167 = smul.addr %s166, 18
        %s168 = smul.addr %s167, 4
        %s169 = scalar_lea.vmem %s1, %s168
      $region24: #{_lambda_.28} parent=15 // pred_fallthru
        _
      // Predicated region
      $region25: #{_lambda_.28} parent=15 // pred_check
        %p170 = pneg %p95
      $region26: #{_lambda_.28} parent=15 // pred_check_branch
        %172 = sbr.rel (%p170) target = $region28
      $region27: #{_lambda_.28} parent=15 // pred_region
        %p173 = scmp.lt.s32.totalorder %s16, 23
        %s174 = scalar_select %p173, %s16, 23
        %s175 = scalar_lea.vmem %s2, %s174
      $region28: #{_lambda_.28} parent=15 // pred_fallthru
        _
    $region16: #{_lambda_.28} parent=5 // pred_fallthru
      _
    %p176 = scmp.le.s32.totalorder 1, %s9
    %p177 = scmp.lt.s32.totalorder %s9, 25
    %p178 = pnand %p176, %p177
    %p179 = pneg %p178
    // Predicated region
    $region29: #{_lambda_.28} parent=5 // pred_check
      _
    $region30: #{_lambda_.28} parent=5 // pred_check_branch
      %181 = sbr.rel (%p178) target = $region32
    $region31: #{_lambda_.28} parent=5 // pred_region
      %s182 = ssub.s32 %s9, 1
      %s183 = smul.u32 2, %s19
      %p184 = scmp.lt.s32.totalorder %s18, 23
      %s185 = scalar_select %p184, %s18, 23
      %p186 = scmp.lt.s32.totalorder %s183, 1
      %s187 = scalar_select %p186, %s183, 1
      %s188 = smul.addr %s187, 2
      %s189 = smul.addr %s185, 4
      %s190 = sadd.s32 %s188, %s189
      %s191 = smul.addr %s190, 4
      %s192 = scalar_lea.vmem %s0, %s191
      %p193 = pneg %p49
      %p194 = pneg %p46
      %p195 = scmp.lt.s32.totalorder %s18, 23
      %s196 = scalar_select %p195, %s18, 23
      %s197 = smul.addr %s196, 18
      %s198 = smul.addr %s197, 4
      %s199 = scalar_lea.vmem %s1, %s198
      %p200 = pneg %p75
      %p201 = pneg %p72
      %p202 = scmp.lt.s32.totalorder %s18, 23
      %s203 = scalar_select %p202, %s18, 23
      %s204 = scalar_lea.vmem %s2, %s203
      %p205 = pneg %p101
      %p206 = pneg %p98
      %p207 = pneg %p129
      %p208 = pneg %p126
      %s209 = smul.u32 2, %s19
      %p210 = scmp.lt.s32.totalorder %s18, 23
      %s211 = scalar_select %p210, %s18, 23
      %p212 = scmp.lt.s32.totalorder %s209, 1
      %s213 = scalar_select %p212, %s209, 1
      %s214 = smul.addr %s211, 2
      %s215 = sadd.s32 %s213, %s214
      %s216 = smul.addr %s215, 4
      %s217 = scalar_lea.vmem %s3, %s216
      %s218 = smul.u32 2, %s19
      %p219 = scmp.lt.s32.totalorder %s18, 23
      %s220 = scalar_select %p219, %s18, 23
      %p221 = scmp.lt.s32.totalorder %s218, 1
      %s222 = scalar_select %p221, %s218, 1
      %s223 = smul.addr %s222, 2
      %s224 = smul.addr %s220, 4
      %s225 = sadd.s32 %s223, %s224
      %s226 = smul.addr %s225, 4
      %s227 = scalar_lea.vmem %s0, %s226
      %s228 = smul.u32 2, %s19
      %p229 = scmp.lt.s32.totalorder %s18, 23
      %s230 = scalar_select %p229, %s18, 23
      %s231 = smul.addr %s230, 18
      %s232 = smul.addr %s231, 4
      %s233 = scalar_lea.vmem %s1, %s232
      %p234 = scmp.lt.s32.totalorder %s18, 23
      %s235 = scalar_select %p234, %s18, 23
      %s236 = scalar_lea.vmem %s2, %s235
      %s237 = smul.u32 2, %s19
      %p238 = scmp.lt.s32.totalorder %s18, 23
      %s239 = scalar_select %p238, %s18, 23
      %p240 = scmp.lt.s32.totalorder %s237, 1
      %s241 = scalar_select %p240, %s237, 1
      %s242 = smul.addr %s239, 2
      %s243 = sadd.s32 %s241, %s242
      %s244 = smul.addr %s243, 4
      %s245 = scalar_lea.vmem %s3, %s244
      %s246 = smul.u32 2, %s19
      %v248 = vld [vmem:[%s227] sm:$0xff]
      %v249 = vld [vmem:[%s227 + $0x8] sm:$0x11]
      %v250 = vld [vmem:[%s233] sm:$0xf]
      %v251 = vld [vmem:[%s233 + $0x4] sm:$0xf]
      %v252 = vld [vmem:[%s233 + $0x8] sm:$0xf]
      %v253 = vld [vmem:[%s233 + $0xc] sm:$0xf]
      %v254 = vld [vmem:[%s233 + $0x10] sm:$0xf]
      %v255 = vld [vmem:[%s233 + $0x14] sm:$0xf]
      %v256 = vld [vmem:[%s233 + $0x18] sm:$0xf]
      %v257 = vld [vmem:[%s233 + $0x1c] sm:$0xf]
      %v258 = vld [vmem:[%s233 + $0x20] sm:$0xf]
      %v259 = vld [vmem:[%s233 + $0x24] sm:$0xf]
      %v260 = vld [vmem:[%s233 + $0x28] sm:$0xf]
      %v261 = vld [vmem:[%s233 + $0x2c] sm:$0xf]
      %v262 = vld [vmem:[%s233 + $0x30] sm:$0xf]
      %v263 = vld [vmem:[%s233 + $0x34] sm:$0xf]
      %v264 = vld [vmem:[%s233 + $0x38] sm:$0xf]
      %v265 = vld [vmem:[%s233 + $0x3c] sm:$0xf]
      %v266 = vld [vmem:[%s233 + $0x40] sm:$0xf]
      %v267 = vld [vmem:[%s233 + $0x44] sm:$0xf]
      %v268 = vld [vmem:[%s236] sm:$0x1]
      %v270 = vperm.slane %v268, 0
      %v274 = vunpack.c.l.b16 %v248
      %v275 = vunpack.c.h.b16 %v248
      %v276 = vunpack.c.l.b16 %v249
      %v277 = vunpack.c.h.b16 %v249
      %v278 = vpack.c.b16 %v276, %v274
      %v279 = vpack.c.b16 %v277, %v275
      %v299 = vunpack.c.l.b16 %v250
      %v300 = vunpack.c.l.b16 %v251
      %v301 = vunpack.c.l.b16 %v252
      %v302 = vunpack.c.l.b16 %v253
      %v303 = vunpack.c.l.b16 %v254
      %v304 = vunpack.c.l.b16 %v255
      %v305 = vunpack.c.l.b16 %v256
      %v306 = vunpack.c.l.b16 %v257
      %v307 = vunpack.c.l.b16 %v258
      %v308 = vunpack.c.l.b16 %v259
      %v309 = vunpack.c.l.b16 %v260
      %v310 = vunpack.c.l.b16 %v261
      %v311 = vunpack.c.l.b16 %v262
      %v312 = vunpack.c.l.b16 %v263
      %v313 = vunpack.c.l.b16 %v264
      %v314 = vunpack.c.l.b16 %v265
      %v315 = vunpack.c.l.b16 %v266
      %v316 = vunpack.c.l.b16 %v267
      %v317 = vpack.c.b16 %v300, %v299
      %v318 = vpack.c.b16 %v302, %v301
      %v319 = vpack.c.b16 %v304, %v303
      %v320 = vpack.c.b16 %v306, %v305
      %v321 = vpack.c.b16 %v308, %v307
      %v322 = vpack.c.b16 %v310, %v309
      %v323 = vpack.c.b16 %v312, %v311
      %v324 = vpack.c.b16 %v314, %v313
      %v325 = vpack.c.b16 %v316, %v315
      %vm335 = vcmask 130048
      %v337 = vsel %vm335, %v279, 0
      %339 = vmatpush.bf16.msra.mxu0 %v324
      %340 = vmatpush.bf16.msra.mxu0 %v323
      %341 = vmatpush.bf16.msra.mxu0 %v322
      %342 = vmatpush.bf16.msra.mxu0 %v321
      %343 = vmatpush.bf16.msra.mxu0 %v320
      %344 = vmatpush.bf16.msra.mxu0 %v319
      %345 = vmatpush.bf16.msra.mxu0 %v318
      %346 = vmatpush.bf16.msra.mxu0 %v317
      %347 = vmatmul.bf16.gmra.mxu0 %v278
      %v348 = vpop.f32.mrf.mxu0
      %v349 = vadd.f32 %v270, %v348
      %v350 = vpop.f32.mrf.mxu0
      %v351 = vadd.f32 %v270, %v350
      %352 = vdwg.mxu0
      %353 = vmatpush.bf16.msra.mxu0 0
      %354 = vmatpush.bf16.msra.mxu0 0
      %355 = vmatpush.bf16.msra.mxu0 0
      %356 = vmatpush.bf16.msra.mxu0 0
      %357 = vmatpush.bf16.msra.mxu0 0
      %358 = vmatpush.bf16.msra.mxu0 0
      %359 = vmatpush.bf16.msra.mxu0 0
      %360 = vmatpush.bf16.msra.mxu0 %v325
      %361 = vmatmul.bf16.gmra.mxu0 %v337
      %v362 = vpop.f32.mrf.mxu0
      %v363 = vadd.f32 %v349, %v362
      %v364 = vpop.f32.mrf.mxu0
      %v365 = vadd.f32 %v351, %v364
      %366 = vdwg.mxu0
      %vm367 = vcmp.gt.f32.partialorder %v363, 0.0
      %vm368 = vcmp.gt.f32.partialorder %v365, 0.0
      %v369 = vmul.f32 %v363, 0.01
      %v370 = vmul.f32 %v365, 0.01
      %v371 = vsel %vm367, %v363, %v369
      %v372 = vsel %vm368, %v365, %v370
      %v373 = vpack.c.bf16 %v371, %v371
      %v374 = vpack.c.bf16 %v372, %v372
      %vm375 = vcmask 257024
      %376 = vst.msk [vmem:[%s245] sm:$0xf] %vm375, %v373
      %vm377 = vcmask 253952
      %vm378 = vsmask.f32 256
      %vm379 = vmand %vm377, %vm378
      %v380 = vld [vmem:[%s245 + $0x4] sm:$0x1]
      %v381 = vsel %vm379, %v374, %v380
      %382 = vst [vmem:[%s245 + $0x4] sm:$0x1] %v381
      %s383 = smul.u32 2, %s19
      %p384 = scmp.lt.s32.totalorder %s18, 23
      %s385 = scalar_select %p384, %s18, 23
      %p386 = scmp.lt.s32.totalorder %s383, 1
      %s387 = scalar_select %p386, %s383, 1
      %s388 = smul.addr %s385, 2
      %s389 = sadd.s32 %s387, %s388
      %s390 = smul.addr %s389, 4
      %s391 = scalar_lea.vmem %s3, %s390
      // Predicated region
      $region33: #{_lambda_.28} parent=31 // pred_check
        %p392 = pneg %p126
      $region34: #{_lambda_.28} parent=31 // pred_check_branch
        %394 = sbr.rel (%p392) target = $region36
      $region35: #{_lambda_.28} parent=31 // pred_region
        %s395 = smul.u32 2, %s19
      $region36: #{_lambda_.28} parent=31 // pred_fallthru
        _
    $region32: #{_lambda_.28} parent=5 // pred_fallthru
      _
    %p396 = scmp.le.s32.totalorder 2, %s9
    // Predicated region
    $region37: #{_lambda_.28} parent=5 // pred_check
      %p397 = pneg %p396
    $region38: #{_lambda_.28} parent=5 // pred_check_branch
      %399 = sbr.rel (%p397) target = $region40
    $region39: #{_lambda_.28} parent=5 // pred_region
      %s400 = ssub.s32 %s9, 2
      // Predicated region
      $region41: #{_lambda_.28} parent=39 // pred_check
        %p401 = pneg %p132
      $region42: #{_lambda_.28} parent=39 // pred_check_branch
        %403 = sbr.rel (%p401) target = $region44
      $region43: #{_lambda_.28} parent=39 // pred_region
        %s404 = smul.u32 2, %s21
        %p405 = scmp.lt.s32.totalorder %s20, 23
        %s406 = scalar_select %p405, %s20, 23
        %p407 = scmp.lt.s32.totalorder %s404, 1
        %s408 = scalar_select %p407, %s404, 1
        %s409 = smul.addr %s406, 2
        %s410 = sadd.s32 %s408, %s409
        %s411 = smul.addr %s410, 4
        %s412 = scalar_lea.vmem %s3, %s411
      $region44: #{_lambda_.28} parent=39 // pred_fallthru
        _
    $region40: #{_lambda_.28} parent=5 // pred_fallthru
      _
  $region6: #{_lambda_.28} parent=0 // loop_footer
    %s13 = sadd.s32 1, %s9
  $region7: #{_lambda_.28} parent=0 // loop_footer_branch
    %8 = sbr.rel target = $region3
  $region8: #{_lambda_.28} parent=0 // loop_exit
    _

// kernel: _lambda_.29
$region0: #{_lambda_.29}
  #allocation0 [shape = 'u32[]', space=smem, size = 0x4, offset = 0x4, fixed_abs, tag = 'smem constant byte address 0x4 - core index']
  #allocation1 [shape = 'u32[72,128]{1,0:T(1,128)}', space=vmem, size = 0x9000, scoped, tag = 'internal scratch']
  %s0 = inlined_call_operand.vmem [shape: bf16[24,36,72], index: 0, kind: input, shape index: {}]
  %s1 = inlined_call_operand.vmem [shape: bf16[24,72,32], index: 1, kind: input, shape index: {}]
  %s2 = inlined_call_operand.vmem [shape: f32[24,1,32], index: 2, kind: input, shape index: {}]
  %s3 = inlined_call_operand.vmem [shape: f32[24,32,12], index: 3, kind: input, shape index: {}]
  %s4 = inlined_call_operand.vmem [shape: f32[24,1,12], index: 4, kind: input, shape index: {}]
  %s5 = inlined_call_operand.vmem [shape: f32[24,36,12], index: 5, kind: output, shape index: {}]
  %s6 = sld [smem:[#allocation0]]
  $region53: #{_lambda_.29} parent=0
    _
  %s8 = ssub.s32 1, %s6
  %s9 = scalar_select 0, %s8, %s6
  loop: start=0, step=1, limit=26
  $region2: #{_lambda_.29} parent=0 // loop_pre_header
    _
  $region3: #{_lambda_.29} parent=0 // loop_header
    %s11 = sphi 0, %s15
    %p12 = scmp.ge.s32.totalorder %s11, 26
    %s18 = sphi 0, %s30
    %s19 = sphi 0, %s26
    %s20 = sphi 0, %s18
    %s21 = sphi 0, %s19
    %s22 = sphi 0, %s20
    %s23 = sphi 0, %s21
    %s35 = sphi 0, %s37
    %s38 = sphi 0, %s35
    %s39 = sphi 0, %s38
    %s55 = sphi 0, %s39
    %s61 = sphi 0, %s63
    %s64 = sphi 0, %s61
    %s65 = sphi 0, %s64
    %s81 = sphi 0, %s65
    %s87 = sphi 0, %s89
    %s90 = sphi 0, %s87
    %s91 = sphi 0, %s90
    %s107 = sphi 0, %s91
    %s113 = sphi 0, %s115
    %s116 = sphi 0, %s113
    %s117 = sphi 0, %s116
    %s133 = sphi 0, %s117
    %s139 = sphi 0, %s141
    %s142 = sphi 0, %s139
    %s143 = sphi 0, %s142
    %s159 = sphi 0, %s143
    %s167 = sphi 0, %s169
    %s170 = sphi 0, %s167
    %s171 = sphi 0, %s170
    %s187 = sphi 0, %s171
  $region4: #{_lambda_.29} parent=0 // loop_header_branch
    %14 = sbr.rel (%p12) target = $region8
  $region5: #{_lambda_.29} parent=0 // loop_body
    %s16 = ssub.s32 %s11, 1
    %s17 = ssub.s32 %s11, 2
    %s24 = sadd.s32 1, %s19
    %p25 = scmp.ge.s32.totalorder %s24, 1
    %s26 = scalar_select %p25, 0, %s24
    %s27 = sadd.s32 1, %s18
    %s28 = scalar_select %p25, %s27, %s18
    %p29 = scmp.ge.s32.totalorder %s28, 24
    %s30 = scalar_select %p29, 0, %s28
    %s31 = ssub.s32 %s18, %s30
    %s32 = ssub.s32 %s19, %s26
    %s33 = sor.u32 %s31, %s32
    %p34 = scmp.eq.s32.totalorder %s33, 0
    %s36 = sadd.s32 %s35, 1
    %s37 = scalar_select %p34, %s35, %s36
    %p40 = pneg %p34
    %p41 = scmp.eq.s32.totalorder %s11, 23
    %p42 = por %p40, %p41
    %p43 = scmp.ne.s32.totalorder %s35, %s38
    %p44 = scmp.eq.s32.totalorder %s11, 0
    %p45 = por %p43, %p44
    %p46 = scmp.ne.s32.totalorder %s35, %s38
    %p47 = scmp.eq.s32.totalorder %s16, 23
    %p48 = por %p46, %p47
    %p49 = scmp.ne.s32.totalorder %s38, %s39
    %p50 = scmp.eq.s32.totalorder %s16, 0
    %p51 = por %p49, %p50
    %p52 = scmp.ne.s32.totalorder %s38, %s39
    %p53 = scmp.eq.s32.totalorder %s17, 23
    %p54 = por %p52, %p53
    %p56 = scmp.ne.s32.totalorder %s39, %s55
    %p57 = scmp.eq.s32.totalorder %s17, 0
    %p58 = por %p56, %p57
    %s59 = ssub.s32 %s18, %s30
    %p60 = scmp.eq.s32.totalorder %s59, 0
    %s62 = sadd.s32 %s61, 1
    %s63 = scalar_select %p60, %s61, %s62
    %p66 = pneg %p60
    %p67 = scmp.eq.s32.totalorder %s11, 23
    %p68 = por %p66, %p67
    %p69 = scmp.ne.s32.totalorder %s61, %s64
    %p70 = scmp.eq.s32.totalorder %s11, 0
    %p71 = por %p69, %p70
    %p72 = scmp.ne.s32.totalorder %s61, %s64
    %p73 = scmp.eq.s32.totalorder %s16, 23
    %p74 = por %p72, %p73
    %p75 = scmp.ne.s32.totalorder %s64, %s65
    %p76 = scmp.eq.s32.totalorder %s16, 0
    %p77 = por %p75, %p76
    %p78 = scmp.ne.s32.totalorder %s64, %s65
    %p79 = scmp.eq.s32.totalorder %s17, 23
    %p80 = por %p78, %p79
    %p82 = scmp.ne.s32.totalorder %s65, %s81
    %p83 = scmp.eq.s32.totalorder %s17, 0
    %p84 = por %p82, %p83
    %s85 = ssub.s32 %s18, %s30
    %p86 = scmp.eq.s32.totalorder %s85, 0
    %s88 = sadd.s32 %s87, 1
    %s89 = scalar_select %p86, %s87, %s88
    %p92 = pneg %p86
    %p93 = scmp.eq.s32.totalorder %s11, 23
    %p94 = por %p92, %p93
    %p95 = scmp.ne.s32.totalorder %s87, %s90
    %p96 = scmp.eq.s32.totalorder %s11, 0
    %p97 = por %p95, %p96
    %p98 = scmp.ne.s32.totalorder %s87, %s90
    %p99 = scmp.eq.s32.totalorder %s16, 23
    %p100 = por %p98, %p99
    %p101 = scmp.ne.s32.totalorder %s90, %s91
    %p102 = scmp.eq.s32.totalorder %s16, 0
    %p103 = por %p101, %p102
    %p104 = scmp.ne.s32.totalorder %s90, %s91
    %p105 = scmp.eq.s32.totalorder %s17, 23
    %p106 = por %p104, %p105
    %p108 = scmp.ne.s32.totalorder %s91, %s107
    %p109 = scmp.eq.s32.totalorder %s17, 0
    %p110 = por %p108, %p109
    %s111 = ssub.s32 %s18, %s30
    %p112 = scmp.eq.s32.totalorder %s111, 0
    %s114 = sadd.s32 %s113, 1
    %s115 = scalar_select %p112, %s113, %s114
    %p118 = pneg %p112
    %p119 = scmp.eq.s32.totalorder %s11, 23
    %p120 = por %p118, %p119
    %p121 = scmp.ne.s32.totalorder %s113, %s116
    %p122 = scmp.eq.s32.totalorder %s11, 0
    %p123 = por %p121, %p122
    %p124 = scmp.ne.s32.totalorder %s113, %s116
    %p125 = scmp.eq.s32.totalorder %s16, 23
    %p126 = por %p124, %p125
    %p127 = scmp.ne.s32.totalorder %s116, %s117
    %p128 = scmp.eq.s32.totalorder %s16, 0
    %p129 = por %p127, %p128
    %p130 = scmp.ne.s32.totalorder %s116, %s117
    %p131 = scmp.eq.s32.totalorder %s17, 23
    %p132 = por %p130, %p131
    %p134 = scmp.ne.s32.totalorder %s117, %s133
    %p135 = scmp.eq.s32.totalorder %s17, 0
    %p136 = por %p134, %p135
    %s137 = ssub.s32 %s18, %s30
    %p138 = scmp.eq.s32.totalorder %s137, 0
    %s140 = sadd.s32 %s139, 1
    %s141 = scalar_select %p138, %s139, %s140
    %p144 = pneg %p138
    %p145 = scmp.eq.s32.totalorder %s11, 23
    %p146 = por %p144, %p145
    %p147 = scmp.ne.s32.totalorder %s139, %s142
    %p148 = scmp.eq.s32.totalorder %s11, 0
    %p149 = por %p147, %p148
    %p150 = scmp.ne.s32.totalorder %s139, %s142
    %p151 = scmp.eq.s32.totalorder %s16, 23
    %p152 = por %p150, %p151
    %p153 = scmp.ne.s32.totalorder %s142, %s143
    %p154 = scmp.eq.s32.totalorder %s16, 0
    %p155 = por %p153, %p154
    %p156 = scmp.ne.s32.totalorder %s142, %s143
    %p157 = scmp.eq.s32.totalorder %s17, 23
    %p158 = por %p156, %p157
    %p160 = scmp.ne.s32.totalorder %s143, %s159
    %p161 = scmp.eq.s32.totalorder %s17, 0
    %p162 = por %p160, %p161
    %s163 = ssub.s32 %s18, %s30
    %s164 = ssub.s32 %s19, %s26
    %s165 = sor.u32 %s163, %s164
    %p166 = scmp.eq.s32.totalorder %s165, 0
    %s168 = sadd.s32 %s167, 1
    %s169 = scalar_select %p166, %s167, %s168
    %p172 = pneg %p166
    %p173 = scmp.eq.s32.totalorder %s11, 23
    %p174 = por %p172, %p173
    %p175 = scmp.ne.s32.totalorder %s167, %s170
    %p176 = scmp.eq.s32.totalorder %s11, 0
    %p177 = por %p175, %p176
    %p178 = scmp.ne.s32.totalorder %s167, %s170
    %p179 = scmp.eq.s32.totalorder %s16, 23
    %p180 = por %p178, %p179
    %p181 = scmp.ne.s32.totalorder %s170, %s171
    %p182 = scmp.eq.s32.totalorder %s16, 0
    %p183 = por %p181, %p182
    %p184 = scmp.ne.s32.totalorder %s170, %s171
    %p185 = scmp.eq.s32.totalorder %s17, 23
    %p186 = por %p184, %p185
    %p188 = scmp.ne.s32.totalorder %s171, %s187
    %p189 = scmp.eq.s32.totalorder %s17, 0
    %p190 = por %p188, %p189
    %p191 = scmp.le.s32.totalorder 1, %s11
    %p192 = scmp.lt.s32.totalorder %s11, 25
    %p193 = pnand %p191, %p192
    %p194 = pneg %p193
    // Predicated region
    $region9: #{_lambda_.29} parent=5 // pred_check
      _
    $region10: #{_lambda_.29} parent=5 // pred_check_branch
      %196 = sbr.rel (%p193) target = $region12
    $region11: #{_lambda_.29} parent=5 // pred_region
      %s197 = ssub.s32 %s11, 1
    $region12: #{_lambda_.29} parent=5 // pred_fallthru
      _
    %p198 = scmp.lt.s32.totalorder %s11, 24
    // Predicated region
    $region13: #{_lambda_.29} parent=5 // pred_check
      %p199 = pneg %p198
    $region14: #{_lambda_.29} parent=5 // pred_check_branch
      %201 = sbr.rel (%p199) target = $region16
    $region15: #{_lambda_.29} parent=5 // pred_region
      // Predicated region
      $region17: #{_lambda_.29} parent=15 // pred_check
        %p202 = pneg %p45
      $region18: #{_lambda_.29} parent=15 // pred_check_branch
        %204 = sbr.rel (%p202) target = $region20
      $region19: #{_lambda_.29} parent=15 // pred_region
        %s205 = smul.u32 5, %s19
        %p206 = scmp.lt.s32.totalorder %s18, 23
        %s207 = scalar_select %p206, %s18, 23
        %p208 = scmp.lt.s32.totalorder %s205, 4
        %s209 = scalar_select %p208, %s205, 4
        %s210 = smul.addr %s207, 5
        %s211 = sadd.s32 %s209, %s210
        %s212 = smul.addr %s211, 4
        %s213 = scalar_lea.vmem %s0, %s212
        %s214 = smul.u32 5, %s19
      $region20: #{_lambda_.29} parent=15 // pred_fallthru
        _
      // Predicated region
      $region21: #{_lambda_.29} parent=15 // pred_check
        %p215 = pneg %p71
      $region22: #{_lambda_.29} parent=15 // pred_check_branch
        %217 = sbr.rel (%p215) target = $region24
      $region23: #{_lambda_.29} parent=15 // pred_region
        %p218 = scmp.lt.s32.totalorder %s18, 23
        %s219 = scalar_select %p218, %s18, 23
        %s220 = smul.addr %s219, 9
        %s221 = smul.addr %s220, 4
        %s222 = scalar_lea.vmem %s1, %s221
      $region24: #{_lambda_.29} parent=15 // pred_fallthru
        _
      // Predicated region
      $region25: #{_lambda_.29} parent=15 // pred_check
        %p223 = pneg %p97
      $region26: #{_lambda_.29} parent=15 // pred_check_branch
        %225 = sbr.rel (%p223) target = $region28
      $region27: #{_lambda_.29} parent=15 // pred_region
        %p226 = scmp.lt.s32.totalorder %s18, 23
        %s227 = scalar_select %p226, %s18, 23
        %s228 = scalar_lea.vmem %s2, %s227
      $region28: #{_lambda_.29} parent=15 // pred_fallthru
        _
      // Predicated region
      $region29: #{_lambda_.29} parent=15 // pred_check
        %p229 = pneg %p123
      $region30: #{_lambda_.29} parent=15 // pred_check_branch
        %231 = sbr.rel (%p229) target = $region32
      $region31: #{_lambda_.29} parent=15 // pred_region
        %p232 = scmp.lt.s32.totalorder %s18, 23
        %s233 = scalar_select %p232, %s18, 23
        %s234 = smul.addr %s233, 4
        %s235 = smul.addr %s234, 8
        %s236 = scalar_lea.vmem %s3, %s235
      $region32: #{_lambda_.29} parent=15 // pred_fallthru
        _
      // Predicated region
      $region33: #{_lambda_.29} parent=15 // pred_check
        %p237 = pneg %p149
      $region34: #{_lambda_.29} parent=15 // pred_check_branch
        %239 = sbr.rel (%p237) target = $region36
      $region35: #{_lambda_.29} parent=15 // pred_region
        %p240 = scmp.lt.s32.totalorder %s18, 23
        %s241 = scalar_select %p240, %s18, 23
        %s242 = scalar_lea.vmem %s4, %s241
      $region36: #{_lambda_.29} parent=15 // pred_fallthru
        _
    $region16: #{_lambda_.29} parent=5 // pred_fallthru
      _
    %p243 = scmp.le.s32.totalorder 1, %s11
    %p244 = scmp.lt.s32.totalorder %s11, 25
    %p245 = pnand %p243, %p244
    %p246 = pneg %p245
    // Predicated region
    $region37: #{_lambda_.29} parent=5 // pred_check
      _
    $region38: #{_lambda_.29} parent=5 // pred_check_branch
      %248 = sbr.rel (%p245) target = $region40
    $region39: #{_lambda_.29} parent=5 // pred_region
      %s249 = ssub.s32 %s11, 1
      %s250 = smul.u32 5, %s21
      %p251 = scmp.lt.s32.totalorder %s20, 23
      %s252 = scalar_select %p251, %s20, 23
      %p253 = scmp.lt.s32.totalorder %s250, 4
      %s254 = scalar_select %p253, %s250, 4
      %s255 = smul.addr %s252, 5
      %s256 = sadd.s32 %s254, %s255
      %s257 = smul.addr %s256, 4
      %s258 = scalar_lea.vmem %s0, %s257
      %p259 = pneg %p51
      %p260 = pneg %p48
      %p261 = scmp.lt.s32.totalorder %s20, 23
      %s262 = scalar_select %p261, %s20, 23
      %s263 = smul.addr %s262, 9
      %s264 = smul.addr %s263, 4
      %s265 = scalar_lea.vmem %s1, %s264
      %p266 = pneg %p77
      %p267 = pneg %p74
      %p268 = scmp.lt.s32.totalorder %s20, 23
      %s269 = scalar_select %p268, %s20, 23
      %s270 = scalar_lea.vmem %s2, %s269
      %p271 = pneg %p103
      %p272 = pneg %p100
      %p273 = scmp.lt.s32.totalorder %s20, 23
      %s274 = scalar_select %p273, %s20, 23
      %s275 = smul.addr %s274, 4
      %s276 = smul.addr %s275, 8
      %s277 = scalar_lea.vmem %s3, %s276
      %p278 = pneg %p129
      %p279 = pneg %p126
      %p280 = scmp.lt.s32.totalorder %s20, 23
      %s281 = scalar_select %p280, %s20, 23
      %s282 = scalar_lea.vmem %s4, %s281
      %p283 = pneg %p155
      %p284 = pneg %p152
      %p285 = pneg %p183
      %p286 = pneg %p180
      %s287 = smul.u32 5, %s21
      %p288 = scmp.lt.s32.totalorder %s20, 23
      %s289 = scalar_select %p288, %s20, 23
      %p290 = scmp.lt.s32.totalorder %s287, 4
      %s291 = scalar_select %p290, %s287, 4
      %s292 = smul.addr %s289, 5
      %s293 = sadd.s32 %s291, %s292
      %s294 = smul.addr %s293, 8
      %s295 = scalar_lea.vmem %s5, %s294
      %s296 = smul.u32 5, %s21
      %p297 = scmp.lt.s32.totalorder %s20, 23
      %s298 = scalar_select %p297, %s20, 23
      %p299 = scmp.lt.s32.totalorder %s296, 4
      %s300 = scalar_select %p299, %s296, 4
      %s301 = smul.addr %s298, 5
      %s302 = sadd.s32 %s300, %s301
      %s303 = smul.addr %s302, 4
      %s304 = scalar_lea.vmem %s0, %s303
      %s305 = smul.u32 5, %s21
      %p306 = scmp.lt.s32.totalorder %s20, 23
      %s307 = scalar_select %p306, %s20, 23
      %s308 = smul.addr %s307, 9
      %s309 = smul.addr %s308, 4
      %s310 = scalar_lea.vmem %s1, %s309
      %p311 = scmp.lt.s32.totalorder %s20, 23
      %s312 = scalar_select %p311, %s20, 23
      %s313 = scalar_lea.vmem %s2, %s312
      %p314 = scmp.lt.s32.totalorder %s20, 23
      %s315 = scalar_select %p314, %s20, 23
      %s316 = smul.addr %s315, 4
      %s317 = smul.addr %s316, 8
      %s318 = scalar_lea.vmem %s3, %s317
      %p319 = scmp.lt.s32.totalorder %s20, 23
      %s320 = scalar_select %p319, %s20, 23
      %s321 = scalar_lea.vmem %s4, %s320
      %s322 = smul.u32 5, %s21
      %p323 = scmp.lt.s32.totalorder %s20, 23
      %s324 = scalar_select %p323, %s20, 23
      %p325 = scmp.lt.s32.totalorder %s322, 4
      %s326 = scalar_select %p325, %s322, 4
      %s327 = smul.addr %s324, 5
      %s328 = sadd.s32 %s326, %s327
      %s329 = smul.addr %s328, 8
      %s330 = scalar_lea.vmem %s5, %s329
      %s331 = smul.u32 5, %s21
      %v333 = vld [vmem:[%s304] sm:$0xf]
      %v334 = vld [vmem:[%s304 + $0x4] sm:$0xf]
      %v335 = vld [vmem:[%s304 + $0x8] sm:$0xf]
      %v336 = vld [vmem:[%s304 + $0xc] sm:$0xf]
      %v337 = vld [vmem:[%s304 + $0x10] sm:$0x3]
      %v338 = vld [vmem:[%s310] sm:$0xf]
      %v339 = vld [vmem:[%s310 + $0x4] sm:$0xf]
      %v340 = vld [vmem:[%s310 + $0x8] sm:$0xf]
      %v341 = vld [vmem:[%s310 + $0xc] sm:$0xf]
      %v342 = vld [vmem:[%s310 + $0x10] sm:$0xf]
      %v343 = vld [vmem:[%s310 + $0x14] sm:$0xf]
      %v344 = vld [vmem:[%s310 + $0x18] sm:$0xf]
      %v345 = vld [vmem:[%s310 + $0x1c] sm:$0xf]
      %v346 = vld [vmem:[%s310 + $0x20] sm:$0xf]
      %v347 = vld [vmem:[%s313] sm:$0x1]
      %v349 = vperm.slane %v347, 0
      %v356 = vunpack.c.l.b16 %v333
      %v357 = vunpack.c.l.b16 %v334
      %v358 = vunpack.c.l.b16 %v335
      %v359 = vunpack.c.l.b16 %v336
      %v360 = vunpack.c.l.b16 %v337
      %v361 = vpack.c.b16 %v357, %v356
      %v362 = vpack.c.b16 %v359, %v358
      %v363 = vpack.c.b16 %v360, %v360
      %v373 = vunpack.c.l.b16 %v338
      %v374 = vunpack.c.l.b16 %v339
      %v375 = vunpack.c.l.b16 %v340
      %v376 = vunpack.c.l.b16 %v341
      %v377 = vunpack.c.l.b16 %v342
      %v378 = vunpack.c.l.b16 %v343
      %v379 = vunpack.c.l.b16 %v344
      %v380 = vunpack.c.l.b16 %v345
      %v381 = vunpack.c.l.b16 %v346
      %v382 = vpack.c.b16 %v374, %v373
      %v383 = vpack.c.b16 %v376, %v375
      %v384 = vpack.c.b16 %v378, %v377
      %v385 = vpack.c.b16 %v380, %v379
      %v386 = vpack.c.b16 %v381, %v381
      %vm391 = vcmask 588800
      %v393 = vsel %vm391, %v361, 0
      %v396 = vsel %vm391, %v362, 0
      %v399 = vsel %vm391, %v363, 0
      %vm401 = vcmask 1043456
      %v403 = vsel %vm401, %v386, 0
      %405 = vmatpush.bf16.msra.mxu0 0
      %406 = vmatpush.bf16.msra.mxu0 0
      %407 = vmatpush.bf16.msra.mxu0 0
      %408 = vmatpush.bf16.msra.mxu0 %v403
      %409 = vmatpush.bf16.msra.mxu0 %v385
      %410 = vmatpush.bf16.msra.mxu0 %v384
      %411 = vmatpush.bf16.msra.mxu0 %v383
      %412 = vmatpush.bf16.msra.mxu0 %v382
      %413 = vmatmul.bf16.gmra.mxu0 %v393
      %v414 = vpop.f32.mrf.mxu0
      %v415 = vadd.f32 %v349, %v414
      %v416 = vpop.f32.mrf.mxu0
      %v417 = vadd.f32 %v349, %v416
      %418 = vmatmul.bf16.gmra.mxu0 %v396
      %v419 = vpop.f32.mrf.mxu0
      %v420 = vadd.f32 %v349, %v419
      %v421 = vpop.f32.mrf.mxu0
      %v422 = vadd.f32 %v349, %v421
      %423 = vmatmul.bf16.gmra.mxu0 %v399
      %v424 = vpop.f32.mrf.mxu0
      %v425 = vadd.f32 %v349, %v424
      %v426 = vpop.f32.mrf.mxu0
      %427 = vdwg.mxu0
      %vm428 = vcmp.gt.f32.partialorder %v415, 0.0
      %vm429 = vcmp.gt.f32.partialorder %v417, 0.0
      %vm430 = vcmp.gt.f32.partialorder %v420, 0.0
      %vm431 = vcmp.gt.f32.partialorder %v422, 0.0
      %vm432 = vcmp.gt.f32.partialorder %v425, 0.0
      %v433 = vmul.f32 %v415, 0.01
      %v434 = vmul.f32 %v417, 0.01
      %v435 = vmul.f32 %v420, 0.01
      %v436 = vmul.f32 %v422, 0.01
      %v437 = vmul.f32 %v425, 0.01
      %v438 = vsel %vm428, %v415, %v433
      %v439 = vsel %vm429, %v417, %v434
      %v440 = vsel %vm430, %v420, %v435
      %v441 = vsel %vm431, %v422, %v436
      %v442 = vsel %vm432, %v425, %v437
      %v443 = vld [vmem:[%s318] sm:$0xff]
      %v444 = vld [vmem:[%s318 + $0x8] sm:$0xff]
      %v445 = vld [vmem:[%s318 + $0x10] sm:$0xff]
      %v446 = vld [vmem:[%s318 + $0x18] sm:$0xff]
      %v447 = vld [vmem:[%s321] sm:$0x1]
      %v449 = vperm.slane %v447, 0
      %vm451 = vcmask 261120
      %v453 = vsel %vm451, %v438, 0
      %v456 = vsel %vm451, %v439, 0
      %v459 = vsel %vm451, %v440, 0
      %v462 = vsel %vm451, %v441, 0
      %v465 = vsel %vm451, %v442, 0
      %467 = vmatpush.msra.mxu0 0.0
      %468 = vmatpush.msra.mxu0 0.0
      %469 = vmatpush.msra.mxu0 0.0
      %470 = vmatpush.msra.mxu0 0.0
      %471 = vmatpush.msra.mxu0 0.0
      %472 = vmatpush.msra.mxu0 0.0
      %473 = vmatpush.msra.mxu0 0.0
      %474 = vmatpush.msra.mxu0 0.0
      %475 = vmatpush.msra.mxu0 0.0
      %476 = vmatpush.msra.mxu0 0.0
      %477 = vmatpush.msra.mxu0 0.0
      %478 = vmatpush.msra.mxu0 0.0
      %479 = vmatpush.msra.mxu0 %v446
      %480 = vmatpush.msra.mxu0 %v445
      %481 = vmatpush.msra.mxu0 %v444
      %482 = vmatpush.msra.mxu0 %v443
      %483 = vmatmul.f32.gmra.mxu0 %v453
      %v484 = vpop.f32.mrf.mxu0
      %v485 = vadd.f32 %v449, %v484
      %486 = vmatmul.f32.gmra.mxu0 %v456
      %v487 = vpop.f32.mrf.mxu0
      %v488 = vadd.f32 %v449, %v487
      %489 = vmatmul.f32.gmra.mxu0 %v459
      %v490 = vpop.f32.mrf.mxu0
      %v491 = vadd.f32 %v449, %v490
      %492 = vmatmul.f32.gmra.mxu0 %v462
      %v493 = vpop.f32.mrf.mxu0
      %v494 = vadd.f32 %v449, %v493
      %495 = vmatmul.f32.gmra.mxu0 %v465
      %v496 = vpop.f32.mrf.mxu0
      %v497 = vadd.f32 %v449, %v496
      %498 = vdwg.mxu0
      %v499 = vtanh.pop %v485
      %v500 = vtanh.pop %v488
      %v501 = vtanh.pop %v491
      %v502 = vtanh.pop %v494
      %v503 = vtanh.pop %v497
      %vm504 = vcmask 97280
      %505 = vst.msk [vmem:[%s330] sm:$0xff] %vm504, %v499
      %506 = vst.msk [vmem:[%s330 + $0x8] sm:$0xff] %vm504, %v500
      %507 = vst.msk [vmem:[%s330 + $0x10] sm:$0xff] %vm504, %v501
      %508 = vst.msk [vmem:[%s330 + $0x18] sm:$0xff] %vm504, %v502
      %vm509 = vcmask 93184
      %510 = vst.msk [vmem:[%s330 + $0x20] sm:$0xf] %vm509, %v503
      %s511 = smul.u32 5, %s21
      %p512 = scmp.lt.s32.totalorder %s20, 23
      %s513 = scalar_select %p512, %s20, 23
      %p514 = scmp.lt.s32.totalorder %s511, 4
      %s515 = scalar_select %p514, %s511, 4
      %s516 = smul.addr %s513, 5
      %s517 = sadd.s32 %s515, %s516
      %s518 = smul.addr %s517, 8
      %s519 = scalar_lea.vmem %s5, %s518
      // Predicated region
      $region41: #{_lambda_.29} parent=39 // pred_check
        %p520 = pneg %p180
      $region42: #{_lambda_.29} parent=39 // pred_check_branch
        %522 = sbr.rel (%p520) target = $region44
      $region43: #{_lambda_.29} parent=39 // pred_region
        %s523 = smul.u32 5, %s21
      $region44: #{_lambda_.29} parent=39 // pred_fallthru
        _
    $region40: #{_lambda_.29} parent=5 // pred_fallthru
      _
    %p524 = scmp.le.s32.totalorder 2, %s11
    // Predicated region
    $region45: #{_lambda_.29} parent=5 // pred_check
      %p525 = pneg %p524
    $region46: #{_lambda_.29} parent=5 // pred_check_branch
      %527 = sbr.rel (%p525) target = $region48
    $region47: #{_lambda_.29} parent=5 // pred_region
      %s528 = ssub.s32 %s11, 2
      // Predicated region
      $region49: #{_lambda_.29} parent=47 // pred_check
        %p529 = pneg %p186
      $region50: #{_lambda_.29} parent=47 // pred_check_branch
        %531 = sbr.rel (%p529) target = $region52
      $region51: #{_lambda_.29} parent=47 // pred_region
        %s532 = smul.u32 5, %s23
        %p533 = scmp.lt.s32.totalorder %s22, 23
        %s534 = scalar_select %p533, %s22, 23
        %p535 = scmp.lt.s32.totalorder %s532, 4
        %s536 = scalar_select %p535, %s532, 4
        %s537 = smul.addr %s534, 5
        %s538 = sadd.s32 %s536, %s537
        %s539 = smul.addr %s538, 8
        %s540 = scalar_lea.vmem %s5, %s539
      $region52: #{_lambda_.29} parent=47 // pred_fallthru
        _
    $region48: #{_lambda_.29} parent=5 // pred_fallthru
      _
  $region6: #{_lambda_.29} parent=0 // loop_footer
    %s15 = sadd.s32 1, %s11
  $region7: #{_lambda_.29} parent=0 // loop_footer_branch
    %10 = sbr.rel target = $region3
  $region8: #{_lambda_.29} parent=0 // loop_exit
    _

</llo_original>
